<compile_context>
chip_gen: v7x
topology: tpu7x:2x2x1
jax: 0.10.0
libtpu: 0.0.40
codegen_flags: <defaults>
</compile_context>

<pallas_src>
import jax
import jax.numpy as jnp
from jax.experimental import pallas as pl
from jax.experimental.pallas import tpu as pltpu

# ---- module hyper-parameters (PyTorch defaults of TopologicalFeatureExtraction) ----
INPUT_DIM = 32
HIDDEN_DIM = 64
OUTPUT_DIM = 32
MAX_EDGE_LENGTH = 2.0
NUM_FILTRATIONS = 20
MAX_DIMENSION = 1
NUM_DIMS = MAX_DIMENSION + 1      # 2 homology dimensions
RES = 10                          # persistence image resolution (10, 10)
SIGMA = 0.2
MAX_PTS = 20                      # padded points per diagram dimension
TOP_PTS = 10                      # PersistenceImageLayer keeps top-10 points
HW = RES * RES

_PARALLEL = pltpu.CompilerParams(dimension_semantics=("parallel",))


def _full_spec(shape):
    nd = len(shape)
    return pl.BlockSpec(tuple(shape), lambda *_: (0,) * nd)


def _iota_div(k, d, upper):
    """k // d for 0 <= k < upper via compares (avoids vector integer division)."""
    acc = jnp.zeros_like(k)
    for r in range(1, (upper + d - 1) // d):
        acc = acc + (k >= r * d).astype(jnp.int32)
    return acc


# ------------------------------ single fused Pallas kernel ------------------------------

def _fused_kernel(x_ref, filt_ref, w9a_ref, cba_ref, w9b_ref, cbb_ref,
                  bw1_ref, bb1_ref, bw2_ref, bb2_ref,
                  fw1_ref, fb1_ref, fw2_ref, fb2_ref,
                  wob_ref, woi_ref, bo_ref, g_ref, beta_ref,
                  out_ref, diag_ref, betti_ref, pimg_ref):
    f32 = jnp.float32
    x = x_ref[0]                                                     # (N, F)
    N = x.shape[0]

    # ---------------- pairwise Euclidean distances (proxy Rips filtration) --------
    # TODO(synk): GUDHI RipsComplex persistent homology / persistent Betti numbers
    # have no Pallas (or JAX) equivalent; diagrams and Betti curves below are a
    # deterministic distance-based proxy (same as the previous, validated version).
    gram = jax.lax.dot_general(x, x, (((1,), (1,)), ((), ())),
                               preferred_element_type=f32)           # (N, N)
    rn = jax.lax.broadcasted_iota(jnp.int32, (N, N), 0)
    cn = jax.lax.broadcasted_iota(jnp.int32, (N, N), 1)
    eye = (rn == cn).astype(f32)
    diag_g = gram * eye
    sq_col = jnp.sum(diag_g, axis=1, keepdims=True)                  # (N, 1)
    sq_row = jnp.sum(diag_g, axis=0, keepdims=True)                  # (1, N)  (no transpose)
    dist = jnp.sqrt(jnp.maximum(sq_col + sq_row - 2.0 * gram, 0.0))  # (N, N), symmetric

    off = dist + eye * 1e9
    nn_col = jnp.min(off, axis=1, keepdims=True)                     # (N, 1)
    nn_row = jnp.min(off, axis=0, keepdims=True)                     # (1, N)  (symmetry)
    md_col = jnp.sum(dist, axis=1, keepdims=True) / (N - 1)
    md_row = jnp.sum(dist, axis=0, keepdims=True) / (N - 1)
    d1d_col = jnp.maximum(md_col, nn_col)
    d1d_row = jnp.maximum(md_row, nn_row)
    p1_col = d1d_col - nn_col
    p1_row = d1d_row - nn_row

    # ---------------- Betti curves (proxy) ----------------------------------------
    filt = filt_ref[...]                                             # (1, 20)
    b0 = jnp.maximum(jnp.sum((nn_col > filt).astype(f32), axis=0, keepdims=True), 1.0)
    b1 = jnp.sum(((nn_col <= filt) & (filt < d1d_col)).astype(f32),
                 axis=0, keepdims=True)
    betti_ref[0, 0:1, :] = b0
    betti_ref[0, 1:2, :] = b1

    # ---------------- diagrams: stable sort by descending persistence (rank matrix)
    idx_col = jax.lax.broadcasted_iota(jnp.int32, (N, 1), 0)
    idx_row = jax.lax.broadcasted_iota(jnp.int32, (1, N), 1)
    tgt_rank = jax.lax.broadcasted_iota(jnp.int32, (1, MAX_PTS), 1)  # (1, 20)

    def rank_desc(p_col, p_row):
        before = (p_row > p_col) | ((p_row == p_col) & (idx_row < idx_col))
        return jnp.sum(before.astype(jnp.int32), axis=1, keepdims=True)  # (N, 1)

    def sorted_row(v_col, rk_col):
        sel = (rk_col == tgt_rank).astype(f32)                       # (N, 20)
        return jnp.sum(v_col * sel, axis=0, keepdims=True)           # (1, 20), zero-padded

    rk0 = rank_desc(nn_col, nn_row)
    rk1 = rank_desc(p1_col, p1_row)
    # raw layout (dim, {birth, death}, point); wrapper swaps to (..., point, 2)
    diag_ref[0, 0, 0:1, :] = jnp.zeros((1, MAX_PTS), f32)
    diag_ref[0, 0, 1:2, :] = sorted_row(nn_col, rk0)
    diag_ref[0, 1, 0:1, :] = sorted_row(nn_col, rk1)
    diag_ref[0, 1, 1:2, :] = sorted_row(d1d_col, rk1)

    # ---------------- persistence images (top-10 points, Gaussian splat, lane-dense)
    k_row = jax.lax.broadcasted_iota(jnp.int32, (1, HW), 1)          # (1, 100)
    k_col = jax.lax.broadcasted_iota(jnp.int32, (HW, 1), 0)          # (100, 1)
    i_row = _iota_div(k_row, RES, HW)
    j_row = k_row - RES * i_row
    i_col = _iota_div(k_col, RES, HW)
    j_col = k_col - RES * i_col
    xg_row = i_row.astype(f32) / (RES - 1)                           # grid x at flat index
    yg_row = j_row.astype(f32) / (RES - 1)                           # grid y at flat index
    inv = 1.0 / (2.0 * SIGMA * SIGMA)

    def splat(b_col, p_col, rk_col):
        # top-10-by-persistence selection folded into the weight (no top_k / gather)
        w_col = jnp.where((rk_col < TOP_PTS) & (p_col > 0.0), p_col, 0.0)       # (N, 1)
        gauss = jnp.exp(-((xg_row - b_col) ** 2 + (yg_row - p_col) ** 2) * inv)  # (N, 100)
        return jnp.sum(gauss * w_col, axis=0, keepdims=True)         # (1, 100)

    pimg_ref[0, 0:1, :] = splat(jnp.zeros_like(nn_col), nn_col, rk0)
    pimg_ref[0, 1:2, :] = splat(nn_col, p1_col, rk1)

    # ---------------- image branch: two 3x3 convs as shift-matrix MXU matmuls -----
    pim = pimg_ref[0]                                                # (2, 100)

    def shift_mat(oy, ox):
        # T[src, dst] = 1 iff src pixel is dst pixel shifted by (oy, ox); OOB -> 0
        return ((i_col == i_row + oy) & (j_col == j_row + ox)).astype(f32)  # (100, 100)

    h1 = jnp.zeros((8, HW), f32)
    for t in range(9):                                               # Conv2d(2->8, 3x3, pad=1)
        oy, ox = t // 3 - 1, t % 3 - 1
        cols = jnp.dot(pim, shift_mat(oy, ox), preferred_element_type=f32)   # (2, 100)
        h1 = h1 + jnp.dot(w9a_ref[t], cols, preferred_element_type=f32)      # (8, 100)
    h1 = jnp.maximum(h1 + cba_ref[...], 0.0)

    h2 = jnp.zeros((16, HW), f32)
    for t in range(9):                                               # Conv2d(8->16, 3x3, pad=1)
        oy, ox = t // 3 - 1, t % 3 - 1
        cols = jnp.dot(h1, shift_mat(oy, ox), preferred_element_type=f32)    # (8, 100)
        h2 = h2 + jnp.dot(w9b_ref[t], cols, preferred_element_type=f32)      # (16, 100)
    h2 = jnp.maximum(h2 + cbb_ref[...], 0.0)

    # -------- AdaptiveAvgPool2d((2,2)) + Flatten folded into one matmul + reduce ---
    m_row = jax.lax.broadcasted_iota(jnp.int32, (1, 16 * 4), 1)      # (1, 64)
    m_div4 = _iota_div(m_row, 4, 16 * 4)
    m_mod4 = m_row - 4 * m_div4
    q_col = (2 * (i_col >= RES // 2).astype(jnp.int32)
             + (j_col >= RES // 2).astype(jnp.int32))                # (100, 1) quadrant id
    pool = (q_col == m_mod4).astype(f32) / float((RES // 2) ** 2)    # (100, 64)
    c_col = jax.lax.broadcasted_iota(jnp.int32, (16, 1), 0)
    cmask = (c_col == m_div4).astype(f32)                            # (16, 64)
    flat = jnp.sum(jnp.dot(h2, pool, preferred_element_type=f32) * cmask,
                   axis=0, keepdims=True)                            # (1, 64) = Flatten(pooled)

    # ---------------- MLP heads + output Linear + LayerNorm ------------------------
    ih = jnp.maximum(jnp.dot(flat, fw1_ref[...], preferred_element_type=f32)
                     + fb1_ref[...], 0.0)
    imf = jnp.dot(ih, fw2_ref[...], preferred_element_type=f32) + fb2_ref[...]

    bh = jnp.maximum(jnp.dot(b0, bw1_ref[...], preferred_element_type=f32)
                     + bb1_ref[...], 0.0)                            # dim-0 Betti curve
    bf = jnp.dot(bh, bw2_ref[...], preferred_element_type=f32) + bb2_ref[...]

    z = (jnp.dot(bf, wob_ref[...], preferred_element_type=f32)
         + jnp.dot(imf, woi_ref[...], preferred_element_type=f32) + bo_ref[...])
    mu = jnp.mean(z, axis=-1, keepdims=True)
    var = jnp.mean((z - mu) ** 2, axis=-1, keepdims=True)
    out_ref[0] = (z - mu) * jax.lax.rsqrt(var + 1e-5) * g_ref[...] + beta_ref[...]


# ------------------------------ wrapper ------------------------------

def topological_feature_extraction(x, params):
    B, N, F = x.shape
    # tiny parameter re-layouts only (no activation glue between kernels)
    w9_1 = params["conv1_w"].transpose(2, 3, 0, 1).reshape(9, 8, NUM_DIMS)
    w9_2 = params["conv2_w"].transpose(2, 3, 0, 1).reshape(9, 16, 8)
    filt = params["filtration_values"].reshape(1, NUM_FILTRATIONS)
    ins = [x, filt,
           w9_1, params["conv1_b"], w9_2, params["conv2_b"],
           params["betti1_w"], params["betti1_b"], params["betti2_w"], params["betti2_b"],
           params["fc1_w"], params["fc1_b"], params["fc2_w"], params["fc2_b"],
           params["out_w"][:OUTPUT_DIM], params["out_w"][OUTPUT_DIM:], params["out_b"],
           params["ln_g"], params["ln_b"]]
    in_specs = ([pl.BlockSpec((1, N, F), lambda b: (b, 0, 0))]
                + [_full_spec(a.shape) for a in ins[1:]])            # weights stay resident
    out_shape = (
        jax.ShapeDtypeStruct((B, 1, OUTPUT_DIM), jnp.float32),            # features
        jax.ShapeDtypeStruct((B, NUM_DIMS, 2, MAX_PTS), jnp.float32),     # diagrams (raw)
        jax.ShapeDtypeStruct((B, NUM_DIMS, NUM_FILTRATIONS), jnp.float32),# Betti curves
        jax.ShapeDtypeStruct((B, NUM_DIMS, HW), jnp.float32),             # images (lane-dense)
    )
    out_specs = (
        pl.BlockSpec((1, 1, OUTPUT_DIM), lambda b: (b, 0, 0)),
        pl.BlockSpec((1, NUM_DIMS, 2, MAX_PTS), lambda b: (b, 0, 0, 0)),
        pl.BlockSpec((1, NUM_DIMS, NUM_FILTRATIONS), lambda b: (b, 0, 0)),
        pl.BlockSpec((1, NUM_DIMS, HW), lambda b: (b, 0, 0)),
    )
    feats, diag_raw, betti, pimg_flat = pl.pallas_call(
        _fused_kernel,
        out_shape=out_shape,
        grid=(B,),
        in_specs=in_specs,
        out_specs=out_specs,
        compiler_params=_PARALLEL,
    )(*ins)
    out = feats[:, 0, :]                                             # (B, 32)
    aux = {"persistence_diagrams": jnp.swapaxes(diag_raw, 2, 3),     # (B, 2, 20, 2)
           "betti_curves": betti,                                    # (B, 2, 20)
           "persistence_images": pimg_flat.reshape(B, NUM_DIMS, RES, RES)}
    return out, aux


# ------------------------------ parameters ------------------------------

def init_params(key):
    ks = jax.random.split(key, 7)

    def w(k, shape, fan_in):
        return jax.random.normal(k, shape, jnp.float32) / jnp.sqrt(float(fan_in))

    return {
        # betti_processor: Linear(20,32) -> ReLU -> Linear(32,32)   (weights stored (in,out))
        "betti1_w": w(ks[0], (NUM_FILTRATIONS, HIDDEN_DIM // 2), NUM_FILTRATIONS),
        "betti1_b": jnp.zeros((1, HIDDEN_DIM // 2), jnp.float32),
        "betti2_w": w(ks[1], (HIDDEN_DIM // 2, OUTPUT_DIM), HIDDEN_DIM // 2),
        "betti2_b": jnp.zeros((1, OUTPUT_DIM), jnp.float32),
        # image_processor convs (PyTorch OIHW) + tail MLP
        "conv1_w": w(ks[2], (8, NUM_DIMS, 3, 3), NUM_DIMS * 9),
        "conv1_b": jnp.zeros((8, 1), jnp.float32),
        "conv2_w": w(ks[3], (16, 8, 3, 3), 8 * 9),
        "conv2_b": jnp.zeros((16, 1), jnp.float32),
        "fc1_w": w(ks[4], (16 * 2 * 2, HIDDEN_DIM // 2), 16 * 2 * 2),
        "fc1_b": jnp.zeros((1, HIDDEN_DIM // 2), jnp.float32),
        "fc2_w": w(ks[5], (HIDDEN_DIM // 2, OUTPUT_DIM), HIDDEN_DIM // 2),
        "fc2_b": jnp.zeros((1, OUTPUT_DIM), jnp.float32),
        # output_layer: Linear(64,32) + LayerNorm(32)
        "out_w": w(ks[6], (OUTPUT_DIM * 2, OUTPUT_DIM), OUTPUT_DIM * 2),
        "out_b": jnp.zeros((1, OUTPUT_DIM), jnp.float32),
        "ln_g": jnp.ones((1, OUTPUT_DIM), jnp.float32),
        "ln_b": jnp.zeros((1, OUTPUT_DIM), jnp.float32),
        # PersistentHomologyLayer.filtration_values parameter
        "filtration_values": jnp.linspace(0.0, MAX_EDGE_LENGTH, NUM_FILTRATIONS,
                                          dtype=jnp.float32),
    }


if __name__ == "__main__":
    params = init_params(jax.random.PRNGKey(42))
    # manifold points: [batch=2, num_points=16, feature_dim=32]
    x = 0.15 * jax.random.normal(jax.random.PRNGKey(0), (2, 16, INPUT_DIM), jnp.float32)
    out, aux = jax.jit(topological_feature_extraction)(x, params)
    jax.block_until_ready((out, aux))
    assert out.shape == (2, OUTPUT_DIM)
    assert aux["persistence_images"].shape == (2, NUM_DIMS, RES, RES)
    assert aux["persistence_diagrams"].shape == (2, NUM_DIMS, MAX_PTS, 2)
    assert aux["betti_curves"].shape == (2, NUM_DIMS, NUM_FILTRATIONS)
    print("KERNEL_OK")
</pallas_src>

<mosaic_0001>
module attributes {stable_mosaic.version = 11 : i64} {
  func.func @_fused_kernel(%arg0: i32, %arg1: memref<1x16x32xf32, #tpu.memory_space<vmem>>, %arg2: memref<1x20xf32, #tpu.memory_space<vmem>>, %arg3: memref<9x8x2xf32, #tpu.memory_space<vmem>>, %arg4: memref<8x1xf32, #tpu.memory_space<vmem>>, %arg5: memref<9x16x8xf32, #tpu.memory_space<vmem>>, %arg6: memref<16x1xf32, #tpu.memory_space<vmem>>, %arg7: memref<20x32xf32, #tpu.memory_space<vmem>>, %arg8: memref<1x32xf32, #tpu.memory_space<vmem>>, %arg9: memref<32x32xf32, #tpu.memory_space<vmem>>, %arg10: memref<1x32xf32, #tpu.memory_space<vmem>>, %arg11: memref<64x32xf32, #tpu.memory_space<vmem>>, %arg12: memref<1x32xf32, #tpu.memory_space<vmem>>, %arg13: memref<32x32xf32, #tpu.memory_space<vmem>>, %arg14: memref<1x32xf32, #tpu.memory_space<vmem>>, %arg15: memref<32x32xf32, #tpu.memory_space<vmem>>, %arg16: memref<32x32xf32, #tpu.memory_space<vmem>>, %arg17: memref<1x32xf32, #tpu.memory_space<vmem>>, %arg18: memref<1x32xf32, #tpu.memory_space<vmem>>, %arg19: memref<1x32xf32, #tpu.memory_space<vmem>>, %arg20: memref<1x1x32xf32, #tpu.memory_space<vmem>>, %arg21: memref<1x2x2x20xf32, #tpu.memory_space<vmem>>, %arg22: memref<1x2x20xf32, #tpu.memory_space<vmem>>, %arg23: memref<1x2x100xf32, #tpu.memory_space<vmem>>) attributes {dimension_semantics = [#tpu.dimension_semantics<parallel>], iteration_bounds = array<i64: 2>, scalar_prefetch = 0 : i64, scratch_operands = 0 : i64, tpu.core_type = #tpu.core_type<tc>, window_params = [{transform_indices = @transform_0, window_bounds = array<i64: 1, 16, 32>}, {pipeline_mode = #tpu.pipeline_mode<synchronous>, transform_indices = @transform_1, window_bounds = array<i64: 1, 20>}, {pipeline_mode = #tpu.pipeline_mode<synchronous>, transform_indices = @transform_2, window_bounds = array<i64: 9, 8, 2>}, {pipeline_mode = #tpu.pipeline_mode<synchronous>, transform_indices = @transform_3, window_bounds = array<i64: 8, 1>}, {pipeline_mode = #tpu.pipeline_mode<synchronous>, transform_indices = @transform_4, window_bounds = array<i64: 9, 16, 8>}, {pipeline_mode = #tpu.pipeline_mode<synchronous>, transform_indices = @transform_5, window_bounds = array<i64: 16, 1>}, {pipeline_mode = #tpu.pipeline_mode<synchronous>, transform_indices = @transform_6, window_bounds = array<i64: 20, 32>}, {pipeline_mode = #tpu.pipeline_mode<synchronous>, transform_indices = @transform_7, window_bounds = array<i64: 1, 32>}, {pipeline_mode = #tpu.pipeline_mode<synchronous>, transform_indices = @transform_8, window_bounds = array<i64: 32, 32>}, {pipeline_mode = #tpu.pipeline_mode<synchronous>, transform_indices = @transform_9, window_bounds = array<i64: 1, 32>}, {pipeline_mode = #tpu.pipeline_mode<synchronous>, transform_indices = @transform_10, window_bounds = array<i64: 64, 32>}, {pipeline_mode = #tpu.pipeline_mode<synchronous>, transform_indices = @transform_11, window_bounds = array<i64: 1, 32>}, {pipeline_mode = #tpu.pipeline_mode<synchronous>, transform_indices = @transform_12, window_bounds = array<i64: 32, 32>}, {pipeline_mode = #tpu.pipeline_mode<synchronous>, transform_indices = @transform_13, window_bounds = array<i64: 1, 32>}, {pipeline_mode = #tpu.pipeline_mode<synchronous>, transform_indices = @transform_14, window_bounds = array<i64: 32, 32>}, {pipeline_mode = #tpu.pipeline_mode<synchronous>, transform_indices = @transform_15, window_bounds = array<i64: 32, 32>}, {pipeline_mode = #tpu.pipeline_mode<synchronous>, transform_indices = @transform_16, window_bounds = array<i64: 1, 32>}, {pipeline_mode = #tpu.pipeline_mode<synchronous>, transform_indices = @transform_17, window_bounds = array<i64: 1, 32>}, {pipeline_mode = #tpu.pipeline_mode<synchronous>, transform_indices = @transform_18, window_bounds = array<i64: 1, 32>}, {transform_indices = @transform_19, window_bounds = array<i64: 1, 1, 32>}, {transform_indices = @transform_20, window_bounds = array<i64: 1, 2, 2, 20>}, {transform_indices = @transform_21, window_bounds = array<i64: 1, 2, 20>}, {transform_indices = @transform_22, window_bounds = array<i64: 1, 2, 100>}]} {
    %c0 = arith.constant 0 : index
    %c0_0 = arith.constant 0 : index
    %c0_1 = arith.constant 0 : index
    %0 = vector.load %arg1[%c0, %c0_0, %c0_1] : memref<1x16x32xf32, #tpu.memory_space<vmem>>, vector<1x16x32xf32>
    %1 = vector.shape_cast %0 : vector<1x16x32xf32> to vector<16x32xf32>
    %cst = arith.constant dense<0.000000e+00> : vector<16x16xf32>
    %2 = tpu.matmul %1, %1, %cst {dimension_numbers = #tpu.dot_dimension_numbers<[1], [1], [0], [0], [0, 0, 1, 0], [], []>} : vector<16x32xf32>, vector<16x32xf32>, vector<16x16xf32> -> vector<16x16xf32>
    %3 = tpu.iota {dimensions = array<i32: 0>} : vector<16x16xi32>
    %4 = tpu.iota {dimensions = array<i32: 1>} : vector<16x16xi32>
    %5 = arith.cmpi eq, %3, %4 : vector<16x16xi32>
    %6 = arith.extui %5 : vector<16x16xi1> to vector<16x16xi32>
    %7 = arith.sitofp %6 : vector<16x16xi32> to vector<16x16xf32>
    %8 = arith.mulf %2, %7 : vector<16x16xf32>
    %cst_2 = arith.constant dense<0.000000e+00> : vector<16xf32>
    %9 = vector.multi_reduction <add>, %8, %cst_2 [1] : vector<16x16xf32> to vector<16xf32>
    %10 = vector.shape_cast %9 : vector<16xf32> to vector<16x1xf32>
    %cst_3 = arith.constant dense<0.000000e+00> : vector<16xf32>
    %11 = vector.multi_reduction <add>, %8, %cst_3 [0] : vector<16x16xf32> to vector<16xf32>
    %12 = vector.shape_cast %11 : vector<16xf32> to vector<1x16xf32>
    %13 = vector.broadcast %10 : vector<16x1xf32> to vector<16x16xf32>
    %14 = vector.broadcast %12 : vector<1x16xf32> to vector<16x16xf32>
    %15 = arith.addf %13, %14 : vector<16x16xf32>
    %cst_4 = arith.constant 2.000000e+00 : f32
    %16 = vector.broadcast %cst_4 : f32 to vector<16x16xf32>
    %17 = arith.mulf %16, %2 : vector<16x16xf32>
    %18 = arith.subf %15, %17 : vector<16x16xf32>
    %cst_5 = arith.constant 0.000000e+00 : f32
    %19 = vector.broadcast %cst_5 : f32 to vector<16x16xf32>
    %20 = arith.maximumf %18, %19 : vector<16x16xf32>
    %21 = math.sqrt %20 : vector<16x16xf32>
    %cst_6 = arith.constant 1.000000e+09 : f32
    %22 = vector.broadcast %cst_6 : f32 to vector<16x16xf32>
    %23 = arith.mulf %7, %22 : vector<16x16xf32>
    %24 = arith.addf %21, %23 : vector<16x16xf32>
    %cst_7 = arith.constant dense<0x7F800000> : vector<16xf32>
    %25 = vector.multi_reduction <minimumf>, %24, %cst_7 [1] : vector<16x16xf32> to vector<16xf32>
    %26 = vector.shape_cast %25 : vector<16xf32> to vector<16x1xf32>
    %cst_8 = arith.constant dense<0x7F800000> : vector<16xf32>
    %27 = vector.multi_reduction <minimumf>, %24, %cst_8 [0] : vector<16x16xf32> to vector<16xf32>
    %28 = vector.shape_cast %27 : vector<16xf32> to vector<1x16xf32>
    %cst_9 = arith.constant dense<0.000000e+00> : vector<16xf32>
    %29 = vector.multi_reduction <add>, %21, %cst_9 [1] : vector<16x16xf32> to vector<16xf32>
    %30 = vector.shape_cast %29 : vector<16xf32> to vector<16x1xf32>
    %cst_10 = arith.constant 1.500000e+01 : f32
    %31 = vector.broadcast %cst_10 : f32 to vector<16x1xf32>
    %32 = arith.divf %30, %31 : vector<16x1xf32>
    %cst_11 = arith.constant dense<0.000000e+00> : vector<16xf32>
    %33 = vector.multi_reduction <add>, %21, %cst_11 [0] : vector<16x16xf32> to vector<16xf32>
    %34 = vector.shape_cast %33 : vector<16xf32> to vector<1x16xf32>
    %cst_12 = arith.constant 1.500000e+01 : f32
    %35 = vector.broadcast %cst_12 : f32 to vector<1x16xf32>
    %36 = arith.divf %34, %35 : vector<1x16xf32>
    %37 = arith.maximumf %32, %26 : vector<16x1xf32>
    %38 = arith.maximumf %36, %28 : vector<1x16xf32>
    %39 = arith.subf %37, %26 : vector<16x1xf32>
    %40 = arith.subf %38, %28 : vector<1x16xf32>
    %c0_13 = arith.constant 0 : index
    %c0_14 = arith.constant 0 : index
    %41 = vector.load %arg2[%c0_13, %c0_14] : memref<1x20xf32, #tpu.memory_space<vmem>>, vector<1x20xf32>
    %42 = vector.broadcast %26 : vector<16x1xf32> to vector<16x20xf32>
    %43 = vector.broadcast %41 : vector<1x20xf32> to vector<16x20xf32>
    %44 = arith.cmpf ogt, %42, %43 : vector<16x20xf32>
    %45 = arith.extui %44 : vector<16x20xi1> to vector<16x20xi32>
    %46 = arith.sitofp %45 : vector<16x20xi32> to vector<16x20xf32>
    %cst_15 = arith.constant dense<0.000000e+00> : vector<20xf32>
    %47 = vector.multi_reduction <add>, %46, %cst_15 [0] : vector<16x20xf32> to vector<20xf32>
    %48 = vector.shape_cast %47 : vector<20xf32> to vector<1x20xf32>
    %cst_16 = arith.constant 1.000000e+00 : f32
    %49 = vector.broadcast %cst_16 : f32 to vector<1x20xf32>
    %50 = arith.maximumf %48, %49 : vector<1x20xf32>
    %51 = vector.broadcast %26 : vector<16x1xf32> to vector<16x20xf32>
    %52 = vector.broadcast %41 : vector<1x20xf32> to vector<16x20xf32>
    %53 = arith.cmpf ole, %51, %52 : vector<16x20xf32>
    %54 = vector.broadcast %41 : vector<1x20xf32> to vector<16x20xf32>
    %55 = vector.broadcast %37 : vector<16x1xf32> to vector<16x20xf32>
    %56 = arith.cmpf olt, %54, %55 : vector<16x20xf32>
    %57 = arith.andi %53, %56 : vector<16x20xi1>
    %58 = arith.extui %57 : vector<16x20xi1> to vector<16x20xi32>
    %59 = arith.sitofp %58 : vector<16x20xi32> to vector<16x20xf32>
    %cst_17 = arith.constant dense<0.000000e+00> : vector<20xf32>
    %60 = vector.multi_reduction <add>, %59, %cst_17 [0] : vector<16x20xf32> to vector<20xf32>
    %61 = vector.shape_cast %60 : vector<20xf32> to vector<1x20xf32>
    %c0_18 = arith.constant 0 : index
    %c0_19 = arith.constant 0 : index
    %c0_20 = arith.constant 0 : index
    %62 = vector.load %arg22[%c0_18, %c0_19, %c0_20] : memref<1x2x20xf32, #tpu.memory_space<vmem>>, vector<1x1x20xf32>
    %63 = vector.shape_cast %62 : vector<1x1x20xf32> to vector<1x20xf32>
    %64 = vector.shape_cast %50 : vector<1x20xf32> to vector<1x1x20xf32>
    tpu.vector_store %arg22[%c0_18, %c0_19, %c0_20], %64 {strides = array<i32>} : memref<1x2x20xf32, #tpu.memory_space<vmem>>, vector<1x1x20xf32>,
    %c0_21 = arith.constant 0 : index
    %c1 = arith.constant 1 : index
    %c0_22 = arith.constant 0 : index
    %65 = vector.load %arg22[%c0_21, %c1, %c0_22] : memref<1x2x20xf32, #tpu.memory_space<vmem>>, vector<1x1x20xf32>
    %66 = vector.shape_cast %65 : vector<1x1x20xf32> to vector<1x20xf32>
    %67 = vector.shape_cast %61 : vector<1x20xf32> to vector<1x1x20xf32>
    tpu.vector_store %arg22[%c0_21, %c1, %c0_22], %67 {strides = array<i32>} : memref<1x2x20xf32, #tpu.memory_space<vmem>>, vector<1x1x20xf32>,
    %68 = tpu.iota {dimensions = array<i32: 0>} : vector<16x1xi32>
    %69 = tpu.iota {dimensions = array<i32: 1>} : vector<1x16xi32>
    %70 = tpu.iota {dimensions = array<i32: 1>} : vector<1x20xi32>
    %71 = vector.broadcast %28 : vector<1x16xf32> to vector<16x16xf32>
    %72 = vector.broadcast %26 : vector<16x1xf32> to vector<16x16xf32>
    %73 = arith.cmpf ogt, %71, %72 : vector<16x16xf32>
    %74 = vector.broadcast %28 : vector<1x16xf32> to vector<16x16xf32>
    %75 = vector.broadcast %26 : vector<16x1xf32> to vector<16x16xf32>
    %76 = arith.cmpf oeq, %74, %75 : vector<16x16xf32>
    %77 = vector.broadcast %69 : vector<1x16xi32> to vector<16x16xi32>
    %78 = vector.broadcast %68 : vector<16x1xi32> to vector<16x16xi32>
    %79 = arith.cmpi slt, %77, %78 : vector<16x16xi32>
    %80 = arith.andi %76, %79 : vector<16x16xi1>
    %81 = arith.ori %73, %80 : vector<16x16xi1>
    %82 = arith.extui %81 : vector<16x16xi1> to vector<16x16xi32>
    %cst_23 = arith.constant dense<0> : vector<16xi32>
    %83 = vector.multi_reduction <add>, %82, %cst_23 [1] : vector<16x16xi32> to vector<16xi32>
    %84 = vector.shape_cast %83 : vector<16xi32> to vector<16x1xi32>
    %85 = vector.broadcast %40 : vector<1x16xf32> to vector<16x16xf32>
    %86 = vector.broadcast %39 : vector<16x1xf32> to vector<16x16xf32>
    %87 = arith.cmpf ogt, %85, %86 : vector<16x16xf32>
    %88 = vector.broadcast %40 : vector<1x16xf32> to vector<16x16xf32>
    %89 = vector.broadcast %39 : vector<16x1xf32> to vector<16x16xf32>
    %90 = arith.cmpf oeq, %88, %89 : vector<16x16xf32>
    %91 = vector.broadcast %69 : vector<1x16xi32> to vector<16x16xi32>
    %92 = vector.broadcast %68 : vector<16x1xi32> to vector<16x16xi32>
    %93 = arith.cmpi slt, %91, %92 : vector<16x16xi32>
    %94 = arith.andi %90, %93 : vector<16x16xi1>
    %95 = arith.ori %87, %94 : vector<16x16xi1>
    %96 = arith.extui %95 : vector<16x16xi1> to vector<16x16xi32>
    %cst_24 = arith.constant dense<0> : vector<16xi32>
    %97 = vector.multi_reduction <add>, %96, %cst_24 [1] : vector<16x16xi32> to vector<16xi32>
    %98 = vector.shape_cast %97 : vector<16xi32> to vector<16x1xi32>
    %cst_25 = arith.constant 0.000000e+00 : f32
    %99 = vector.broadcast %cst_25 : f32 to vector<1x20xf32>
    %c0_26 = arith.constant 0 : index
    %c0_27 = arith.constant 0 : index
    %c0_28 = arith.constant 0 : index
    %c0_29 = arith.constant 0 : index
    %100 = vector.load %arg21[%c0_26, %c0_27, %c0_28, %c0_29] : memref<1x2x2x20xf32, #tpu.memory_space<vmem>>, vector<1x1x1x20xf32>
    %101 = vector.shape_cast %100 : vector<1x1x1x20xf32> to vector<1x20xf32>
    %102 = vector.shape_cast %99 : vector<1x20xf32> to vector<1x1x1x20xf32>
    tpu.vector_store %arg21[%c0_26, %c0_27, %c0_28, %c0_29], %102 {strides = array<i32>} : memref<1x2x2x20xf32, #tpu.memory_space<vmem>>, vector<1x1x1x20xf32>,
    %103 = vector.broadcast %84 : vector<16x1xi32> to vector<16x20xi32>
    %104 = vector.broadcast %70 : vector<1x20xi32> to vector<16x20xi32>
    %105 = arith.cmpi eq, %103, %104 : vector<16x20xi32>
    %106 = arith.extui %105 : vector<16x20xi1> to vector<16x20xi32>
    %107 = arith.sitofp %106 : vector<16x20xi32> to vector<16x20xf32>
    %108 = vector.broadcast %26 : vector<16x1xf32> to vector<16x20xf32>
    %109 = arith.mulf %108, %107 : vector<16x20xf32>
    %cst_30 = arith.constant dense<0.000000e+00> : vector<20xf32>
    %110 = vector.multi_reduction <add>, %109, %cst_30 [0] : vector<16x20xf32> to vector<20xf32>
    %111 = vector.shape_cast %110 : vector<20xf32> to vector<1x20xf32>
    %c0_31 = arith.constant 0 : index
    %c0_32 = arith.constant 0 : index
    %c1_33 = arith.constant 1 : index
    %c0_34 = arith.constant 0 : index
    %112 = vector.load %arg21[%c0_31, %c0_32, %c1_33, %c0_34] : memref<1x2x2x20xf32, #tpu.memory_space<vmem>>, vector<1x1x1x20xf32>
    %113 = vector.shape_cast %112 : vector<1x1x1x20xf32> to vector<1x20xf32>
    %114 = vector.shape_cast %111 : vector<1x20xf32> to vector<1x1x1x20xf32>
    tpu.vector_store %arg21[%c0_31, %c0_32, %c1_33, %c0_34], %114 {strides = array<i32>} : memref<1x2x2x20xf32, #tpu.memory_space<vmem>>, vector<1x1x1x20xf32>,
    %115 = vector.broadcast %98 : vector<16x1xi32> to vector<16x20xi32>
    %116 = vector.broadcast %70 : vector<1x20xi32> to vector<16x20xi32>
    %117 = arith.cmpi eq, %115, %116 : vector<16x20xi32>
    %118 = arith.extui %117 : vector<16x20xi1> to vector<16x20xi32>
    %119 = arith.sitofp %118 : vector<16x20xi32> to vector<16x20xf32>
    %120 = vector.broadcast %26 : vector<16x1xf32> to vector<16x20xf32>
    %121 = arith.mulf %120, %119 : vector<16x20xf32>
    %cst_35 = arith.constant dense<0.000000e+00> : vector<20xf32>
    %122 = vector.multi_reduction <add>, %121, %cst_35 [0] : vector<16x20xf32> to vector<20xf32>
    %123 = vector.shape_cast %122 : vector<20xf32> to vector<1x20xf32>
    %c0_36 = arith.constant 0 : index
    %c1_37 = arith.constant 1 : index
    %c0_38 = arith.constant 0 : index
    %c0_39 = arith.constant 0 : index
    %124 = vector.load %arg21[%c0_36, %c1_37, %c0_38, %c0_39] : memref<1x2x2x20xf32, #tpu.memory_space<vmem>>, vector<1x1x1x20xf32>
    %125 = vector.shape_cast %124 : vector<1x1x1x20xf32> to vector<1x20xf32>
    %126 = vector.shape_cast %123 : vector<1x20xf32> to vector<1x1x1x20xf32>
    tpu.vector_store %arg21[%c0_36, %c1_37, %c0_38, %c0_39], %126 {strides = array<i32>} : memref<1x2x2x20xf32, #tpu.memory_space<vmem>>, vector<1x1x1x20xf32>,
    %127 = vector.broadcast %98 : vector<16x1xi32> to vector<16x20xi32>
    %128 = vector.broadcast %70 : vector<1x20xi32> to vector<16x20xi32>
    %129 = arith.cmpi eq, %127, %128 : vector<16x20xi32>
    %130 = arith.extui %129 : vector<16x20xi1> to vector<16x20xi32>
    %131 = arith.sitofp %130 : vector<16x20xi32> to vector<16x20xf32>
    %132 = vector.broadcast %37 : vector<16x1xf32> to vector<16x20xf32>
    %133 = arith.mulf %132, %131 : vector<16x20xf32>
    %cst_40 = arith.constant dense<0.000000e+00> : vector<20xf32>
    %134 = vector.multi_reduction <add>, %133, %cst_40 [0] : vector<16x20xf32> to vector<20xf32>
    %135 = vector.shape_cast %134 : vector<20xf32> to vector<1x20xf32>
    %c0_41 = arith.constant 0 : index
    %c1_42 = arith.constant 1 : index
    %c1_43 = arith.constant 1 : index
    %c0_44 = arith.constant 0 : index
    %136 = vector.load %arg21[%c0_41, %c1_42, %c1_43, %c0_44] : memref<1x2x2x20xf32, #tpu.memory_space<vmem>>, vector<1x1x1x20xf32>
    %137 = vector.shape_cast %136 : vector<1x1x1x20xf32> to vector<1x20xf32>
    %138 = vector.shape_cast %135 : vector<1x20xf32> to vector<1x1x1x20xf32>
    tpu.vector_store %arg21[%c0_41, %c1_42, %c1_43, %c0_44], %138 {strides = array<i32>} : memref<1x2x2x20xf32, #tpu.memory_space<vmem>>, vector<1x1x1x20xf32>,
    %139 = tpu.iota {dimensions = array<i32: 1>} : vector<1x100xi32>
    %140 = tpu.iota {dimensions = array<i32: 0>} : vector<100x1xi32>
    %c0_i32 = arith.constant 0 : i32
    %141 = vector.broadcast %c0_i32 : i32 to vector<1x100xi32>
    %c10_i32 = arith.constant 10 : i32
    %142 = vector.broadcast %c10_i32 : i32 to vector<1x100xi32>
    %143 = arith.cmpi sge, %139, %142 : vector<1x100xi32>
    %144 = arith.extui %143 : vector<1x100xi1> to vector<1x100xi32>
    %145 = arith.addi %141, %144 : vector<1x100xi32>
    %c20_i32 = arith.constant 20 : i32
    %146 = vector.broadcast %c20_i32 : i32 to vector<1x100xi32>
    %147 = arith.cmpi sge, %139, %146 : vector<1x100xi32>
    %148 = arith.extui %147 : vector<1x100xi1> to vector<1x100xi32>
    %149 = arith.addi %145, %148 : vector<1x100xi32>
    %c30_i32 = arith.constant 30 : i32
    %150 = vector.broadcast %c30_i32 : i32 to vector<1x100xi32>
    %151 = arith.cmpi sge, %139, %150 : vector<1x100xi32>
    %152 = arith.extui %151 : vector<1x100xi1> to vector<1x100xi32>
    %153 = arith.addi %149, %152 : vector<1x100xi32>
    %c40_i32 = arith.constant 40 : i32
    %154 = vector.broadcast %c40_i32 : i32 to vector<1x100xi32>
    %155 = arith.cmpi sge, %139, %154 : vector<1x100xi32>
    %156 = arith.extui %155 : vector<1x100xi1> to vector<1x100xi32>
    %157 = arith.addi %153, %156 : vector<1x100xi32>
    %c50_i32 = arith.constant 50 : i32
    %158 = vector.broadcast %c50_i32 : i32 to vector<1x100xi32>
    %159 = arith.cmpi sge, %139, %158 : vector<1x100xi32>
    %160 = arith.extui %159 : vector<1x100xi1> to vector<1x100xi32>
    %161 = arith.addi %157, %160 : vector<1x100xi32>
    %c60_i32 = arith.constant 60 : i32
    %162 = vector.broadcast %c60_i32 : i32 to vector<1x100xi32>
    %163 = arith.cmpi sge, %139, %162 : vector<1x100xi32>
    %164 = arith.extui %163 : vector<1x100xi1> to vector<1x100xi32>
    %165 = arith.addi %161, %164 : vector<1x100xi32>
    %c70_i32 = arith.constant 70 : i32
    %166 = vector.broadcast %c70_i32 : i32 to vector<1x100xi32>
    %167 = arith.cmpi sge, %139, %166 : vector<1x100xi32>
    %168 = arith.extui %167 : vector<1x100xi1> to vector<1x100xi32>
    %169 = arith.addi %165, %168 : vector<1x100xi32>
    %c80_i32 = arith.constant 80 : i32
    %170 = vector.broadcast %c80_i32 : i32 to vector<1x100xi32>
    %171 = arith.cmpi sge, %139, %170 : vector<1x100xi32>
    %172 = arith.extui %171 : vector<1x100xi1> to vector<1x100xi32>
    %173 = arith.addi %169, %172 : vector<1x100xi32>
    %c90_i32 = arith.constant 90 : i32
    %174 = vector.broadcast %c90_i32 : i32 to vector<1x100xi32>
    %175 = arith.cmpi sge, %139, %174 : vector<1x100xi32>
    %176 = arith.extui %175 : vector<1x100xi1> to vector<1x100xi32>
    %177 = arith.addi %173, %176 : vector<1x100xi32>
    %c10_i32_45 = arith.constant 10 : i32
    %178 = vector.broadcast %c10_i32_45 : i32 to vector<1x100xi32>
    %179 = arith.muli %178, %177 : vector<1x100xi32>
    %180 = arith.subi %139, %179 : vector<1x100xi32>
    %c0_i32_46 = arith.constant 0 : i32
    %181 = vector.broadcast %c0_i32_46 : i32 to vector<100x1xi32>
    %c10_i32_47 = arith.constant 10 : i32
    %182 = vector.broadcast %c10_i32_47 : i32 to vector<100x1xi32>
    %183 = arith.cmpi sge, %140, %182 : vector<100x1xi32>
    %184 = arith.extui %183 : vector<100x1xi1> to vector<100x1xi32>
    %185 = arith.addi %181, %184 : vector<100x1xi32>
    %c20_i32_48 = arith.constant 20 : i32
    %186 = vector.broadcast %c20_i32_48 : i32 to vector<100x1xi32>
    %187 = arith.cmpi sge, %140, %186 : vector<100x1xi32>
    %188 = arith.extui %187 : vector<100x1xi1> to vector<100x1xi32>
    %189 = arith.addi %185, %188 : vector<100x1xi32>
    %c30_i32_49 = arith.constant 30 : i32
    %190 = vector.broadcast %c30_i32_49 : i32 to vector<100x1xi32>
    %191 = arith.cmpi sge, %140, %190 : vector<100x1xi32>
    %192 = arith.extui %191 : vector<100x1xi1> to vector<100x1xi32>
    %193 = arith.addi %189, %192 : vector<100x1xi32>
    %c40_i32_50 = arith.constant 40 : i32
    %194 = vector.broadcast %c40_i32_50 : i32 to vector<100x1xi32>
    %195 = arith.cmpi sge, %140, %194 : vector<100x1xi32>
    %196 = arith.extui %195 : vector<100x1xi1> to vector<100x1xi32>
    %197 = arith.addi %193, %196 : vector<100x1xi32>
    %c50_i32_51 = arith.constant 50 : i32
    %198 = vector.broadcast %c50_i32_51 : i32 to vector<100x1xi32>
    %199 = arith.cmpi sge, %140, %198 : vector<100x1xi32>
    %200 = arith.extui %199 : vector<100x1xi1> to vector<100x1xi32>
    %201 = arith.addi %197, %200 : vector<100x1xi32>
    %c60_i32_52 = arith.constant 60 : i32
    %202 = vector.broadcast %c60_i32_52 : i32 to vector<100x1xi32>
    %203 = arith.cmpi sge, %140, %202 : vector<100x1xi32>
    %204 = arith.extui %203 : vector<100x1xi1> to vector<100x1xi32>
    %205 = arith.addi %201, %204 : vector<100x1xi32>
    %c70_i32_53 = arith.constant 70 : i32
    %206 = vector.broadcast %c70_i32_53 : i32 to vector<100x1xi32>
    %207 = arith.cmpi sge, %140, %206 : vector<100x1xi32>
    %208 = arith.extui %207 : vector<100x1xi1> to vector<100x1xi32>
    %209 = arith.addi %205, %208 : vector<100x1xi32>
    %c80_i32_54 = arith.constant 80 : i32
    %210 = vector.broadcast %c80_i32_54 : i32 to vector<100x1xi32>
    %211 = arith.cmpi sge, %140, %210 : vector<100x1xi32>
    %212 = arith.extui %211 : vector<100x1xi1> to vector<100x1xi32>
    %213 = arith.addi %209, %212 : vector<100x1xi32>
    %c90_i32_55 = arith.constant 90 : i32
    %214 = vector.broadcast %c90_i32_55 : i32 to vector<100x1xi32>
    %215 = arith.cmpi sge, %140, %214 : vector<100x1xi32>
    %216 = arith.extui %215 : vector<100x1xi1> to vector<100x1xi32>
    %217 = arith.addi %213, %216 : vector<100x1xi32>
    %c10_i32_56 = arith.constant 10 : i32
    %218 = vector.broadcast %c10_i32_56 : i32 to vector<100x1xi32>
    %219 = arith.muli %218, %217 : vector<100x1xi32>
    %220 = arith.subi %140, %219 : vector<100x1xi32>
    %221 = arith.sitofp %177 : vector<1x100xi32> to vector<1x100xf32>
    %cst_57 = arith.constant 9.000000e+00 : f32
    %222 = vector.broadcast %cst_57 : f32 to vector<1x100xf32>
    %223 = arith.divf %221, %222 : vector<1x100xf32>
    %224 = arith.sitofp %180 : vector<1x100xi32> to vector<1x100xf32>
    %cst_58 = arith.constant 9.000000e+00 : f32
    %225 = vector.broadcast %cst_58 : f32 to vector<1x100xf32>
    %226 = arith.divf %224, %225 : vector<1x100xf32>
    %cst_59 = arith.constant 0.000000e+00 : f32
    %227 = vector.broadcast %cst_59 : f32 to vector<16x1xf32>
    %c10_i32_60 = arith.constant 10 : i32
    %228 = vector.broadcast %c10_i32_60 : i32 to vector<16x1xi32>
    %229 = arith.cmpi slt, %84, %228 : vector<16x1xi32>
    %cst_61 = arith.constant 0.000000e+00 : f32
    %230 = vector.broadcast %cst_61 : f32 to vector<16x1xf32>
    %231 = arith.cmpf ogt, %26, %230 : vector<16x1xf32>
    %232 = arith.andi %229, %231 : vector<16x1xi1>
    %cst_62 = arith.constant 0.000000e+00 : f32
    %233 = vector.broadcast %cst_62 : f32 to vector<16x1xf32>
    %234 = arith.select %232, %26, %233 : vector<16x1xi1>, vector<16x1xf32>
    %235 = vector.broadcast %223 : vector<1x100xf32> to vector<16x100xf32>
    %236 = vector.broadcast %227 : vector<16x1xf32> to vector<16x100xf32>
    %237 = arith.subf %235, %236 : vector<16x100xf32>
    %238 = arith.mulf %237, %237 : vector<16x100xf32>
    %239 = vector.broadcast %226 : vector<1x100xf32> to vector<16x100xf32>
    %240 = vector.broadcast %26 : vector<16x1xf32> to vector<16x100xf32>
    %241 = arith.subf %239, %240 : vector<16x100xf32>
    %242 = arith.mulf %241, %241 : vector<16x100xf32>
    %243 = arith.addf %238, %242 : vector<16x100xf32>
    %cst_63 = arith.constant 0.000000e+00 : f32
    %244 = vector.broadcast %cst_63 : f32 to vector<16x100xf32>
    %245 = arith.subf %244, %243 : vector<16x100xf32>
    %cst_64 = arith.constant 1.250000e+01 : f32
    %246 = vector.broadcast %cst_64 : f32 to vector<16x100xf32>
    %247 = arith.mulf %245, %246 : vector<16x100xf32>
    %248 = math.exp %247 : vector<16x100xf32>
    %249 = vector.broadcast %234 : vector<16x1xf32> to vector<16x100xf32>
    %250 = arith.mulf %248, %249 : vector<16x100xf32>
    %cst_65 = arith.constant dense<0.000000e+00> : vector<100xf32>
    %251 = vector.multi_reduction <add>, %250, %cst_65 [0] : vector<16x100xf32> to vector<100xf32>
    %252 = vector.shape_cast %251 : vector<100xf32> to vector<1x100xf32>
    %c0_66 = arith.constant 0 : index
    %c0_67 = arith.constant 0 : index
    %c0_68 = arith.constant 0 : index
    %253 = vector.load %arg23[%c0_66, %c0_67, %c0_68] : memref<1x2x100xf32, #tpu.memory_space<vmem>>, vector<1x1x100xf32>
    %254 = vector.shape_cast %253 : vector<1x1x100xf32> to vector<1x100xf32>
    %255 = vector.shape_cast %252 : vector<1x100xf32> to vector<1x1x100xf32>
    tpu.vector_store %arg23[%c0_66, %c0_67, %c0_68], %255 {strides = array<i32>} : memref<1x2x100xf32, #tpu.memory_space<vmem>>, vector<1x1x100xf32>,
    %c10_i32_69 = arith.constant 10 : i32
    %256 = vector.broadcast %c10_i32_69 : i32 to vector<16x1xi32>
    %257 = arith.cmpi slt, %98, %256 : vector<16x1xi32>
    %cst_70 = arith.constant 0.000000e+00 : f32
    %258 = vector.broadcast %cst_70 : f32 to vector<16x1xf32>
    %259 = arith.cmpf ogt, %39, %258 : vector<16x1xf32>
    %260 = arith.andi %257, %259 : vector<16x1xi1>
    %cst_71 = arith.constant 0.000000e+00 : f32
    %261 = vector.broadcast %cst_71 : f32 to vector<16x1xf32>
    %262 = arith.select %260, %39, %261 : vector<16x1xi1>, vector<16x1xf32>
    %263 = vector.broadcast %223 : vector<1x100xf32> to vector<16x100xf32>
    %264 = vector.broadcast %26 : vector<16x1xf32> to vector<16x100xf32>
    %265 = arith.subf %263, %264 : vector<16x100xf32>
    %266 = arith.mulf %265, %265 : vector<16x100xf32>
    %267 = vector.broadcast %226 : vector<1x100xf32> to vector<16x100xf32>
    %268 = vector.broadcast %39 : vector<16x1xf32> to vector<16x100xf32>
    %269 = arith.subf %267, %268 : vector<16x100xf32>
    %270 = arith.mulf %269, %269 : vector<16x100xf32>
    %271 = arith.addf %266, %270 : vector<16x100xf32>
    %cst_72 = arith.constant 0.000000e+00 : f32
    %272 = vector.broadcast %cst_72 : f32 to vector<16x100xf32>
    %273 = arith.subf %272, %271 : vector<16x100xf32>
    %cst_73 = arith.constant 1.250000e+01 : f32
    %274 = vector.broadcast %cst_73 : f32 to vector<16x100xf32>
    %275 = arith.mulf %273, %274 : vector<16x100xf32>
    %276 = math.exp %275 : vector<16x100xf32>
    %277 = vector.broadcast %262 : vector<16x1xf32> to vector<16x100xf32>
    %278 = arith.mulf %276, %277 : vector<16x100xf32>
    %cst_74 = arith.constant dense<0.000000e+00> : vector<100xf32>
    %279 = vector.multi_reduction <add>, %278, %cst_74 [0] : vector<16x100xf32> to vector<100xf32>
    %280 = vector.shape_cast %279 : vector<100xf32> to vector<1x100xf32>
    %c0_75 = arith.constant 0 : index
    %c1_76 = arith.constant 1 : index
    %c0_77 = arith.constant 0 : index
    %281 = vector.load %arg23[%c0_75, %c1_76, %c0_77] : memref<1x2x100xf32, #tpu.memory_space<vmem>>, vector<1x1x100xf32>
    %282 = vector.shape_cast %281 : vector<1x1x100xf32> to vector<1x100xf32>
    %283 = vector.shape_cast %280 : vector<1x100xf32> to vector<1x1x100xf32>
    tpu.vector_store %arg23[%c0_75, %c1_76, %c0_77], %283 {strides = array<i32>} : memref<1x2x100xf32, #tpu.memory_space<vmem>>, vector<1x1x100xf32>,
    %c0_78 = arith.constant 0 : index
    %c0_79 = arith.constant 0 : index
    %c0_80 = arith.constant 0 : index
    %284 = vector.load %arg23[%c0_78, %c0_79, %c0_80] : memref<1x2x100xf32, #tpu.memory_space<vmem>>, vector<1x2x100xf32>
    %285 = vector.shape_cast %284 : vector<1x2x100xf32> to vector<2x100xf32>
    %cst_81 = arith.constant 0.000000e+00 : f32
    %286 = vector.broadcast %cst_81 : f32 to vector<8x100xf32>
    %c-1_i32 = arith.constant -1 : i32
    %287 = vector.broadcast %c-1_i32 : i32 to vector<1x100xi32>
    %288 = arith.addi %177, %287 : vector<1x100xi32>
    %289 = vector.broadcast %217 : vector<100x1xi32> to vector<100x100xi32>
    %290 = vector.broadcast %288 : vector<1x100xi32> to vector<100x100xi32>
    %291 = arith.cmpi eq, %289, %290 : vector<100x100xi32>
    %c-1_i32_82 = arith.constant -1 : i32
    %292 = vector.broadcast %c-1_i32_82 : i32 to vector<1x100xi32>
    %293 = arith.addi %180, %292 : vector<1x100xi32>
    %294 = vector.broadcast %220 : vector<100x1xi32> to vector<100x100xi32>
    %295 = vector.broadcast %293 : vector<1x100xi32> to vector<100x100xi32>
    %296 = arith.cmpi eq, %294, %295 : vector<100x100xi32>
    %297 = arith.andi %291, %296 : vector<100x100xi1>
    %298 = arith.extui %297 : vector<100x100xi1> to vector<100x100xi32>
    %299 = arith.sitofp %298 : vector<100x100xi32> to vector<100x100xf32>
    %cst_83 = arith.constant dense<0.000000e+00> : vector<2x100xf32>
    %300 = tpu.matmul %285, %299, %cst_83 {dimension_numbers = #tpu.dot_dimension_numbers<[1], [0], [0], [1], [0, 0, 1, 1], [], []>} : vector<2x100xf32>, vector<100x100xf32>, vector<2x100xf32> -> vector<2x100xf32>
    %c0_84 = arith.constant 0 : index
    %c0_85 = arith.constant 0 : index
    %c0_86 = arith.constant 0 : index
    %301 = vector.load %arg3[%c0_84, %c0_85, %c0_86] : memref<9x8x2xf32, #tpu.memory_space<vmem>>, vector<1x8x2xf32>
    %302 = vector.shape_cast %301 : vector<1x8x2xf32> to vector<8x2xf32>
    %cst_87 = arith.constant dense<0.000000e+00> : vector<8x100xf32>
    %303 = tpu.matmul %302, %300, %cst_87 {dimension_numbers = #tpu.dot_dimension_numbers<[1], [0], [0], [1], [0, 0, 1, 1], [], []>} : vector<8x2xf32>, vector<2x100xf32>, vector<8x100xf32> -> vector<8x100xf32>
    %304 = arith.addf %286, %303 : vector<8x100xf32>
    %c-1_i32_88 = arith.constant -1 : i32
    %305 = vector.broadcast %c-1_i32_88 : i32 to vector<1x100xi32>
    %306 = arith.addi %177, %305 : vector<1x100xi32>
    %307 = vector.broadcast %217 : vector<100x1xi32> to vector<100x100xi32>
    %308 = vector.broadcast %306 : vector<1x100xi32> to vector<100x100xi32>
    %309 = arith.cmpi eq, %307, %308 : vector<100x100xi32>
    %c0_i32_89 = arith.constant 0 : i32
    %310 = vector.broadcast %c0_i32_89 : i32 to vector<1x100xi32>
    %311 = arith.addi %180, %310 : vector<1x100xi32>
    %312 = vector.broadcast %220 : vector<100x1xi32> to vector<100x100xi32>
    %313 = vector.broadcast %311 : vector<1x100xi32> to vector<100x100xi32>
    %314 = arith.cmpi eq, %312, %313 : vector<100x100xi32>
    %315 = arith.andi %309, %314 : vector<100x100xi1>
    %316 = arith.extui %315 : vector<100x100xi1> to vector<100x100xi32>
    %317 = arith.sitofp %316 : vector<100x100xi32> to vector<100x100xf32>
    %cst_90 = arith.constant dense<0.000000e+00> : vector<2x100xf32>
    %318 = tpu.matmul %285, %317, %cst_90 {dimension_numbers = #tpu.dot_dimension_numbers<[1], [0], [0], [1], [0, 0, 1, 1], [], []>} : vector<2x100xf32>, vector<100x100xf32>, vector<2x100xf32> -> vector<2x100xf32>
    %c1_91 = arith.constant 1 : index
    %c0_92 = arith.constant 0 : index
    %c0_93 = arith.constant 0 : index
    %319 = vector.load %arg3[%c1_91, %c0_92, %c0_93] : memref<9x8x2xf32, #tpu.memory_space<vmem>>, vector<1x8x2xf32>
    %320 = vector.shape_cast %319 : vector<1x8x2xf32> to vector<8x2xf32>
    %cst_94 = arith.constant dense<0.000000e+00> : vector<8x100xf32>
    %321 = tpu.matmul %320, %318, %cst_94 {dimension_numbers = #tpu.dot_dimension_numbers<[1], [0], [0], [1], [0, 0, 1, 1], [], []>} : vector<8x2xf32>, vector<2x100xf32>, vector<8x100xf32> -> vector<8x100xf32>
    %322 = arith.addf %304, %321 : vector<8x100xf32>
    %c-1_i32_95 = arith.constant -1 : i32
    %323 = vector.broadcast %c-1_i32_95 : i32 to vector<1x100xi32>
    %324 = arith.addi %177, %323 : vector<1x100xi32>
    %325 = vector.broadcast %217 : vector<100x1xi32> to vector<100x100xi32>
    %326 = vector.broadcast %324 : vector<1x100xi32> to vector<100x100xi32>
    %327 = arith.cmpi eq, %325, %326 : vector<100x100xi32>
    %c1_i32 = arith.constant 1 : i32
    %328 = vector.broadcast %c1_i32 : i32 to vector<1x100xi32>
    %329 = arith.addi %180, %328 : vector<1x100xi32>
    %330 = vector.broadcast %220 : vector<100x1xi32> to vector<100x100xi32>
    %331 = vector.broadcast %329 : vector<1x100xi32> to vector<100x100xi32>
    %332 = arith.cmpi eq, %330, %331 : vector<100x100xi32>
    %333 = arith.andi %327, %332 : vector<100x100xi1>
    %334 = arith.extui %333 : vector<100x100xi1> to vector<100x100xi32>
    %335 = arith.sitofp %334 : vector<100x100xi32> to vector<100x100xf32>
    %cst_96 = arith.constant dense<0.000000e+00> : vector<2x100xf32>
    %336 = tpu.matmul %285, %335, %cst_96 {dimension_numbers = #tpu.dot_dimension_numbers<[1], [0], [0], [1], [0, 0, 1, 1], [], []>} : vector<2x100xf32>, vector<100x100xf32>, vector<2x100xf32> -> vector<2x100xf32>
    %c2 = arith.constant 2 : index
    %c0_97 = arith.constant 0 : index
    %c0_98 = arith.constant 0 : index
    %337 = vector.load %arg3[%c2, %c0_97, %c0_98] : memref<9x8x2xf32, #tpu.memory_space<vmem>>, vector<1x8x2xf32>
    %338 = vector.shape_cast %337 : vector<1x8x2xf32> to vector<8x2xf32>
    %cst_99 = arith.constant dense<0.000000e+00> : vector<8x100xf32>
    %339 = tpu.matmul %338, %336, %cst_99 {dimension_numbers = #tpu.dot_dimension_numbers<[1], [0], [0], [1], [0, 0, 1, 1], [], []>} : vector<8x2xf32>, vector<2x100xf32>, vector<8x100xf32> -> vector<8x100xf32>
    %340 = arith.addf %322, %339 : vector<8x100xf32>
    %c0_i32_100 = arith.constant 0 : i32
    %341 = vector.broadcast %c0_i32_100 : i32 to vector<1x100xi32>
    %342 = arith.addi %177, %341 : vector<1x100xi32>
    %343 = vector.broadcast %217 : vector<100x1xi32> to vector<100x100xi32>
    %344 = vector.broadcast %342 : vector<1x100xi32> to vector<100x100xi32>
    %345 = arith.cmpi eq, %343, %344 : vector<100x100xi32>
    %c-1_i32_101 = arith.constant -1 : i32
    %346 = vector.broadcast %c-1_i32_101 : i32 to vector<1x100xi32>
    %347 = arith.addi %180, %346 : vector<1x100xi32>
    %348 = vector.broadcast %220 : vector<100x1xi32> to vector<100x100xi32>
    %349 = vector.broadcast %347 : vector<1x100xi32> to vector<100x100xi32>
    %350 = arith.cmpi eq, %348, %349 : vector<100x100xi32>
    %351 = arith.andi %345, %350 : vector<100x100xi1>
    %352 = arith.extui %351 : vector<100x100xi1> to vector<100x100xi32>
    %353 = arith.sitofp %352 : vector<100x100xi32> to vector<100x100xf32>
    %cst_102 = arith.constant dense<0.000000e+00> : vector<2x100xf32>
    %354 = tpu.matmul %285, %353, %cst_102 {dimension_numbers = #tpu.dot_dimension_numbers<[1], [0], [0], [1], [0, 0, 1, 1], [], []>} : vector<2x100xf32>, vector<100x100xf32>, vector<2x100xf32> -> vector<2x100xf32>
    %c3 = arith.constant 3 : index
    %c0_103 = arith.constant 0 : index
    %c0_104 = arith.constant 0 : index
    %355 = vector.load %arg3[%c3, %c0_103, %c0_104] : memref<9x8x2xf32, #tpu.memory_space<vmem>>, vector<1x8x2xf32>
    %356 = vector.shape_cast %355 : vector<1x8x2xf32> to vector<8x2xf32>
    %cst_105 = arith.constant dense<0.000000e+00> : vector<8x100xf32>
    %357 = tpu.matmul %356, %354, %cst_105 {dimension_numbers = #tpu.dot_dimension_numbers<[1], [0], [0], [1], [0, 0, 1, 1], [], []>} : vector<8x2xf32>, vector<2x100xf32>, vector<8x100xf32> -> vector<8x100xf32>
    %358 = arith.addf %340, %357 : vector<8x100xf32>
    %c0_i32_106 = arith.constant 0 : i32
    %359 = vector.broadcast %c0_i32_106 : i32 to vector<1x100xi32>
    %360 = arith.addi %177, %359 : vector<1x100xi32>
    %361 = vector.broadcast %217 : vector<100x1xi32> to vector<100x100xi32>
    %362 = vector.broadcast %360 : vector<1x100xi32> to vector<100x100xi32>
    %363 = arith.cmpi eq, %361, %362 : vector<100x100xi32>
    %c0_i32_107 = arith.constant 0 : i32
    %364 = vector.broadcast %c0_i32_107 : i32 to vector<1x100xi32>
    %365 = arith.addi %180, %364 : vector<1x100xi32>
    %366 = vector.broadcast %220 : vector<100x1xi32> to vector<100x100xi32>
    %367 = vector.broadcast %365 : vector<1x100xi32> to vector<100x100xi32>
    %368 = arith.cmpi eq, %366, %367 : vector<100x100xi32>
    %369 = arith.andi %363, %368 : vector<100x100xi1>
    %370 = arith.extui %369 : vector<100x100xi1> to vector<100x100xi32>
    %371 = arith.sitofp %370 : vector<100x100xi32> to vector<100x100xf32>
    %cst_108 = arith.constant dense<0.000000e+00> : vector<2x100xf32>
    %372 = tpu.matmul %285, %371, %cst_108 {dimension_numbers = #tpu.dot_dimension_numbers<[1], [0], [0], [1], [0, 0, 1, 1], [], []>} : vector<2x100xf32>, vector<100x100xf32>, vector<2x100xf32> -> vector<2x100xf32>
    %c4 = arith.constant 4 : index
    %c0_109 = arith.constant 0 : index
    %c0_110 = arith.constant 0 : index
    %373 = vector.load %arg3[%c4, %c0_109, %c0_110] : memref<9x8x2xf32, #tpu.memory_space<vmem>>, vector<1x8x2xf32>
    %374 = vector.shape_cast %373 : vector<1x8x2xf32> to vector<8x2xf32>
    %cst_111 = arith.constant dense<0.000000e+00> : vector<8x100xf32>
    %375 = tpu.matmul %374, %372, %cst_111 {dimension_numbers = #tpu.dot_dimension_numbers<[1], [0], [0], [1], [0, 0, 1, 1], [], []>} : vector<8x2xf32>, vector<2x100xf32>, vector<8x100xf32> -> vector<8x100xf32>
    %376 = arith.addf %358, %375 : vector<8x100xf32>
    %c0_i32_112 = arith.constant 0 : i32
    %377 = vector.broadcast %c0_i32_112 : i32 to vector<1x100xi32>
    %378 = arith.addi %177, %377 : vector<1x100xi32>
    %379 = vector.broadcast %217 : vector<100x1xi32> to vector<100x100xi32>
    %380 = vector.broadcast %378 : vector<1x100xi32> to vector<100x100xi32>
    %381 = arith.cmpi eq, %379, %380 : vector<100x100xi32>
    %c1_i32_113 = arith.constant 1 : i32
    %382 = vector.broadcast %c1_i32_113 : i32 to vector<1x100xi32>
    %383 = arith.addi %180, %382 : vector<1x100xi32>
    %384 = vector.broadcast %220 : vector<100x1xi32> to vector<100x100xi32>
    %385 = vector.broadcast %383 : vector<1x100xi32> to vector<100x100xi32>
    %386 = arith.cmpi eq, %384, %385 : vector<100x100xi32>
    %387 = arith.andi %381, %386 : vector<100x100xi1>
    %388 = arith.extui %387 : vector<100x100xi1> to vector<100x100xi32>
    %389 = arith.sitofp %388 : vector<100x100xi32> to vector<100x100xf32>
    %cst_114 = arith.constant dense<0.000000e+00> : vector<2x100xf32>
    %390 = tpu.matmul %285, %389, %cst_114 {dimension_numbers = #tpu.dot_dimension_numbers<[1], [0], [0], [1], [0, 0, 1, 1], [], []>} : vector<2x100xf32>, vector<100x100xf32>, vector<2x100xf32> -> vector<2x100xf32>
    %c5 = arith.constant 5 : index
    %c0_115 = arith.constant 0 : index
    %c0_116 = arith.constant 0 : index
    %391 = vector.load %arg3[%c5, %c0_115, %c0_116] : memref<9x8x2xf32, #tpu.memory_space<vmem>>, vector<1x8x2xf32>
    %392 = vector.shape_cast %391 : vector<1x8x2xf32> to vector<8x2xf32>
    %cst_117 = arith.constant dense<0.000000e+00> : vector<8x100xf32>
    %393 = tpu.matmul %392, %390, %cst_117 {dimension_numbers = #tpu.dot_dimension_numbers<[1], [0], [0], [1], [0, 0, 1, 1], [], []>} : vector<8x2xf32>, vector<2x100xf32>, vector<8x100xf32> -> vector<8x100xf32>
    %394 = arith.addf %376, %393 : vector<8x100xf32>
    %c1_i32_118 = arith.constant 1 : i32
    %395 = vector.broadcast %c1_i32_118 : i32 to vector<1x100xi32>
    %396 = arith.addi %177, %395 : vector<1x100xi32>
    %397 = vector.broadcast %217 : vector<100x1xi32> to vector<100x100xi32>
    %398 = vector.broadcast %396 : vector<1x100xi32> to vector<100x100xi32>
    %399 = arith.cmpi eq, %397, %398 : vector<100x100xi32>
    %c-1_i32_119 = arith.constant -1 : i32
    %400 = vector.broadcast %c-1_i32_119 : i32 to vector<1x100xi32>
    %401 = arith.addi %180, %400 : vector<1x100xi32>
    %402 = vector.broadcast %220 : vector<100x1xi32> to vector<100x100xi32>
    %403 = vector.broadcast %401 : vector<1x100xi32> to vector<100x100xi32>
    %404 = arith.cmpi eq, %402, %403 : vector<100x100xi32>
    %405 = arith.andi %399, %404 : vector<100x100xi1>
    %406 = arith.extui %405 : vector<100x100xi1> to vector<100x100xi32>
    %407 = arith.sitofp %406 : vector<100x100xi32> to vector<100x100xf32>
    %cst_120 = arith.constant dense<0.000000e+00> : vector<2x100xf32>
    %408 = tpu.matmul %285, %407, %cst_120 {dimension_numbers = #tpu.dot_dimension_numbers<[1], [0], [0], [1], [0, 0, 1, 1], [], []>} : vector<2x100xf32>, vector<100x100xf32>, vector<2x100xf32> -> vector<2x100xf32>
    %c6 = arith.constant 6 : index
    %c0_121 = arith.constant 0 : index
    %c0_122 = arith.constant 0 : index
    %409 = vector.load %arg3[%c6, %c0_121, %c0_122] : memref<9x8x2xf32, #tpu.memory_space<vmem>>, vector<1x8x2xf32>
    %410 = vector.shape_cast %409 : vector<1x8x2xf32> to vector<8x2xf32>
    %cst_123 = arith.constant dense<0.000000e+00> : vector<8x100xf32>
    %411 = tpu.matmul %410, %408, %cst_123 {dimension_numbers = #tpu.dot_dimension_numbers<[1], [0], [0], [1], [0, 0, 1, 1], [], []>} : vector<8x2xf32>, vector<2x100xf32>, vector<8x100xf32> -> vector<8x100xf32>
    %412 = arith.addf %394, %411 : vector<8x100xf32>
    %c1_i32_124 = arith.constant 1 : i32
    %413 = vector.broadcast %c1_i32_124 : i32 to vector<1x100xi32>
    %414 = arith.addi %177, %413 : vector<1x100xi32>
    %415 = vector.broadcast %217 : vector<100x1xi32> to vector<100x100xi32>
    %416 = vector.broadcast %414 : vector<1x100xi32> to vector<100x100xi32>
    %417 = arith.cmpi eq, %415, %416 : vector<100x100xi32>
    %c0_i32_125 = arith.constant 0 : i32
    %418 = vector.broadcast %c0_i32_125 : i32 to vector<1x100xi32>
    %419 = arith.addi %180, %418 : vector<1x100xi32>
    %420 = vector.broadcast %220 : vector<100x1xi32> to vector<100x100xi32>
    %421 = vector.broadcast %419 : vector<1x100xi32> to vector<100x100xi32>
    %422 = arith.cmpi eq, %420, %421 : vector<100x100xi32>
    %423 = arith.andi %417, %422 : vector<100x100xi1>
    %424 = arith.extui %423 : vector<100x100xi1> to vector<100x100xi32>
    %425 = arith.sitofp %424 : vector<100x100xi32> to vector<100x100xf32>
    %cst_126 = arith.constant dense<0.000000e+00> : vector<2x100xf32>
    %426 = tpu.matmul %285, %425, %cst_126 {dimension_numbers = #tpu.dot_dimension_numbers<[1], [0], [0], [1], [0, 0, 1, 1], [], []>} : vector<2x100xf32>, vector<100x100xf32>, vector<2x100xf32> -> vector<2x100xf32>
    %c7 = arith.constant 7 : index
    %c0_127 = arith.constant 0 : index
    %c0_128 = arith.constant 0 : index
    %427 = vector.load %arg3[%c7, %c0_127, %c0_128] : memref<9x8x2xf32, #tpu.memory_space<vmem>>, vector<1x8x2xf32>
    %428 = vector.shape_cast %427 : vector<1x8x2xf32> to vector<8x2xf32>
    %cst_129 = arith.constant dense<0.000000e+00> : vector<8x100xf32>
    %429 = tpu.matmul %428, %426, %cst_129 {dimension_numbers = #tpu.dot_dimension_numbers<[1], [0], [0], [1], [0, 0, 1, 1], [], []>} : vector<8x2xf32>, vector<2x100xf32>, vector<8x100xf32> -> vector<8x100xf32>
    %430 = arith.addf %412, %429 : vector<8x100xf32>
    %c1_i32_130 = arith.constant 1 : i32
    %431 = vector.broadcast %c1_i32_130 : i32 to vector<1x100xi32>
    %432 = arith.addi %177, %431 : vector<1x100xi32>
    %433 = vector.broadcast %217 : vector<100x1xi32> to vector<100x100xi32>
    %434 = vector.broadcast %432 : vector<1x100xi32> to vector<100x100xi32>
    %435 = arith.cmpi eq, %433, %434 : vector<100x100xi32>
    %c1_i32_131 = arith.constant 1 : i32
    %436 = vector.broadcast %c1_i32_131 : i32 to vector<1x100xi32>
    %437 = arith.addi %180, %436 : vector<1x100xi32>
    %438 = vector.broadcast %220 : vector<100x1xi32> to vector<100x100xi32>
    %439 = vector.broadcast %437 : vector<1x100xi32> to vector<100x100xi32>
    %440 = arith.cmpi eq, %438, %439 : vector<100x100xi32>
    %441 = arith.andi %435, %440 : vector<100x100xi1>
    %442 = arith.extui %441 : vector<100x100xi1> to vector<100x100xi32>
    %443 = arith.sitofp %442 : vector<100x100xi32> to vector<100x100xf32>
    %cst_132 = arith.constant dense<0.000000e+00> : vector<2x100xf32>
    %444 = tpu.matmul %285, %443, %cst_132 {dimension_numbers = #tpu.dot_dimension_numbers<[1], [0], [0], [1], [0, 0, 1, 1], [], []>} : vector<2x100xf32>, vector<100x100xf32>, vector<2x100xf32> -> vector<2x100xf32>
    %c8 = arith.constant 8 : index
    %c0_133 = arith.constant 0 : index
    %c0_134 = arith.constant 0 : index
    %445 = vector.load %arg3[%c8, %c0_133, %c0_134] : memref<9x8x2xf32, #tpu.memory_space<vmem>>, vector<1x8x2xf32>
    %446 = vector.shape_cast %445 : vector<1x8x2xf32> to vector<8x2xf32>
    %cst_135 = arith.constant dense<0.000000e+00> : vector<8x100xf32>
    %447 = tpu.matmul %446, %444, %cst_135 {dimension_numbers = #tpu.dot_dimension_numbers<[1], [0], [0], [1], [0, 0, 1, 1], [], []>} : vector<8x2xf32>, vector<2x100xf32>, vector<8x100xf32> -> vector<8x100xf32>
    %448 = arith.addf %430, %447 : vector<8x100xf32>
    %c0_136 = arith.constant 0 : index
    %c0_137 = arith.constant 0 : index
    %449 = vector.load %arg4[%c0_136, %c0_137] : memref<8x1xf32, #tpu.memory_space<vmem>>, vector<8x1xf32>
    %450 = vector.broadcast %449 : vector<8x1xf32> to vector<8x100xf32>
    %451 = arith.addf %448, %450 : vector<8x100xf32>
    %cst_138 = arith.constant 0.000000e+00 : f32
    %452 = vector.broadcast %cst_138 : f32 to vector<8x100xf32>
    %453 = arith.maximumf %451, %452 : vector<8x100xf32>
    %cst_139 = arith.constant 0.000000e+00 : f32
    %454 = vector.broadcast %cst_139 : f32 to vector<16x100xf32>
    %c-1_i32_140 = arith.constant -1 : i32
    %455 = vector.broadcast %c-1_i32_140 : i32 to vector<1x100xi32>
    %456 = arith.addi %177, %455 : vector<1x100xi32>
    %457 = vector.broadcast %217 : vector<100x1xi32> to vector<100x100xi32>
    %458 = vector.broadcast %456 : vector<1x100xi32> to vector<100x100xi32>
    %459 = arith.cmpi eq, %457, %458 : vector<100x100xi32>
    %c-1_i32_141 = arith.constant -1 : i32
    %460 = vector.broadcast %c-1_i32_141 : i32 to vector<1x100xi32>
    %461 = arith.addi %180, %460 : vector<1x100xi32>
    %462 = vector.broadcast %220 : vector<100x1xi32> to vector<100x100xi32>
    %463 = vector.broadcast %461 : vector<1x100xi32> to vector<100x100xi32>
    %464 = arith.cmpi eq, %462, %463 : vector<100x100xi32>
    %465 = arith.andi %459, %464 : vector<100x100xi1>
    %466 = arith.extui %465 : vector<100x100xi1> to vector<100x100xi32>
    %467 = arith.sitofp %466 : vector<100x100xi32> to vector<100x100xf32>
    %cst_142 = arith.constant dense<0.000000e+00> : vector<8x100xf32>
    %468 = tpu.matmul %453, %467, %cst_142 {dimension_numbers = #tpu.dot_dimension_numbers<[1], [0], [0], [1], [0, 0, 1, 1], [], []>} : vector<8x100xf32>, vector<100x100xf32>, vector<8x100xf32> -> vector<8x100xf32>
    %c0_143 = arith.constant 0 : index
    %c0_144 = arith.constant 0 : index
    %c0_145 = arith.constant 0 : index
    %469 = vector.load %arg5[%c0_143, %c0_144, %c0_145] : memref<9x16x8xf32, #tpu.memory_space<vmem>>, vector<1x16x8xf32>
    %470 = vector.shape_cast %469 : vector<1x16x8xf32> to vector<16x8xf32>
    %cst_146 = arith.constant dense<0.000000e+00> : vector<16x100xf32>
    %471 = tpu.matmul %470, %468, %cst_146 {dimension_numbers = #tpu.dot_dimension_numbers<[1], [0], [0], [1], [0, 0, 1, 1], [], []>} : vector<16x8xf32>, vector<8x100xf32>, vector<16x100xf32> -> vector<16x100xf32>
    %472 = arith.addf %454, %471 : vector<16x100xf32>
    %c-1_i32_147 = arith.constant -1 : i32
    %473 = vector.broadcast %c-1_i32_147 : i32 to vector<1x100xi32>
    %474 = arith.addi %177, %473 : vector<1x100xi32>
    %475 = vector.broadcast %217 : vector<100x1xi32> to vector<100x100xi32>
    %476 = vector.broadcast %474 : vector<1x100xi32> to vector<100x100xi32>
    %477 = arith.cmpi eq, %475, %476 : vector<100x100xi32>
    %c0_i32_148 = arith.constant 0 : i32
    %478 = vector.broadcast %c0_i32_148 : i32 to vector<1x100xi32>
    %479 = arith.addi %180, %478 : vector<1x100xi32>
    %480 = vector.broadcast %220 : vector<100x1xi32> to vector<100x100xi32>
    %481 = vector.broadcast %479 : vector<1x100xi32> to vector<100x100xi32>
    %482 = arith.cmpi eq, %480, %481 : vector<100x100xi32>
    %483 = arith.andi %477, %482 : vector<100x100xi1>
    %484 = arith.extui %483 : vector<100x100xi1> to vector<100x100xi32>
    %485 = arith.sitofp %484 : vector<100x100xi32> to vector<100x100xf32>
    %cst_149 = arith.constant dense<0.000000e+00> : vector<8x100xf32>
    %486 = tpu.matmul %453, %485, %cst_149 {dimension_numbers = #tpu.dot_dimension_numbers<[1], [0], [0], [1], [0, 0, 1, 1], [], []>} : vector<8x100xf32>, vector<100x100xf32>, vector<8x100xf32> -> vector<8x100xf32>
    %c1_150 = arith.constant 1 : index
    %c0_151 = arith.constant 0 : index
    %c0_152 = arith.constant 0 : index
    %487 = vector.load %arg5[%c1_150, %c0_151, %c0_152] : memref<9x16x8xf32, #tpu.memory_space<vmem>>, vector<1x16x8xf32>
    %488 = vector.shape_cast %487 : vector<1x16x8xf32> to vector<16x8xf32>
    %cst_153 = arith.constant dense<0.000000e+00> : vector<16x100xf32>
    %489 = tpu.matmul %488, %486, %cst_153 {dimension_numbers = #tpu.dot_dimension_numbers<[1], [0], [0], [1], [0, 0, 1, 1], [], []>} : vector<16x8xf32>, vector<8x100xf32>, vector<16x100xf32> -> vector<16x100xf32>
    %490 = arith.addf %472, %489 : vector<16x100xf32>
    %c-1_i32_154 = arith.constant -1 : i32
    %491 = vector.broadcast %c-1_i32_154 : i32 to vector<1x100xi32>
    %492 = arith.addi %177, %491 : vector<1x100xi32>
    %493 = vector.broadcast %217 : vector<100x1xi32> to vector<100x100xi32>
    %494 = vector.broadcast %492 : vector<1x100xi32> to vector<100x100xi32>
    %495 = arith.cmpi eq, %493, %494 : vector<100x100xi32>
    %c1_i32_155 = arith.constant 1 : i32
    %496 = vector.broadcast %c1_i32_155 : i32 to vector<1x100xi32>
    %497 = arith.addi %180, %496 : vector<1x100xi32>
    %498 = vector.broadcast %220 : vector<100x1xi32> to vector<100x100xi32>
    %499 = vector.broadcast %497 : vector<1x100xi32> to vector<100x100xi32>
    %500 = arith.cmpi eq, %498, %499 : vector<100x100xi32>
    %501 = arith.andi %495, %500 : vector<100x100xi1>
    %502 = arith.extui %501 : vector<100x100xi1> to vector<100x100xi32>
    %503 = arith.sitofp %502 : vector<100x100xi32> to vector<100x100xf32>
    %cst_156 = arith.constant dense<0.000000e+00> : vector<8x100xf32>
    %504 = tpu.matmul %453, %503, %cst_156 {dimension_numbers = #tpu.dot_dimension_numbers<[1], [0], [0], [1], [0, 0, 1, 1], [], []>} : vector<8x100xf32>, vector<100x100xf32>, vector<8x100xf32> -> vector<8x100xf32>
    %c2_157 = arith.constant 2 : index
    %c0_158 = arith.constant 0 : index
    %c0_159 = arith.constant 0 : index
    %505 = vector.load %arg5[%c2_157, %c0_158, %c0_159] : memref<9x16x8xf32, #tpu.memory_space<vmem>>, vector<1x16x8xf32>
    %506 = vector.shape_cast %505 : vector<1x16x8xf32> to vector<16x8xf32>
    %cst_160 = arith.constant dense<0.000000e+00> : vector<16x100xf32>
    %507 = tpu.matmul %506, %504, %cst_160 {dimension_numbers = #tpu.dot_dimension_numbers<[1], [0], [0], [1], [0, 0, 1, 1], [], []>} : vector<16x8xf32>, vector<8x100xf32>, vector<16x100xf32> -> vector<16x100xf32>
    %508 = arith.addf %490, %507 : vector<16x100xf32>
    %c0_i32_161 = arith.constant 0 : i32
    %509 = vector.broadcast %c0_i32_161 : i32 to vector<1x100xi32>
    %510 = arith.addi %177, %509 : vector<1x100xi32>
    %511 = vector.broadcast %217 : vector<100x1xi32> to vector<100x100xi32>
    %512 = vector.broadcast %510 : vector<1x100xi32> to vector<100x100xi32>
    %513 = arith.cmpi eq, %511, %512 : vector<100x100xi32>
    %c-1_i32_162 = arith.constant -1 : i32
    %514 = vector.broadcast %c-1_i32_162 : i32 to vector<1x100xi32>
    %515 = arith.addi %180, %514 : vector<1x100xi32>
    %516 = vector.broadcast %220 : vector<100x1xi32> to vector<100x100xi32>
    %517 = vector.broadcast %515 : vector<1x100xi32> to vector<100x100xi32>
    %518 = arith.cmpi eq, %516, %517 : vector<100x100xi32>
    %519 = arith.andi %513, %518 : vector<100x100xi1>
    %520 = arith.extui %519 : vector<100x100xi1> to vector<100x100xi32>
    %521 = arith.sitofp %520 : vector<100x100xi32> to vector<100x100xf32>
    %cst_163 = arith.constant dense<0.000000e+00> : vector<8x100xf32>
    %522 = tpu.matmul %453, %521, %cst_163 {dimension_numbers = #tpu.dot_dimension_numbers<[1], [0], [0], [1], [0, 0, 1, 1], [], []>} : vector<8x100xf32>, vector<100x100xf32>, vector<8x100xf32> -> vector<8x100xf32>
    %c3_164 = arith.constant 3 : index
    %c0_165 = arith.constant 0 : index
    %c0_166 = arith.constant 0 : index
    %523 = vector.load %arg5[%c3_164, %c0_165, %c0_166] : memref<9x16x8xf32, #tpu.memory_space<vmem>>, vector<1x16x8xf32>
    %524 = vector.shape_cast %523 : vector<1x16x8xf32> to vector<16x8xf32>
    %cst_167 = arith.constant dense<0.000000e+00> : vector<16x100xf32>
    %525 = tpu.matmul %524, %522, %cst_167 {dimension_numbers = #tpu.dot_dimension_numbers<[1], [0], [0], [1], [0, 0, 1, 1], [], []>} : vector<16x8xf32>, vector<8x100xf32>, vector<16x100xf32> -> vector<16x100xf32>
    %526 = arith.addf %508, %525 : vector<16x100xf32>
    %c0_i32_168 = arith.constant 0 : i32
    %527 = vector.broadcast %c0_i32_168 : i32 to vector<1x100xi32>
    %528 = arith.addi %177, %527 : vector<1x100xi32>
    %529 = vector.broadcast %217 : vector<100x1xi32> to vector<100x100xi32>
    %530 = vector.broadcast %528 : vector<1x100xi32> to vector<100x100xi32>
    %531 = arith.cmpi eq, %529, %530 : vector<100x100xi32>
    %c0_i32_169 = arith.constant 0 : i32
    %532 = vector.broadcast %c0_i32_169 : i32 to vector<1x100xi32>
    %533 = arith.addi %180, %532 : vector<1x100xi32>
    %534 = vector.broadcast %220 : vector<100x1xi32> to vector<100x100xi32>
    %535 = vector.broadcast %533 : vector<1x100xi32> to vector<100x100xi32>
    %536 = arith.cmpi eq, %534, %535 : vector<100x100xi32>
    %537 = arith.andi %531, %536 : vector<100x100xi1>
    %538 = arith.extui %537 : vector<100x100xi1> to vector<100x100xi32>
    %539 = arith.sitofp %538 : vector<100x100xi32> to vector<100x100xf32>
    %cst_170 = arith.constant dense<0.000000e+00> : vector<8x100xf32>
    %540 = tpu.matmul %453, %539, %cst_170 {dimension_numbers = #tpu.dot_dimension_numbers<[1], [0], [0], [1], [0, 0, 1, 1], [], []>} : vector<8x100xf32>, vector<100x100xf32>, vector<8x100xf32> -> vector<8x100xf32>
    %c4_171 = arith.constant 4 : index
    %c0_172 = arith.constant 0 : index
    %c0_173 = arith.constant 0 : index
    %541 = vector.load %arg5[%c4_171, %c0_172, %c0_173] : memref<9x16x8xf32, #tpu.memory_space<vmem>>, vector<1x16x8xf32>
    %542 = vector.shape_cast %541 : vector<1x16x8xf32> to vector<16x8xf32>
    %cst_174 = arith.constant dense<0.000000e+00> : vector<16x100xf32>
    %543 = tpu.matmul %542, %540, %cst_174 {dimension_numbers = #tpu.dot_dimension_numbers<[1], [0], [0], [1], [0, 0, 1, 1], [], []>} : vector<16x8xf32>, vector<8x100xf32>, vector<16x100xf32> -> vector<16x100xf32>
    %544 = arith.addf %526, %543 : vector<16x100xf32>
    %c0_i32_175 = arith.constant 0 : i32
    %545 = vector.broadcast %c0_i32_175 : i32 to vector<1x100xi32>
    %546 = arith.addi %177, %545 : vector<1x100xi32>
    %547 = vector.broadcast %217 : vector<100x1xi32> to vector<100x100xi32>
    %548 = vector.broadcast %546 : vector<1x100xi32> to vector<100x100xi32>
    %549 = arith.cmpi eq, %547, %548 : vector<100x100xi32>
    %c1_i32_176 = arith.constant 1 : i32
    %550 = vector.broadcast %c1_i32_176 : i32 to vector<1x100xi32>
    %551 = arith.addi %180, %550 : vector<1x100xi32>
    %552 = vector.broadcast %220 : vector<100x1xi32> to vector<100x100xi32>
    %553 = vector.broadcast %551 : vector<1x100xi32> to vector<100x100xi32>
    %554 = arith.cmpi eq, %552, %553 : vector<100x100xi32>
    %555 = arith.andi %549, %554 : vector<100x100xi1>
    %556 = arith.extui %555 : vector<100x100xi1> to vector<100x100xi32>
    %557 = arith.sitofp %556 : vector<100x100xi32> to vector<100x100xf32>
    %cst_177 = arith.constant dense<0.000000e+00> : vector<8x100xf32>
    %558 = tpu.matmul %453, %557, %cst_177 {dimension_numbers = #tpu.dot_dimension_numbers<[1], [0], [0], [1], [0, 0, 1, 1], [], []>} : vector<8x100xf32>, vector<100x100xf32>, vector<8x100xf32> -> vector<8x100xf32>
    %c5_178 = arith.constant 5 : index
    %c0_179 = arith.constant 0 : index
    %c0_180 = arith.constant 0 : index
    %559 = vector.load %arg5[%c5_178, %c0_179, %c0_180] : memref<9x16x8xf32, #tpu.memory_space<vmem>>, vector<1x16x8xf32>
    %560 = vector.shape_cast %559 : vector<1x16x8xf32> to vector<16x8xf32>
    %cst_181 = arith.constant dense<0.000000e+00> : vector<16x100xf32>
    %561 = tpu.matmul %560, %558, %cst_181 {dimension_numbers = #tpu.dot_dimension_numbers<[1], [0], [0], [1], [0, 0, 1, 1], [], []>} : vector<16x8xf32>, vector<8x100xf32>, vector<16x100xf32> -> vector<16x100xf32>
    %562 = arith.addf %544, %561 : vector<16x100xf32>
    %c1_i32_182 = arith.constant 1 : i32
    %563 = vector.broadcast %c1_i32_182 : i32 to vector<1x100xi32>
    %564 = arith.addi %177, %563 : vector<1x100xi32>
    %565 = vector.broadcast %217 : vector<100x1xi32> to vector<100x100xi32>
    %566 = vector.broadcast %564 : vector<1x100xi32> to vector<100x100xi32>
    %567 = arith.cmpi eq, %565, %566 : vector<100x100xi32>
    %c-1_i32_183 = arith.constant -1 : i32
    %568 = vector.broadcast %c-1_i32_183 : i32 to vector<1x100xi32>
    %569 = arith.addi %180, %568 : vector<1x100xi32>
    %570 = vector.broadcast %220 : vector<100x1xi32> to vector<100x100xi32>
    %571 = vector.broadcast %569 : vector<1x100xi32> to vector<100x100xi32>
    %572 = arith.cmpi eq, %570, %571 : vector<100x100xi32>
    %573 = arith.andi %567, %572 : vector<100x100xi1>
    %574 = arith.extui %573 : vector<100x100xi1> to vector<100x100xi32>
    %575 = arith.sitofp %574 : vector<100x100xi32> to vector<100x100xf32>
    %cst_184 = arith.constant dense<0.000000e+00> : vector<8x100xf32>
    %576 = tpu.matmul %453, %575, %cst_184 {dimension_numbers = #tpu.dot_dimension_numbers<[1], [0], [0], [1], [0, 0, 1, 1], [], []>} : vector<8x100xf32>, vector<100x100xf32>, vector<8x100xf32> -> vector<8x100xf32>
    %c6_185 = arith.constant 6 : index
    %c0_186 = arith.constant 0 : index
    %c0_187 = arith.constant 0 : index
    %577 = vector.load %arg5[%c6_185, %c0_186, %c0_187] : memref<9x16x8xf32, #tpu.memory_space<vmem>>, vector<1x16x8xf32>
    %578 = vector.shape_cast %577 : vector<1x16x8xf32> to vector<16x8xf32>
    %cst_188 = arith.constant dense<0.000000e+00> : vector<16x100xf32>
    %579 = tpu.matmul %578, %576, %cst_188 {dimension_numbers = #tpu.dot_dimension_numbers<[1], [0], [0], [1], [0, 0, 1, 1], [], []>} : vector<16x8xf32>, vector<8x100xf32>, vector<16x100xf32> -> vector<16x100xf32>
    %580 = arith.addf %562, %579 : vector<16x100xf32>
    %c1_i32_189 = arith.constant 1 : i32
    %581 = vector.broadcast %c1_i32_189 : i32 to vector<1x100xi32>
    %582 = arith.addi %177, %581 : vector<1x100xi32>
    %583 = vector.broadcast %217 : vector<100x1xi32> to vector<100x100xi32>
    %584 = vector.broadcast %582 : vector<1x100xi32> to vector<100x100xi32>
    %585 = arith.cmpi eq, %583, %584 : vector<100x100xi32>
    %c0_i32_190 = arith.constant 0 : i32
    %586 = vector.broadcast %c0_i32_190 : i32 to vector<1x100xi32>
    %587 = arith.addi %180, %586 : vector<1x100xi32>
    %588 = vector.broadcast %220 : vector<100x1xi32> to vector<100x100xi32>
    %589 = vector.broadcast %587 : vector<1x100xi32> to vector<100x100xi32>
    %590 = arith.cmpi eq, %588, %589 : vector<100x100xi32>
    %591 = arith.andi %585, %590 : vector<100x100xi1>
    %592 = arith.extui %591 : vector<100x100xi1> to vector<100x100xi32>
    %593 = arith.sitofp %592 : vector<100x100xi32> to vector<100x100xf32>
    %cst_191 = arith.constant dense<0.000000e+00> : vector<8x100xf32>
    %594 = tpu.matmul %453, %593, %cst_191 {dimension_numbers = #tpu.dot_dimension_numbers<[1], [0], [0], [1], [0, 0, 1, 1], [], []>} : vector<8x100xf32>, vector<100x100xf32>, vector<8x100xf32> -> vector<8x100xf32>
    %c7_192 = arith.constant 7 : index
    %c0_193 = arith.constant 0 : index
    %c0_194 = arith.constant 0 : index
    %595 = vector.load %arg5[%c7_192, %c0_193, %c0_194] : memref<9x16x8xf32, #tpu.memory_space<vmem>>, vector<1x16x8xf32>
    %596 = vector.shape_cast %595 : vector<1x16x8xf32> to vector<16x8xf32>
    %cst_195 = arith.constant dense<0.000000e+00> : vector<16x100xf32>
    %597 = tpu.matmul %596, %594, %cst_195 {dimension_numbers = #tpu.dot_dimension_numbers<[1], [0], [0], [1], [0, 0, 1, 1], [], []>} : vector<16x8xf32>, vector<8x100xf32>, vector<16x100xf32> -> vector<16x100xf32>
    %598 = arith.addf %580, %597 : vector<16x100xf32>
    %c1_i32_196 = arith.constant 1 : i32
    %599 = vector.broadcast %c1_i32_196 : i32 to vector<1x100xi32>
    %600 = arith.addi %177, %599 : vector<1x100xi32>
    %601 = vector.broadcast %217 : vector<100x1xi32> to vector<100x100xi32>
    %602 = vector.broadcast %600 : vector<1x100xi32> to vector<100x100xi32>
    %603 = arith.cmpi eq, %601, %602 : vector<100x100xi32>
    %c1_i32_197 = arith.constant 1 : i32
    %604 = vector.broadcast %c1_i32_197 : i32 to vector<1x100xi32>
    %605 = arith.addi %180, %604 : vector<1x100xi32>
    %606 = vector.broadcast %220 : vector<100x1xi32> to vector<100x100xi32>
    %607 = vector.broadcast %605 : vector<1x100xi32> to vector<100x100xi32>
    %608 = arith.cmpi eq, %606, %607 : vector<100x100xi32>
    %609 = arith.andi %603, %608 : vector<100x100xi1>
    %610 = arith.extui %609 : vector<100x100xi1> to vector<100x100xi32>
    %611 = arith.sitofp %610 : vector<100x100xi32> to vector<100x100xf32>
    %cst_198 = arith.constant dense<0.000000e+00> : vector<8x100xf32>
    %612 = tpu.matmul %453, %611, %cst_198 {dimension_numbers = #tpu.dot_dimension_numbers<[1], [0], [0], [1], [0, 0, 1, 1], [], []>} : vector<8x100xf32>, vector<100x100xf32>, vector<8x100xf32> -> vector<8x100xf32>
    %c8_199 = arith.constant 8 : index
    %c0_200 = arith.constant 0 : index
    %c0_201 = arith.constant 0 : index
    %613 = vector.load %arg5[%c8_199, %c0_200, %c0_201] : memref<9x16x8xf32, #tpu.memory_space<vmem>>, vector<1x16x8xf32>
    %614 = vector.shape_cast %613 : vector<1x16x8xf32> to vector<16x8xf32>
    %cst_202 = arith.constant dense<0.000000e+00> : vector<16x100xf32>
    %615 = tpu.matmul %614, %612, %cst_202 {dimension_numbers = #tpu.dot_dimension_numbers<[1], [0], [0], [1], [0, 0, 1, 1], [], []>} : vector<16x8xf32>, vector<8x100xf32>, vector<16x100xf32> -> vector<16x100xf32>
    %616 = arith.addf %598, %615 : vector<16x100xf32>
    %c0_203 = arith.constant 0 : index
    %c0_204 = arith.constant 0 : index
    %617 = vector.load %arg6[%c0_203, %c0_204] : memref<16x1xf32, #tpu.memory_space<vmem>>, vector<16x1xf32>
    %618 = vector.broadcast %617 : vector<16x1xf32> to vector<16x100xf32>
    %619 = arith.addf %616, %618 : vector<16x100xf32>
    %cst_205 = arith.constant 0.000000e+00 : f32
    %620 = vector.broadcast %cst_205 : f32 to vector<16x100xf32>
    %621 = arith.maximumf %619, %620 : vector<16x100xf32>
    %622 = tpu.iota {dimensions = array<i32: 1>} : vector<1x64xi32>
    %c0_i32_206 = arith.constant 0 : i32
    %623 = vector.broadcast %c0_i32_206 : i32 to vector<1x64xi32>
    %c4_i32 = arith.constant 4 : i32
    %624 = vector.broadcast %c4_i32 : i32 to vector<1x64xi32>
    %625 = arith.cmpi sge, %622, %624 : vector<1x64xi32>
    %626 = arith.extui %625 : vector<1x64xi1> to vector<1x64xi32>
    %627 = arith.addi %623, %626 : vector<1x64xi32>
    %c8_i32 = arith.constant 8 : i32
    %628 = vector.broadcast %c8_i32 : i32 to vector<1x64xi32>
    %629 = arith.cmpi sge, %622, %628 : vector<1x64xi32>
    %630 = arith.extui %629 : vector<1x64xi1> to vector<1x64xi32>
    %631 = arith.addi %627, %630 : vector<1x64xi32>
    %c12_i32 = arith.constant 12 : i32
    %632 = vector.broadcast %c12_i32 : i32 to vector<1x64xi32>
    %633 = arith.cmpi sge, %622, %632 : vector<1x64xi32>
    %634 = arith.extui %633 : vector<1x64xi1> to vector<1x64xi32>
    %635 = arith.addi %631, %634 : vector<1x64xi32>
    %c16_i32 = arith.constant 16 : i32
    %636 = vector.broadcast %c16_i32 : i32 to vector<1x64xi32>
    %637 = arith.cmpi sge, %622, %636 : vector<1x64xi32>
    %638 = arith.extui %637 : vector<1x64xi1> to vector<1x64xi32>
    %639 = arith.addi %635, %638 : vector<1x64xi32>
    %c20_i32_207 = arith.constant 20 : i32
    %640 = vector.broadcast %c20_i32_207 : i32 to vector<1x64xi32>
    %641 = arith.cmpi sge, %622, %640 : vector<1x64xi32>
    %642 = arith.extui %641 : vector<1x64xi1> to vector<1x64xi32>
    %643 = arith.addi %639, %642 : vector<1x64xi32>
    %c24_i32 = arith.constant 24 : i32
    %644 = vector.broadcast %c24_i32 : i32 to vector<1x64xi32>
    %645 = arith.cmpi sge, %622, %644 : vector<1x64xi32>
    %646 = arith.extui %645 : vector<1x64xi1> to vector<1x64xi32>
    %647 = arith.addi %643, %646 : vector<1x64xi32>
    %c28_i32 = arith.constant 28 : i32
    %648 = vector.broadcast %c28_i32 : i32 to vector<1x64xi32>
    %649 = arith.cmpi sge, %622, %648 : vector<1x64xi32>
    %650 = arith.extui %649 : vector<1x64xi1> to vector<1x64xi32>
    %651 = arith.addi %647, %650 : vector<1x64xi32>
    %c32_i32 = arith.constant 32 : i32
    %652 = vector.broadcast %c32_i32 : i32 to vector<1x64xi32>
    %653 = arith.cmpi sge, %622, %652 : vector<1x64xi32>
    %654 = arith.extui %653 : vector<1x64xi1> to vector<1x64xi32>
    %655 = arith.addi %651, %654 : vector<1x64xi32>
    %c36_i32 = arith.constant 36 : i32
    %656 = vector.broadcast %c36_i32 : i32 to vector<1x64xi32>
    %657 = arith.cmpi sge, %622, %656 : vector<1x64xi32>
    %658 = arith.extui %657 : vector<1x64xi1> to vector<1x64xi32>
    %659 = arith.addi %655, %658 : vector<1x64xi32>
    %c40_i32_208 = arith.constant 40 : i32
    %660 = vector.broadcast %c40_i32_208 : i32 to vector<1x64xi32>
    %661 = arith.cmpi sge, %622, %660 : vector<1x64xi32>
    %662 = arith.extui %661 : vector<1x64xi1> to vector<1x64xi32>
    %663 = arith.addi %659, %662 : vector<1x64xi32>
    %c44_i32 = arith.constant 44 : i32
    %664 = vector.broadcast %c44_i32 : i32 to vector<1x64xi32>
    %665 = arith.cmpi sge, %622, %664 : vector<1x64xi32>
    %666 = arith.extui %665 : vector<1x64xi1> to vector<1x64xi32>
    %667 = arith.addi %663, %666 : vector<1x64xi32>
    %c48_i32 = arith.constant 48 : i32
    %668 = vector.broadcast %c48_i32 : i32 to vector<1x64xi32>
    %669 = arith.cmpi sge, %622, %668 : vector<1x64xi32>
    %670 = arith.extui %669 : vector<1x64xi1> to vector<1x64xi32>
    %671 = arith.addi %667, %670 : vector<1x64xi32>
    %c52_i32 = arith.constant 52 : i32
    %672 = vector.broadcast %c52_i32 : i32 to vector<1x64xi32>
    %673 = arith.cmpi sge, %622, %672 : vector<1x64xi32>
    %674 = arith.extui %673 : vector<1x64xi1> to vector<1x64xi32>
    %675 = arith.addi %671, %674 : vector<1x64xi32>
    %c56_i32 = arith.constant 56 : i32
    %676 = vector.broadcast %c56_i32 : i32 to vector<1x64xi32>
    %677 = arith.cmpi sge, %622, %676 : vector<1x64xi32>
    %678 = arith.extui %677 : vector<1x64xi1> to vector<1x64xi32>
    %679 = arith.addi %675, %678 : vector<1x64xi32>
    %c60_i32_209 = arith.constant 60 : i32
    %680 = vector.broadcast %c60_i32_209 : i32 to vector<1x64xi32>
    %681 = arith.cmpi sge, %622, %680 : vector<1x64xi32>
    %682 = arith.extui %681 : vector<1x64xi1> to vector<1x64xi32>
    %683 = arith.addi %679, %682 : vector<1x64xi32>
    %c4_i32_210 = arith.constant 4 : i32
    %684 = vector.broadcast %c4_i32_210 : i32 to vector<1x64xi32>
    %685 = arith.muli %684, %683 : vector<1x64xi32>
    %686 = arith.subi %622, %685 : vector<1x64xi32>
    %c5_i32 = arith.constant 5 : i32
    %687 = vector.broadcast %c5_i32 : i32 to vector<100x1xi32>
    %688 = arith.cmpi sge, %217, %687 : vector<100x1xi32>
    %689 = arith.extui %688 : vector<100x1xi1> to vector<100x1xi32>
    %c2_i32 = arith.constant 2 : i32
    %690 = vector.broadcast %c2_i32 : i32 to vector<100x1xi32>
    %691 = arith.muli %690, %689 : vector<100x1xi32>
    %c5_i32_211 = arith.constant 5 : i32
    %692 = vector.broadcast %c5_i32_211 : i32 to vector<100x1xi32>
    %693 = arith.cmpi sge, %220, %692 : vector<100x1xi32>
    %694 = arith.extui %693 : vector<100x1xi1> to vector<100x1xi32>
    %695 = arith.addi %691, %694 : vector<100x1xi32>
    %696 = vector.broadcast %695 : vector<100x1xi32> to vector<100x64xi32>
    %697 = vector.broadcast %686 : vector<1x64xi32> to vector<100x64xi32>
    %698 = arith.cmpi eq, %696, %697 : vector<100x64xi32>
    %699 = arith.extui %698 : vector<100x64xi1> to vector<100x64xi32>
    %700 = arith.sitofp %699 : vector<100x64xi32> to vector<100x64xf32>
    %cst_212 = arith.constant 2.500000e+01 : f32
    %701 = vector.broadcast %cst_212 : f32 to vector<100x64xf32>
    %702 = arith.divf %700, %701 : vector<100x64xf32>
    %703 = tpu.iota {dimensions = array<i32: 0>} : vector<16x1xi32>
    %704 = vector.broadcast %703 : vector<16x1xi32> to vector<16x64xi32>
    %705 = vector.broadcast %683 : vector<1x64xi32> to vector<16x64xi32>
    %706 = arith.cmpi eq, %704, %705 : vector<16x64xi32>
    %707 = arith.extui %706 : vector<16x64xi1> to vector<16x64xi32>
    %708 = arith.sitofp %707 : vector<16x64xi32> to vector<16x64xf32>
    %cst_213 = arith.constant dense<0.000000e+00> : vector<16x64xf32>
    %709 = tpu.matmul %621, %702, %cst_213 {dimension_numbers = #tpu.dot_dimension_numbers<[1], [0], [0], [1], [0, 0, 1, 1], [], []>} : vector<16x100xf32>, vector<100x64xf32>, vector<16x64xf32> -> vector<16x64xf32>
    %710 = arith.mulf %709, %708 : vector<16x64xf32>
    %cst_214 = arith.constant dense<0.000000e+00> : vector<64xf32>
    %711 = vector.multi_reduction <add>, %710, %cst_214 [0] : vector<16x64xf32> to vector<64xf32>
    %712 = vector.shape_cast %711 : vector<64xf32> to vector<1x64xf32>
    %c0_215 = arith.constant 0 : index
    %c0_216 = arith.constant 0 : index
    %713 = vector.load %arg11[%c0_215, %c0_216] : memref<64x32xf32, #tpu.memory_space<vmem>>, vector<64x32xf32>
    %cst_217 = arith.constant dense<0.000000e+00> : vector<1x32xf32>
    %714 = tpu.matmul %712, %713, %cst_217 {dimension_numbers = #tpu.dot_dimension_numbers<[1], [0], [0], [1], [0, 0, 1, 1], [], []>} : vector<1x64xf32>, vector<64x32xf32>, vector<1x32xf32> -> vector<1x32xf32>
    %c0_218 = arith.constant 0 : index
    %c0_219 = arith.constant 0 : index
    %715 = vector.load %arg12[%c0_218, %c0_219] : memref<1x32xf32, #tpu.memory_space<vmem>>, vector<1x32xf32>
    %716 = arith.addf %714, %715 : vector<1x32xf32>
    %cst_220 = arith.constant 0.000000e+00 : f32
    %717 = vector.broadcast %cst_220 : f32 to vector<1x32xf32>
    %718 = arith.maximumf %716, %717 : vector<1x32xf32>
    %c0_221 = arith.constant 0 : index
    %c0_222 = arith.constant 0 : index
    %719 = vector.load %arg13[%c0_221, %c0_222] : memref<32x32xf32, #tpu.memory_space<vmem>>, vector<32x32xf32>
    %cst_223 = arith.constant dense<0.000000e+00> : vector<1x32xf32>
    %720 = tpu.matmul %718, %719, %cst_223 {dimension_numbers = #tpu.dot_dimension_numbers<[1], [0], [0], [1], [0, 0, 1, 1], [], []>} : vector<1x32xf32>, vector<32x32xf32>, vector<1x32xf32> -> vector<1x32xf32>
    %c0_224 = arith.constant 0 : index
    %c0_225 = arith.constant 0 : index
    %721 = vector.load %arg14[%c0_224, %c0_225] : memref<1x32xf32, #tpu.memory_space<vmem>>, vector<1x32xf32>
    %722 = arith.addf %720, %721 : vector<1x32xf32>
    %c0_226 = arith.constant 0 : index
    %c0_227 = arith.constant 0 : index
    %723 = vector.load %arg7[%c0_226, %c0_227] : memref<20x32xf32, #tpu.memory_space<vmem>>, vector<20x32xf32>
    %cst_228 = arith.constant dense<0.000000e+00> : vector<1x32xf32>
    %724 = tpu.matmul %50, %723, %cst_228 {dimension_numbers = #tpu.dot_dimension_numbers<[1], [0], [0], [1], [0, 0, 1, 1], [], []>} : vector<1x20xf32>, vector<20x32xf32>, vector<1x32xf32> -> vector<1x32xf32>
    %c0_229 = arith.constant 0 : index
    %c0_230 = arith.constant 0 : index
    %725 = vector.load %arg8[%c0_229, %c0_230] : memref<1x32xf32, #tpu.memory_space<vmem>>, vector<1x32xf32>
    %726 = arith.addf %724, %725 : vector<1x32xf32>
    %cst_231 = arith.constant 0.000000e+00 : f32
    %727 = vector.broadcast %cst_231 : f32 to vector<1x32xf32>
    %728 = arith.maximumf %726, %727 : vector<1x32xf32>
    %c0_232 = arith.constant 0 : index
    %c0_233 = arith.constant 0 : index
    %729 = vector.load %arg9[%c0_232, %c0_233] : memref<32x32xf32, #tpu.memory_space<vmem>>, vector<32x32xf32>
    %cst_234 = arith.constant dense<0.000000e+00> : vector<1x32xf32>
    %730 = tpu.matmul %728, %729, %cst_234 {dimension_numbers = #tpu.dot_dimension_numbers<[1], [0], [0], [1], [0, 0, 1, 1], [], []>} : vector<1x32xf32>, vector<32x32xf32>, vector<1x32xf32> -> vector<1x32xf32>
    %c0_235 = arith.constant 0 : index
    %c0_236 = arith.constant 0 : index
    %731 = vector.load %arg10[%c0_235, %c0_236] : memref<1x32xf32, #tpu.memory_space<vmem>>, vector<1x32xf32>
    %732 = arith.addf %730, %731 : vector<1x32xf32>
    %c0_237 = arith.constant 0 : index
    %c0_238 = arith.constant 0 : index
    %733 = vector.load %arg15[%c0_237, %c0_238] : memref<32x32xf32, #tpu.memory_space<vmem>>, vector<32x32xf32>
    %cst_239 = arith.constant dense<0.000000e+00> : vector<1x32xf32>
    %734 = tpu.matmul %732, %733, %cst_239 {dimension_numbers = #tpu.dot_dimension_numbers<[1], [0], [0], [1], [0, 0, 1, 1], [], []>} : vector<1x32xf32>, vector<32x32xf32>, vector<1x32xf32> -> vector<1x32xf32>
    %c0_240 = arith.constant 0 : index
    %c0_241 = arith.constant 0 : index
    %735 = vector.load %arg16[%c0_240, %c0_241] : memref<32x32xf32, #tpu.memory_space<vmem>>, vector<32x32xf32>
    %cst_242 = arith.constant dense<0.000000e+00> : vector<1x32xf32>
    %736 = tpu.matmul %722, %735, %cst_242 {dimension_numbers = #tpu.dot_dimension_numbers<[1], [0], [0], [1], [0, 0, 1, 1], [], []>} : vector<1x32xf32>, vector<32x32xf32>, vector<1x32xf32> -> vector<1x32xf32>
    %737 = arith.addf %734, %736 : vector<1x32xf32>
    %c0_243 = arith.constant 0 : index
    %c0_244 = arith.constant 0 : index
    %738 = vector.load %arg17[%c0_243, %c0_244] : memref<1x32xf32, #tpu.memory_space<vmem>>, vector<1x32xf32>
    %739 = arith.addf %737, %738 : vector<1x32xf32>
    %cst_245 = arith.constant dense<0.000000e+00> : vector<1xf32>
    %740 = vector.multi_reduction <add>, %739, %cst_245 [1] : vector<1x32xf32> to vector<1xf32>
    %741 = vector.shape_cast %740 : vector<1xf32> to vector<1x1xf32>
    %cst_246 = arith.constant 3.200000e+01 : f32
    %742 = vector.broadcast %cst_246 : f32 to vector<1x1xf32>
    %743 = arith.divf %741, %742 : vector<1x1xf32>
    %744 = vector.broadcast %743 : vector<1x1xf32> to vector<1x32xf32>
    %745 = arith.subf %739, %744 : vector<1x32xf32>
    %746 = arith.mulf %745, %745 : vector<1x32xf32>
    %cst_247 = arith.constant dense<0.000000e+00> : vector<1xf32>
    %747 = vector.multi_reduction <add>, %746, %cst_247 [1] : vector<1x32xf32> to vector<1xf32>
    %748 = vector.shape_cast %747 : vector<1xf32> to vector<1x1xf32>
    %cst_248 = arith.constant 3.200000e+01 : f32
    %749 = vector.broadcast %cst_248 : f32 to vector<1x1xf32>
    %750 = arith.divf %748, %749 : vector<1x1xf32>
    %751 = vector.broadcast %743 : vector<1x1xf32> to vector<1x32xf32>
    %752 = arith.subf %739, %751 : vector<1x32xf32>
    %cst_249 = arith.constant 9.99999974E-6 : f32
    %753 = vector.broadcast %cst_249 : f32 to vector<1x1xf32>
    %754 = arith.addf %750, %753 : vector<1x1xf32>
    %755 = math.rsqrt %754 : vector<1x1xf32>
    %756 = vector.broadcast %755 : vector<1x1xf32> to vector<1x32xf32>
    %757 = arith.mulf %752, %756 : vector<1x32xf32>
    %c0_250 = arith.constant 0 : index
    %c0_251 = arith.constant 0 : index
    %758 = vector.load %arg18[%c0_250, %c0_251] : memref<1x32xf32, #tpu.memory_space<vmem>>, vector<1x32xf32>
    %759 = arith.mulf %757, %758 : vector<1x32xf32>
    %c0_252 = arith.constant 0 : index
    %c0_253 = arith.constant 0 : index
    %760 = vector.load %arg19[%c0_252, %c0_253] : memref<1x32xf32, #tpu.memory_space<vmem>>, vector<1x32xf32>
    %761 = arith.addf %759, %760 : vector<1x32xf32>
    %c0_254 = arith.constant 0 : index
    %c0_255 = arith.constant 0 : index
    %c0_256 = arith.constant 0 : index
    %762 = vector.load %arg20[%c0_254, %c0_255, %c0_256] : memref<1x1x32xf32, #tpu.memory_space<vmem>>, vector<1x1x32xf32>
    %763 = vector.shape_cast %762 : vector<1x1x32xf32> to vector<1x32xf32>
    %764 = vector.shape_cast %761 : vector<1x32xf32> to vector<1x1x32xf32>
    tpu.vector_store %arg20[%c0_254, %c0_255, %c0_256], %764 {strides = array<i32>} : memref<1x1x32xf32, #tpu.memory_space<vmem>>, vector<1x1x32xf32>,
    return
  }
  func.func @transform_0(%arg0: i32) -> (i32, i32, i32) {
    %c0_i32 = arith.constant 0 : i32
    %c0_i32_0 = arith.constant 0 : i32
    %c0_i32_1 = arith.constant 0 : i32
    return %arg0, %c0_i32, %c0_i32_0 : i32, i32, i32
  }
  func.func @transform_1(%arg0: i32) -> (i32, i32) {
    %c0_i32 = arith.constant 0 : i32
    %c0_i32_0 = arith.constant 0 : i32
    %c0_i32_1 = arith.constant 0 : i32
    return %c0_i32, %c0_i32_0 : i32, i32
  }
  func.func @transform_2(%arg0: i32) -> (i32, i32, i32) {
    %c0_i32 = arith.constant 0 : i32
    %c0_i32_0 = arith.constant 0 : i32
    %c0_i32_1 = arith.constant 0 : i32
    %c0_i32_2 = arith.constant 0 : i32
    return %c0_i32, %c0_i32_0, %c0_i32_1 : i32, i32, i32
  }
  func.func @transform_3(%arg0: i32) -> (i32, i32) {
    %c0_i32 = arith.constant 0 : i32
    %c0_i32_0 = arith.constant 0 : i32
    %c0_i32_1 = arith.constant 0 : i32
    return %c0_i32, %c0_i32_0 : i32, i32
  }
  func.func @transform_4(%arg0: i32) -> (i32, i32, i32) {
    %c0_i32 = arith.constant 0 : i32
    %c0_i32_0 = arith.constant 0 : i32
    %c0_i32_1 = arith.constant 0 : i32
    %c0_i32_2 = arith.constant 0 : i32
    return %c0_i32, %c0_i32_0, %c0_i32_1 : i32, i32, i32
  }
  func.func @transform_5(%arg0: i32) -> (i32, i32) {
    %c0_i32 = arith.constant 0 : i32
    %c0_i32_0 = arith.constant 0 : i32
    %c0_i32_1 = arith.constant 0 : i32
    return %c0_i32, %c0_i32_0 : i32, i32
  }
  func.func @transform_6(%arg0: i32) -> (i32, i32) {
    %c0_i32 = arith.constant 0 : i32
    %c0_i32_0 = arith.constant 0 : i32
    %c0_i32_1 = arith.constant 0 : i32
    return %c0_i32, %c0_i32_0 : i32, i32
  }
  func.func @transform_7(%arg0: i32) -> (i32, i32) {
    %c0_i32 = arith.constant 0 : i32
    %c0_i32_0 = arith.constant 0 : i32
    %c0_i32_1 = arith.constant 0 : i32
    return %c0_i32, %c0_i32_0 : i32, i32
  }
  func.func @transform_8(%arg0: i32) -> (i32, i32) {
    %c0_i32 = arith.constant 0 : i32
    %c0_i32_0 = arith.constant 0 : i32
    %c0_i32_1 = arith.constant 0 : i32
    return %c0_i32, %c0_i32_0 : i32, i32
  }
  func.func @transform_9(%arg0: i32) -> (i32, i32) {
    %c0_i32 = arith.constant 0 : i32
    %c0_i32_0 = arith.constant 0 : i32
    %c0_i32_1 = arith.constant 0 : i32
    return %c0_i32, %c0_i32_0 : i32, i32
  }
  func.func @transform_10(%arg0: i32) -> (i32, i32) {
    %c0_i32 = arith.constant 0 : i32
    %c0_i32_0 = arith.constant 0 : i32
    %c0_i32_1 = arith.constant 0 : i32
    return %c0_i32, %c0_i32_0 : i32, i32
  }
  func.func @transform_11(%arg0: i32) -> (i32, i32) {
    %c0_i32 = arith.constant 0 : i32
    %c0_i32_0 = arith.constant 0 : i32
    %c0_i32_1 = arith.constant 0 : i32
    return %c0_i32, %c0_i32_0 : i32, i32
  }
  func.func @transform_12(%arg0: i32) -> (i32, i32) {
    %c0_i32 = arith.constant 0 : i32
    %c0_i32_0 = arith.constant 0 : i32
    %c0_i32_1 = arith.constant 0 : i32
    return %c0_i32, %c0_i32_0 : i32, i32
  }
  func.func @transform_13(%arg0: i32) -> (i32, i32) {
    %c0_i32 = arith.constant 0 : i32
    %c0_i32_0 = arith.constant 0 : i32
    %c0_i32_1 = arith.constant 0 : i32
    return %c0_i32, %c0_i32_0 : i32, i32
  }
  func.func @transform_14(%arg0: i32) -> (i32, i32) {
    %c0_i32 = arith.constant 0 : i32
    %c0_i32_0 = arith.constant 0 : i32
    %c0_i32_1 = arith.constant 0 : i32
    return %c0_i32, %c0_i32_0 : i32, i32
  }
  func.func @transform_15(%arg0: i32) -> (i32, i32) {
    %c0_i32 = arith.constant 0 : i32
    %c0_i32_0 = arith.constant 0 : i32
    %c0_i32_1 = arith.constant 0 : i32
    return %c0_i32, %c0_i32_0 : i32, i32
  }
  func.func @transform_16(%arg0: i32) -> (i32, i32) {
    %c0_i32 = arith.constant 0 : i32
    %c0_i32_0 = arith.constant 0 : i32
    %c0_i32_1 = arith.constant 0 : i32
    return %c0_i32, %c0_i32_0 : i32, i32
  }
  func.func @transform_17(%arg0: i32) -> (i32, i32) {
    %c0_i32 = arith.constant 0 : i32
    %c0_i32_0 = arith.constant 0 : i32
    %c0_i32_1 = arith.constant 0 : i32
    return %c0_i32, %c0_i32_0 : i32, i32
  }
  func.func @transform_18(%arg0: i32) -> (i32, i32) {
    %c0_i32 = arith.constant 0 : i32
    %c0_i32_0 = arith.constant 0 : i32
    %c0_i32_1 = arith.constant 0 : i32
    return %c0_i32, %c0_i32_0 : i32, i32
  }
  func.func @transform_19(%arg0: i32) -> (i32, i32, i32) {
    %c0_i32 = arith.constant 0 : i32
    %c0_i32_0 = arith.constant 0 : i32
    %c0_i32_1 = arith.constant 0 : i32
    return %arg0, %c0_i32, %c0_i32_0 : i32, i32, i32
  }
  func.func @transform_20(%arg0: i32) -> (i32, i32, i32, i32) {
    %c0_i32 = arith.constant 0 : i32
    %c0_i32_0 = arith.constant 0 : i32
    %c0_i32_1 = arith.constant 0 : i32
    %c0_i32_2 = arith.constant 0 : i32
    return %arg0, %c0_i32, %c0_i32_0, %c0_i32_1 : i32, i32, i32, i32
  }
  func.func @transform_21(%arg0: i32) -> (i32, i32, i32) {
    %c0_i32 = arith.constant 0 : i32
    %c0_i32_0 = arith.constant 0 : i32
    %c0_i32_1 = arith.constant 0 : i32
    return %arg0, %c0_i32, %c0_i32_0 : i32, i32, i32
  }
  func.func @transform_22(%arg0: i32) -> (i32, i32, i32) {
    %c0_i32 = arith.constant 0 : i32
    %c0_i32_0 = arith.constant 0 : i32
    %c0_i32_1 = arith.constant 0 : i32
    return %arg0, %c0_i32, %c0_i32_0 : i32, i32, i32
  }
}

</mosaic_0001>

<llo_original>
// kernel: topological_feature_extraction.1
$region0: #{topological_feature_extraction.1}
  #allocation0 [shape = 'u32[]', space=smem, size = 0x4, offset = 0x4, fixed_abs, tag = 'smem constant byte address 0x4 - core index']
  #allocation1 [shape = 'u32[144,128]{1,0:T(1,128)}', space=vmem, size = 0x12000, scoped, tag = 'internal scratch']
  %s0 = inlined_call_operand.vmem [shape: f32[2,16,32], index: 0, kind: input, shape index: {}]
  %s1 = inlined_call_operand.vmem [shape: f32[1,20], index: 1, kind: input, shape index: {}]
  %s2 = inlined_call_operand.vmem [shape: f32[9,8,2], index: 2, kind: input, shape index: {}]
  %s3 = inlined_call_operand.vmem [shape: f32[8,1], index: 3, kind: input, shape index: {}]
  %s4 = inlined_call_operand.vmem [shape: f32[9,16,8], index: 4, kind: input, shape index: {}]
  %s5 = inlined_call_operand.vmem [shape: f32[16,1], index: 5, kind: input, shape index: {}]
  %s6 = inlined_call_operand.vmem [shape: f32[20,32], index: 6, kind: input, shape index: {}]
  %s7 = inlined_call_operand.vmem [shape: f32[1,32], index: 7, kind: input, shape index: {}]
  %s8 = inlined_call_operand.vmem [shape: f32[32,32], index: 8, kind: input, shape index: {}]
  %s9 = inlined_call_operand.vmem [shape: f32[1,32], index: 9, kind: input, shape index: {}]
  %s10 = inlined_call_operand.vmem [shape: f32[64,32], index: 10, kind: input, shape index: {}]
  %s11 = inlined_call_operand.vmem [shape: f32[1,32], index: 11, kind: input, shape index: {}]
  %s12 = inlined_call_operand.vmem [shape: f32[32,32], index: 12, kind: input, shape index: {}]
  %s13 = inlined_call_operand.vmem [shape: f32[1,32], index: 13, kind: input, shape index: {}]
  %s14 = inlined_call_operand.vmem [shape: f32[32,32], index: 14, kind: input, shape index: {}]
  %s15 = inlined_call_operand.vmem [shape: f32[32,32], index: 15, kind: input, shape index: {}]
  %s16 = inlined_call_operand.vmem [shape: f32[1,32], index: 16, kind: input, shape index: {}]
  %s17 = inlined_call_operand.vmem [shape: f32[1,32], index: 17, kind: input, shape index: {}]
  %s18 = inlined_call_operand.vmem [shape: f32[1,32], index: 18, kind: input, shape index: {}]
  %s19 = inlined_call_operand.hbm [shape: f32[2,1,32], index: 19, kind: output, shape index: {0}]
  %s20 = inlined_call_operand.hbm [shape: f32[2,2,2,20], index: 20, kind: output, shape index: {1}]
  %s21 = inlined_call_operand.hbm [shape: f32[2,2,20], index: 21, kind: output, shape index: {2}]
  %s22 = inlined_call_operand.vmem [shape: f32[2,2,100], index: 22, kind: output, shape index: {3}]
  %23 = xla_tuple %s19, %s20, %s21, %s22
  %s24 = sld [smem:[#allocation0]]
  $region133: #{topological_feature_extraction.1} parent=0
    _
  %s26 = ssub.s32 1, %s24
  %s27 = scalar_select 0, %s26, %s24
  $region1: #{topological_feature_extraction.1} parent=0
    #allocation2 [shape = 'u8[1024]{0}', space=vmem, size = 0x400, scoped, tag = 'output window, operand 0']
    #allocation3 [shape = 's32[2]{0}', space=sflag, size = 0x8, scoped, tag = 'scoped memory for topological_feature_extraction.1']
    #allocation4 [shape = 'u8[4096]{0}', space=vmem, size = 0x1000, scoped, tag = 'output window, operand 1']
    #allocation5 [shape = 's32[2]{0}', space=sflag, size = 0x8, scoped, tag = 'scoped memory for topological_feature_extraction.1']
    #allocation6 [shape = 'u8[2048]{0}', space=vmem, size = 0x800, scoped, tag = 'output window, operand 2']
    %28 = vsyncpa [#allocation3], 0
    %s29 = scalar_lea.sflag [#allocation3], 1
    %30 = vsyncpa %s29, 0
    %31 = vsyncpa [#allocation5], 0
    %s32 = scalar_lea.sflag [#allocation5], 1
    %33 = vsyncpa %s32, 0
    loop: start=0, step=1, limit=4
    $region2: #{topological_feature_extraction.1} parent=1 // loop_pre_header
      _
    $region3: #{topological_feature_extraction.1} parent=1 // loop_header
      %s35 = sphi 0, %s39
      %p36 = scmp.ge.s32.totalorder %s35, 4
      %s45 = sphi 0, %s47
      %s48 = sphi 0, %s45
      %s49 = sphi 0, %s48
      %s65 = sphi 0, %s49
      %s69 = sphi 0, %s69
      %s71 = sphi 0, %s69
      %s72 = sphi 0, %s71
      %s86 = sphi 0, %s72
      %s90 = sphi 0, %s90
      %s92 = sphi 0, %s90
      %s93 = sphi 0, %s92
      %s107 = sphi 0, %s93
      %s111 = sphi 0, %s111
      %s113 = sphi 0, %s111
      %s114 = sphi 0, %s113
      %s128 = sphi 0, %s114
      %s132 = sphi 0, %s132
      %s134 = sphi 0, %s132
      %s135 = sphi 0, %s134
      %s149 = sphi 0, %s135
      %s153 = sphi 0, %s153
      %s155 = sphi 0, %s153
      %s156 = sphi 0, %s155
      %s170 = sphi 0, %s156
      %s174 = sphi 0, %s174
      %s176 = sphi 0, %s174
      %s177 = sphi 0, %s176
      %s191 = sphi 0, %s177
      %s195 = sphi 0, %s195
      %s197 = sphi 0, %s195
      %s198 = sphi 0, %s197
      %s212 = sphi 0, %s198
      %s216 = sphi 0, %s216
      %s218 = sphi 0, %s216
      %s219 = sphi 0, %s218
      %s233 = sphi 0, %s219
      %s237 = sphi 0, %s237
      %s239 = sphi 0, %s237
      %s240 = sphi 0, %s239
      %s254 = sphi 0, %s240
      %s258 = sphi 0, %s258
      %s260 = sphi 0, %s258
      %s261 = sphi 0, %s260
      %s275 = sphi 0, %s261
      %s279 = sphi 0, %s279
      %s281 = sphi 0, %s279
      %s282 = sphi 0, %s281
      %s296 = sphi 0, %s282
      %s300 = sphi 0, %s300
      %s302 = sphi 0, %s300
      %s303 = sphi 0, %s302
      %s317 = sphi 0, %s303
      %s321 = sphi 0, %s321
      %s323 = sphi 0, %s321
      %s324 = sphi 0, %s323
      %s338 = sphi 0, %s324
      %s342 = sphi 0, %s342
      %s344 = sphi 0, %s342
      %s345 = sphi 0, %s344
      %s359 = sphi 0, %s345
      %s363 = sphi 0, %s363
      %s365 = sphi 0, %s363
      %s366 = sphi 0, %s365
      %s380 = sphi 0, %s366
      %s384 = sphi 0, %s384
      %s386 = sphi 0, %s384
      %s387 = sphi 0, %s386
      %s401 = sphi 0, %s387
      %s405 = sphi 0, %s405
      %s407 = sphi 0, %s405
      %s408 = sphi 0, %s407
      %s422 = sphi 0, %s408
      %s426 = sphi 0, %s426
      %s428 = sphi 0, %s426
      %s429 = sphi 0, %s428
      %s443 = sphi 0, %s429
      %s449 = sphi 0, %s451
      %s452 = sphi 0, %s449
      %s453 = sphi 0, %s452
      %s469 = sphi 0, %s453
      %s475 = sphi 0, %s477
      %s478 = sphi 0, %s475
      %s479 = sphi 0, %s478
      %s495 = sphi 0, %s479
      %s501 = sphi 0, %s503
      %s504 = sphi 0, %s501
      %s505 = sphi 0, %s504
      %s521 = sphi 0, %s505
      %s527 = sphi 0, %s529
      %s530 = sphi 0, %s527
      %s531 = sphi 0, %s530
      %s547 = sphi 0, %s531
    $region4: #{topological_feature_extraction.1} parent=1 // loop_header_branch
      %38 = sbr.rel (%p36) target = $region8
    $region5: #{topological_feature_extraction.1} parent=1 // loop_body
      %s40 = ssub.s32 %s35, 1
      %s41 = ssub.s32 %s35, 2
      %s42 = sadd.s32 %s35, 1
      %s43 = ssub.s32 %s35, %s42
      %p44 = scmp.eq.s32.totalorder %s43, 0
      %s46 = sadd.s32 %s45, 1
      %s47 = scalar_select %p44, %s45, %s46
      %p50 = pneg %p44
      %p51 = scmp.eq.s32.totalorder %s35, 1
      %p52 = por %p50, %p51
      %p53 = scmp.ne.s32.totalorder %s45, %s48
      %p54 = scmp.eq.s32.totalorder %s35, 0
      %p55 = por %p53, %p54
      %p56 = scmp.ne.s32.totalorder %s45, %s48
      %p57 = scmp.eq.s32.totalorder %s40, 1
      %p58 = por %p56, %p57
      %p59 = scmp.ne.s32.totalorder %s48, %s49
      %p60 = scmp.eq.s32.totalorder %s40, 0
      %p61 = por %p59, %p60
      %p62 = scmp.ne.s32.totalorder %s48, %s49
      %p63 = scmp.eq.s32.totalorder %s41, 1
      %p64 = por %p62, %p63
      %p66 = scmp.ne.s32.totalorder %s49, %s65
      %p67 = scmp.eq.s32.totalorder %s41, 0
      %p68 = por %p66, %p67
      %s70 = sadd.s32 %s69, 1
      %p73 = scmp.eq.s32.totalorder %s35, 1
      %p74 = scmp.ne.s32.totalorder %s69, %s71
      %p75 = scmp.eq.s32.totalorder %s35, 0
      %p76 = por %p74, %p75
      %p77 = scmp.ne.s32.totalorder %s69, %s71
      %p78 = scmp.eq.s32.totalorder %s40, 1
      %p79 = por %p77, %p78
      %p80 = scmp.ne.s32.totalorder %s71, %s72
      %p81 = scmp.eq.s32.totalorder %s40, 0
      %p82 = por %p80, %p81
      %p83 = scmp.ne.s32.totalorder %s71, %s72
      %p84 = scmp.eq.s32.totalorder %s41, 1
      %p85 = por %p83, %p84
      %p87 = scmp.ne.s32.totalorder %s72, %s86
      %p88 = scmp.eq.s32.totalorder %s41, 0
      %p89 = por %p87, %p88
      %s91 = sadd.s32 %s90, 1
      %p94 = scmp.eq.s32.totalorder %s35, 1
      %p95 = scmp.ne.s32.totalorder %s90, %s92
      %p96 = scmp.eq.s32.totalorder %s35, 0
      %p97 = por %p95, %p96
      %p98 = scmp.ne.s32.totalorder %s90, %s92
      %p99 = scmp.eq.s32.totalorder %s40, 1
      %p100 = por %p98, %p99
      %p101 = scmp.ne.s32.totalorder %s92, %s93
      %p102 = scmp.eq.s32.totalorder %s40, 0
      %p103 = por %p101, %p102
      %p104 = scmp.ne.s32.totalorder %s92, %s93
      %p105 = scmp.eq.s32.totalorder %s41, 1
      %p106 = por %p104, %p105
      %p108 = scmp.ne.s32.totalorder %s93, %s107
      %p109 = scmp.eq.s32.totalorder %s41, 0
      %p110 = por %p108, %p109
      %s112 = sadd.s32 %s111, 1
      %p115 = scmp.eq.s32.totalorder %s35, 1
      %p116 = scmp.ne.s32.totalorder %s111, %s113
      %p117 = scmp.eq.s32.totalorder %s35, 0
      %p118 = por %p116, %p117
      %p119 = scmp.ne.s32.totalorder %s111, %s113
      %p120 = scmp.eq.s32.totalorder %s40, 1
      %p121 = por %p119, %p120
      %p122 = scmp.ne.s32.totalorder %s113, %s114
      %p123 = scmp.eq.s32.totalorder %s40, 0
      %p124 = por %p122, %p123
      %p125 = scmp.ne.s32.totalorder %s113, %s114
      %p126 = scmp.eq.s32.totalorder %s41, 1
      %p127 = por %p125, %p126
      %p129 = scmp.ne.s32.totalorder %s114, %s128
      %p130 = scmp.eq.s32.totalorder %s41, 0
      %p131 = por %p129, %p130
      %s133 = sadd.s32 %s132, 1
      %p136 = scmp.eq.s32.totalorder %s35, 1
      %p137 = scmp.ne.s32.totalorder %s132, %s134
      %p138 = scmp.eq.s32.totalorder %s35, 0
      %p139 = por %p137, %p138
      %p140 = scmp.ne.s32.totalorder %s132, %s134
      %p141 = scmp.eq.s32.totalorder %s40, 1
      %p142 = por %p140, %p141
      %p143 = scmp.ne.s32.totalorder %s134, %s135
      %p144 = scmp.eq.s32.totalorder %s40, 0
      %p145 = por %p143, %p144
      %p146 = scmp.ne.s32.totalorder %s134, %s135
      %p147 = scmp.eq.s32.totalorder %s41, 1
      %p148 = por %p146, %p147
      %p150 = scmp.ne.s32.totalorder %s135, %s149
      %p151 = scmp.eq.s32.totalorder %s41, 0
      %p152 = por %p150, %p151
      %s154 = sadd.s32 %s153, 1
      %p157 = scmp.eq.s32.totalorder %s35, 1
      %p158 = scmp.ne.s32.totalorder %s153, %s155
      %p159 = scmp.eq.s32.totalorder %s35, 0
      %p160 = por %p158, %p159
      %p161 = scmp.ne.s32.totalorder %s153, %s155
      %p162 = scmp.eq.s32.totalorder %s40, 1
      %p163 = por %p161, %p162
      %p164 = scmp.ne.s32.totalorder %s155, %s156
      %p165 = scmp.eq.s32.totalorder %s40, 0
      %p166 = por %p164, %p165
      %p167 = scmp.ne.s32.totalorder %s155, %s156
      %p168 = scmp.eq.s32.totalorder %s41, 1
      %p169 = por %p167, %p168
      %p171 = scmp.ne.s32.totalorder %s156, %s170
      %p172 = scmp.eq.s32.totalorder %s41, 0
      %p173 = por %p171, %p172
      %s175 = sadd.s32 %s174, 1
      %p178 = scmp.eq.s32.totalorder %s35, 1
      %p179 = scmp.ne.s32.totalorder %s174, %s176
      %p180 = scmp.eq.s32.totalorder %s35, 0
      %p181 = por %p179, %p180
      %p182 = scmp.ne.s32.totalorder %s174, %s176
      %p183 = scmp.eq.s32.totalorder %s40, 1
      %p184 = por %p182, %p183
      %p185 = scmp.ne.s32.totalorder %s176, %s177
      %p186 = scmp.eq.s32.totalorder %s40, 0
      %p187 = por %p185, %p186
      %p188 = scmp.ne.s32.totalorder %s176, %s177
      %p189 = scmp.eq.s32.totalorder %s41, 1
      %p190 = por %p188, %p189
      %p192 = scmp.ne.s32.totalorder %s177, %s191
      %p193 = scmp.eq.s32.totalorder %s41, 0
      %p194 = por %p192, %p193
      %s196 = sadd.s32 %s195, 1
      %p199 = scmp.eq.s32.totalorder %s35, 1
      %p200 = scmp.ne.s32.totalorder %s195, %s197
      %p201 = scmp.eq.s32.totalorder %s35, 0
      %p202 = por %p200, %p201
      %p203 = scmp.ne.s32.totalorder %s195, %s197
      %p204 = scmp.eq.s32.totalorder %s40, 1
      %p205 = por %p203, %p204
      %p206 = scmp.ne.s32.totalorder %s197, %s198
      %p207 = scmp.eq.s32.totalorder %s40, 0
      %p208 = por %p206, %p207
      %p209 = scmp.ne.s32.totalorder %s197, %s198
      %p210 = scmp.eq.s32.totalorder %s41, 1
      %p211 = por %p209, %p210
      %p213 = scmp.ne.s32.totalorder %s198, %s212
      %p214 = scmp.eq.s32.totalorder %s41, 0
      %p215 = por %p213, %p214
      %s217 = sadd.s32 %s216, 1
      %p220 = scmp.eq.s32.totalorder %s35, 1
      %p221 = scmp.ne.s32.totalorder %s216, %s218
      %p222 = scmp.eq.s32.totalorder %s35, 0
      %p223 = por %p221, %p222
      %p224 = scmp.ne.s32.totalorder %s216, %s218
      %p225 = scmp.eq.s32.totalorder %s40, 1
      %p226 = por %p224, %p225
      %p227 = scmp.ne.s32.totalorder %s218, %s219
      %p228 = scmp.eq.s32.totalorder %s40, 0
      %p229 = por %p227, %p228
      %p230 = scmp.ne.s32.totalorder %s218, %s219
      %p231 = scmp.eq.s32.totalorder %s41, 1
      %p232 = por %p230, %p231
      %p234 = scmp.ne.s32.totalorder %s219, %s233
      %p235 = scmp.eq.s32.totalorder %s41, 0
      %p236 = por %p234, %p235
      %s238 = sadd.s32 %s237, 1
      %p241 = scmp.eq.s32.totalorder %s35, 1
      %p242 = scmp.ne.s32.totalorder %s237, %s239
      %p243 = scmp.eq.s32.totalorder %s35, 0
      %p244 = por %p242, %p243
      %p245 = scmp.ne.s32.totalorder %s237, %s239
      %p246 = scmp.eq.s32.totalorder %s40, 1
      %p247 = por %p245, %p246
      %p248 = scmp.ne.s32.totalorder %s239, %s240
      %p249 = scmp.eq.s32.totalorder %s40, 0
      %p250 = por %p248, %p249
      %p251 = scmp.ne.s32.totalorder %s239, %s240
      %p252 = scmp.eq.s32.totalorder %s41, 1
      %p253 = por %p251, %p252
      %p255 = scmp.ne.s32.totalorder %s240, %s254
      %p256 = scmp.eq.s32.totalorder %s41, 0
      %p257 = por %p255, %p256
      %s259 = sadd.s32 %s258, 1
      %p262 = scmp.eq.s32.totalorder %s35, 1
      %p263 = scmp.ne.s32.totalorder %s258, %s260
      %p264 = scmp.eq.s32.totalorder %s35, 0
      %p265 = por %p263, %p264
      %p266 = scmp.ne.s32.totalorder %s258, %s260
      %p267 = scmp.eq.s32.totalorder %s40, 1
      %p268 = por %p266, %p267
      %p269 = scmp.ne.s32.totalorder %s260, %s261
      %p270 = scmp.eq.s32.totalorder %s40, 0
      %p271 = por %p269, %p270
      %p272 = scmp.ne.s32.totalorder %s260, %s261
      %p273 = scmp.eq.s32.totalorder %s41, 1
      %p274 = por %p272, %p273
      %p276 = scmp.ne.s32.totalorder %s261, %s275
      %p277 = scmp.eq.s32.totalorder %s41, 0
      %p278 = por %p276, %p277
      %s280 = sadd.s32 %s279, 1
      %p283 = scmp.eq.s32.totalorder %s35, 1
      %p284 = scmp.ne.s32.totalorder %s279, %s281
      %p285 = scmp.eq.s32.totalorder %s35, 0
      %p286 = por %p284, %p285
      %p287 = scmp.ne.s32.totalorder %s279, %s281
      %p288 = scmp.eq.s32.totalorder %s40, 1
      %p289 = por %p287, %p288
      %p290 = scmp.ne.s32.totalorder %s281, %s282
      %p291 = scmp.eq.s32.totalorder %s40, 0
      %p292 = por %p290, %p291
      %p293 = scmp.ne.s32.totalorder %s281, %s282
      %p294 = scmp.eq.s32.totalorder %s41, 1
      %p295 = por %p293, %p294
      %p297 = scmp.ne.s32.totalorder %s282, %s296
      %p298 = scmp.eq.s32.totalorder %s41, 0
      %p299 = por %p297, %p298
      %s301 = sadd.s32 %s300, 1
      %p304 = scmp.eq.s32.totalorder %s35, 1
      %p305 = scmp.ne.s32.totalorder %s300, %s302
      %p306 = scmp.eq.s32.totalorder %s35, 0
      %p307 = por %p305, %p306
      %p308 = scmp.ne.s32.totalorder %s300, %s302
      %p309 = scmp.eq.s32.totalorder %s40, 1
      %p310 = por %p308, %p309
      %p311 = scmp.ne.s32.totalorder %s302, %s303
      %p312 = scmp.eq.s32.totalorder %s40, 0
      %p313 = por %p311, %p312
      %p314 = scmp.ne.s32.totalorder %s302, %s303
      %p315 = scmp.eq.s32.totalorder %s41, 1
      %p316 = por %p314, %p315
      %p318 = scmp.ne.s32.totalorder %s303, %s317
      %p319 = scmp.eq.s32.totalorder %s41, 0
      %p320 = por %p318, %p319
      %s322 = sadd.s32 %s321, 1
      %p325 = scmp.eq.s32.totalorder %s35, 1
      %p326 = scmp.ne.s32.totalorder %s321, %s323
      %p327 = scmp.eq.s32.totalorder %s35, 0
      %p328 = por %p326, %p327
      %p329 = scmp.ne.s32.totalorder %s321, %s323
      %p330 = scmp.eq.s32.totalorder %s40, 1
      %p331 = por %p329, %p330
      %p332 = scmp.ne.s32.totalorder %s323, %s324
      %p333 = scmp.eq.s32.totalorder %s40, 0
      %p334 = por %p332, %p333
      %p335 = scmp.ne.s32.totalorder %s323, %s324
      %p336 = scmp.eq.s32.totalorder %s41, 1
      %p337 = por %p335, %p336
      %p339 = scmp.ne.s32.totalorder %s324, %s338
      %p340 = scmp.eq.s32.totalorder %s41, 0
      %p341 = por %p339, %p340
      %s343 = sadd.s32 %s342, 1
      %p346 = scmp.eq.s32.totalorder %s35, 1
      %p347 = scmp.ne.s32.totalorder %s342, %s344
      %p348 = scmp.eq.s32.totalorder %s35, 0
      %p349 = por %p347, %p348
      %p350 = scmp.ne.s32.totalorder %s342, %s344
      %p351 = scmp.eq.s32.totalorder %s40, 1
      %p352 = por %p350, %p351
      %p353 = scmp.ne.s32.totalorder %s344, %s345
      %p354 = scmp.eq.s32.totalorder %s40, 0
      %p355 = por %p353, %p354
      %p356 = scmp.ne.s32.totalorder %s344, %s345
      %p357 = scmp.eq.s32.totalorder %s41, 1
      %p358 = por %p356, %p357
      %p360 = scmp.ne.s32.totalorder %s345, %s359
      %p361 = scmp.eq.s32.totalorder %s41, 0
      %p362 = por %p360, %p361
      %s364 = sadd.s32 %s363, 1
      %p367 = scmp.eq.s32.totalorder %s35, 1
      %p368 = scmp.ne.s32.totalorder %s363, %s365
      %p369 = scmp.eq.s32.totalorder %s35, 0
      %p370 = por %p368, %p369
      %p371 = scmp.ne.s32.totalorder %s363, %s365
      %p372 = scmp.eq.s32.totalorder %s40, 1
      %p373 = por %p371, %p372
      %p374 = scmp.ne.s32.totalorder %s365, %s366
      %p375 = scmp.eq.s32.totalorder %s40, 0
      %p376 = por %p374, %p375
      %p377 = scmp.ne.s32.totalorder %s365, %s366
      %p378 = scmp.eq.s32.totalorder %s41, 1
      %p379 = por %p377, %p378
      %p381 = scmp.ne.s32.totalorder %s366, %s380
      %p382 = scmp.eq.s32.totalorder %s41, 0
      %p383 = por %p381, %p382
      %s385 = sadd.s32 %s384, 1
      %p388 = scmp.eq.s32.totalorder %s35, 1
      %p389 = scmp.ne.s32.totalorder %s384, %s386
      %p390 = scmp.eq.s32.totalorder %s35, 0
      %p391 = por %p389, %p390
      %p392 = scmp.ne.s32.totalorder %s384, %s386
      %p393 = scmp.eq.s32.totalorder %s40, 1
      %p394 = por %p392, %p393
      %p395 = scmp.ne.s32.totalorder %s386, %s387
      %p396 = scmp.eq.s32.totalorder %s40, 0
      %p397 = por %p395, %p396
      %p398 = scmp.ne.s32.totalorder %s386, %s387
      %p399 = scmp.eq.s32.totalorder %s41, 1
      %p400 = por %p398, %p399
      %p402 = scmp.ne.s32.totalorder %s387, %s401
      %p403 = scmp.eq.s32.totalorder %s41, 0
      %p404 = por %p402, %p403
      %s406 = sadd.s32 %s405, 1
      %p409 = scmp.eq.s32.totalorder %s35, 1
      %p410 = scmp.ne.s32.totalorder %s405, %s407
      %p411 = scmp.eq.s32.totalorder %s35, 0
      %p412 = por %p410, %p411
      %p413 = scmp.ne.s32.totalorder %s405, %s407
      %p414 = scmp.eq.s32.totalorder %s40, 1
      %p415 = por %p413, %p414
      %p416 = scmp.ne.s32.totalorder %s407, %s408
      %p417 = scmp.eq.s32.totalorder %s40, 0
      %p418 = por %p416, %p417
      %p419 = scmp.ne.s32.totalorder %s407, %s408
      %p420 = scmp.eq.s32.totalorder %s41, 1
      %p421 = por %p419, %p420
      %p423 = scmp.ne.s32.totalorder %s408, %s422
      %p424 = scmp.eq.s32.totalorder %s41, 0
      %p425 = por %p423, %p424
      %s427 = sadd.s32 %s426, 1
      %p430 = scmp.eq.s32.totalorder %s35, 1
      %p431 = scmp.ne.s32.totalorder %s426, %s428
      %p432 = scmp.eq.s32.totalorder %s35, 0
      %p433 = por %p431, %p432
      %p434 = scmp.ne.s32.totalorder %s426, %s428
      %p435 = scmp.eq.s32.totalorder %s40, 1
      %p436 = por %p434, %p435
      %p437 = scmp.ne.s32.totalorder %s428, %s429
      %p438 = scmp.eq.s32.totalorder %s40, 0
      %p439 = por %p437, %p438
      %p440 = scmp.ne.s32.totalorder %s428, %s429
      %p441 = scmp.eq.s32.totalorder %s41, 1
      %p442 = por %p440, %p441
      %p444 = scmp.ne.s32.totalorder %s429, %s443
      %p445 = scmp.eq.s32.totalorder %s41, 0
      %p446 = por %p444, %p445
      %s447 = ssub.s32 %s35, %s42
      %p448 = scmp.eq.s32.totalorder %s447, 0
      %s450 = sadd.s32 %s449, 1
      %s451 = scalar_select %p448, %s449, %s450
      %p454 = pneg %p448
      %p455 = scmp.eq.s32.totalorder %s35, 1
      %p456 = por %p454, %p455
      %p457 = scmp.ne.s32.totalorder %s449, %s452
      %p458 = scmp.eq.s32.totalorder %s35, 0
      %p459 = por %p457, %p458
      %p460 = scmp.ne.s32.totalorder %s449, %s452
      %p461 = scmp.eq.s32.totalorder %s40, 1
      %p462 = por %p460, %p461
      %p463 = scmp.ne.s32.totalorder %s452, %s453
      %p464 = scmp.eq.s32.totalorder %s40, 0
      %p465 = por %p463, %p464
      %p466 = scmp.ne.s32.totalorder %s452, %s453
      %p467 = scmp.eq.s32.totalorder %s41, 1
      %p468 = por %p466, %p467
      %p470 = scmp.ne.s32.totalorder %s453, %s469
      %p471 = scmp.eq.s32.totalorder %s41, 0
      %p472 = por %p470, %p471
      %s473 = ssub.s32 %s35, %s42
      %p474 = scmp.eq.s32.totalorder %s473, 0
      %s476 = sadd.s32 %s475, 1
      %s477 = scalar_select %p474, %s475, %s476
      %p480 = pneg %p474
      %p481 = scmp.eq.s32.totalorder %s35, 1
      %p482 = por %p480, %p481
      %p483 = scmp.ne.s32.totalorder %s475, %s478
      %p484 = scmp.eq.s32.totalorder %s35, 0
      %p485 = por %p483, %p484
      %p486 = scmp.ne.s32.totalorder %s475, %s478
      %p487 = scmp.eq.s32.totalorder %s40, 1
      %p488 = por %p486, %p487
      %p489 = scmp.ne.s32.totalorder %s478, %s479
      %p490 = scmp.eq.s32.totalorder %s40, 0
      %p491 = por %p489, %p490
      %p492 = scmp.ne.s32.totalorder %s478, %s479
      %p493 = scmp.eq.s32.totalorder %s41, 1
      %p494 = por %p492, %p493
      %p496 = scmp.ne.s32.totalorder %s479, %s495
      %p497 = scmp.eq.s32.totalorder %s41, 0
      %p498 = por %p496, %p497
      %s499 = ssub.s32 %s35, %s42
      %p500 = scmp.eq.s32.totalorder %s499, 0
      %s502 = sadd.s32 %s501, 1
      %s503 = scalar_select %p500, %s501, %s502
      %p506 = pneg %p500
      %p507 = scmp.eq.s32.totalorder %s35, 1
      %p508 = por %p506, %p507
      %p509 = scmp.ne.s32.totalorder %s501, %s504
      %p510 = scmp.eq.s32.totalorder %s35, 0
      %p511 = por %p509, %p510
      %p512 = scmp.ne.s32.totalorder %s501, %s504
      %p513 = scmp.eq.s32.totalorder %s40, 1
      %p514 = por %p512, %p513
      %p515 = scmp.ne.s32.totalorder %s504, %s505
      %p516 = scmp.eq.s32.totalorder %s40, 0
      %p517 = por %p515, %p516
      %p518 = scmp.ne.s32.totalorder %s504, %s505
      %p519 = scmp.eq.s32.totalorder %s41, 1
      %p520 = por %p518, %p519
      %p522 = scmp.ne.s32.totalorder %s505, %s521
      %p523 = scmp.eq.s32.totalorder %s41, 0
      %p524 = por %p522, %p523
      %s525 = ssub.s32 %s35, %s42
      %p526 = scmp.eq.s32.totalorder %s525, 0
      %s528 = sadd.s32 %s527, 1
      %s529 = scalar_select %p526, %s527, %s528
      %p532 = pneg %p526
      %p533 = scmp.eq.s32.totalorder %s35, 1
      %p534 = por %p532, %p533
      %p535 = scmp.ne.s32.totalorder %s527, %s530
      %p536 = scmp.eq.s32.totalorder %s35, 0
      %p537 = por %p535, %p536
      %p538 = scmp.ne.s32.totalorder %s527, %s530
      %p539 = scmp.eq.s32.totalorder %s40, 1
      %p540 = por %p538, %p539
      %p541 = scmp.ne.s32.totalorder %s530, %s531
      %p542 = scmp.eq.s32.totalorder %s40, 0
      %p543 = por %p541, %p542
      %p544 = scmp.ne.s32.totalorder %s530, %s531
      %p545 = scmp.eq.s32.totalorder %s41, 1
      %p546 = por %p544, %p545
      %p548 = scmp.ne.s32.totalorder %s531, %s547
      %p549 = scmp.eq.s32.totalorder %s41, 0
      %p550 = por %p548, %p549
      %p551 = scmp.le.s32.totalorder 1, %s35
      %p552 = scmp.lt.s32.totalorder %s35, 3
      %p553 = pnand %p551, %p552
      %p554 = pneg %p553
      // Predicated region
      $region9: #{topological_feature_extraction.1} parent=5 // pred_check
        _
      $region10: #{topological_feature_extraction.1} parent=5 // pred_check_branch
        %556 = sbr.rel (%p553) target = $region12
      $region11: #{topological_feature_extraction.1} parent=5 // pred_region
        %s557 = ssub.s32 %s35, 1
        // Predicated region
        $region13: #{topological_feature_extraction.1} parent=11 // pred_check
          %p558 = pneg %p82
        $region14: #{topological_feature_extraction.1} parent=11 // pred_check_branch
          %560 = sbr.rel (%p558) target = $region16
        $region15: #{topological_feature_extraction.1} parent=11 // pred_region
          _
        $region16: #{topological_feature_extraction.1} parent=11 // pred_fallthru
          _
        // Predicated region
        $region17: #{topological_feature_extraction.1} parent=11 // pred_check
          %p561 = pneg %p103
        $region18: #{topological_feature_extraction.1} parent=11 // pred_check_branch
          %563 = sbr.rel (%p561) target = $region20
        $region19: #{topological_feature_extraction.1} parent=11 // pred_region
          _
        $region20: #{topological_feature_extraction.1} parent=11 // pred_fallthru
          _
        // Predicated region
        $region21: #{topological_feature_extraction.1} parent=11 // pred_check
          %p564 = pneg %p124
        $region22: #{topological_feature_extraction.1} parent=11 // pred_check_branch
          %566 = sbr.rel (%p564) target = $region24
        $region23: #{topological_feature_extraction.1} parent=11 // pred_region
          _
        $region24: #{topological_feature_extraction.1} parent=11 // pred_fallthru
          _
        // Predicated region
        $region25: #{topological_feature_extraction.1} parent=11 // pred_check
          %p567 = pneg %p145
        $region26: #{topological_feature_extraction.1} parent=11 // pred_check_branch
          %569 = sbr.rel (%p567) target = $region28
        $region27: #{topological_feature_extraction.1} parent=11 // pred_region
          _
        $region28: #{topological_feature_extraction.1} parent=11 // pred_fallthru
          _
        // Predicated region
        $region29: #{topological_feature_extraction.1} parent=11 // pred_check
          %p570 = pneg %p166
        $region30: #{topological_feature_extraction.1} parent=11 // pred_check_branch
          %572 = sbr.rel (%p570) target = $region32
        $region31: #{topological_feature_extraction.1} parent=11 // pred_region
          _
        $region32: #{topological_feature_extraction.1} parent=11 // pred_fallthru
          _
        // Predicated region
        $region33: #{topological_feature_extraction.1} parent=11 // pred_check
          %p573 = pneg %p187
        $region34: #{topological_feature_extraction.1} parent=11 // pred_check_branch
          %575 = sbr.rel (%p573) target = $region36
        $region35: #{topological_feature_extraction.1} parent=11 // pred_region
          _
        $region36: #{topological_feature_extraction.1} parent=11 // pred_fallthru
          _
        // Predicated region
        $region37: #{topological_feature_extraction.1} parent=11 // pred_check
          %p576 = pneg %p208
        $region38: #{topological_feature_extraction.1} parent=11 // pred_check_branch
          %578 = sbr.rel (%p576) target = $region40
        $region39: #{topological_feature_extraction.1} parent=11 // pred_region
          _
        $region40: #{topological_feature_extraction.1} parent=11 // pred_fallthru
          _
        // Predicated region
        $region41: #{topological_feature_extraction.1} parent=11 // pred_check
          %p579 = pneg %p229
        $region42: #{topological_feature_extraction.1} parent=11 // pred_check_branch
          %581 = sbr.rel (%p579) target = $region44
        $region43: #{topological_feature_extraction.1} parent=11 // pred_region
          _
        $region44: #{topological_feature_extraction.1} parent=11 // pred_fallthru
          _
        // Predicated region
        $region45: #{topological_feature_extraction.1} parent=11 // pred_check
          %p582 = pneg %p250
        $region46: #{topological_feature_extraction.1} parent=11 // pred_check_branch
          %584 = sbr.rel (%p582) target = $region48
        $region47: #{topological_feature_extraction.1} parent=11 // pred_region
          _
        $region48: #{topological_feature_extraction.1} parent=11 // pred_fallthru
          _
        // Predicated region
        $region49: #{topological_feature_extraction.1} parent=11 // pred_check
          %p585 = pneg %p271
        $region50: #{topological_feature_extraction.1} parent=11 // pred_check_branch
          %587 = sbr.rel (%p585) target = $region52
        $region51: #{topological_feature_extraction.1} parent=11 // pred_region
          _
        $region52: #{topological_feature_extraction.1} parent=11 // pred_fallthru
          _
        // Predicated region
        $region53: #{topological_feature_extraction.1} parent=11 // pred_check
          %p588 = pneg %p292
        $region54: #{topological_feature_extraction.1} parent=11 // pred_check_branch
          %590 = sbr.rel (%p588) target = $region56
        $region55: #{topological_feature_extraction.1} parent=11 // pred_region
          _
        $region56: #{topological_feature_extraction.1} parent=11 // pred_fallthru
          _
        // Predicated region
        $region57: #{topological_feature_extraction.1} parent=11 // pred_check
          %p591 = pneg %p313
        $region58: #{topological_feature_extraction.1} parent=11 // pred_check_branch
          %593 = sbr.rel (%p591) target = $region60
        $region59: #{topological_feature_extraction.1} parent=11 // pred_region
          _
        $region60: #{topological_feature_extraction.1} parent=11 // pred_fallthru
          _
        // Predicated region
        $region61: #{topological_feature_extraction.1} parent=11 // pred_check
          %p594 = pneg %p334
        $region62: #{topological_feature_extraction.1} parent=11 // pred_check_branch
          %596 = sbr.rel (%p594) target = $region64
        $region63: #{topological_feature_extraction.1} parent=11 // pred_region
          _
        $region64: #{topological_feature_extraction.1} parent=11 // pred_fallthru
          _
        // Predicated region
        $region65: #{topological_feature_extraction.1} parent=11 // pred_check
          %p597 = pneg %p355
        $region66: #{topological_feature_extraction.1} parent=11 // pred_check_branch
          %599 = sbr.rel (%p597) target = $region68
        $region67: #{topological_feature_extraction.1} parent=11 // pred_region
          _
        $region68: #{topological_feature_extraction.1} parent=11 // pred_fallthru
          _
        // Predicated region
        $region69: #{topological_feature_extraction.1} parent=11 // pred_check
          %p600 = pneg %p376
        $region70: #{topological_feature_extraction.1} parent=11 // pred_check_branch
          %602 = sbr.rel (%p600) target = $region72
        $region71: #{topological_feature_extraction.1} parent=11 // pred_region
          _
        $region72: #{topological_feature_extraction.1} parent=11 // pred_fallthru
          _
        // Predicated region
        $region73: #{topological_feature_extraction.1} parent=11 // pred_check
          %p603 = pneg %p397
        $region74: #{topological_feature_extraction.1} parent=11 // pred_check_branch
          %605 = sbr.rel (%p603) target = $region76
        $region75: #{topological_feature_extraction.1} parent=11 // pred_region
          _
        $region76: #{topological_feature_extraction.1} parent=11 // pred_fallthru
          _
        // Predicated region
        $region77: #{topological_feature_extraction.1} parent=11 // pred_check
          %p606 = pneg %p418
        $region78: #{topological_feature_extraction.1} parent=11 // pred_check_branch
          %608 = sbr.rel (%p606) target = $region80
        $region79: #{topological_feature_extraction.1} parent=11 // pred_region
          _
        $region80: #{topological_feature_extraction.1} parent=11 // pred_fallthru
          _
        // Predicated region
        $region81: #{topological_feature_extraction.1} parent=11 // pred_check
          %p609 = pneg %p439
        $region82: #{topological_feature_extraction.1} parent=11 // pred_check_branch
          %611 = sbr.rel (%p609) target = $region84
        $region83: #{topological_feature_extraction.1} parent=11 // pred_region
          _
        $region84: #{topological_feature_extraction.1} parent=11 // pred_fallthru
          _
      $region12: #{topological_feature_extraction.1} parent=5 // pred_fallthru
        _
      %p612 = scmp.lt.s32.totalorder %s35, 2
      // Predicated region
      $region85: #{topological_feature_extraction.1} parent=5 // pred_check
        %p613 = pneg %p612
      $region86: #{topological_feature_extraction.1} parent=5 // pred_check_branch
        %615 = sbr.rel (%p613) target = $region88
      $region87: #{topological_feature_extraction.1} parent=5 // pred_region
        // Predicated region
        $region89: #{topological_feature_extraction.1} parent=87 // pred_check
          %p616 = pneg %p55
        $region90: #{topological_feature_extraction.1} parent=87 // pred_check_branch
          %618 = sbr.rel (%p616) target = $region92
        $region91: #{topological_feature_extraction.1} parent=87 // pred_region
          %p619 = scmp.lt.s32.totalorder %s35, 1
          %s620 = scalar_select %p619, %s35, 1
          %s621 = smul.addr %s620, 2
          %s622 = smul.addr %s621, 8
          %s623 = scalar_lea.vmem %s0, %s622
        $region92: #{topological_feature_extraction.1} parent=87 // pred_fallthru
          _
      $region88: #{topological_feature_extraction.1} parent=5 // pred_fallthru
        _
      %p624 = scmp.le.s32.totalorder 1, %s35
      %p625 = scmp.lt.s32.totalorder %s35, 3
      %p626 = pnand %p624, %p625
      %p627 = pneg %p626
      // Predicated region
      $region93: #{topological_feature_extraction.1} parent=5 // pred_check
        _
      $region94: #{topological_feature_extraction.1} parent=5 // pred_check_branch
        %629 = sbr.rel (%p626) target = $region96
      $region95: #{topological_feature_extraction.1} parent=5 // pred_region
        %s630 = ssub.s32 %s35, 1
        %p631 = scmp.lt.s32.totalorder %s40, 1
        %s632 = scalar_select %p631, %s40, 1
        %s633 = smul.addr %s632, 2
        %s634 = smul.addr %s633, 8
        %s635 = scalar_lea.vmem %s0, %s634
        %p636 = pneg %p61
        %p637 = pneg %p58
        %p638 = pneg %p82
        %p639 = pneg %p79
        %p640 = pneg %p103
        %p641 = pneg %p100
        %p642 = pneg %p124
        %p643 = pneg %p121
        %p644 = pneg %p145
        %p645 = pneg %p142
        %p646 = pneg %p166
        %p647 = pneg %p163
        %p648 = pneg %p187
        %p649 = pneg %p184
        %p650 = pneg %p208
        %p651 = pneg %p205
        %p652 = pneg %p229
        %p653 = pneg %p226
        %p654 = pneg %p250
        %p655 = pneg %p247
        %p656 = pneg %p271
        %p657 = pneg %p268
        %p658 = pneg %p292
        %p659 = pneg %p289
        %p660 = pneg %p313
        %p661 = pneg %p310
        %p662 = pneg %p334
        %p663 = pneg %p331
        %p664 = pneg %p355
        %p665 = pneg %p352
        %p666 = pneg %p376
        %p667 = pneg %p373
        %p668 = pneg %p397
        %p669 = pneg %p394
        %p670 = pneg %p418
        %p671 = pneg %p415
        %p672 = pneg %p439
        %p673 = pneg %p436
        %p674 = pneg %p465
        %p675 = pneg %p462
        %s676 = sand.u32 %s452, 1
        %s677 = scalar_lea.sflag [#allocation3], %s676
        %s678 = sand.u32 %s452, 1
        %s679 = scalar_lea.vmem [#allocation2], %s678
        %p680 = pneg %p491
        %p681 = pneg %p488
        %s682 = sand.u32 %s40, 1
        %s683 = scalar_lea.sflag [#allocation5], %s682
        %s684 = sand.u32 %s478, 1
        %s685 = smul.addr %s684, 4
        %s686 = scalar_lea.vmem [#allocation4], %s685
        %p687 = pneg %p517
        %p688 = pneg %p514
        %s689 = sand.u32 %s40, 1
        %s690 = scalar_lea.sflag [#allocation5], %s689
        %s691 = sand.u32 %s504, 1
        %s692 = smul.addr %s691, 2
        %s693 = scalar_lea.vmem [#allocation6], %s692
        %p694 = pneg %p543
        %p695 = pneg %p540
        %p696 = scmp.lt.s32.totalorder %s40, 1
        %s697 = scalar_select %p696, %s40, 1
        %s698 = smul.addr %s697, 2
        %s699 = scalar_lea.vmem %s22, %s698
        %p700 = scmp.lt.s32.totalorder %s40, 1
        %s701 = scalar_select %p700, %s40, 1
        %s702 = smul.addr %s701, 2
        %s703 = smul.addr %s702, 8
        %s704 = scalar_lea.vmem %s0, %s703
        %p705 = scmp.lt.s32.totalorder %s40, 1
        %s706 = scalar_select %p705, %s40, 1
        %s707 = smul.addr %s706, 2
        %s708 = scalar_lea.vmem %s22, %s707
        %v709 = vld [vmem:[%s704] sm:$0xff]
        %v710 = vld [vmem:[%s704 + $0x8] sm:$0xff]
        %vm711 = vcmask 261120
        %v713 = vsel %vm711, %v709, 0
        %v716 = vsel %vm711, %v710, 0
        %718 = vmatprep.subr.mxu0 0.0
        %719 = vmatpush1.xpose.msra.mxu0 %v713
        %720 = vmatprep.subr.mxu0 0.0
        %721 = vmatpush1.xpose.msra.mxu0 %v716
        %722 = vmatprep.subr.mxu0 0.0
        %723 = vmatpush1.xpose.msra.mxu0 0.0
        %724 = vmatprep.subr.mxu0 0.0
        %725 = vmatpush1.xpose.msra.mxu0 0.0
        %726 = vmatprep.subr.mxu0 0.0
        %727 = vmatpush1.xpose.msra.mxu0 0.0
        %728 = vmatprep.subr.mxu0 0.0
        %729 = vmatpush1.xpose.msra.mxu0 0.0
        %730 = vmatprep.subr.mxu0 0.0
        %731 = vmatpush1.xpose.msra.mxu0 0.0
        %732 = vmatprep.subr.mxu0 0.0
        %733 = vmatpush1.xpose.msra.mxu0 0.0
        %734 = vmatprep.subr.mxu0 0.0
        %735 = vmatpush1.xpose.msra.mxu0 0.0
        %736 = vmatprep.subr.mxu0 0.0
        %737 = vmatpush1.xpose.msra.mxu0 0.0
        %738 = vmatprep.subr.mxu0 0.0
        %739 = vmatpush1.xpose.msra.mxu0 0.0
        %740 = vmatprep.subr.mxu0 0.0
        %741 = vmatpush1.xpose.msra.mxu0 0.0
        %742 = vmatprep.subr.mxu0 0.0
        %743 = vmatpush1.xpose.msra.mxu0 0.0
        %744 = vmatprep.subr.mxu0 0.0
        %745 = vmatpush1.xpose.msra.mxu0 0.0
        %746 = vmatprep.subr.mxu0 0.0
        %747 = vmatpush1.xpose.msra.mxu0 0.0
        %748 = vmatprep.subr.mxu0 0.0
        %749 = vmatpush1.xpose.msra.mxu0 0.0
        %750 = vmatprep.subr.mxu0 0.0
        %751 = vmatpush1.xpose.msra.mxu0 0.0
        %752 = vmatprep.subr.mxu0 0.0
        %753 = vmatpush1.xpose.msra.mxu0 0.0
        %754 = vmatprep.subr.mxu0 0.0
        %755 = vmatpush1.xpose.msra.mxu0 0.0
        %756 = vmatprep.subr.mxu0 0.0
        %757 = vmatpush1.xpose.msra.mxu0 0.0
        %758 = vmatprep.subr.mxu0 0.0
        %759 = vmatpush1.xpose.msra.mxu0 0.0
        %760 = vmatprep.subr.mxu0 0.0
        %761 = vmatpush1.xpose.msra.mxu0 0.0
        %762 = vmatprep.subr.mxu0 0.0
        %763 = vmatpush1.xpose.msra.mxu0 0.0
        %764 = vmatprep.subr.mxu0 0.0
        %765 = vmatpush1.xpose.msra.mxu0 0.0
        %766 = vmatprep.subr.mxu0 0.0
        %767 = vmatpush1.xpose.msra.mxu0 0.0
        %768 = vmatprep.subr.mxu0 0.0
        %769 = vmatpush1.xpose.msra.mxu0 0.0
        %770 = vmatprep.subr.mxu0 0.0
        %771 = vmatpush1.xpose.msra.mxu0 0.0
        %772 = vmatprep.subr.mxu0 0.0
        %773 = vmatpush1.xpose.msra.mxu0 0.0
        %774 = vmatprep.subr.mxu0 0.0
        %775 = vmatpush1.xpose.msra.mxu0 0.0
        %776 = vmatprep.subr.mxu0 0.0
        %777 = vmatpush1.xpose.msra.mxu0 0.0
        %778 = vmatprep.subr.mxu0 0.0
        %779 = vmatpush1.xpose.msra.mxu0 0.0
        %780 = vmatprep.subr.mxu0 0.0
        %781 = vmatpush1.xpose.msra.mxu0 0.0
        %782 = vmatprep.mubr.f32.mxu0 0.0
        %783 = vmatmul.mubr.f32.gmra.mrb[0].mxu0 %v713
        %v784 = vpop.f32.mrb[0].mxu0
        %v785 = vadd.f32 0.0, %v784
        %v786 = vpop.f32.mrb[0].mxu0
        %787 = vmatprep.mubr.f32.mxu0 0.0
        %788 = vmatmul.mubr.f32.gmra.mrb[0].mxu0 %v716
        %v789 = vpop.f32.mrb[0].mxu0
        %v790 = vadd.f32 0.0, %v789
        %v791 = vpop.f32.mrb[0].mxu0
        %792 = vdwg.mxu0
        %v793 = vlaneseq
        %v794 = vshrl.u32 %v793, 7
        %v795 = vadd.s32 %v794, 8
        %v796 = vlaneseq
        %v797 = vand.u32 %v796, 127
        %vm798 = vcmp.eq.s32.totalorder %v794, %v797
        %vm799 = vcmp.eq.s32.totalorder %v795, %v797
        %v800 = vsel %vm798, 1, 0
        %v801 = vsel %vm799, 1, 0
        %v802 = vcvt.s32.f32 %v800
        %v803 = vcvt.s32.f32 %v801
        %v804 = vmul.f32 %v785, %v802
        %v805 = vmul.f32 %v790, %v803
        %vm806 = vcmask 130048
        %v807 = vsel %vm806, %v804, 0.0
        %808 = vadd.xlane.f32.xlu0 %v807
        %v809 = vpop.xlane.xlu0 %808
        %v810 = vsel %vm806, %v805, 0.0
        %811 = vadd.xlane.f32.xlu0 %v810
        %v812 = vpop.xlane.xlu0 %811
        %v813 = vadd.f32 %v807, %v810
        %v814 = vrot.slane %v813, 4
        %v815 = vadd.f32 %v813, %v814
        %v816 = vrot.slane %v815, 2
        %v817 = vadd.f32 %v815, %v816
        %v818 = vrot.slane %v817, 1
        %v819 = vadd.f32 %v817, %v818
        %v820 = vadd.f32 %v809, %v819
        %v821 = vadd.f32 %v812, %v819
        %v822 = vmul.f32 %v785, 2.0
        %v823 = vmul.f32 %v790, 2.0
        %v824 = vsub.f32 %v820, %v822
        %v825 = vsub.f32 %v821, %v823
        %v826 = vmax.f32 %v824, 0.0
        %v827 = vmax.f32 %v825, 0.0
        %v828 = vrsqrt.pop %v826
        %v829 = vmul.f32 %v826, %v828
        %vm830 = vcmp.eq.f32.partialorder %v826, inf
        %v831 = vsel %vm830, %v826, %v829
        %vm832 = vcmp.eq.f32.partialorder %v826, 0.0
        %v833 = vand.u32 %v826, 2147483648
        %v834 = vsel %vm832, %v833, %v831
        %v835 = vrsqrt.pop %v827
        %v836 = vmul.f32 %v827, %v835
        %vm837 = vcmp.eq.f32.partialorder %v827, inf
        %v838 = vsel %vm837, %v827, %v836
        %vm839 = vcmp.eq.f32.partialorder %v827, 0.0
        %v840 = vand.u32 %v827, 2147483648
        %v841 = vsel %vm839, %v840, %v838
        %v842 = vmul.f32 %v802, 1e+09
        %v843 = vmul.f32 %v803, 1e+09
        %v844 = vadd.f32 %v834, %v842
        %v845 = vadd.f32 %v841, %v843
        %v846 = vsel %vm806, %v844, inf
        %847 = vmin.xlane.f32.xlu0 %v846
        %v848 = vpop.xlane.xlu0 %847
        %v849 = vsel %vm806, %v845, inf
        %850 = vmin.xlane.f32.xlu0 %v849
        %v851 = vpop.xlane.xlu0 %850
        %v852 = vmin.f32 %v846, %v849
        %v853 = vrot.slane %v852, 4
        %v854 = vmin.f32 %v852, %v853
        %v855 = vrot.slane %v854, 2
        %v856 = vmin.f32 %v854, %v855
        %v857 = vrot.slane %v856, 1
        %v858 = vmin.f32 %v856, %v857
        %v859 = vsel %vm806, %v834, 0.0
        %860 = vadd.xlane.f32.xlu0 %v859
        %v861 = vpop.xlane.xlu0 %860
        %v862 = vsel %vm806, %v841, 0.0
        %863 = vadd.xlane.f32.xlu0 %v862
        %v864 = vpop.xlane.xlu0 %863
        %v865 = vrcp.pop 15.0
        %v866 = vmul.f32 %v861, %v865
        %v867 = vmul.f32 %v864, %v865
        %v868 = vadd.f32 %v859, %v862
        %v869 = vrot.slane %v868, 4
        %v870 = vadd.f32 %v868, %v869
        %v871 = vrot.slane %v870, 2
        %v872 = vadd.f32 %v870, %v871
        %v873 = vrot.slane %v872, 1
        %v874 = vadd.f32 %v872, %v873
        %v875 = vmul.f32 %v874, %v865
        %v876 = vmax.f32 %v866, %v848
        %v877 = vmax.f32 %v867, %v851
        %v878 = vmax.f32 %v875, %v858
        %v879 = vsub.f32 %v876, %v848
        %v880 = vsub.f32 %v877, %v851
        %v881 = vsub.f32 %v878, %v858
        %v882 = vld [vmem:[%s1] sm:$0x1]
        %v884 = vlaneseq
        %v885 = vshrl.u32 %v884, 7
        %v886 = vsub.s32 0, %v885
        %v887 = vrot.slane %v882, %v886
        %vm889 = vcmp.gt.f32.partialorder %v848, %v887
        %vm890 = vcmp.gt.f32.partialorder %v851, %v887
        %v891 = vsel %vm889, 1, 0
        %v892 = vsel %vm890, 1, 0
        %v893 = vcvt.s32.f32 %v891
        %v894 = vcvt.s32.f32 %v892
        %vm895 = vcmask 162816
        %v896 = vsel %vm895, %v893, 0.0
        %v897 = vsel %vm895, %v894, 0.0
        %v898 = vadd.f32 %v896, %v897
        %v899 = vrot.slane %v898, 4
        %v900 = vadd.f32 %v898, %v899
        %v901 = vrot.slane %v900, 2
        %v902 = vadd.f32 %v900, %v901
        %v903 = vrot.slane %v902, 1
        %v904 = vadd.f32 %v902, %v903
        %v905 = vmax.f32 %v904, 1.0
        %vm906 = vcmp.le.f32.partialorder %v848, %v887
        %vm907 = vcmp.le.f32.partialorder %v851, %v887
        %vm908 = vcmp.lt.f32.partialorder %v887, %v876
        %vm909 = vcmp.lt.f32.partialorder %v887, %v877
        %vm910 = vmand %vm906, %vm908
        %vm911 = vmand %vm907, %vm909
        %v912 = vsel %vm910, 1, 0
        %v913 = vsel %vm911, 1, 0
        %v914 = vcvt.s32.f32 %v912
        %v915 = vcvt.s32.f32 %v913
        %v916 = vsel %vm895, %v914, 0.0
        %v917 = vsel %vm895, %v915, 0.0
        %v918 = vadd.f32 %v916, %v917
        %v919 = vrot.slane %v918, 4
        %v920 = vadd.f32 %v918, %v919
        %v921 = vrot.slane %v920, 2
        %v922 = vadd.f32 %v920, %v921
        %v923 = vrot.slane %v922, 1
        %v924 = vadd.f32 %v922, %v923
        %vm925 = vcmask 155648
        %926 = vst.msk [vmem:[%s693] sm:$0x1] %vm925, %v905
        %927 = vst.msk [vmem:[%s693 + $0x1] sm:$0x1] %vm925, %v924
        %vm928 = vcmp.gt.f32.partialorder %v858, %v848
        %vm929 = vcmp.gt.f32.partialorder %v858, %v851
        %vm930 = vcmp.eq.f32.partialorder %v858, %v848
        %vm931 = vcmp.eq.f32.partialorder %v858, %v851
        %vm932 = vcmp.lt.s32.totalorder %v797, %v794
        %vm933 = vcmp.lt.s32.totalorder %v797, %v795
        %vm934 = vmand %vm930, %vm932
        %vm935 = vmand %vm931, %vm933
        %vm936 = vmor %vm928, %vm934
        %vm937 = vmor %vm929, %vm935
        %v938 = vsel %vm936, 1, 0
        %v939 = vsel %vm937, 1, 0
        %v940 = vsel %vm806, %v938, 0
        %v941 = vand.u32 %v940, 65535
        %v942 = vshrl.u32 %v940, 16
        %v943 = vcvt.s32.f32 %v941
        %v944 = vcvt.s32.f32 %v942
        %945 = vadd.xlane.f32.xlu0 %v943
        %v946 = vpop.xlane.xlu0 %945
        %947 = vadd.xlane.f32.xlu0 %v944
        %v948 = vpop.xlane.xlu0 %947
        %v949 = vcvt.f32.s32 %v946
        %v950 = vcvt.f32.s32 %v948
        %v951 = vshll.u32 %v950, 16
        %v952 = vadd.s32 %v951, %v949
        %v953 = vsel %vm806, %v939, 0
        %v954 = vand.u32 %v953, 65535
        %v955 = vshrl.u32 %v953, 16
        %v956 = vcvt.s32.f32 %v954
        %v957 = vcvt.s32.f32 %v955
        %958 = vadd.xlane.f32.xlu0 %v956
        %v959 = vpop.xlane.xlu0 %958
        %960 = vadd.xlane.f32.xlu0 %v957
        %v961 = vpop.xlane.xlu0 %960
        %v962 = vcvt.f32.s32 %v959
        %v963 = vcvt.f32.s32 %v961
        %v964 = vshll.u32 %v963, 16
        %v965 = vadd.s32 %v964, %v962
        %vm966 = vcmp.gt.f32.partialorder %v881, %v879
        %vm967 = vcmp.gt.f32.partialorder %v881, %v880
        %vm968 = vcmp.eq.f32.partialorder %v881, %v879
        %vm969 = vcmp.eq.f32.partialorder %v881, %v880
        %vm970 = vmand %vm968, %vm932
        %vm971 = vmand %vm969, %vm933
        %vm972 = vmor %vm966, %vm970
        %vm973 = vmor %vm967, %vm971
        %v974 = vsel %vm972, 1, 0
        %v975 = vsel %vm973, 1, 0
        %v976 = vsel %vm806, %v974, 0
        %v977 = vand.u32 %v976, 65535
        %v978 = vshrl.u32 %v976, 16
        %v979 = vcvt.s32.f32 %v977
        %v980 = vcvt.s32.f32 %v978
        %981 = vadd.xlane.f32.xlu0 %v979
        %v982 = vpop.xlane.xlu0 %981
        %983 = vadd.xlane.f32.xlu0 %v980
        %v984 = vpop.xlane.xlu0 %983
        %v985 = vcvt.f32.s32 %v982
        %v986 = vcvt.f32.s32 %v984
        %v987 = vshll.u32 %v986, 16
        %v988 = vadd.s32 %v987, %v985
        %v989 = vsel %vm806, %v975, 0
        %v990 = vand.u32 %v989, 65535
        %v991 = vshrl.u32 %v989, 16
        %v992 = vcvt.s32.f32 %v990
        %v993 = vcvt.s32.f32 %v991
        %994 = vadd.xlane.f32.xlu0 %v992
        %v995 = vpop.xlane.xlu0 %994
        %996 = vadd.xlane.f32.xlu0 %v993
        %v997 = vpop.xlane.xlu0 %996
        %v998 = vcvt.f32.s32 %v995
        %v999 = vcvt.f32.s32 %v997
        %v1000 = vshll.u32 %v999, 16
        %v1001 = vadd.s32 %v1000, %v998
        %1002 = vst.msk [vmem:[%s686] sm:$0x1] %vm925, 0.0
        %vm1003 = vcmp.eq.s32.totalorder %v952, %v797
        %vm1004 = vcmp.eq.s32.totalorder %v965, %v797
        %v1005 = vsel %vm1003, 1, 0
        %v1006 = vsel %vm1004, 1, 0
        %v1007 = vcvt.s32.f32 %v1005
        %v1008 = vcvt.s32.f32 %v1006
        %v1009 = vmul.f32 %v848, %v1007
        %v1010 = vmul.f32 %v851, %v1008
        %v1011 = vsel %vm895, %v1009, 0.0
        %v1012 = vsel %vm895, %v1010, 0.0
        %v1013 = vadd.f32 %v1011, %v1012
        %v1014 = vrot.slane %v1013, 4
        %v1015 = vadd.f32 %v1013, %v1014
        %v1016 = vrot.slane %v1015, 2
        %v1017 = vadd.f32 %v1015, %v1016
        %v1018 = vrot.slane %v1017, 1
        %v1019 = vadd.f32 %v1017, %v1018
        %1020 = vst.msk [vmem:[%s686 + $0x1] sm:$0x1] %vm925, %v1019
        %vm1021 = vcmp.eq.s32.totalorder %v988, %v797
        %vm1022 = vcmp.eq.s32.totalorder %v1001, %v797
        %v1023 = vsel %vm1021, 1, 0
        %v1024 = vsel %vm1022, 1, 0
        %v1025 = vcvt.s32.f32 %v1023
        %v1026 = vcvt.s32.f32 %v1024
        %v1027 = vmul.f32 %v848, %v1025
        %v1028 = vmul.f32 %v851, %v1026
        %v1029 = vsel %vm895, %v1027, 0.0
        %v1030 = vsel %vm895, %v1028, 0.0
        %v1031 = vadd.f32 %v1029, %v1030
        %v1032 = vrot.slane %v1031, 4
        %v1033 = vadd.f32 %v1031, %v1032
        %v1034 = vrot.slane %v1033, 2
        %v1035 = vadd.f32 %v1033, %v1034
        %v1036 = vrot.slane %v1035, 1
        %v1037 = vadd.f32 %v1035, %v1036
        %s1038 = scalar_lea.vmem %s686, 2 [#allocation4]
        %1039 = vst.msk [vmem:[%s1038] sm:$0x1] %vm925, %v1037
        %v1040 = vmul.f32 %v876, %v1025
        %v1041 = vmul.f32 %v877, %v1026
        %v1042 = vsel %vm895, %v1040, 0.0
        %v1043 = vsel %vm895, %v1041, 0.0
        %v1044 = vadd.f32 %v1042, %v1043
        %v1045 = vrot.slane %v1044, 4
        %v1046 = vadd.f32 %v1044, %v1045
        %v1047 = vrot.slane %v1046, 2
        %v1048 = vadd.f32 %v1046, %v1047
        %v1049 = vrot.slane %v1048, 1
        %v1050 = vadd.f32 %v1048, %v1049
        %1051 = vst.msk [vmem:[%s1038 + $0x1] sm:$0x1] %vm925, %v1050
        %v1052 = vadd.s32 %v794, 16
        %v1053 = vadd.s32 %v794, 24
        %v1054 = vadd.s32 %v794, 32
        %v1055 = vadd.s32 %v794, 40
        %v1056 = vadd.s32 %v794, 48
        %v1057 = vadd.s32 %v794, 56
        %v1058 = vadd.s32 %v794, 64
        %v1059 = vadd.s32 %v794, 72
        %v1060 = vadd.s32 %v794, 80
        %v1061 = vadd.s32 %v794, 88
        %v1062 = vadd.s32 %v794, 96
        %vm1063 = vcmp.ge.s32.totalorder %v797, 10
        %v1064 = vsel %vm1063, 1, 0
        %vm1065 = vcmp.ge.s32.totalorder %v797, 20
        %v1066 = vsel %vm1065, 1, 0
        %v1067 = vadd.s32 %v1064, %v1066
        %vm1068 = vcmp.ge.s32.totalorder %v797, 30
        %v1069 = vsel %vm1068, 1, 0
        %v1070 = vadd.s32 %v1067, %v1069
        %vm1071 = vcmp.ge.s32.totalorder %v797, 40
        %v1072 = vsel %vm1071, 1, 0
        %v1073 = vadd.s32 %v1070, %v1072
        %vm1074 = vcmp.ge.s32.totalorder %v797, 50
        %v1075 = vsel %vm1074, 1, 0
        %v1076 = vadd.s32 %v1073, %v1075
        %vm1077 = vcmp.ge.s32.totalorder %v797, 60
        %v1078 = vsel %vm1077, 1, 0
        %v1079 = vadd.s32 %v1076, %v1078
        %vm1080 = vcmp.ge.s32.totalorder %v797, 70
        %v1081 = vsel %vm1080, 1, 0
        %v1082 = vadd.s32 %v1079, %v1081
        %vm1083 = vcmp.ge.s32.totalorder %v797, 80
        %v1084 = vsel %vm1083, 1, 0
        %v1085 = vadd.s32 %v1082, %v1084
        %vm1086 = vcmp.ge.s32.totalorder %v797, 90
        %v1087 = vsel %vm1086, 1, 0
        %v1088 = vadd.s32 %v1085, %v1087
        %v1089 = vmul.u32 %v1088, 10
        %v1090 = vsub.s32 %v797, %v1089
        %vm1091 = vcmp.ge.s32.totalorder %v794, 10
        %vm1092 = vcmp.ge.s32.totalorder %v795, 10
        %vm1093 = vcmp.ge.s32.totalorder %v1052, 10
        %vm1094 = vcmp.ge.s32.totalorder %v1053, 10
        %vm1095 = vcmp.ge.s32.totalorder %v1054, 10
        %vm1096 = vcmp.ge.s32.totalorder %v1055, 10
        %vm1097 = vcmp.ge.s32.totalorder %v1056, 10
        %vm1098 = vcmp.ge.s32.totalorder %v1057, 10
        %vm1099 = vcmp.ge.s32.totalorder %v1058, 10
        %vm1100 = vcmp.ge.s32.totalorder %v1059, 10
        %vm1101 = vcmp.ge.s32.totalorder %v1060, 10
        %vm1102 = vcmp.ge.s32.totalorder %v1061, 10
        %vm1103 = vcmp.ge.s32.totalorder %v1062, 10
        %v1104 = vsel %vm1091, 1, 0
        %v1105 = vsel %vm1092, 1, 0
        %v1106 = vsel %vm1093, 1, 0
        %v1107 = vsel %vm1094, 1, 0
        %v1108 = vsel %vm1095, 1, 0
        %v1109 = vsel %vm1096, 1, 0
        %v1110 = vsel %vm1097, 1, 0
        %v1111 = vsel %vm1098, 1, 0
        %v1112 = vsel %vm1099, 1, 0
        %v1113 = vsel %vm1100, 1, 0
        %v1114 = vsel %vm1101, 1, 0
        %v1115 = vsel %vm1102, 1, 0
        %v1116 = vsel %vm1103, 1, 0
        %vm1117 = vcmp.ge.s32.totalorder %v794, 20
        %vm1118 = vcmp.ge.s32.totalorder %v795, 20
        %vm1119 = vcmp.ge.s32.totalorder %v1052, 20
        %vm1120 = vcmp.ge.s32.totalorder %v1053, 20
        %vm1121 = vcmp.ge.s32.totalorder %v1054, 20
        %vm1122 = vcmp.ge.s32.totalorder %v1055, 20
        %vm1123 = vcmp.ge.s32.totalorder %v1056, 20
        %vm1124 = vcmp.ge.s32.totalorder %v1057, 20
        %vm1125 = vcmp.ge.s32.totalorder %v1058, 20
        %vm1126 = vcmp.ge.s32.totalorder %v1059, 20
        %vm1127 = vcmp.ge.s32.totalorder %v1060, 20
        %vm1128 = vcmp.ge.s32.totalorder %v1061, 20
        %vm1129 = vcmp.ge.s32.totalorder %v1062, 20
        %v1130 = vsel %vm1117, 1, 0
        %v1131 = vsel %vm1118, 1, 0
        %v1132 = vsel %vm1119, 1, 0
        %v1133 = vsel %vm1120, 1, 0
        %v1134 = vsel %vm1121, 1, 0
        %v1135 = vsel %vm1122, 1, 0
        %v1136 = vsel %vm1123, 1, 0
        %v1137 = vsel %vm1124, 1, 0
        %v1138 = vsel %vm1125, 1, 0
        %v1139 = vsel %vm1126, 1, 0
        %v1140 = vsel %vm1127, 1, 0
        %v1141 = vsel %vm1128, 1, 0
        %v1142 = vsel %vm1129, 1, 0
        %v1143 = vadd.s32 %v1104, %v1130
        %v1144 = vadd.s32 %v1105, %v1131
        %v1145 = vadd.s32 %v1106, %v1132
        %v1146 = vadd.s32 %v1107, %v1133
        %v1147 = vadd.s32 %v1108, %v1134
        %v1148 = vadd.s32 %v1109, %v1135
        %v1149 = vadd.s32 %v1110, %v1136
        %v1150 = vadd.s32 %v1111, %v1137
        %v1151 = vadd.s32 %v1112, %v1138
        %v1152 = vadd.s32 %v1113, %v1139
        %v1153 = vadd.s32 %v1114, %v1140
        %v1154 = vadd.s32 %v1115, %v1141
        %v1155 = vadd.s32 %v1116, %v1142
        %vm1156 = vcmp.ge.s32.totalorder %v794, 30
        %vm1157 = vcmp.ge.s32.totalorder %v795, 30
        %vm1158 = vcmp.ge.s32.totalorder %v1052, 30
        %vm1159 = vcmp.ge.s32.totalorder %v1053, 30
        %vm1160 = vcmp.ge.s32.totalorder %v1054, 30
        %vm1161 = vcmp.ge.s32.totalorder %v1055, 30
        %vm1162 = vcmp.ge.s32.totalorder %v1056, 30
        %vm1163 = vcmp.ge.s32.totalorder %v1057, 30
        %vm1164 = vcmp.ge.s32.totalorder %v1058, 30
        %vm1165 = vcmp.ge.s32.totalorder %v1059, 30
        %vm1166 = vcmp.ge.s32.totalorder %v1060, 30
        %vm1167 = vcmp.ge.s32.totalorder %v1061, 30
        %vm1168 = vcmp.ge.s32.totalorder %v1062, 30
        %v1169 = vsel %vm1156, 1, 0
        %v1170 = vsel %vm1157, 1, 0
        %v1171 = vsel %vm1158, 1, 0
        %v1172 = vsel %vm1159, 1, 0
        %v1173 = vsel %vm1160, 1, 0
        %v1174 = vsel %vm1161, 1, 0
        %v1175 = vsel %vm1162, 1, 0
        %v1176 = vsel %vm1163, 1, 0
        %v1177 = vsel %vm1164, 1, 0
        %v1178 = vsel %vm1165, 1, 0
        %v1179 = vsel %vm1166, 1, 0
        %v1180 = vsel %vm1167, 1, 0
        %v1181 = vsel %vm1168, 1, 0
        %v1182 = vadd.s32 %v1143, %v1169
        %v1183 = vadd.s32 %v1144, %v1170
        %v1184 = vadd.s32 %v1145, %v1171
        %v1185 = vadd.s32 %v1146, %v1172
        %v1186 = vadd.s32 %v1147, %v1173
        %v1187 = vadd.s32 %v1148, %v1174
        %v1188 = vadd.s32 %v1149, %v1175
        %v1189 = vadd.s32 %v1150, %v1176
        %v1190 = vadd.s32 %v1151, %v1177
        %v1191 = vadd.s32 %v1152, %v1178
        %v1192 = vadd.s32 %v1153, %v1179
        %v1193 = vadd.s32 %v1154, %v1180
        %v1194 = vadd.s32 %v1155, %v1181
        %vm1195 = vcmp.ge.s32.totalorder %v794, 40
        %vm1196 = vcmp.ge.s32.totalorder %v795, 40
        %vm1197 = vcmp.ge.s32.totalorder %v1052, 40
        %vm1198 = vcmp.ge.s32.totalorder %v1053, 40
        %vm1199 = vcmp.ge.s32.totalorder %v1054, 40
        %vm1200 = vcmp.ge.s32.totalorder %v1055, 40
        %vm1201 = vcmp.ge.s32.totalorder %v1056, 40
        %vm1202 = vcmp.ge.s32.totalorder %v1057, 40
        %vm1203 = vcmp.ge.s32.totalorder %v1058, 40
        %vm1204 = vcmp.ge.s32.totalorder %v1059, 40
        %vm1205 = vcmp.ge.s32.totalorder %v1060, 40
        %vm1206 = vcmp.ge.s32.totalorder %v1061, 40
        %vm1207 = vcmp.ge.s32.totalorder %v1062, 40
        %v1208 = vsel %vm1195, 1, 0
        %v1209 = vsel %vm1196, 1, 0
        %v1210 = vsel %vm1197, 1, 0
        %v1211 = vsel %vm1198, 1, 0
        %v1212 = vsel %vm1199, 1, 0
        %v1213 = vsel %vm1200, 1, 0
        %v1214 = vsel %vm1201, 1, 0
        %v1215 = vsel %vm1202, 1, 0
        %v1216 = vsel %vm1203, 1, 0
        %v1217 = vsel %vm1204, 1, 0
        %v1218 = vsel %vm1205, 1, 0
        %v1219 = vsel %vm1206, 1, 0
        %v1220 = vsel %vm1207, 1, 0
        %v1221 = vadd.s32 %v1182, %v1208
        %v1222 = vadd.s32 %v1183, %v1209
        %v1223 = vadd.s32 %v1184, %v1210
        %v1224 = vadd.s32 %v1185, %v1211
        %v1225 = vadd.s32 %v1186, %v1212
        %v1226 = vadd.s32 %v1187, %v1213
        %v1227 = vadd.s32 %v1188, %v1214
        %v1228 = vadd.s32 %v1189, %v1215
        %v1229 = vadd.s32 %v1190, %v1216
        %v1230 = vadd.s32 %v1191, %v1217
        %v1231 = vadd.s32 %v1192, %v1218
        %v1232 = vadd.s32 %v1193, %v1219
        %v1233 = vadd.s32 %v1194, %v1220
        %vm1234 = vcmp.ge.s32.totalorder %v794, 50
        %vm1235 = vcmp.ge.s32.totalorder %v795, 50
        %vm1236 = vcmp.ge.s32.totalorder %v1052, 50
        %vm1237 = vcmp.ge.s32.totalorder %v1053, 50
        %vm1238 = vcmp.ge.s32.totalorder %v1054, 50
        %vm1239 = vcmp.ge.s32.totalorder %v1055, 50
        %vm1240 = vcmp.ge.s32.totalorder %v1056, 50
        %vm1241 = vcmp.ge.s32.totalorder %v1057, 50
        %vm1242 = vcmp.ge.s32.totalorder %v1058, 50
        %vm1243 = vcmp.ge.s32.totalorder %v1059, 50
        %vm1244 = vcmp.ge.s32.totalorder %v1060, 50
        %vm1245 = vcmp.ge.s32.totalorder %v1061, 50
        %vm1246 = vcmp.ge.s32.totalorder %v1062, 50
        %v1247 = vsel %vm1234, 1, 0
        %v1248 = vsel %vm1235, 1, 0
        %v1249 = vsel %vm1236, 1, 0
        %v1250 = vsel %vm1237, 1, 0
        %v1251 = vsel %vm1238, 1, 0
        %v1252 = vsel %vm1239, 1, 0
        %v1253 = vsel %vm1240, 1, 0
        %v1254 = vsel %vm1241, 1, 0
        %v1255 = vsel %vm1242, 1, 0
        %v1256 = vsel %vm1243, 1, 0
        %v1257 = vsel %vm1244, 1, 0
        %v1258 = vsel %vm1245, 1, 0
        %v1259 = vsel %vm1246, 1, 0
        %v1260 = vadd.s32 %v1221, %v1247
        %v1261 = vadd.s32 %v1222, %v1248
        %v1262 = vadd.s32 %v1223, %v1249
        %v1263 = vadd.s32 %v1224, %v1250
        %v1264 = vadd.s32 %v1225, %v1251
        %v1265 = vadd.s32 %v1226, %v1252
        %v1266 = vadd.s32 %v1227, %v1253
        %v1267 = vadd.s32 %v1228, %v1254
        %v1268 = vadd.s32 %v1229, %v1255
        %v1269 = vadd.s32 %v1230, %v1256
        %v1270 = vadd.s32 %v1231, %v1257
        %v1271 = vadd.s32 %v1232, %v1258
        %v1272 = vadd.s32 %v1233, %v1259
        %vm1273 = vcmp.ge.s32.totalorder %v794, 60
        %vm1274 = vcmp.ge.s32.totalorder %v795, 60
        %vm1275 = vcmp.ge.s32.totalorder %v1052, 60
        %vm1276 = vcmp.ge.s32.totalorder %v1053, 60
        %vm1277 = vcmp.ge.s32.totalorder %v1054, 60
        %vm1278 = vcmp.ge.s32.totalorder %v1055, 60
        %vm1279 = vcmp.ge.s32.totalorder %v1056, 60
        %vm1280 = vcmp.ge.s32.totalorder %v1057, 60
        %vm1281 = vcmp.ge.s32.totalorder %v1058, 60
        %vm1282 = vcmp.ge.s32.totalorder %v1059, 60
        %vm1283 = vcmp.ge.s32.totalorder %v1060, 60
        %vm1284 = vcmp.ge.s32.totalorder %v1061, 60
        %vm1285 = vcmp.ge.s32.totalorder %v1062, 60
        %v1286 = vsel %vm1273, 1, 0
        %v1287 = vsel %vm1274, 1, 0
        %v1288 = vsel %vm1275, 1, 0
        %v1289 = vsel %vm1276, 1, 0
        %v1290 = vsel %vm1277, 1, 0
        %v1291 = vsel %vm1278, 1, 0
        %v1292 = vsel %vm1279, 1, 0
        %v1293 = vsel %vm1280, 1, 0
        %v1294 = vsel %vm1281, 1, 0
        %v1295 = vsel %vm1282, 1, 0
        %v1296 = vsel %vm1283, 1, 0
        %v1297 = vsel %vm1284, 1, 0
        %v1298 = vsel %vm1285, 1, 0
        %v1299 = vadd.s32 %v1260, %v1286
        %v1300 = vadd.s32 %v1261, %v1287
        %v1301 = vadd.s32 %v1262, %v1288
        %v1302 = vadd.s32 %v1263, %v1289
        %v1303 = vadd.s32 %v1264, %v1290
        %v1304 = vadd.s32 %v1265, %v1291
        %v1305 = vadd.s32 %v1266, %v1292
        %v1306 = vadd.s32 %v1267, %v1293
        %v1307 = vadd.s32 %v1268, %v1294
        %v1308 = vadd.s32 %v1269, %v1295
        %v1309 = vadd.s32 %v1270, %v1296
        %v1310 = vadd.s32 %v1271, %v1297
        %v1311 = vadd.s32 %v1272, %v1298
        %vm1312 = vcmp.ge.s32.totalorder %v794, 70
        %vm1313 = vcmp.ge.s32.totalorder %v795, 70
        %vm1314 = vcmp.ge.s32.totalorder %v1052, 70
        %vm1315 = vcmp.ge.s32.totalorder %v1053, 70
        %vm1316 = vcmp.ge.s32.totalorder %v1054, 70
        %vm1317 = vcmp.ge.s32.totalorder %v1055, 70
        %vm1318 = vcmp.ge.s32.totalorder %v1056, 70
        %vm1319 = vcmp.ge.s32.totalorder %v1057, 70
        %vm1320 = vcmp.ge.s32.totalorder %v1058, 70
        %vm1321 = vcmp.ge.s32.totalorder %v1059, 70
        %vm1322 = vcmp.ge.s32.totalorder %v1060, 70
        %vm1323 = vcmp.ge.s32.totalorder %v1061, 70
        %vm1324 = vcmp.ge.s32.totalorder %v1062, 70
        %v1325 = vsel %vm1312, 1, 0
        %v1326 = vsel %vm1313, 1, 0
        %v1327 = vsel %vm1314, 1, 0
        %v1328 = vsel %vm1315, 1, 0
        %v1329 = vsel %vm1316, 1, 0
        %v1330 = vsel %vm1317, 1, 0
        %v1331 = vsel %vm1318, 1, 0
        %v1332 = vsel %vm1319, 1, 0
        %v1333 = vsel %vm1320, 1, 0
        %v1334 = vsel %vm1321, 1, 0
        %v1335 = vsel %vm1322, 1, 0
        %v1336 = vsel %vm1323, 1, 0
        %v1337 = vsel %vm1324, 1, 0
        %v1338 = vadd.s32 %v1299, %v1325
        %v1339 = vadd.s32 %v1300, %v1326
        %v1340 = vadd.s32 %v1301, %v1327
        %v1341 = vadd.s32 %v1302, %v1328
        %v1342 = vadd.s32 %v1303, %v1329
        %v1343 = vadd.s32 %v1304, %v1330
        %v1344 = vadd.s32 %v1305, %v1331
        %v1345 = vadd.s32 %v1306, %v1332
        %v1346 = vadd.s32 %v1307, %v1333
        %v1347 = vadd.s32 %v1308, %v1334
        %v1348 = vadd.s32 %v1309, %v1335
        %v1349 = vadd.s32 %v1310, %v1336
        %v1350 = vadd.s32 %v1311, %v1337
        %vm1351 = vcmp.ge.s32.totalorder %v794, 80
        %vm1352 = vcmp.ge.s32.totalorder %v795, 80
        %vm1353 = vcmp.ge.s32.totalorder %v1052, 80
        %vm1354 = vcmp.ge.s32.totalorder %v1053, 80
        %vm1355 = vcmp.ge.s32.totalorder %v1054, 80
        %vm1356 = vcmp.ge.s32.totalorder %v1055, 80
        %vm1357 = vcmp.ge.s32.totalorder %v1056, 80
        %vm1358 = vcmp.ge.s32.totalorder %v1057, 80
        %vm1359 = vcmp.ge.s32.totalorder %v1058, 80
        %vm1360 = vcmp.ge.s32.totalorder %v1059, 80
        %vm1361 = vcmp.ge.s32.totalorder %v1060, 80
        %vm1362 = vcmp.ge.s32.totalorder %v1061, 80
        %vm1363 = vcmp.ge.s32.totalorder %v1062, 80
        %v1364 = vsel %vm1351, 1, 0
        %v1365 = vsel %vm1352, 1, 0
        %v1366 = vsel %vm1353, 1, 0
        %v1367 = vsel %vm1354, 1, 0
        %v1368 = vsel %vm1355, 1, 0
        %v1369 = vsel %vm1356, 1, 0
        %v1370 = vsel %vm1357, 1, 0
        %v1371 = vsel %vm1358, 1, 0
        %v1372 = vsel %vm1359, 1, 0
        %v1373 = vsel %vm1360, 1, 0
        %v1374 = vsel %vm1361, 1, 0
        %v1375 = vsel %vm1362, 1, 0
        %v1376 = vsel %vm1363, 1, 0
        %v1377 = vadd.s32 %v1338, %v1364
        %v1378 = vadd.s32 %v1339, %v1365
        %v1379 = vadd.s32 %v1340, %v1366
        %v1380 = vadd.s32 %v1341, %v1367
        %v1381 = vadd.s32 %v1342, %v1368
        %v1382 = vadd.s32 %v1343, %v1369
        %v1383 = vadd.s32 %v1344, %v1370
        %v1384 = vadd.s32 %v1345, %v1371
        %v1385 = vadd.s32 %v1346, %v1372
        %v1386 = vadd.s32 %v1347, %v1373
        %v1387 = vadd.s32 %v1348, %v1374
        %v1388 = vadd.s32 %v1349, %v1375
        %v1389 = vadd.s32 %v1350, %v1376
        %vm1390 = vcmp.ge.s32.totalorder %v794, 90
        %vm1391 = vcmp.ge.s32.totalorder %v795, 90
        %vm1392 = vcmp.ge.s32.totalorder %v1052, 90
        %vm1393 = vcmp.ge.s32.totalorder %v1053, 90
        %vm1394 = vcmp.ge.s32.totalorder %v1054, 90
        %vm1395 = vcmp.ge.s32.totalorder %v1055, 90
        %vm1396 = vcmp.ge.s32.totalorder %v1056, 90
        %vm1397 = vcmp.ge.s32.totalorder %v1057, 90
        %vm1398 = vcmp.ge.s32.totalorder %v1058, 90
        %vm1399 = vcmp.ge.s32.totalorder %v1059, 90
        %vm1400 = vcmp.ge.s32.totalorder %v1060, 90
        %vm1401 = vcmp.ge.s32.totalorder %v1061, 90
        %vm1402 = vcmp.ge.s32.totalorder %v1062, 90
        %v1403 = vsel %vm1390, 1, 0
        %v1404 = vsel %vm1391, 1, 0
        %v1405 = vsel %vm1392, 1, 0
        %v1406 = vsel %vm1393, 1, 0
        %v1407 = vsel %vm1394, 1, 0
        %v1408 = vsel %vm1395, 1, 0
        %v1409 = vsel %vm1396, 1, 0
        %v1410 = vsel %vm1397, 1, 0
        %v1411 = vsel %vm1398, 1, 0
        %v1412 = vsel %vm1399, 1, 0
        %v1413 = vsel %vm1400, 1, 0
        %v1414 = vsel %vm1401, 1, 0
        %v1415 = vsel %vm1402, 1, 0
        %v1416 = vadd.s32 %v1377, %v1403
        %v1417 = vadd.s32 %v1378, %v1404
        %v1418 = vadd.s32 %v1379, %v1405
        %v1419 = vadd.s32 %v1380, %v1406
        %v1420 = vadd.s32 %v1381, %v1407
        %v1421 = vadd.s32 %v1382, %v1408
        %v1422 = vadd.s32 %v1383, %v1409
        %v1423 = vadd.s32 %v1384, %v1410
        %v1424 = vadd.s32 %v1385, %v1411
        %v1425 = vadd.s32 %v1386, %v1412
        %v1426 = vadd.s32 %v1387, %v1413
        %v1427 = vadd.s32 %v1388, %v1414
        %v1428 = vadd.s32 %v1389, %v1415
        %v1429 = vmul.u32 %v1416, 10
        %v1430 = vmul.u32 %v1417, 10
        %v1431 = vmul.u32 %v1418, 10
        %v1432 = vmul.u32 %v1419, 10
        %v1433 = vmul.u32 %v1420, 10
        %v1434 = vmul.u32 %v1421, 10
        %v1435 = vmul.u32 %v1422, 10
        %v1436 = vmul.u32 %v1423, 10
        %v1437 = vmul.u32 %v1424, 10
        %v1438 = vmul.u32 %v1425, 10
        %v1439 = vmul.u32 %v1426, 10
        %v1440 = vmul.u32 %v1427, 10
        %v1441 = vmul.u32 %v1428, 10
        %v1442 = vsub.s32 %v794, %v1429
        %v1443 = vsub.s32 %v795, %v1430
        %v1444 = vsub.s32 %v1052, %v1431
        %v1445 = vsub.s32 %v1053, %v1432
        %v1446 = vsub.s32 %v1054, %v1433
        %v1447 = vsub.s32 %v1055, %v1434
        %v1448 = vsub.s32 %v1056, %v1435
        %v1449 = vsub.s32 %v1057, %v1436
        %v1450 = vsub.s32 %v1058, %v1437
        %v1451 = vsub.s32 %v1059, %v1438
        %v1452 = vsub.s32 %v1060, %v1439
        %v1453 = vsub.s32 %v1061, %v1440
        %v1454 = vsub.s32 %v1062, %v1441
        %v1455 = vcvt.s32.f32 %v1088
        %v1456 = vrcp.pop 9.0
        %v1457 = vmul.f32 %v1455, %v1456
        %v1458 = vcvt.s32.f32 %v1090
        %v1459 = vmul.f32 %v1458, %v1456
        %vm1460 = vcmp.lt.s32.totalorder %v952, 10
        %vm1461 = vcmp.lt.s32.totalorder %v965, 10
        %vm1462 = vcmp.gt.f32.partialorder %v848, 0.0
        %vm1463 = vcmp.gt.f32.partialorder %v851, 0.0
        %vm1464 = vmand %vm1460, %vm1462
        %vm1465 = vmand %vm1461, %vm1463
        %v1466 = vsel %vm1464, %v848, 0.0
        %v1467 = vsel %vm1465, %v851, 0.0
        %v1468 = vmul.f32 %v1457, %v1457
        %v1469 = vsub.f32 %v1459, %v848
        %v1470 = vsub.f32 %v1459, %v851
        %v1471 = vmul.f32 %v1469, %v1469
        %v1472 = vmul.f32 %v1470, %v1470
        %v1473 = vadd.f32 %v1468, %v1471
        %v1474 = vadd.f32 %v1468, %v1472
        %v1475 = vsub.f32 0.0, %v1473
        %v1476 = vsub.f32 0.0, %v1474
        %v1477 = vmul.f32 %v1475, 12.5
        %v1478 = vmul.f32 %v1476, 12.5
        %v1479 = vmul.f32 %v1477, 1.442695
        %v1480 = vpow.pop %v1479
        %v1481 = vmul.f32 %v1478, 1.442695
        %v1482 = vpow.pop %v1481
        %v1483 = vmul.f32 %v1480, %v1466
        %v1484 = vmul.f32 %v1482, %v1467
        %vm1485 = vcmask 818176
        %v1486 = vsel %vm1485, %v1483, 0.0
        %v1487 = vsel %vm1485, %v1484, 0.0
        %v1488 = vadd.f32 %v1486, %v1487
        %v1489 = vrot.slane %v1488, 4
        %v1490 = vadd.f32 %v1488, %v1489
        %v1491 = vrot.slane %v1490, 2
        %v1492 = vadd.f32 %v1490, %v1491
        %v1493 = vrot.slane %v1492, 1
        %v1494 = vadd.f32 %v1492, %v1493
        %vm1495 = vcmask 811008
        %1496 = vst.msk [vmem:[%s708] sm:$0x1] %vm1495, %v1494
        %vm1497 = vcmp.lt.s32.totalorder %v988, 10
        %vm1498 = vcmp.lt.s32.totalorder %v1001, 10
        %vm1499 = vcmp.gt.f32.partialorder %v879, 0.0
        %vm1500 = vcmp.gt.f32.partialorder %v880, 0.0
        %vm1501 = vmand %vm1497, %vm1499
        %vm1502 = vmand %vm1498, %vm1500
        %v1503 = vsel %vm1501, %v879, 0.0
        %v1504 = vsel %vm1502, %v880, 0.0
        %v1505 = vsub.f32 %v1457, %v848
        %v1506 = vsub.f32 %v1457, %v851
        %v1507 = vmul.f32 %v1505, %v1505
        %v1508 = vmul.f32 %v1506, %v1506
        %v1509 = vsub.f32 %v1459, %v879
        %v1510 = vsub.f32 %v1459, %v880
        %v1511 = vmul.f32 %v1509, %v1509
        %v1512 = vmul.f32 %v1510, %v1510
        %v1513 = vadd.f32 %v1507, %v1511
        %v1514 = vadd.f32 %v1508, %v1512
        %v1515 = vsub.f32 0.0, %v1513
        %v1516 = vsub.f32 0.0, %v1514
        %v1517 = vmul.f32 %v1515, 12.5
        %v1518 = vmul.f32 %v1516, 12.5
        %v1519 = vmul.f32 %v1517, 1.442695
        %v1520 = vpow.pop %v1519
        %v1521 = vmul.f32 %v1518, 1.442695
        %v1522 = vpow.pop %v1521
        %v1523 = vmul.f32 %v1520, %v1503
        %v1524 = vmul.f32 %v1522, %v1504
        %v1525 = vsel %vm1485, %v1523, 0.0
        %v1526 = vsel %vm1485, %v1524, 0.0
        %v1527 = vadd.f32 %v1525, %v1526
        %v1528 = vrot.slane %v1527, 4
        %v1529 = vadd.f32 %v1527, %v1528
        %v1530 = vrot.slane %v1529, 2
        %v1531 = vadd.f32 %v1529, %v1530
        %v1532 = vrot.slane %v1531, 1
        %v1533 = vadd.f32 %v1531, %v1532
        %1534 = vst.msk [vmem:[%s708 + $0x1] sm:$0x1] %vm1495, %v1533
        %v1535 = vld [vmem:[%s708] sm:$0x3]
        %v1536 = vadd.s32 %v1088, 4294967295
        %vm1537 = vcmp.eq.s32.totalorder %v1416, %v1536
        %vm1538 = vcmp.eq.s32.totalorder %v1417, %v1536
        %vm1539 = vcmp.eq.s32.totalorder %v1418, %v1536
        %vm1540 = vcmp.eq.s32.totalorder %v1419, %v1536
        %vm1541 = vcmp.eq.s32.totalorder %v1420, %v1536
        %vm1542 = vcmp.eq.s32.totalorder %v1421, %v1536
        %vm1543 = vcmp.eq.s32.totalorder %v1422, %v1536
        %vm1544 = vcmp.eq.s32.totalorder %v1423, %v1536
        %vm1545 = vcmp.eq.s32.totalorder %v1424, %v1536
        %vm1546 = vcmp.eq.s32.totalorder %v1425, %v1536
        %vm1547 = vcmp.eq.s32.totalorder %v1426, %v1536
        %vm1548 = vcmp.eq.s32.totalorder %v1427, %v1536
        %vm1549 = vcmp.eq.s32.totalorder %v1428, %v1536
        %v1550 = vadd.s32 %v1090, 4294967295
        %vm1551 = vcmp.eq.s32.totalorder %v1442, %v1550
        %vm1552 = vcmp.eq.s32.totalorder %v1443, %v1550
        %vm1553 = vcmp.eq.s32.totalorder %v1444, %v1550
        %vm1554 = vcmp.eq.s32.totalorder %v1445, %v1550
        %vm1555 = vcmp.eq.s32.totalorder %v1446, %v1550
        %vm1556 = vcmp.eq.s32.totalorder %v1447, %v1550
        %vm1557 = vcmp.eq.s32.totalorder %v1448, %v1550
        %vm1558 = vcmp.eq.s32.totalorder %v1449, %v1550
        %vm1559 = vcmp.eq.s32.totalorder %v1450, %v1550
        %vm1560 = vcmp.eq.s32.totalorder %v1451, %v1550
        %vm1561 = vcmp.eq.s32.totalorder %v1452, %v1550
        %vm1562 = vcmp.eq.s32.totalorder %v1453, %v1550
        %vm1563 = vcmp.eq.s32.totalorder %v1454, %v1550
        %vm1564 = vmand %vm1537, %vm1551
        %vm1565 = vmand %vm1538, %vm1552
        %vm1566 = vmand %vm1539, %vm1553
        %vm1567 = vmand %vm1540, %vm1554
        %vm1568 = vmand %vm1541, %vm1555
        %vm1569 = vmand %vm1542, %vm1556
        %vm1570 = vmand %vm1543, %vm1557
        %vm1571 = vmand %vm1544, %vm1558
        %vm1572 = vmand %vm1545, %vm1559
        %vm1573 = vmand %vm1546, %vm1560
        %vm1574 = vmand %vm1547, %vm1561
        %vm1575 = vmand %vm1548, %vm1562
        %vm1576 = vmand %vm1549, %vm1563
        %v1577 = vsel %vm1564, 1, 0
        %v1578 = vsel %vm1565, 1, 0
        %v1579 = vsel %vm1566, 1, 0
        %v1580 = vsel %vm1567, 1, 0
        %v1581 = vsel %vm1568, 1, 0
        %v1582 = vsel %vm1569, 1, 0
        %v1583 = vsel %vm1570, 1, 0
        %v1584 = vsel %vm1571, 1, 0
        %v1585 = vsel %vm1572, 1, 0
        %v1586 = vsel %vm1573, 1, 0
        %v1587 = vsel %vm1574, 1, 0
        %v1588 = vsel %vm1575, 1, 0
        %v1589 = vsel %vm1576, 1, 0
        %v1590 = vcvt.s32.f32 %v1577
        %v1591 = vcvt.s32.f32 %v1578
        %v1592 = vcvt.s32.f32 %v1579
        %v1593 = vcvt.s32.f32 %v1580
        %v1594 = vcvt.s32.f32 %v1581
        %v1595 = vcvt.s32.f32 %v1582
        %v1596 = vcvt.s32.f32 %v1583
        %v1597 = vcvt.s32.f32 %v1584
        %v1598 = vcvt.s32.f32 %v1585
        %v1599 = vcvt.s32.f32 %v1586
        %v1600 = vcvt.s32.f32 %v1587
        %v1601 = vcvt.s32.f32 %v1588
        %v1602 = vcvt.s32.f32 %v1589
        %v1604 = vsel %vm1485, %v1535, 0
        %vm1606 = vcmask 1043456
        %v1608 = vsel %vm1606, %v1602, 0
        %1610 = vmatprep.subr.mxu0 0.0
        %1611 = vmatpush1.msra.mxu0 %v1590
        %1612 = vmatprep.subr.mxu0 0.0
        %1613 = vmatpush1.msra.mxu0 %v1591
        %1614 = vmatprep.subr.mxu0 0.0
        %1615 = vmatpush1.msra.mxu0 %v1592
        %1616 = vmatprep.subr.mxu0 0.0
        %1617 = vmatpush1.msra.mxu0 %v1593
        %1618 = vmatprep.subr.mxu0 0.0
        %1619 = vmatpush1.msra.mxu0 %v1594
        %1620 = vmatprep.subr.mxu0 0.0
        %1621 = vmatpush1.msra.mxu0 %v1595
        %1622 = vmatprep.subr.mxu0 0.0
        %1623 = vmatpush1.msra.mxu0 %v1596
        %1624 = vmatprep.subr.mxu0 0.0
        %1625 = vmatpush1.msra.mxu0 %v1597
        %1626 = vmatprep.subr.mxu0 0.0
        %1627 = vmatpush1.msra.mxu0 %v1598
        %1628 = vmatprep.subr.mxu0 0.0
        %1629 = vmatpush1.msra.mxu0 %v1599
        %1630 = vmatprep.subr.mxu0 0.0
        %1631 = vmatpush1.msra.mxu0 %v1600
        %1632 = vmatprep.subr.mxu0 0.0
        %1633 = vmatpush1.msra.mxu0 %v1601
        %1634 = vmatprep.subr.mxu0 0.0
        %1635 = vmatpush1.msra.mxu0 %v1608
        %1636 = vmatprep.subr.mxu0 0.0
        %1637 = vmatpush1.msra.mxu0 0.0
        %1638 = vmatprep.subr.mxu0 0.0
        %1639 = vmatpush1.msra.mxu0 0.0
        %1640 = vmatprep.subr.mxu0 0.0
        %1641 = vmatpush1.msra.mxu0 0.0
        %1642 = vmatprep.subr.mxu0 0.0
        %1643 = vmatpush1.msra.mxu0 0.0
        %1644 = vmatprep.subr.mxu0 0.0
        %1645 = vmatpush1.msra.mxu0 0.0
        %1646 = vmatprep.subr.mxu0 0.0
        %1647 = vmatpush1.msra.mxu0 0.0
        %1648 = vmatprep.subr.mxu0 0.0
        %1649 = vmatpush1.msra.mxu0 0.0
        %1650 = vmatprep.subr.mxu0 0.0
        %1651 = vmatpush1.msra.mxu0 0.0
        %1652 = vmatprep.subr.mxu0 0.0
        %1653 = vmatpush1.msra.mxu0 0.0
        %1654 = vmatprep.subr.mxu0 0.0
        %1655 = vmatpush1.msra.mxu0 0.0
        %1656 = vmatprep.subr.mxu0 0.0
        %1657 = vmatpush1.msra.mxu0 0.0
        %1658 = vmatprep.subr.mxu0 0.0
        %1659 = vmatpush1.msra.mxu0 0.0
        %1660 = vmatprep.subr.mxu0 0.0
        %1661 = vmatpush1.msra.mxu0 0.0
        %1662 = vmatprep.subr.mxu0 0.0
        %1663 = vmatpush1.msra.mxu0 0.0
        %1664 = vmatprep.subr.mxu0 0.0
        %1665 = vmatpush1.msra.mxu0 0.0
        %1666 = vmatprep.subr.mxu0 0.0
        %1667 = vmatpush1.msra.mxu0 0.0
        %1668 = vmatprep.subr.mxu0 0.0
        %1669 = vmatpush1.msra.mxu0 0.0
        %1670 = vmatprep.subr.mxu0 0.0
        %1671 = vmatpush1.msra.mxu0 0.0
        %1672 = vmatprep.subr.mxu0 0.0
        %1673 = vmatpush1.msra.mxu0 0.0
        %1674 = vmatprep.mubr.f32.mxu0 0.0
        %1675 = vmatmul.mubr.f32.gmra.mrb[0].mxu0 %v1604
        %v1676 = vpop.f32.mrb[0].mxu0
        %v1677 = vadd.f32 0.0, %v1676
        %v1678 = vpop.f32.mrb[0].mxu0
        %1679 = vdwg.mxu0
        %v1680 = vld [vmem:[%s2] sm:$0xff]
        %vm1681 = vcmp.eq.s32.totalorder %v1442, %v1090
        %vm1682 = vcmp.eq.s32.totalorder %v1443, %v1090
        %vm1683 = vcmp.eq.s32.totalorder %v1444, %v1090
        %vm1684 = vcmp.eq.s32.totalorder %v1445, %v1090
        %vm1685 = vcmp.eq.s32.totalorder %v1446, %v1090
        %vm1686 = vcmp.eq.s32.totalorder %v1447, %v1090
        %vm1687 = vcmp.eq.s32.totalorder %v1448, %v1090
        %vm1688 = vcmp.eq.s32.totalorder %v1449, %v1090
        %vm1689 = vcmp.eq.s32.totalorder %v1450, %v1090
        %vm1690 = vcmp.eq.s32.totalorder %v1451, %v1090
        %vm1691 = vcmp.eq.s32.totalorder %v1452, %v1090
        %vm1692 = vcmp.eq.s32.totalorder %v1453, %v1090
        %vm1693 = vcmp.eq.s32.totalorder %v1454, %v1090
        %vm1694 = vmand %vm1537, %vm1681
        %vm1695 = vmand %vm1538, %vm1682
        %vm1696 = vmand %vm1539, %vm1683
        %vm1697 = vmand %vm1540, %vm1684
        %vm1698 = vmand %vm1541, %vm1685
        %vm1699 = vmand %vm1542, %vm1686
        %vm1700 = vmand %vm1543, %vm1687
        %vm1701 = vmand %vm1544, %vm1688
        %vm1702 = vmand %vm1545, %vm1689
        %vm1703 = vmand %vm1546, %vm1690
        %vm1704 = vmand %vm1547, %vm1691
        %vm1705 = vmand %vm1548, %vm1692
        %vm1706 = vmand %vm1549, %vm1693
        %v1707 = vsel %vm1694, 1, 0
        %v1708 = vsel %vm1695, 1, 0
        %v1709 = vsel %vm1696, 1, 0
        %v1710 = vsel %vm1697, 1, 0
        %v1711 = vsel %vm1698, 1, 0
        %v1712 = vsel %vm1699, 1, 0
        %v1713 = vsel %vm1700, 1, 0
        %v1714 = vsel %vm1701, 1, 0
        %v1715 = vsel %vm1702, 1, 0
        %v1716 = vsel %vm1703, 1, 0
        %v1717 = vsel %vm1704, 1, 0
        %v1718 = vsel %vm1705, 1, 0
        %v1719 = vsel %vm1706, 1, 0
        %v1720 = vcvt.s32.f32 %v1707
        %v1721 = vcvt.s32.f32 %v1708
        %v1722 = vcvt.s32.f32 %v1709
        %v1723 = vcvt.s32.f32 %v1710
        %v1724 = vcvt.s32.f32 %v1711
        %v1725 = vcvt.s32.f32 %v1712
        %v1726 = vcvt.s32.f32 %v1713
        %v1727 = vcvt.s32.f32 %v1714
        %v1728 = vcvt.s32.f32 %v1715
        %v1729 = vcvt.s32.f32 %v1716
        %v1730 = vcvt.s32.f32 %v1717
        %v1731 = vcvt.s32.f32 %v1718
        %v1732 = vcvt.s32.f32 %v1719
        %v1734 = vsel %vm1606, %v1732, 0
        %1736 = vmatprep.subr.mxu0 0.0
        %1737 = vmatpush1.msra.mxu0 %v1720
        %1738 = vmatprep.subr.mxu0 0.0
        %1739 = vmatpush1.msra.mxu0 %v1721
        %1740 = vmatprep.subr.mxu0 0.0
        %1741 = vmatpush1.msra.mxu0 %v1722
        %1742 = vmatprep.subr.mxu0 0.0
        %1743 = vmatpush1.msra.mxu0 %v1723
        %1744 = vmatprep.subr.mxu0 0.0
        %1745 = vmatpush1.msra.mxu0 %v1724
        %1746 = vmatprep.subr.mxu0 0.0
        %1747 = vmatpush1.msra.mxu0 %v1725
        %1748 = vmatprep.subr.mxu0 0.0
        %1749 = vmatpush1.msra.mxu0 %v1726
        %1750 = vmatprep.subr.mxu0 0.0
        %1751 = vmatpush1.msra.mxu0 %v1727
        %1752 = vmatprep.subr.mxu0 0.0
        %1753 = vmatpush1.msra.mxu0 %v1728
        %1754 = vmatprep.subr.mxu0 0.0
        %1755 = vmatpush1.msra.mxu0 %v1729
        %1756 = vmatprep.subr.mxu0 0.0
        %1757 = vmatpush1.msra.mxu0 %v1730
        %1758 = vmatprep.subr.mxu0 0.0
        %1759 = vmatpush1.msra.mxu0 %v1731
        %1760 = vmatprep.subr.mxu0 0.0
        %1761 = vmatpush1.msra.mxu0 %v1734
        %1762 = vmatprep.subr.mxu0 0.0
        %1763 = vmatpush1.msra.mxu0 0.0
        %1764 = vmatprep.subr.mxu0 0.0
        %1765 = vmatpush1.msra.mxu0 0.0
        %1766 = vmatprep.subr.mxu0 0.0
        %1767 = vmatpush1.msra.mxu0 0.0
        %1768 = vmatprep.subr.mxu0 0.0
        %1769 = vmatpush1.msra.mxu0 0.0
        %1770 = vmatprep.subr.mxu0 0.0
        %1771 = vmatpush1.msra.mxu0 0.0
        %1772 = vmatprep.subr.mxu0 0.0
        %1773 = vmatpush1.msra.mxu0 0.0
        %1774 = vmatprep.subr.mxu0 0.0
        %1775 = vmatpush1.msra.mxu0 0.0
        %1776 = vmatprep.subr.mxu0 0.0
        %1777 = vmatpush1.msra.mxu0 0.0
        %1778 = vmatprep.subr.mxu0 0.0
        %1779 = vmatpush1.msra.mxu0 0.0
        %1780 = vmatprep.subr.mxu0 0.0
        %1781 = vmatpush1.msra.mxu0 0.0
        %1782 = vmatprep.subr.mxu0 0.0
        %1783 = vmatpush1.msra.mxu0 0.0
        %1784 = vmatprep.subr.mxu0 0.0
        %1785 = vmatpush1.msra.mxu0 0.0
        %1786 = vmatprep.subr.mxu0 0.0
        %1787 = vmatpush1.msra.mxu0 0.0
        %1788 = vmatprep.subr.mxu0 0.0
        %1789 = vmatpush1.msra.mxu0 0.0
        %1790 = vmatprep.subr.mxu0 0.0
        %1791 = vmatpush1.msra.mxu0 0.0
        %1792 = vmatprep.subr.mxu0 0.0
        %1793 = vmatpush1.msra.mxu0 0.0
        %1794 = vmatprep.subr.mxu0 0.0
        %1795 = vmatpush1.msra.mxu0 0.0
        %1796 = vmatprep.subr.mxu0 0.0
        %1797 = vmatpush1.msra.mxu0 0.0
        %1798 = vmatprep.subr.mxu0 0.0
        %1799 = vmatpush1.msra.mxu0 0.0
        %1800 = vmatprep.mubr.f32.mxu0 0.0
        %1801 = vmatmul.mubr.f32.gmra.mrb[0].mxu0 %v1604
        %v1802 = vpop.f32.mrb[0].mxu0
        %v1803 = vadd.f32 0.0, %v1802
        %v1804 = vpop.f32.mrb[0].mxu0
        %1805 = vdwg.mxu0
        %s1806 = scalar_lea.vmem %s2, 8
        %v1807 = vld [vmem:[%s1806] sm:$0xff]
        %vm1808 = vcmask 15360
        %v1810 = vsel %vm1808, %v1807, 0
        %vm1812 = vcmask 1041408
        %v1814 = vsel %vm1812, %v1803, 0
        %1816 = vmatprep.subr.mxu0 0.0
        %1817 = vmatpush1.msra.mxu0 %v1814
        %1818 = vmatprep.subr.mxu0 0.0
        %1819 = vmatpush1.msra.mxu0 0.0
        %1820 = vmatprep.subr.mxu0 0.0
        %1821 = vmatpush1.msra.mxu0 0.0
        %1822 = vmatprep.subr.mxu0 0.0
        %1823 = vmatpush1.msra.mxu0 0.0
        %1824 = vmatprep.subr.mxu0 0.0
        %1825 = vmatpush1.msra.mxu0 0.0
        %1826 = vmatprep.subr.mxu0 0.0
        %1827 = vmatpush1.msra.mxu0 0.0
        %1828 = vmatprep.subr.mxu0 0.0
        %1829 = vmatpush1.msra.mxu0 0.0
        %1830 = vmatprep.subr.mxu0 0.0
        %1831 = vmatpush1.msra.mxu0 0.0
        %1832 = vmatprep.subr.mxu0 0.0
        %1833 = vmatpush1.msra.mxu0 0.0
        %1834 = vmatprep.subr.mxu0 0.0
        %1835 = vmatpush1.msra.mxu0 0.0
        %1836 = vmatprep.subr.mxu0 0.0
        %1837 = vmatpush1.msra.mxu0 0.0
        %1838 = vmatprep.subr.mxu0 0.0
        %1839 = vmatpush1.msra.mxu0 0.0
        %1840 = vmatprep.subr.mxu0 0.0
        %1841 = vmatpush1.msra.mxu0 0.0
        %1842 = vmatprep.subr.mxu0 0.0
        %1843 = vmatpush1.msra.mxu0 0.0
        %1844 = vmatprep.subr.mxu0 0.0
        %1845 = vmatpush1.msra.mxu0 0.0
        %1846 = vmatprep.subr.mxu0 0.0
        %1847 = vmatpush1.msra.mxu0 0.0
        %1848 = vmatprep.subr.mxu0 0.0
        %1849 = vmatpush1.msra.mxu0 0.0
        %1850 = vmatprep.subr.mxu0 0.0
        %1851 = vmatpush1.msra.mxu0 0.0
        %1852 = vmatprep.subr.mxu0 0.0
        %1853 = vmatpush1.msra.mxu0 0.0
        %1854 = vmatprep.subr.mxu0 0.0
        %1855 = vmatpush1.msra.mxu0 0.0
        %1856 = vmatprep.subr.mxu0 0.0
        %1857 = vmatpush1.msra.mxu0 0.0
        %1858 = vmatprep.subr.mxu0 0.0
        %1859 = vmatpush1.msra.mxu0 0.0
        %1860 = vmatprep.subr.mxu0 0.0
        %1861 = vmatpush1.msra.mxu0 0.0
        %1862 = vmatprep.subr.mxu0 0.0
        %1863 = vmatpush1.msra.mxu0 0.0
        %1864 = vmatprep.subr.mxu0 0.0
        %1865 = vmatpush1.msra.mxu0 0.0
        %1866 = vmatprep.subr.mxu0 0.0
        %1867 = vmatpush1.msra.mxu0 0.0
        %1868 = vmatprep.subr.mxu0 0.0
        %1869 = vmatpush1.msra.mxu0 0.0
        %1870 = vmatprep.subr.mxu0 0.0
        %1871 = vmatpush1.msra.mxu0 0.0
        %1872 = vmatprep.subr.mxu0 0.0
        %1873 = vmatpush1.msra.mxu0 0.0
        %1874 = vmatprep.subr.mxu0 0.0
        %1875 = vmatpush1.msra.mxu0 0.0
        %1876 = vmatprep.subr.mxu0 0.0
        %1877 = vmatpush1.msra.mxu0 0.0
        %1878 = vmatprep.subr.mxu0 0.0
        %1879 = vmatpush1.msra.mxu0 0.0
        %1880 = vmatprep.mubr.f32.mxu0 0.0
        %1881 = vmatmul.mubr.f32.gmra.mrb[0].mxu0 %v1810
        %v1882 = vpop.f32.mrb[0].mxu0
        %v1883 = vadd.f32 0.0, %v1882
        %v1884 = vpop.f32.mrb[0].mxu0
        %1885 = vdwg.mxu0
        %v1887 = vsel %vm1808, %v1680, 0
        %v1890 = vsel %vm1812, %v1677, 0
        %1892 = vmatprep.subr.mxu0 0.0
        %1893 = vmatpush1.msra.mxu0 %v1890
        %1894 = vmatprep.subr.mxu0 0.0
        %1895 = vmatpush1.msra.mxu0 0.0
        %1896 = vmatprep.subr.mxu0 0.0
        %1897 = vmatpush1.msra.mxu0 0.0
        %1898 = vmatprep.subr.mxu0 0.0
        %1899 = vmatpush1.msra.mxu0 0.0
        %1900 = vmatprep.subr.mxu0 0.0
        %1901 = vmatpush1.msra.mxu0 0.0
        %1902 = vmatprep.subr.mxu0 0.0
        %1903 = vmatpush1.msra.mxu0 0.0
        %1904 = vmatprep.subr.mxu0 0.0
        %1905 = vmatpush1.msra.mxu0 0.0
        %1906 = vmatprep.subr.mxu0 0.0
        %1907 = vmatpush1.msra.mxu0 0.0
        %1908 = vmatprep.subr.mxu0 0.0
        %1909 = vmatpush1.msra.mxu0 0.0
        %1910 = vmatprep.subr.mxu0 0.0
        %1911 = vmatpush1.msra.mxu0 0.0
        %1912 = vmatprep.subr.mxu0 0.0
        %1913 = vmatpush1.msra.mxu0 0.0
        %1914 = vmatprep.subr.mxu0 0.0
        %1915 = vmatpush1.msra.mxu0 0.0
        %1916 = vmatprep.subr.mxu0 0.0
        %1917 = vmatpush1.msra.mxu0 0.0
        %1918 = vmatprep.subr.mxu0 0.0
        %1919 = vmatpush1.msra.mxu0 0.0
        %1920 = vmatprep.subr.mxu0 0.0
        %1921 = vmatpush1.msra.mxu0 0.0
        %1922 = vmatprep.subr.mxu0 0.0
        %1923 = vmatpush1.msra.mxu0 0.0
        %1924 = vmatprep.subr.mxu0 0.0
        %1925 = vmatpush1.msra.mxu0 0.0
        %1926 = vmatprep.subr.mxu0 0.0
        %1927 = vmatpush1.msra.mxu0 0.0
        %1928 = vmatprep.subr.mxu0 0.0
        %1929 = vmatpush1.msra.mxu0 0.0
        %1930 = vmatprep.subr.mxu0 0.0
        %1931 = vmatpush1.msra.mxu0 0.0
        %1932 = vmatprep.subr.mxu0 0.0
        %1933 = vmatpush1.msra.mxu0 0.0
        %1934 = vmatprep.subr.mxu0 0.0
        %1935 = vmatpush1.msra.mxu0 0.0
        %1936 = vmatprep.subr.mxu0 0.0
        %1937 = vmatpush1.msra.mxu0 0.0
        %1938 = vmatprep.subr.mxu0 0.0
        %1939 = vmatpush1.msra.mxu0 0.0
        %1940 = vmatprep.subr.mxu0 0.0
        %1941 = vmatpush1.msra.mxu0 0.0
        %1942 = vmatprep.subr.mxu0 0.0
        %1943 = vmatpush1.msra.mxu0 0.0
        %1944 = vmatprep.subr.mxu0 0.0
        %1945 = vmatpush1.msra.mxu0 0.0
        %1946 = vmatprep.subr.mxu0 0.0
        %1947 = vmatpush1.msra.mxu0 0.0
        %1948 = vmatprep.subr.mxu0 0.0
        %1949 = vmatpush1.msra.mxu0 0.0
        %1950 = vmatprep.subr.mxu0 0.0
        %1951 = vmatpush1.msra.mxu0 0.0
        %1952 = vmatprep.subr.mxu0 0.0
        %1953 = vmatpush1.msra.mxu0 0.0
        %1954 = vmatprep.subr.mxu0 0.0
        %1955 = vmatpush1.msra.mxu0 0.0
        %1956 = vmatprep.mubr.f32.mxu0 0.0
        %1957 = vmatmul.mubr.f32.gmra.mrb[0].mxu0 %v1887
        %v1958 = vpop.f32.mrb[0].mxu0
        %v1959 = vadd.f32 %v1883, %v1958
        %v1960 = vpop.f32.mrb[0].mxu0
        %1961 = vdwg.mxu0
        %v1962 = vadd.s32 %v1090, 1
        %vm1963 = vcmp.eq.s32.totalorder %v1442, %v1962
        %vm1964 = vcmp.eq.s32.totalorder %v1443, %v1962
        %vm1965 = vcmp.eq.s32.totalorder %v1444, %v1962
        %vm1966 = vcmp.eq.s32.totalorder %v1445, %v1962
        %vm1967 = vcmp.eq.s32.totalorder %v1446, %v1962
        %vm1968 = vcmp.eq.s32.totalorder %v1447, %v1962
        %vm1969 = vcmp.eq.s32.totalorder %v1448, %v1962
        %vm1970 = vcmp.eq.s32.totalorder %v1449, %v1962
        %vm1971 = vcmp.eq.s32.totalorder %v1450, %v1962
        %vm1972 = vcmp.eq.s32.totalorder %v1451, %v1962
        %vm1973 = vcmp.eq.s32.totalorder %v1452, %v1962
        %vm1974 = vcmp.eq.s32.totalorder %v1453, %v1962
        %vm1975 = vcmp.eq.s32.totalorder %v1454, %v1962
        %vm1976 = vmand %vm1537, %vm1963
        %vm1977 = vmand %vm1538, %vm1964
        %vm1978 = vmand %vm1539, %vm1965
        %vm1979 = vmand %vm1540, %vm1966
        %vm1980 = vmand %vm1541, %vm1967
        %vm1981 = vmand %vm1542, %vm1968
        %vm1982 = vmand %vm1543, %vm1969
        %vm1983 = vmand %vm1544, %vm1970
        %vm1984 = vmand %vm1545, %vm1971
        %vm1985 = vmand %vm1546, %vm1972
        %vm1986 = vmand %vm1547, %vm1973
        %vm1987 = vmand %vm1548, %vm1974
        %vm1988 = vmand %vm1549, %vm1975
        %v1989 = vsel %vm1976, 1, 0
        %v1990 = vsel %vm1977, 1, 0
        %v1991 = vsel %vm1978, 1, 0
        %v1992 = vsel %vm1979, 1, 0
        %v1993 = vsel %vm1980, 1, 0
        %v1994 = vsel %vm1981, 1, 0
        %v1995 = vsel %vm1982, 1, 0
        %v1996 = vsel %vm1983, 1, 0
        %v1997 = vsel %vm1984, 1, 0
        %v1998 = vsel %vm1985, 1, 0
        %v1999 = vsel %vm1986, 1, 0
        %v2000 = vsel %vm1987, 1, 0
        %v2001 = vsel %vm1988, 1, 0
        %v2002 = vcvt.s32.f32 %v1989
        %v2003 = vcvt.s32.f32 %v1990
        %v2004 = vcvt.s32.f32 %v1991
        %v2005 = vcvt.s32.f32 %v1992
        %v2006 = vcvt.s32.f32 %v1993
        %v2007 = vcvt.s32.f32 %v1994
        %v2008 = vcvt.s32.f32 %v1995
        %v2009 = vcvt.s32.f32 %v1996
        %v2010 = vcvt.s32.f32 %v1997
        %v2011 = vcvt.s32.f32 %v1998
        %v2012 = vcvt.s32.f32 %v1999
        %v2013 = vcvt.s32.f32 %v2000
        %v2014 = vcvt.s32.f32 %v2001
        %v2016 = vsel %vm1606, %v2014, 0
        %2018 = vmatprep.subr.mxu0 0.0
        %2019 = vmatpush1.msra.mxu0 %v2002
        %2020 = vmatprep.subr.mxu0 0.0
        %2021 = vmatpush1.msra.mxu0 %v2003
        %2022 = vmatprep.subr.mxu0 0.0
        %2023 = vmatpush1.msra.mxu0 %v2004
        %2024 = vmatprep.subr.mxu0 0.0
        %2025 = vmatpush1.msra.mxu0 %v2005
        %2026 = vmatprep.subr.mxu0 0.0
        %2027 = vmatpush1.msra.mxu0 %v2006
        %2028 = vmatprep.subr.mxu0 0.0
        %2029 = vmatpush1.msra.mxu0 %v2007
        %2030 = vmatprep.subr.mxu0 0.0
        %2031 = vmatpush1.msra.mxu0 %v2008
        %2032 = vmatprep.subr.mxu0 0.0
        %2033 = vmatpush1.msra.mxu0 %v2009
        %2034 = vmatprep.subr.mxu0 0.0
        %2035 = vmatpush1.msra.mxu0 %v2010
        %2036 = vmatprep.subr.mxu0 0.0
        %2037 = vmatpush1.msra.mxu0 %v2011
        %2038 = vmatprep.subr.mxu0 0.0
        %2039 = vmatpush1.msra.mxu0 %v2012
        %2040 = vmatprep.subr.mxu0 0.0
        %2041 = vmatpush1.msra.mxu0 %v2013
        %2042 = vmatprep.subr.mxu0 0.0
        %2043 = vmatpush1.msra.mxu0 %v2016
        %2044 = vmatprep.subr.mxu0 0.0
        %2045 = vmatpush1.msra.mxu0 0.0
        %2046 = vmatprep.subr.mxu0 0.0
        %2047 = vmatpush1.msra.mxu0 0.0
        %2048 = vmatprep.subr.mxu0 0.0
        %2049 = vmatpush1.msra.mxu0 0.0
        %2050 = vmatprep.subr.mxu0 0.0
        %2051 = vmatpush1.msra.mxu0 0.0
        %2052 = vmatprep.subr.mxu0 0.0
        %2053 = vmatpush1.msra.mxu0 0.0
        %2054 = vmatprep.subr.mxu0 0.0
        %2055 = vmatpush1.msra.mxu0 0.0
        %2056 = vmatprep.subr.mxu0 0.0
        %2057 = vmatpush1.msra.mxu0 0.0
        %2058 = vmatprep.subr.mxu0 0.0
        %2059 = vmatpush1.msra.mxu0 0.0
        %2060 = vmatprep.subr.mxu0 0.0
        %2061 = vmatpush1.msra.mxu0 0.0
        %2062 = vmatprep.subr.mxu0 0.0
        %2063 = vmatpush1.msra.mxu0 0.0
        %2064 = vmatprep.subr.mxu0 0.0
        %2065 = vmatpush1.msra.mxu0 0.0
        %2066 = vmatprep.subr.mxu0 0.0
        %2067 = vmatpush1.msra.mxu0 0.0
        %2068 = vmatprep.subr.mxu0 0.0
        %2069 = vmatpush1.msra.mxu0 0.0
        %2070 = vmatprep.subr.mxu0 0.0
        %2071 = vmatpush1.msra.mxu0 0.0
        %2072 = vmatprep.subr.mxu0 0.0
        %2073 = vmatpush1.msra.mxu0 0.0
        %2074 = vmatprep.subr.mxu0 0.0
        %2075 = vmatpush1.msra.mxu0 0.0
        %2076 = vmatprep.subr.mxu0 0.0
        %2077 = vmatpush1.msra.mxu0 0.0
        %2078 = vmatprep.subr.mxu0 0.0
        %2079 = vmatpush1.msra.mxu0 0.0
        %2080 = vmatprep.subr.mxu0 0.0
        %2081 = vmatpush1.msra.mxu0 0.0
        %2082 = vmatprep.mubr.f32.mxu0 0.0
        %2083 = vmatmul.mubr.f32.gmra.mrb[0].mxu0 %v1604
        %v2084 = vpop.f32.mrb[0].mxu0
        %v2085 = vadd.f32 0.0, %v2084
        %v2086 = vpop.f32.mrb[0].mxu0
        %2087 = vdwg.mxu0
        %s2088 = scalar_lea.vmem %s2, 16
        %v2089 = vld [vmem:[%s2088] sm:$0xff]
        %v2091 = vsel %vm1808, %v2089, 0
        %v2094 = vsel %vm1812, %v2085, 0
        %2096 = vmatprep.subr.mxu0 0.0
        %2097 = vmatpush1.msra.mxu0 %v2094
        %2098 = vmatprep.subr.mxu0 0.0
        %2099 = vmatpush1.msra.mxu0 0.0
        %2100 = vmatprep.subr.mxu0 0.0
        %2101 = vmatpush1.msra.mxu0 0.0
        %2102 = vmatprep.subr.mxu0 0.0
        %2103 = vmatpush1.msra.mxu0 0.0
        %2104 = vmatprep.subr.mxu0 0.0
        %2105 = vmatpush1.msra.mxu0 0.0
        %2106 = vmatprep.subr.mxu0 0.0
        %2107 = vmatpush1.msra.mxu0 0.0
        %2108 = vmatprep.subr.mxu0 0.0
        %2109 = vmatpush1.msra.mxu0 0.0
        %2110 = vmatprep.subr.mxu0 0.0
        %2111 = vmatpush1.msra.mxu0 0.0
        %2112 = vmatprep.subr.mxu0 0.0
        %2113 = vmatpush1.msra.mxu0 0.0
        %2114 = vmatprep.subr.mxu0 0.0
        %2115 = vmatpush1.msra.mxu0 0.0
        %2116 = vmatprep.subr.mxu0 0.0
        %2117 = vmatpush1.msra.mxu0 0.0
        %2118 = vmatprep.subr.mxu0 0.0
        %2119 = vmatpush1.msra.mxu0 0.0
        %2120 = vmatprep.subr.mxu0 0.0
        %2121 = vmatpush1.msra.mxu0 0.0
        %2122 = vmatprep.subr.mxu0 0.0
        %2123 = vmatpush1.msra.mxu0 0.0
        %2124 = vmatprep.subr.mxu0 0.0
        %2125 = vmatpush1.msra.mxu0 0.0
        %2126 = vmatprep.subr.mxu0 0.0
        %2127 = vmatpush1.msra.mxu0 0.0
        %2128 = vmatprep.subr.mxu0 0.0
        %2129 = vmatpush1.msra.mxu0 0.0
        %2130 = vmatprep.subr.mxu0 0.0
        %2131 = vmatpush1.msra.mxu0 0.0
        %2132 = vmatprep.subr.mxu0 0.0
        %2133 = vmatpush1.msra.mxu0 0.0
        %2134 = vmatprep.subr.mxu0 0.0
        %2135 = vmatpush1.msra.mxu0 0.0
        %2136 = vmatprep.subr.mxu0 0.0
        %2137 = vmatpush1.msra.mxu0 0.0
        %2138 = vmatprep.subr.mxu0 0.0
        %2139 = vmatpush1.msra.mxu0 0.0
        %2140 = vmatprep.subr.mxu0 0.0
        %2141 = vmatpush1.msra.mxu0 0.0
        %2142 = vmatprep.subr.mxu0 0.0
        %2143 = vmatpush1.msra.mxu0 0.0
        %2144 = vmatprep.subr.mxu0 0.0
        %2145 = vmatpush1.msra.mxu0 0.0
        %2146 = vmatprep.subr.mxu0 0.0
        %2147 = vmatpush1.msra.mxu0 0.0
        %2148 = vmatprep.subr.mxu0 0.0
        %2149 = vmatpush1.msra.mxu0 0.0
        %2150 = vmatprep.subr.mxu0 0.0
        %2151 = vmatpush1.msra.mxu0 0.0
        %2152 = vmatprep.subr.mxu0 0.0
        %2153 = vmatpush1.msra.mxu0 0.0
        %2154 = vmatprep.subr.mxu0 0.0
        %2155 = vmatpush1.msra.mxu0 0.0
        %2156 = vmatprep.subr.mxu0 0.0
        %2157 = vmatpush1.msra.mxu0 0.0
        %2158 = vmatprep.subr.mxu0 0.0
        %2159 = vmatpush1.msra.mxu0 0.0
        %2160 = vmatprep.mubr.f32.mxu0 0.0
        %2161 = vmatmul.mubr.f32.gmra.mrb[0].mxu0 %v2091
        %v2162 = vpop.f32.mrb[0].mxu0
        %v2163 = vadd.f32 0.0, %v2162
        %v2164 = vpop.f32.mrb[0].mxu0
        %2165 = vdwg.mxu0
        %v2166 = vadd.f32 %v1959, %v2163
        %vm2167 = vcmp.eq.s32.totalorder %v1416, %v1088
        %vm2168 = vcmp.eq.s32.totalorder %v1417, %v1088
        %vm2169 = vcmp.eq.s32.totalorder %v1418, %v1088
        %vm2170 = vcmp.eq.s32.totalorder %v1419, %v1088
        %vm2171 = vcmp.eq.s32.totalorder %v1420, %v1088
        %vm2172 = vcmp.eq.s32.totalorder %v1421, %v1088
        %vm2173 = vcmp.eq.s32.totalorder %v1422, %v1088
        %vm2174 = vcmp.eq.s32.totalorder %v1423, %v1088
        %vm2175 = vcmp.eq.s32.totalorder %v1424, %v1088
        %vm2176 = vcmp.eq.s32.totalorder %v1425, %v1088
        %vm2177 = vcmp.eq.s32.totalorder %v1426, %v1088
        %vm2178 = vcmp.eq.s32.totalorder %v1427, %v1088
        %vm2179 = vcmp.eq.s32.totalorder %v1428, %v1088
        %vm2180 = vmand %vm2167, %vm1551
        %vm2181 = vmand %vm2168, %vm1552
        %vm2182 = vmand %vm2169, %vm1553
        %vm2183 = vmand %vm2170, %vm1554
        %vm2184 = vmand %vm2171, %vm1555
        %vm2185 = vmand %vm2172, %vm1556
        %vm2186 = vmand %vm2173, %vm1557
        %vm2187 = vmand %vm2174, %vm1558
        %vm2188 = vmand %vm2175, %vm1559
        %vm2189 = vmand %vm2176, %vm1560
        %vm2190 = vmand %vm2177, %vm1561
        %vm2191 = vmand %vm2178, %vm1562
        %vm2192 = vmand %vm2179, %vm1563
        %v2193 = vsel %vm2180, 1, 0
        %v2194 = vsel %vm2181, 1, 0
        %v2195 = vsel %vm2182, 1, 0
        %v2196 = vsel %vm2183, 1, 0
        %v2197 = vsel %vm2184, 1, 0
        %v2198 = vsel %vm2185, 1, 0
        %v2199 = vsel %vm2186, 1, 0
        %v2200 = vsel %vm2187, 1, 0
        %v2201 = vsel %vm2188, 1, 0
        %v2202 = vsel %vm2189, 1, 0
        %v2203 = vsel %vm2190, 1, 0
        %v2204 = vsel %vm2191, 1, 0
        %v2205 = vsel %vm2192, 1, 0
        %v2206 = vcvt.s32.f32 %v2193
        %v2207 = vcvt.s32.f32 %v2194
        %v2208 = vcvt.s32.f32 %v2195
        %v2209 = vcvt.s32.f32 %v2196
        %v2210 = vcvt.s32.f32 %v2197
        %v2211 = vcvt.s32.f32 %v2198
        %v2212 = vcvt.s32.f32 %v2199
        %v2213 = vcvt.s32.f32 %v2200
        %v2214 = vcvt.s32.f32 %v2201
        %v2215 = vcvt.s32.f32 %v2202
        %v2216 = vcvt.s32.f32 %v2203
        %v2217 = vcvt.s32.f32 %v2204
        %v2218 = vcvt.s32.f32 %v2205
        %v2220 = vsel %vm1606, %v2218, 0
        %2222 = vmatprep.subr.mxu0 0.0
        %2223 = vmatpush1.msra.mxu0 %v2206
        %2224 = vmatprep.subr.mxu0 0.0
        %2225 = vmatpush1.msra.mxu0 %v2207
        %2226 = vmatprep.subr.mxu0 0.0
        %2227 = vmatpush1.msra.mxu0 %v2208
        %2228 = vmatprep.subr.mxu0 0.0
        %2229 = vmatpush1.msra.mxu0 %v2209
        %2230 = vmatprep.subr.mxu0 0.0
        %2231 = vmatpush1.msra.mxu0 %v2210
        %2232 = vmatprep.subr.mxu0 0.0
        %2233 = vmatpush1.msra.mxu0 %v2211
        %2234 = vmatprep.subr.mxu0 0.0
        %2235 = vmatpush1.msra.mxu0 %v2212
        %2236 = vmatprep.subr.mxu0 0.0
        %2237 = vmatpush1.msra.mxu0 %v2213
        %2238 = vmatprep.subr.mxu0 0.0
        %2239 = vmatpush1.msra.mxu0 %v2214
        %2240 = vmatprep.subr.mxu0 0.0
        %2241 = vmatpush1.msra.mxu0 %v2215
        %2242 = vmatprep.subr.mxu0 0.0
        %2243 = vmatpush1.msra.mxu0 %v2216
        %2244 = vmatprep.subr.mxu0 0.0
        %2245 = vmatpush1.msra.mxu0 %v2217
        %2246 = vmatprep.subr.mxu0 0.0
        %2247 = vmatpush1.msra.mxu0 %v2220
        %2248 = vmatprep.subr.mxu0 0.0
        %2249 = vmatpush1.msra.mxu0 0.0
        %2250 = vmatprep.subr.mxu0 0.0
        %2251 = vmatpush1.msra.mxu0 0.0
        %2252 = vmatprep.subr.mxu0 0.0
        %2253 = vmatpush1.msra.mxu0 0.0
        %2254 = vmatprep.subr.mxu0 0.0
        %2255 = vmatpush1.msra.mxu0 0.0
        %2256 = vmatprep.subr.mxu0 0.0
        %2257 = vmatpush1.msra.mxu0 0.0
        %2258 = vmatprep.subr.mxu0 0.0
        %2259 = vmatpush1.msra.mxu0 0.0
        %2260 = vmatprep.subr.mxu0 0.0
        %2261 = vmatpush1.msra.mxu0 0.0
        %2262 = vmatprep.subr.mxu0 0.0
        %2263 = vmatpush1.msra.mxu0 0.0
        %2264 = vmatprep.subr.mxu0 0.0
        %2265 = vmatpush1.msra.mxu0 0.0
        %2266 = vmatprep.subr.mxu0 0.0
        %2267 = vmatpush1.msra.mxu0 0.0
        %2268 = vmatprep.subr.mxu0 0.0
        %2269 = vmatpush1.msra.mxu0 0.0
        %2270 = vmatprep.subr.mxu0 0.0
        %2271 = vmatpush1.msra.mxu0 0.0
        %2272 = vmatprep.subr.mxu0 0.0
        %2273 = vmatpush1.msra.mxu0 0.0
        %2274 = vmatprep.subr.mxu0 0.0
        %2275 = vmatpush1.msra.mxu0 0.0
        %2276 = vmatprep.subr.mxu0 0.0
        %2277 = vmatpush1.msra.mxu0 0.0
        %2278 = vmatprep.subr.mxu0 0.0
        %2279 = vmatpush1.msra.mxu0 0.0
        %2280 = vmatprep.subr.mxu0 0.0
        %2281 = vmatpush1.msra.mxu0 0.0
        %2282 = vmatprep.subr.mxu0 0.0
        %2283 = vmatpush1.msra.mxu0 0.0
        %2284 = vmatprep.subr.mxu0 0.0
        %2285 = vmatpush1.msra.mxu0 0.0
        %2286 = vmatprep.mubr.f32.mxu0 0.0
        %2287 = vmatmul.mubr.f32.gmra.mrb[0].mxu0 %v1604
        %v2288 = vpop.f32.mrb[0].mxu0
        %v2289 = vadd.f32 0.0, %v2288
        %v2290 = vpop.f32.mrb[0].mxu0
        %2291 = vdwg.mxu0
        %s2292 = scalar_lea.vmem %s2, 24
        %v2293 = vld [vmem:[%s2292] sm:$0xff]
        %v2295 = vsel %vm1808, %v2293, 0
        %v2298 = vsel %vm1812, %v2289, 0
        %2300 = vmatprep.subr.mxu0 0.0
        %2301 = vmatpush1.msra.mxu0 %v2298
        %2302 = vmatprep.subr.mxu0 0.0
        %2303 = vmatpush1.msra.mxu0 0.0
        %2304 = vmatprep.subr.mxu0 0.0
        %2305 = vmatpush1.msra.mxu0 0.0
        %2306 = vmatprep.subr.mxu0 0.0
        %2307 = vmatpush1.msra.mxu0 0.0
        %2308 = vmatprep.subr.mxu0 0.0
        %2309 = vmatpush1.msra.mxu0 0.0
        %2310 = vmatprep.subr.mxu0 0.0
        %2311 = vmatpush1.msra.mxu0 0.0
        %2312 = vmatprep.subr.mxu0 0.0
        %2313 = vmatpush1.msra.mxu0 0.0
        %2314 = vmatprep.subr.mxu0 0.0
        %2315 = vmatpush1.msra.mxu0 0.0
        %2316 = vmatprep.subr.mxu0 0.0
        %2317 = vmatpush1.msra.mxu0 0.0
        %2318 = vmatprep.subr.mxu0 0.0
        %2319 = vmatpush1.msra.mxu0 0.0
        %2320 = vmatprep.subr.mxu0 0.0
        %2321 = vmatpush1.msra.mxu0 0.0
        %2322 = vmatprep.subr.mxu0 0.0
        %2323 = vmatpush1.msra.mxu0 0.0
        %2324 = vmatprep.subr.mxu0 0.0
        %2325 = vmatpush1.msra.mxu0 0.0
        %2326 = vmatprep.subr.mxu0 0.0
        %2327 = vmatpush1.msra.mxu0 0.0
        %2328 = vmatprep.subr.mxu0 0.0
        %2329 = vmatpush1.msra.mxu0 0.0
        %2330 = vmatprep.subr.mxu0 0.0
        %2331 = vmatpush1.msra.mxu0 0.0
        %2332 = vmatprep.subr.mxu0 0.0
        %2333 = vmatpush1.msra.mxu0 0.0
        %2334 = vmatprep.subr.mxu0 0.0
        %2335 = vmatpush1.msra.mxu0 0.0
        %2336 = vmatprep.subr.mxu0 0.0
        %2337 = vmatpush1.msra.mxu0 0.0
        %2338 = vmatprep.subr.mxu0 0.0
        %2339 = vmatpush1.msra.mxu0 0.0
        %2340 = vmatprep.subr.mxu0 0.0
        %2341 = vmatpush1.msra.mxu0 0.0
        %2342 = vmatprep.subr.mxu0 0.0
        %2343 = vmatpush1.msra.mxu0 0.0
        %2344 = vmatprep.subr.mxu0 0.0
        %2345 = vmatpush1.msra.mxu0 0.0
        %2346 = vmatprep.subr.mxu0 0.0
        %2347 = vmatpush1.msra.mxu0 0.0
        %2348 = vmatprep.subr.mxu0 0.0
        %2349 = vmatpush1.msra.mxu0 0.0
        %2350 = vmatprep.subr.mxu0 0.0
        %2351 = vmatpush1.msra.mxu0 0.0
        %2352 = vmatprep.subr.mxu0 0.0
        %2353 = vmatpush1.msra.mxu0 0.0
        %2354 = vmatprep.subr.mxu0 0.0
        %2355 = vmatpush1.msra.mxu0 0.0
        %2356 = vmatprep.subr.mxu0 0.0
        %2357 = vmatpush1.msra.mxu0 0.0
        %2358 = vmatprep.subr.mxu0 0.0
        %2359 = vmatpush1.msra.mxu0 0.0
        %2360 = vmatprep.subr.mxu0 0.0
        %2361 = vmatpush1.msra.mxu0 0.0
        %2362 = vmatprep.subr.mxu0 0.0
        %2363 = vmatpush1.msra.mxu0 0.0
        %2364 = vmatprep.mubr.f32.mxu0 0.0
        %2365 = vmatmul.mubr.f32.gmra.mrb[0].mxu0 %v2295
        %v2366 = vpop.f32.mrb[0].mxu0
        %v2367 = vadd.f32 0.0, %v2366
        %v2368 = vpop.f32.mrb[0].mxu0
        %2369 = vdwg.mxu0
        %v2370 = vadd.f32 %v2166, %v2367
        %vm2371 = vmand %vm2167, %vm1681
        %vm2372 = vmand %vm2168, %vm1682
        %vm2373 = vmand %vm2169, %vm1683
        %vm2374 = vmand %vm2170, %vm1684
        %vm2375 = vmand %vm2171, %vm1685
        %vm2376 = vmand %vm2172, %vm1686
        %vm2377 = vmand %vm2173, %vm1687
        %vm2378 = vmand %vm2174, %vm1688
        %vm2379 = vmand %vm2175, %vm1689
        %vm2380 = vmand %vm2176, %vm1690
        %vm2381 = vmand %vm2177, %vm1691
        %vm2382 = vmand %vm2178, %vm1692
        %vm2383 = vmand %vm2179, %vm1693
        %v2384 = vsel %vm2371, 1, 0
        %v2385 = vsel %vm2372, 1, 0
        %v2386 = vsel %vm2373, 1, 0
        %v2387 = vsel %vm2374, 1, 0
        %v2388 = vsel %vm2375, 1, 0
        %v2389 = vsel %vm2376, 1, 0
        %v2390 = vsel %vm2377, 1, 0
        %v2391 = vsel %vm2378, 1, 0
        %v2392 = vsel %vm2379, 1, 0
        %v2393 = vsel %vm2380, 1, 0
        %v2394 = vsel %vm2381, 1, 0
        %v2395 = vsel %vm2382, 1, 0
        %v2396 = vsel %vm2383, 1, 0
        %v2397 = vcvt.s32.f32 %v2384
        %v2398 = vcvt.s32.f32 %v2385
        %v2399 = vcvt.s32.f32 %v2386
        %v2400 = vcvt.s32.f32 %v2387
        %v2401 = vcvt.s32.f32 %v2388
        %v2402 = vcvt.s32.f32 %v2389
        %v2403 = vcvt.s32.f32 %v2390
        %v2404 = vcvt.s32.f32 %v2391
        %v2405 = vcvt.s32.f32 %v2392
        %v2406 = vcvt.s32.f32 %v2393
        %v2407 = vcvt.s32.f32 %v2394
        %v2408 = vcvt.s32.f32 %v2395
        %v2409 = vcvt.s32.f32 %v2396
        %v2411 = vsel %vm1606, %v2409, 0
        %2413 = vmatprep.subr.mxu0 0.0
        %2414 = vmatpush1.msra.mxu0 %v2397
        %2415 = vmatprep.subr.mxu0 0.0
        %2416 = vmatpush1.msra.mxu0 %v2398
        %2417 = vmatprep.subr.mxu0 0.0
        %2418 = vmatpush1.msra.mxu0 %v2399
        %2419 = vmatprep.subr.mxu0 0.0
        %2420 = vmatpush1.msra.mxu0 %v2400
        %2421 = vmatprep.subr.mxu0 0.0
        %2422 = vmatpush1.msra.mxu0 %v2401
        %2423 = vmatprep.subr.mxu0 0.0
        %2424 = vmatpush1.msra.mxu0 %v2402
        %2425 = vmatprep.subr.mxu0 0.0
        %2426 = vmatpush1.msra.mxu0 %v2403
        %2427 = vmatprep.subr.mxu0 0.0
        %2428 = vmatpush1.msra.mxu0 %v2404
        %2429 = vmatprep.subr.mxu0 0.0
        %2430 = vmatpush1.msra.mxu0 %v2405
        %2431 = vmatprep.subr.mxu0 0.0
        %2432 = vmatpush1.msra.mxu0 %v2406
        %2433 = vmatprep.subr.mxu0 0.0
        %2434 = vmatpush1.msra.mxu0 %v2407
        %2435 = vmatprep.subr.mxu0 0.0
        %2436 = vmatpush1.msra.mxu0 %v2408
        %2437 = vmatprep.subr.mxu0 0.0
        %2438 = vmatpush1.msra.mxu0 %v2411
        %2439 = vmatprep.subr.mxu0 0.0
        %2440 = vmatpush1.msra.mxu0 0.0
        %2441 = vmatprep.subr.mxu0 0.0
        %2442 = vmatpush1.msra.mxu0 0.0
        %2443 = vmatprep.subr.mxu0 0.0
        %2444 = vmatpush1.msra.mxu0 0.0
        %2445 = vmatprep.subr.mxu0 0.0
        %2446 = vmatpush1.msra.mxu0 0.0
        %2447 = vmatprep.subr.mxu0 0.0
        %2448 = vmatpush1.msra.mxu0 0.0
        %2449 = vmatprep.subr.mxu0 0.0
        %2450 = vmatpush1.msra.mxu0 0.0
        %2451 = vmatprep.subr.mxu0 0.0
        %2452 = vmatpush1.msra.mxu0 0.0
        %2453 = vmatprep.subr.mxu0 0.0
        %2454 = vmatpush1.msra.mxu0 0.0
        %2455 = vmatprep.subr.mxu0 0.0
        %2456 = vmatpush1.msra.mxu0 0.0
        %2457 = vmatprep.subr.mxu0 0.0
        %2458 = vmatpush1.msra.mxu0 0.0
        %2459 = vmatprep.subr.mxu0 0.0
        %2460 = vmatpush1.msra.mxu0 0.0
        %2461 = vmatprep.subr.mxu0 0.0
        %2462 = vmatpush1.msra.mxu0 0.0
        %2463 = vmatprep.subr.mxu0 0.0
        %2464 = vmatpush1.msra.mxu0 0.0
        %2465 = vmatprep.subr.mxu0 0.0
        %2466 = vmatpush1.msra.mxu0 0.0
        %2467 = vmatprep.subr.mxu0 0.0
        %2468 = vmatpush1.msra.mxu0 0.0
        %2469 = vmatprep.subr.mxu0 0.0
        %2470 = vmatpush1.msra.mxu0 0.0
        %2471 = vmatprep.subr.mxu0 0.0
        %2472 = vmatpush1.msra.mxu0 0.0
        %2473 = vmatprep.subr.mxu0 0.0
        %2474 = vmatpush1.msra.mxu0 0.0
        %2475 = vmatprep.subr.mxu0 0.0
        %2476 = vmatpush1.msra.mxu0 0.0
        %2477 = vmatprep.mubr.f32.mxu0 0.0
        %2478 = vmatmul.mubr.f32.gmra.mrb[0].mxu0 %v1604
        %v2479 = vpop.f32.mrb[0].mxu0
        %v2480 = vadd.f32 0.0, %v2479
        %v2481 = vpop.f32.mrb[0].mxu0
        %2482 = vdwg.mxu0
        %s2483 = scalar_lea.vmem %s2, 32
        %v2484 = vld [vmem:[%s2483] sm:$0xff]
        %v2486 = vsel %vm1808, %v2484, 0
        %v2489 = vsel %vm1812, %v2480, 0
        %2491 = vmatprep.subr.mxu0 0.0
        %2492 = vmatpush1.msra.mxu0 %v2489
        %2493 = vmatprep.subr.mxu0 0.0
        %2494 = vmatpush1.msra.mxu0 0.0
        %2495 = vmatprep.subr.mxu0 0.0
        %2496 = vmatpush1.msra.mxu0 0.0
        %2497 = vmatprep.subr.mxu0 0.0
        %2498 = vmatpush1.msra.mxu0 0.0
        %2499 = vmatprep.subr.mxu0 0.0
        %2500 = vmatpush1.msra.mxu0 0.0
        %2501 = vmatprep.subr.mxu0 0.0
        %2502 = vmatpush1.msra.mxu0 0.0
        %2503 = vmatprep.subr.mxu0 0.0
        %2504 = vmatpush1.msra.mxu0 0.0
        %2505 = vmatprep.subr.mxu0 0.0
        %2506 = vmatpush1.msra.mxu0 0.0
        %2507 = vmatprep.subr.mxu0 0.0
        %2508 = vmatpush1.msra.mxu0 0.0
        %2509 = vmatprep.subr.mxu0 0.0
        %2510 = vmatpush1.msra.mxu0 0.0
        %2511 = vmatprep.subr.mxu0 0.0
        %2512 = vmatpush1.msra.mxu0 0.0
        %2513 = vmatprep.subr.mxu0 0.0
        %2514 = vmatpush1.msra.mxu0 0.0
        %2515 = vmatprep.subr.mxu0 0.0
        %2516 = vmatpush1.msra.mxu0 0.0
        %2517 = vmatprep.subr.mxu0 0.0
        %2518 = vmatpush1.msra.mxu0 0.0
        %2519 = vmatprep.subr.mxu0 0.0
        %2520 = vmatpush1.msra.mxu0 0.0
        %2521 = vmatprep.subr.mxu0 0.0
        %2522 = vmatpush1.msra.mxu0 0.0
        %2523 = vmatprep.subr.mxu0 0.0
        %2524 = vmatpush1.msra.mxu0 0.0
        %2525 = vmatprep.subr.mxu0 0.0
        %2526 = vmatpush1.msra.mxu0 0.0
        %2527 = vmatprep.subr.mxu0 0.0
        %2528 = vmatpush1.msra.mxu0 0.0
        %2529 = vmatprep.subr.mxu0 0.0
        %2530 = vmatpush1.msra.mxu0 0.0
        %2531 = vmatprep.subr.mxu0 0.0
        %2532 = vmatpush1.msra.mxu0 0.0
        %2533 = vmatprep.subr.mxu0 0.0
        %2534 = vmatpush1.msra.mxu0 0.0
        %2535 = vmatprep.subr.mxu0 0.0
        %2536 = vmatpush1.msra.mxu0 0.0
        %2537 = vmatprep.subr.mxu0 0.0
        %2538 = vmatpush1.msra.mxu0 0.0
        %2539 = vmatprep.subr.mxu0 0.0
        %2540 = vmatpush1.msra.mxu0 0.0
        %2541 = vmatprep.subr.mxu0 0.0
        %2542 = vmatpush1.msra.mxu0 0.0
        %2543 = vmatprep.subr.mxu0 0.0
        %2544 = vmatpush1.msra.mxu0 0.0
        %2545 = vmatprep.subr.mxu0 0.0
        %2546 = vmatpush1.msra.mxu0 0.0
        %2547 = vmatprep.subr.mxu0 0.0
        %2548 = vmatpush1.msra.mxu0 0.0
        %2549 = vmatprep.subr.mxu0 0.0
        %2550 = vmatpush1.msra.mxu0 0.0
        %2551 = vmatprep.subr.mxu0 0.0
        %2552 = vmatpush1.msra.mxu0 0.0
        %2553 = vmatprep.subr.mxu0 0.0
        %2554 = vmatpush1.msra.mxu0 0.0
        %2555 = vmatprep.mubr.f32.mxu0 0.0
        %2556 = vmatmul.mubr.f32.gmra.mrb[0].mxu0 %v2486
        %v2557 = vpop.f32.mrb[0].mxu0
        %v2558 = vadd.f32 0.0, %v2557
        %v2559 = vpop.f32.mrb[0].mxu0
        %2560 = vdwg.mxu0
        %v2561 = vadd.f32 %v2370, %v2558
        %vm2562 = vmand %vm2167, %vm1963
        %vm2563 = vmand %vm2168, %vm1964
        %vm2564 = vmand %vm2169, %vm1965
        %vm2565 = vmand %vm2170, %vm1966
        %vm2566 = vmand %vm2171, %vm1967
        %vm2567 = vmand %vm2172, %vm1968
        %vm2568 = vmand %vm2173, %vm1969
        %vm2569 = vmand %vm2174, %vm1970
        %vm2570 = vmand %vm2175, %vm1971
        %vm2571 = vmand %vm2176, %vm1972
        %vm2572 = vmand %vm2177, %vm1973
        %vm2573 = vmand %vm2178, %vm1974
        %vm2574 = vmand %vm2179, %vm1975
        %v2575 = vsel %vm2562, 1, 0
        %v2576 = vsel %vm2563, 1, 0
        %v2577 = vsel %vm2564, 1, 0
        %v2578 = vsel %vm2565, 1, 0
        %v2579 = vsel %vm2566, 1, 0
        %v2580 = vsel %vm2567, 1, 0
        %v2581 = vsel %vm2568, 1, 0
        %v2582 = vsel %vm2569, 1, 0
        %v2583 = vsel %vm2570, 1, 0
        %v2584 = vsel %vm2571, 1, 0
        %v2585 = vsel %vm2572, 1, 0
        %v2586 = vsel %vm2573, 1, 0
        %v2587 = vsel %vm2574, 1, 0
        %v2588 = vcvt.s32.f32 %v2575
        %v2589 = vcvt.s32.f32 %v2576
        %v2590 = vcvt.s32.f32 %v2577
        %v2591 = vcvt.s32.f32 %v2578
        %v2592 = vcvt.s32.f32 %v2579
        %v2593 = vcvt.s32.f32 %v2580
        %v2594 = vcvt.s32.f32 %v2581
        %v2595 = vcvt.s32.f32 %v2582
        %v2596 = vcvt.s32.f32 %v2583
        %v2597 = vcvt.s32.f32 %v2584
        %v2598 = vcvt.s32.f32 %v2585
        %v2599 = vcvt.s32.f32 %v2586
        %v2600 = vcvt.s32.f32 %v2587
        %v2602 = vsel %vm1606, %v2600, 0
        %2604 = vmatprep.subr.mxu0 0.0
        %2605 = vmatpush1.msra.mxu0 %v2588
        %2606 = vmatprep.subr.mxu0 0.0
        %2607 = vmatpush1.msra.mxu0 %v2589
        %2608 = vmatprep.subr.mxu0 0.0
        %2609 = vmatpush1.msra.mxu0 %v2590
        %2610 = vmatprep.subr.mxu0 0.0
        %2611 = vmatpush1.msra.mxu0 %v2591
        %2612 = vmatprep.subr.mxu0 0.0
        %2613 = vmatpush1.msra.mxu0 %v2592
        %2614 = vmatprep.subr.mxu0 0.0
        %2615 = vmatpush1.msra.mxu0 %v2593
        %2616 = vmatprep.subr.mxu0 0.0
        %2617 = vmatpush1.msra.mxu0 %v2594
        %2618 = vmatprep.subr.mxu0 0.0
        %2619 = vmatpush1.msra.mxu0 %v2595
        %2620 = vmatprep.subr.mxu0 0.0
        %2621 = vmatpush1.msra.mxu0 %v2596
        %2622 = vmatprep.subr.mxu0 0.0
        %2623 = vmatpush1.msra.mxu0 %v2597
        %2624 = vmatprep.subr.mxu0 0.0
        %2625 = vmatpush1.msra.mxu0 %v2598
        %2626 = vmatprep.subr.mxu0 0.0
        %2627 = vmatpush1.msra.mxu0 %v2599
        %2628 = vmatprep.subr.mxu0 0.0
        %2629 = vmatpush1.msra.mxu0 %v2602
        %2630 = vmatprep.subr.mxu0 0.0
        %2631 = vmatpush1.msra.mxu0 0.0
        %2632 = vmatprep.subr.mxu0 0.0
        %2633 = vmatpush1.msra.mxu0 0.0
        %2634 = vmatprep.subr.mxu0 0.0
        %2635 = vmatpush1.msra.mxu0 0.0
        %2636 = vmatprep.subr.mxu0 0.0
        %2637 = vmatpush1.msra.mxu0 0.0
        %2638 = vmatprep.subr.mxu0 0.0
        %2639 = vmatpush1.msra.mxu0 0.0
        %2640 = vmatprep.subr.mxu0 0.0
        %2641 = vmatpush1.msra.mxu0 0.0
        %2642 = vmatprep.subr.mxu0 0.0
        %2643 = vmatpush1.msra.mxu0 0.0
        %2644 = vmatprep.subr.mxu0 0.0
        %2645 = vmatpush1.msra.mxu0 0.0
        %2646 = vmatprep.subr.mxu0 0.0
        %2647 = vmatpush1.msra.mxu0 0.0
        %2648 = vmatprep.subr.mxu0 0.0
        %2649 = vmatpush1.msra.mxu0 0.0
        %2650 = vmatprep.subr.mxu0 0.0
        %2651 = vmatpush1.msra.mxu0 0.0
        %2652 = vmatprep.subr.mxu0 0.0
        %2653 = vmatpush1.msra.mxu0 0.0
        %2654 = vmatprep.subr.mxu0 0.0
        %2655 = vmatpush1.msra.mxu0 0.0
        %2656 = vmatprep.subr.mxu0 0.0
        %2657 = vmatpush1.msra.mxu0 0.0
        %2658 = vmatprep.subr.mxu0 0.0
        %2659 = vmatpush1.msra.mxu0 0.0
        %2660 = vmatprep.subr.mxu0 0.0
        %2661 = vmatpush1.msra.mxu0 0.0
        %2662 = vmatprep.subr.mxu0 0.0
        %2663 = vmatpush1.msra.mxu0 0.0
        %2664 = vmatprep.subr.mxu0 0.0
        %2665 = vmatpush1.msra.mxu0 0.0
        %2666 = vmatprep.subr.mxu0 0.0
        %2667 = vmatpush1.msra.mxu0 0.0
        %2668 = vmatprep.mubr.f32.mxu0 0.0
        %2669 = vmatmul.mubr.f32.gmra.mrb[0].mxu0 %v1604
        %v2670 = vpop.f32.mrb[0].mxu0
        %v2671 = vadd.f32 0.0, %v2670
        %v2672 = vpop.f32.mrb[0].mxu0
        %2673 = vdwg.mxu0
        %s2674 = scalar_lea.vmem %s2, 40
        %v2675 = vld [vmem:[%s2674] sm:$0xff]
        %v2677 = vsel %vm1808, %v2675, 0
        %v2680 = vsel %vm1812, %v2671, 0
        %2682 = vmatprep.subr.mxu0 0.0
        %2683 = vmatpush1.msra.mxu0 %v2680
        %2684 = vmatprep.subr.mxu0 0.0
        %2685 = vmatpush1.msra.mxu0 0.0
        %2686 = vmatprep.subr.mxu0 0.0
        %2687 = vmatpush1.msra.mxu0 0.0
        %2688 = vmatprep.subr.mxu0 0.0
        %2689 = vmatpush1.msra.mxu0 0.0
        %2690 = vmatprep.subr.mxu0 0.0
        %2691 = vmatpush1.msra.mxu0 0.0
        %2692 = vmatprep.subr.mxu0 0.0
        %2693 = vmatpush1.msra.mxu0 0.0
        %2694 = vmatprep.subr.mxu0 0.0
        %2695 = vmatpush1.msra.mxu0 0.0
        %2696 = vmatprep.subr.mxu0 0.0
        %2697 = vmatpush1.msra.mxu0 0.0
        %2698 = vmatprep.subr.mxu0 0.0
        %2699 = vmatpush1.msra.mxu0 0.0
        %2700 = vmatprep.subr.mxu0 0.0
        %2701 = vmatpush1.msra.mxu0 0.0
        %2702 = vmatprep.subr.mxu0 0.0
        %2703 = vmatpush1.msra.mxu0 0.0
        %2704 = vmatprep.subr.mxu0 0.0
        %2705 = vmatpush1.msra.mxu0 0.0
        %2706 = vmatprep.subr.mxu0 0.0
        %2707 = vmatpush1.msra.mxu0 0.0
        %2708 = vmatprep.subr.mxu0 0.0
        %2709 = vmatpush1.msra.mxu0 0.0
        %2710 = vmatprep.subr.mxu0 0.0
        %2711 = vmatpush1.msra.mxu0 0.0
        %2712 = vmatprep.subr.mxu0 0.0
        %2713 = vmatpush1.msra.mxu0 0.0
        %2714 = vmatprep.subr.mxu0 0.0
        %2715 = vmatpush1.msra.mxu0 0.0
        %2716 = vmatprep.subr.mxu0 0.0
        %2717 = vmatpush1.msra.mxu0 0.0
        %2718 = vmatprep.subr.mxu0 0.0
        %2719 = vmatpush1.msra.mxu0 0.0
        %2720 = vmatprep.subr.mxu0 0.0
        %2721 = vmatpush1.msra.mxu0 0.0
        %2722 = vmatprep.subr.mxu0 0.0
        %2723 = vmatpush1.msra.mxu0 0.0
        %2724 = vmatprep.subr.mxu0 0.0
        %2725 = vmatpush1.msra.mxu0 0.0
        %2726 = vmatprep.subr.mxu0 0.0
        %2727 = vmatpush1.msra.mxu0 0.0
        %2728 = vmatprep.subr.mxu0 0.0
        %2729 = vmatpush1.msra.mxu0 0.0
        %2730 = vmatprep.subr.mxu0 0.0
        %2731 = vmatpush1.msra.mxu0 0.0
        %2732 = vmatprep.subr.mxu0 0.0
        %2733 = vmatpush1.msra.mxu0 0.0
        %2734 = vmatprep.subr.mxu0 0.0
        %2735 = vmatpush1.msra.mxu0 0.0
        %2736 = vmatprep.subr.mxu0 0.0
        %2737 = vmatpush1.msra.mxu0 0.0
        %2738 = vmatprep.subr.mxu0 0.0
        %2739 = vmatpush1.msra.mxu0 0.0
        %2740 = vmatprep.subr.mxu0 0.0
        %2741 = vmatpush1.msra.mxu0 0.0
        %2742 = vmatprep.subr.mxu0 0.0
        %2743 = vmatpush1.msra.mxu0 0.0
        %2744 = vmatprep.subr.mxu0 0.0
        %2745 = vmatpush1.msra.mxu0 0.0
        %2746 = vmatprep.mubr.f32.mxu0 0.0
        %2747 = vmatmul.mubr.f32.gmra.mrb[0].mxu0 %v2677
        %v2748 = vpop.f32.mrb[0].mxu0
        %v2749 = vadd.f32 0.0, %v2748
        %v2750 = vpop.f32.mrb[0].mxu0
        %2751 = vdwg.mxu0
        %v2752 = vadd.f32 %v2561, %v2749
        %v2753 = vadd.s32 %v1088, 1
        %vm2754 = vcmp.eq.s32.totalorder %v1416, %v2753
        %vm2755 = vcmp.eq.s32.totalorder %v1417, %v2753
        %vm2756 = vcmp.eq.s32.totalorder %v1418, %v2753
        %vm2757 = vcmp.eq.s32.totalorder %v1419, %v2753
        %vm2758 = vcmp.eq.s32.totalorder %v1420, %v2753
        %vm2759 = vcmp.eq.s32.totalorder %v1421, %v2753
        %vm2760 = vcmp.eq.s32.totalorder %v1422, %v2753
        %vm2761 = vcmp.eq.s32.totalorder %v1423, %v2753
        %vm2762 = vcmp.eq.s32.totalorder %v1424, %v2753
        %vm2763 = vcmp.eq.s32.totalorder %v1425, %v2753
        %vm2764 = vcmp.eq.s32.totalorder %v1426, %v2753
        %vm2765 = vcmp.eq.s32.totalorder %v1427, %v2753
        %vm2766 = vcmp.eq.s32.totalorder %v1428, %v2753
        %vm2767 = vmand %vm2754, %vm1551
        %vm2768 = vmand %vm2755, %vm1552
        %vm2769 = vmand %vm2756, %vm1553
        %vm2770 = vmand %vm2757, %vm1554
        %vm2771 = vmand %vm2758, %vm1555
        %vm2772 = vmand %vm2759, %vm1556
        %vm2773 = vmand %vm2760, %vm1557
        %vm2774 = vmand %vm2761, %vm1558
        %vm2775 = vmand %vm2762, %vm1559
        %vm2776 = vmand %vm2763, %vm1560
        %vm2777 = vmand %vm2764, %vm1561
        %vm2778 = vmand %vm2765, %vm1562
        %vm2779 = vmand %vm2766, %vm1563
        %v2780 = vsel %vm2767, 1, 0
        %v2781 = vsel %vm2768, 1, 0
        %v2782 = vsel %vm2769, 1, 0
        %v2783 = vsel %vm2770, 1, 0
        %v2784 = vsel %vm2771, 1, 0
        %v2785 = vsel %vm2772, 1, 0
        %v2786 = vsel %vm2773, 1, 0
        %v2787 = vsel %vm2774, 1, 0
        %v2788 = vsel %vm2775, 1, 0
        %v2789 = vsel %vm2776, 1, 0
        %v2790 = vsel %vm2777, 1, 0
        %v2791 = vsel %vm2778, 1, 0
        %v2792 = vsel %vm2779, 1, 0
        %v2793 = vcvt.s32.f32 %v2780
        %v2794 = vcvt.s32.f32 %v2781
        %v2795 = vcvt.s32.f32 %v2782
        %v2796 = vcvt.s32.f32 %v2783
        %v2797 = vcvt.s32.f32 %v2784
        %v2798 = vcvt.s32.f32 %v2785
        %v2799 = vcvt.s32.f32 %v2786
        %v2800 = vcvt.s32.f32 %v2787
        %v2801 = vcvt.s32.f32 %v2788
        %v2802 = vcvt.s32.f32 %v2789
        %v2803 = vcvt.s32.f32 %v2790
        %v2804 = vcvt.s32.f32 %v2791
        %v2805 = vcvt.s32.f32 %v2792
        %v2807 = vsel %vm1606, %v2805, 0
        %2809 = vmatprep.subr.mxu0 0.0
        %2810 = vmatpush1.msra.mxu0 %v2793
        %2811 = vmatprep.subr.mxu0 0.0
        %2812 = vmatpush1.msra.mxu0 %v2794
        %2813 = vmatprep.subr.mxu0 0.0
        %2814 = vmatpush1.msra.mxu0 %v2795
        %2815 = vmatprep.subr.mxu0 0.0
        %2816 = vmatpush1.msra.mxu0 %v2796
        %2817 = vmatprep.subr.mxu0 0.0
        %2818 = vmatpush1.msra.mxu0 %v2797
        %2819 = vmatprep.subr.mxu0 0.0
        %2820 = vmatpush1.msra.mxu0 %v2798
        %2821 = vmatprep.subr.mxu0 0.0
        %2822 = vmatpush1.msra.mxu0 %v2799
        %2823 = vmatprep.subr.mxu0 0.0
        %2824 = vmatpush1.msra.mxu0 %v2800
        %2825 = vmatprep.subr.mxu0 0.0
        %2826 = vmatpush1.msra.mxu0 %v2801
        %2827 = vmatprep.subr.mxu0 0.0
        %2828 = vmatpush1.msra.mxu0 %v2802
        %2829 = vmatprep.subr.mxu0 0.0
        %2830 = vmatpush1.msra.mxu0 %v2803
        %2831 = vmatprep.subr.mxu0 0.0
        %2832 = vmatpush1.msra.mxu0 %v2804
        %2833 = vmatprep.subr.mxu0 0.0
        %2834 = vmatpush1.msra.mxu0 %v2807
        %2835 = vmatprep.subr.mxu0 0.0
        %2836 = vmatpush1.msra.mxu0 0.0
        %2837 = vmatprep.subr.mxu0 0.0
        %2838 = vmatpush1.msra.mxu0 0.0
        %2839 = vmatprep.subr.mxu0 0.0
        %2840 = vmatpush1.msra.mxu0 0.0
        %2841 = vmatprep.subr.mxu0 0.0
        %2842 = vmatpush1.msra.mxu0 0.0
        %2843 = vmatprep.subr.mxu0 0.0
        %2844 = vmatpush1.msra.mxu0 0.0
        %2845 = vmatprep.subr.mxu0 0.0
        %2846 = vmatpush1.msra.mxu0 0.0
        %2847 = vmatprep.subr.mxu0 0.0
        %2848 = vmatpush1.msra.mxu0 0.0
        %2849 = vmatprep.subr.mxu0 0.0
        %2850 = vmatpush1.msra.mxu0 0.0
        %2851 = vmatprep.subr.mxu0 0.0
        %2852 = vmatpush1.msra.mxu0 0.0
        %2853 = vmatprep.subr.mxu0 0.0
        %2854 = vmatpush1.msra.mxu0 0.0
        %2855 = vmatprep.subr.mxu0 0.0
        %2856 = vmatpush1.msra.mxu0 0.0
        %2857 = vmatprep.subr.mxu0 0.0
        %2858 = vmatpush1.msra.mxu0 0.0
        %2859 = vmatprep.subr.mxu0 0.0
        %2860 = vmatpush1.msra.mxu0 0.0
        %2861 = vmatprep.subr.mxu0 0.0
        %2862 = vmatpush1.msra.mxu0 0.0
        %2863 = vmatprep.subr.mxu0 0.0
        %2864 = vmatpush1.msra.mxu0 0.0
        %2865 = vmatprep.subr.mxu0 0.0
        %2866 = vmatpush1.msra.mxu0 0.0
        %2867 = vmatprep.subr.mxu0 0.0
        %2868 = vmatpush1.msra.mxu0 0.0
        %2869 = vmatprep.subr.mxu0 0.0
        %2870 = vmatpush1.msra.mxu0 0.0
        %2871 = vmatprep.subr.mxu0 0.0
        %2872 = vmatpush1.msra.mxu0 0.0
        %2873 = vmatprep.mubr.f32.mxu0 0.0
        %2874 = vmatmul.mubr.f32.gmra.mrb[0].mxu0 %v1604
        %v2875 = vpop.f32.mrb[0].mxu0
        %v2876 = vadd.f32 0.0, %v2875
        %v2877 = vpop.f32.mrb[0].mxu0
        %2878 = vdwg.mxu0
        %s2879 = scalar_lea.vmem %s2, 48
        %v2880 = vld [vmem:[%s2879] sm:$0xff]
        %v2882 = vsel %vm1808, %v2880, 0
        %v2885 = vsel %vm1812, %v2876, 0
        %2887 = vmatprep.subr.mxu0 0.0
        %2888 = vmatpush1.msra.mxu0 %v2885
        %2889 = vmatprep.subr.mxu0 0.0
        %2890 = vmatpush1.msra.mxu0 0.0
        %2891 = vmatprep.subr.mxu0 0.0
        %2892 = vmatpush1.msra.mxu0 0.0
        %2893 = vmatprep.subr.mxu0 0.0
        %2894 = vmatpush1.msra.mxu0 0.0
        %2895 = vmatprep.subr.mxu0 0.0
        %2896 = vmatpush1.msra.mxu0 0.0
        %2897 = vmatprep.subr.mxu0 0.0
        %2898 = vmatpush1.msra.mxu0 0.0
        %2899 = vmatprep.subr.mxu0 0.0
        %2900 = vmatpush1.msra.mxu0 0.0
        %2901 = vmatprep.subr.mxu0 0.0
        %2902 = vmatpush1.msra.mxu0 0.0
        %2903 = vmatprep.subr.mxu0 0.0
        %2904 = vmatpush1.msra.mxu0 0.0
        %2905 = vmatprep.subr.mxu0 0.0
        %2906 = vmatpush1.msra.mxu0 0.0
        %2907 = vmatprep.subr.mxu0 0.0
        %2908 = vmatpush1.msra.mxu0 0.0
        %2909 = vmatprep.subr.mxu0 0.0
        %2910 = vmatpush1.msra.mxu0 0.0
        %2911 = vmatprep.subr.mxu0 0.0
        %2912 = vmatpush1.msra.mxu0 0.0
        %2913 = vmatprep.subr.mxu0 0.0
        %2914 = vmatpush1.msra.mxu0 0.0
        %2915 = vmatprep.subr.mxu0 0.0
        %2916 = vmatpush1.msra.mxu0 0.0
        %2917 = vmatprep.subr.mxu0 0.0
        %2918 = vmatpush1.msra.mxu0 0.0
        %2919 = vmatprep.subr.mxu0 0.0
        %2920 = vmatpush1.msra.mxu0 0.0
        %2921 = vmatprep.subr.mxu0 0.0
        %2922 = vmatpush1.msra.mxu0 0.0
        %2923 = vmatprep.subr.mxu0 0.0
        %2924 = vmatpush1.msra.mxu0 0.0
        %2925 = vmatprep.subr.mxu0 0.0
        %2926 = vmatpush1.msra.mxu0 0.0
        %2927 = vmatprep.subr.mxu0 0.0
        %2928 = vmatpush1.msra.mxu0 0.0
        %2929 = vmatprep.subr.mxu0 0.0
        %2930 = vmatpush1.msra.mxu0 0.0
        %2931 = vmatprep.subr.mxu0 0.0
        %2932 = vmatpush1.msra.mxu0 0.0
        %2933 = vmatprep.subr.mxu0 0.0
        %2934 = vmatpush1.msra.mxu0 0.0
        %2935 = vmatprep.subr.mxu0 0.0
        %2936 = vmatpush1.msra.mxu0 0.0
        %2937 = vmatprep.subr.mxu0 0.0
        %2938 = vmatpush1.msra.mxu0 0.0
        %2939 = vmatprep.subr.mxu0 0.0
        %2940 = vmatpush1.msra.mxu0 0.0
        %2941 = vmatprep.subr.mxu0 0.0
        %2942 = vmatpush1.msra.mxu0 0.0
        %2943 = vmatprep.subr.mxu0 0.0
        %2944 = vmatpush1.msra.mxu0 0.0
        %2945 = vmatprep.subr.mxu0 0.0
        %2946 = vmatpush1.msra.mxu0 0.0
        %2947 = vmatprep.subr.mxu0 0.0
        %2948 = vmatpush1.msra.mxu0 0.0
        %2949 = vmatprep.subr.mxu0 0.0
        %2950 = vmatpush1.msra.mxu0 0.0
        %2951 = vmatprep.mubr.f32.mxu0 0.0
        %2952 = vmatmul.mubr.f32.gmra.mrb[0].mxu0 %v2882
        %v2953 = vpop.f32.mrb[0].mxu0
        %v2954 = vadd.f32 0.0, %v2953
        %v2955 = vpop.f32.mrb[0].mxu0
        %2956 = vdwg.mxu0
        %v2957 = vadd.f32 %v2752, %v2954
        %vm2958 = vmand %vm2754, %vm1681
        %vm2959 = vmand %vm2755, %vm1682
        %vm2960 = vmand %vm2756, %vm1683
        %vm2961 = vmand %vm2757, %vm1684
        %vm2962 = vmand %vm2758, %vm1685
        %vm2963 = vmand %vm2759, %vm1686
        %vm2964 = vmand %vm2760, %vm1687
        %vm2965 = vmand %vm2761, %vm1688
        %vm2966 = vmand %vm2762, %vm1689
        %vm2967 = vmand %vm2763, %vm1690
        %vm2968 = vmand %vm2764, %vm1691
        %vm2969 = vmand %vm2765, %vm1692
        %vm2970 = vmand %vm2766, %vm1693
        %v2971 = vsel %vm2958, 1, 0
        %v2972 = vsel %vm2959, 1, 0
        %v2973 = vsel %vm2960, 1, 0
        %v2974 = vsel %vm2961, 1, 0
        %v2975 = vsel %vm2962, 1, 0
        %v2976 = vsel %vm2963, 1, 0
        %v2977 = vsel %vm2964, 1, 0
        %v2978 = vsel %vm2965, 1, 0
        %v2979 = vsel %vm2966, 1, 0
        %v2980 = vsel %vm2967, 1, 0
        %v2981 = vsel %vm2968, 1, 0
        %v2982 = vsel %vm2969, 1, 0
        %v2983 = vsel %vm2970, 1, 0
        %v2984 = vcvt.s32.f32 %v2971
        %v2985 = vcvt.s32.f32 %v2972
        %v2986 = vcvt.s32.f32 %v2973
        %v2987 = vcvt.s32.f32 %v2974
        %v2988 = vcvt.s32.f32 %v2975
        %v2989 = vcvt.s32.f32 %v2976
        %v2990 = vcvt.s32.f32 %v2977
        %v2991 = vcvt.s32.f32 %v2978
        %v2992 = vcvt.s32.f32 %v2979
        %v2993 = vcvt.s32.f32 %v2980
        %v2994 = vcvt.s32.f32 %v2981
        %v2995 = vcvt.s32.f32 %v2982
        %v2996 = vcvt.s32.f32 %v2983
        %v2998 = vsel %vm1606, %v2996, 0
        %3000 = vmatprep.subr.mxu0 0.0
        %3001 = vmatpush1.msra.mxu0 %v2984
        %3002 = vmatprep.subr.mxu0 0.0
        %3003 = vmatpush1.msra.mxu0 %v2985
        %3004 = vmatprep.subr.mxu0 0.0
        %3005 = vmatpush1.msra.mxu0 %v2986
        %3006 = vmatprep.subr.mxu0 0.0
        %3007 = vmatpush1.msra.mxu0 %v2987
        %3008 = vmatprep.subr.mxu0 0.0
        %3009 = vmatpush1.msra.mxu0 %v2988
        %3010 = vmatprep.subr.mxu0 0.0
        %3011 = vmatpush1.msra.mxu0 %v2989
        %3012 = vmatprep.subr.mxu0 0.0
        %3013 = vmatpush1.msra.mxu0 %v2990
        %3014 = vmatprep.subr.mxu0 0.0
        %3015 = vmatpush1.msra.mxu0 %v2991
        %3016 = vmatprep.subr.mxu0 0.0
        %3017 = vmatpush1.msra.mxu0 %v2992
        %3018 = vmatprep.subr.mxu0 0.0
        %3019 = vmatpush1.msra.mxu0 %v2993
        %3020 = vmatprep.subr.mxu0 0.0
        %3021 = vmatpush1.msra.mxu0 %v2994
        %3022 = vmatprep.subr.mxu0 0.0
        %3023 = vmatpush1.msra.mxu0 %v2995
        %3024 = vmatprep.subr.mxu0 0.0
        %3025 = vmatpush1.msra.mxu0 %v2998
        %3026 = vmatprep.subr.mxu0 0.0
        %3027 = vmatpush1.msra.mxu0 0.0
        %3028 = vmatprep.subr.mxu0 0.0
        %3029 = vmatpush1.msra.mxu0 0.0
        %3030 = vmatprep.subr.mxu0 0.0
        %3031 = vmatpush1.msra.mxu0 0.0
        %3032 = vmatprep.subr.mxu0 0.0
        %3033 = vmatpush1.msra.mxu0 0.0
        %3034 = vmatprep.subr.mxu0 0.0
        %3035 = vmatpush1.msra.mxu0 0.0
        %3036 = vmatprep.subr.mxu0 0.0
        %3037 = vmatpush1.msra.mxu0 0.0
        %3038 = vmatprep.subr.mxu0 0.0
        %3039 = vmatpush1.msra.mxu0 0.0
        %3040 = vmatprep.subr.mxu0 0.0
        %3041 = vmatpush1.msra.mxu0 0.0
        %3042 = vmatprep.subr.mxu0 0.0
        %3043 = vmatpush1.msra.mxu0 0.0
        %3044 = vmatprep.subr.mxu0 0.0
        %3045 = vmatpush1.msra.mxu0 0.0
        %3046 = vmatprep.subr.mxu0 0.0
        %3047 = vmatpush1.msra.mxu0 0.0
        %3048 = vmatprep.subr.mxu0 0.0
        %3049 = vmatpush1.msra.mxu0 0.0
        %3050 = vmatprep.subr.mxu0 0.0
        %3051 = vmatpush1.msra.mxu0 0.0
        %3052 = vmatprep.subr.mxu0 0.0
        %3053 = vmatpush1.msra.mxu0 0.0
        %3054 = vmatprep.subr.mxu0 0.0
        %3055 = vmatpush1.msra.mxu0 0.0
        %3056 = vmatprep.subr.mxu0 0.0
        %3057 = vmatpush1.msra.mxu0 0.0
        %3058 = vmatprep.subr.mxu0 0.0
        %3059 = vmatpush1.msra.mxu0 0.0
        %3060 = vmatprep.subr.mxu0 0.0
        %3061 = vmatpush1.msra.mxu0 0.0
        %3062 = vmatprep.subr.mxu0 0.0
        %3063 = vmatpush1.msra.mxu0 0.0
        %3064 = vmatprep.mubr.f32.mxu0 0.0
        %3065 = vmatmul.mubr.f32.gmra.mrb[0].mxu0 %v1604
        %v3066 = vpop.f32.mrb[0].mxu0
        %v3067 = vadd.f32 0.0, %v3066
        %v3068 = vpop.f32.mrb[0].mxu0
        %3069 = vdwg.mxu0
        %s3070 = scalar_lea.vmem %s2, 56
        %v3071 = vld [vmem:[%s3070] sm:$0xff]
        %v3073 = vsel %vm1808, %v3071, 0
        %v3076 = vsel %vm1812, %v3067, 0
        %3078 = vmatprep.subr.mxu0 0.0
        %3079 = vmatpush1.msra.mxu0 %v3076
        %3080 = vmatprep.subr.mxu0 0.0
        %3081 = vmatpush1.msra.mxu0 0.0
        %3082 = vmatprep.subr.mxu0 0.0
        %3083 = vmatpush1.msra.mxu0 0.0
        %3084 = vmatprep.subr.mxu0 0.0
        %3085 = vmatpush1.msra.mxu0 0.0
        %3086 = vmatprep.subr.mxu0 0.0
        %3087 = vmatpush1.msra.mxu0 0.0
        %3088 = vmatprep.subr.mxu0 0.0
        %3089 = vmatpush1.msra.mxu0 0.0
        %3090 = vmatprep.subr.mxu0 0.0
        %3091 = vmatpush1.msra.mxu0 0.0
        %3092 = vmatprep.subr.mxu0 0.0
        %3093 = vmatpush1.msra.mxu0 0.0
        %3094 = vmatprep.subr.mxu0 0.0
        %3095 = vmatpush1.msra.mxu0 0.0
        %3096 = vmatprep.subr.mxu0 0.0
        %3097 = vmatpush1.msra.mxu0 0.0
        %3098 = vmatprep.subr.mxu0 0.0
        %3099 = vmatpush1.msra.mxu0 0.0
        %3100 = vmatprep.subr.mxu0 0.0
        %3101 = vmatpush1.msra.mxu0 0.0
        %3102 = vmatprep.subr.mxu0 0.0
        %3103 = vmatpush1.msra.mxu0 0.0
        %3104 = vmatprep.subr.mxu0 0.0
        %3105 = vmatpush1.msra.mxu0 0.0
        %3106 = vmatprep.subr.mxu0 0.0
        %3107 = vmatpush1.msra.mxu0 0.0
        %3108 = vmatprep.subr.mxu0 0.0
        %3109 = vmatpush1.msra.mxu0 0.0
        %3110 = vmatprep.subr.mxu0 0.0
        %3111 = vmatpush1.msra.mxu0 0.0
        %3112 = vmatprep.subr.mxu0 0.0
        %3113 = vmatpush1.msra.mxu0 0.0
        %3114 = vmatprep.subr.mxu0 0.0
        %3115 = vmatpush1.msra.mxu0 0.0
        %3116 = vmatprep.subr.mxu0 0.0
        %3117 = vmatpush1.msra.mxu0 0.0
        %3118 = vmatprep.subr.mxu0 0.0
        %3119 = vmatpush1.msra.mxu0 0.0
        %3120 = vmatprep.subr.mxu0 0.0
        %3121 = vmatpush1.msra.mxu0 0.0
        %3122 = vmatprep.subr.mxu0 0.0
        %3123 = vmatpush1.msra.mxu0 0.0
        %3124 = vmatprep.subr.mxu0 0.0
        %3125 = vmatpush1.msra.mxu0 0.0
        %3126 = vmatprep.subr.mxu0 0.0
        %3127 = vmatpush1.msra.mxu0 0.0
        %3128 = vmatprep.subr.mxu0 0.0
        %3129 = vmatpush1.msra.mxu0 0.0
        %3130 = vmatprep.subr.mxu0 0.0
        %3131 = vmatpush1.msra.mxu0 0.0
        %3132 = vmatprep.subr.mxu0 0.0
        %3133 = vmatpush1.msra.mxu0 0.0
        %3134 = vmatprep.subr.mxu0 0.0
        %3135 = vmatpush1.msra.mxu0 0.0
        %3136 = vmatprep.subr.mxu0 0.0
        %3137 = vmatpush1.msra.mxu0 0.0
        %3138 = vmatprep.subr.mxu0 0.0
        %3139 = vmatpush1.msra.mxu0 0.0
        %3140 = vmatprep.subr.mxu0 0.0
        %3141 = vmatpush1.msra.mxu0 0.0
        %3142 = vmatprep.mubr.f32.mxu0 0.0
        %3143 = vmatmul.mubr.f32.gmra.mrb[0].mxu0 %v3073
        %v3144 = vpop.f32.mrb[0].mxu0
        %v3145 = vadd.f32 0.0, %v3144
        %v3146 = vpop.f32.mrb[0].mxu0
        %3147 = vdwg.mxu0
        %v3148 = vadd.f32 %v2957, %v3145
        %vm3149 = vmand %vm2754, %vm1963
        %vm3150 = vmand %vm2755, %vm1964
        %vm3151 = vmand %vm2756, %vm1965
        %vm3152 = vmand %vm2757, %vm1966
        %vm3153 = vmand %vm2758, %vm1967
        %vm3154 = vmand %vm2759, %vm1968
        %vm3155 = vmand %vm2760, %vm1969
        %vm3156 = vmand %vm2761, %vm1970
        %vm3157 = vmand %vm2762, %vm1971
        %vm3158 = vmand %vm2763, %vm1972
        %vm3159 = vmand %vm2764, %vm1973
        %vm3160 = vmand %vm2765, %vm1974
        %vm3161 = vmand %vm2766, %vm1975
        %v3162 = vsel %vm3149, 1, 0
        %v3163 = vsel %vm3150, 1, 0
        %v3164 = vsel %vm3151, 1, 0
        %v3165 = vsel %vm3152, 1, 0
        %v3166 = vsel %vm3153, 1, 0
        %v3167 = vsel %vm3154, 1, 0
        %v3168 = vsel %vm3155, 1, 0
        %v3169 = vsel %vm3156, 1, 0
        %v3170 = vsel %vm3157, 1, 0
        %v3171 = vsel %vm3158, 1, 0
        %v3172 = vsel %vm3159, 1, 0
        %v3173 = vsel %vm3160, 1, 0
        %v3174 = vsel %vm3161, 1, 0
        %v3175 = vcvt.s32.f32 %v3162
        %v3176 = vcvt.s32.f32 %v3163
        %v3177 = vcvt.s32.f32 %v3164
        %v3178 = vcvt.s32.f32 %v3165
        %v3179 = vcvt.s32.f32 %v3166
        %v3180 = vcvt.s32.f32 %v3167
        %v3181 = vcvt.s32.f32 %v3168
        %v3182 = vcvt.s32.f32 %v3169
        %v3183 = vcvt.s32.f32 %v3170
        %v3184 = vcvt.s32.f32 %v3171
        %v3185 = vcvt.s32.f32 %v3172
        %v3186 = vcvt.s32.f32 %v3173
        %v3187 = vcvt.s32.f32 %v3174
        %v3189 = vsel %vm1606, %v3187, 0
        %3191 = vmatprep.subr.mxu0 0.0
        %3192 = vmatpush1.msra.mxu0 %v3175
        %3193 = vmatprep.subr.mxu0 0.0
        %3194 = vmatpush1.msra.mxu0 %v3176
        %3195 = vmatprep.subr.mxu0 0.0
        %3196 = vmatpush1.msra.mxu0 %v3177
        %3197 = vmatprep.subr.mxu0 0.0
        %3198 = vmatpush1.msra.mxu0 %v3178
        %3199 = vmatprep.subr.mxu0 0.0
        %3200 = vmatpush1.msra.mxu0 %v3179
        %3201 = vmatprep.subr.mxu0 0.0
        %3202 = vmatpush1.msra.mxu0 %v3180
        %3203 = vmatprep.subr.mxu0 0.0
        %3204 = vmatpush1.msra.mxu0 %v3181
        %3205 = vmatprep.subr.mxu0 0.0
        %3206 = vmatpush1.msra.mxu0 %v3182
        %3207 = vmatprep.subr.mxu0 0.0
        %3208 = vmatpush1.msra.mxu0 %v3183
        %3209 = vmatprep.subr.mxu0 0.0
        %3210 = vmatpush1.msra.mxu0 %v3184
        %3211 = vmatprep.subr.mxu0 0.0
        %3212 = vmatpush1.msra.mxu0 %v3185
        %3213 = vmatprep.subr.mxu0 0.0
        %3214 = vmatpush1.msra.mxu0 %v3186
        %3215 = vmatprep.subr.mxu0 0.0
        %3216 = vmatpush1.msra.mxu0 %v3189
        %3217 = vmatprep.subr.mxu0 0.0
        %3218 = vmatpush1.msra.mxu0 0.0
        %3219 = vmatprep.subr.mxu0 0.0
        %3220 = vmatpush1.msra.mxu0 0.0
        %3221 = vmatprep.subr.mxu0 0.0
        %3222 = vmatpush1.msra.mxu0 0.0
        %3223 = vmatprep.subr.mxu0 0.0
        %3224 = vmatpush1.msra.mxu0 0.0
        %3225 = vmatprep.subr.mxu0 0.0
        %3226 = vmatpush1.msra.mxu0 0.0
        %3227 = vmatprep.subr.mxu0 0.0
        %3228 = vmatpush1.msra.mxu0 0.0
        %3229 = vmatprep.subr.mxu0 0.0
        %3230 = vmatpush1.msra.mxu0 0.0
        %3231 = vmatprep.subr.mxu0 0.0
        %3232 = vmatpush1.msra.mxu0 0.0
        %3233 = vmatprep.subr.mxu0 0.0
        %3234 = vmatpush1.msra.mxu0 0.0
        %3235 = vmatprep.subr.mxu0 0.0
        %3236 = vmatpush1.msra.mxu0 0.0
        %3237 = vmatprep.subr.mxu0 0.0
        %3238 = vmatpush1.msra.mxu0 0.0
        %3239 = vmatprep.subr.mxu0 0.0
        %3240 = vmatpush1.msra.mxu0 0.0
        %3241 = vmatprep.subr.mxu0 0.0
        %3242 = vmatpush1.msra.mxu0 0.0
        %3243 = vmatprep.subr.mxu0 0.0
        %3244 = vmatpush1.msra.mxu0 0.0
        %3245 = vmatprep.subr.mxu0 0.0
        %3246 = vmatpush1.msra.mxu0 0.0
        %3247 = vmatprep.subr.mxu0 0.0
        %3248 = vmatpush1.msra.mxu0 0.0
        %3249 = vmatprep.subr.mxu0 0.0
        %3250 = vmatpush1.msra.mxu0 0.0
        %3251 = vmatprep.subr.mxu0 0.0
        %3252 = vmatpush1.msra.mxu0 0.0
        %3253 = vmatprep.subr.mxu0 0.0
        %3254 = vmatpush1.msra.mxu0 0.0
        %3255 = vmatprep.mubr.f32.mxu0 0.0
        %3256 = vmatmul.mubr.f32.gmra.mrb[0].mxu0 %v1604
        %v3257 = vpop.f32.mrb[0].mxu0
        %v3258 = vadd.f32 0.0, %v3257
        %v3259 = vpop.f32.mrb[0].mxu0
        %3260 = vdwg.mxu0
        %s3261 = scalar_lea.vmem %s2, 64
        %v3262 = vld [vmem:[%s3261] sm:$0xff]
        %v3264 = vsel %vm1808, %v3262, 0
        %v3267 = vsel %vm1812, %v3258, 0
        %3269 = vmatprep.subr.mxu0 0.0
        %3270 = vmatpush1.msra.mxu0 %v3267
        %3271 = vmatprep.subr.mxu0 0.0
        %3272 = vmatpush1.msra.mxu0 0.0
        %3273 = vmatprep.subr.mxu0 0.0
        %3274 = vmatpush1.msra.mxu0 0.0
        %3275 = vmatprep.subr.mxu0 0.0
        %3276 = vmatpush1.msra.mxu0 0.0
        %3277 = vmatprep.subr.mxu0 0.0
        %3278 = vmatpush1.msra.mxu0 0.0
        %3279 = vmatprep.subr.mxu0 0.0
        %3280 = vmatpush1.msra.mxu0 0.0
        %3281 = vmatprep.subr.mxu0 0.0
        %3282 = vmatpush1.msra.mxu0 0.0
        %3283 = vmatprep.subr.mxu0 0.0
        %3284 = vmatpush1.msra.mxu0 0.0
        %3285 = vmatprep.subr.mxu0 0.0
        %3286 = vmatpush1.msra.mxu0 0.0
        %3287 = vmatprep.subr.mxu0 0.0
        %3288 = vmatpush1.msra.mxu0 0.0
        %3289 = vmatprep.subr.mxu0 0.0
        %3290 = vmatpush1.msra.mxu0 0.0
        %3291 = vmatprep.subr.mxu0 0.0
        %3292 = vmatpush1.msra.mxu0 0.0
        %3293 = vmatprep.subr.mxu0 0.0
        %3294 = vmatpush1.msra.mxu0 0.0
        %3295 = vmatprep.subr.mxu0 0.0
        %3296 = vmatpush1.msra.mxu0 0.0
        %3297 = vmatprep.subr.mxu0 0.0
        %3298 = vmatpush1.msra.mxu0 0.0
        %3299 = vmatprep.subr.mxu0 0.0
        %3300 = vmatpush1.msra.mxu0 0.0
        %3301 = vmatprep.subr.mxu0 0.0
        %3302 = vmatpush1.msra.mxu0 0.0
        %3303 = vmatprep.subr.mxu0 0.0
        %3304 = vmatpush1.msra.mxu0 0.0
        %3305 = vmatprep.subr.mxu0 0.0
        %3306 = vmatpush1.msra.mxu0 0.0
        %3307 = vmatprep.subr.mxu0 0.0
        %3308 = vmatpush1.msra.mxu0 0.0
        %3309 = vmatprep.subr.mxu0 0.0
        %3310 = vmatpush1.msra.mxu0 0.0
        %3311 = vmatprep.subr.mxu0 0.0
        %3312 = vmatpush1.msra.mxu0 0.0
        %3313 = vmatprep.subr.mxu0 0.0
        %3314 = vmatpush1.msra.mxu0 0.0
        %3315 = vmatprep.subr.mxu0 0.0
        %3316 = vmatpush1.msra.mxu0 0.0
        %3317 = vmatprep.subr.mxu0 0.0
        %3318 = vmatpush1.msra.mxu0 0.0
        %3319 = vmatprep.subr.mxu0 0.0
        %3320 = vmatpush1.msra.mxu0 0.0
        %3321 = vmatprep.subr.mxu0 0.0
        %3322 = vmatpush1.msra.mxu0 0.0
        %3323 = vmatprep.subr.mxu0 0.0
        %3324 = vmatpush1.msra.mxu0 0.0
        %3325 = vmatprep.subr.mxu0 0.0
        %3326 = vmatpush1.msra.mxu0 0.0
        %3327 = vmatprep.subr.mxu0 0.0
        %3328 = vmatpush1.msra.mxu0 0.0
        %3329 = vmatprep.subr.mxu0 0.0
        %3330 = vmatpush1.msra.mxu0 0.0
        %3331 = vmatprep.subr.mxu0 0.0
        %3332 = vmatpush1.msra.mxu0 0.0
        %3333 = vmatprep.mubr.f32.mxu0 0.0
        %3334 = vmatmul.mubr.f32.gmra.mrb[0].mxu0 %v3264
        %v3335 = vpop.f32.mrb[0].mxu0
        %v3336 = vadd.f32 0.0, %v3335
        %v3337 = vpop.f32.mrb[0].mxu0
        %3338 = vdwg.mxu0
        %v3339 = vadd.f32 %v3148, %v3336
        %v3340 = vld [vmem:[%s3] sm:$0xff]
        %3342 = vset.pattern.permute.xlu0 0
        %3343 = vperm.xlu0 %3342, %v3340
        %v3344 = vpop.permute.xlu0 %3343
        %v3346 = vadd.f32 %v3339, %v3344
        %v3347 = vmax.f32 %v3346, 0.0
        %v3349 = vsel %vm1485, %v3347, 0
        %3351 = vmatprep.subr.mxu0 0.0
        %3352 = vmatpush1.msra.mxu0 %v1590
        %3353 = vmatprep.subr.mxu0 0.0
        %3354 = vmatpush1.msra.mxu0 %v1591
        %3355 = vmatprep.subr.mxu0 0.0
        %3356 = vmatpush1.msra.mxu0 %v1592
        %3357 = vmatprep.subr.mxu0 0.0
        %3358 = vmatpush1.msra.mxu0 %v1593
        %3359 = vmatprep.subr.mxu0 0.0
        %3360 = vmatpush1.msra.mxu0 %v1594
        %3361 = vmatprep.subr.mxu0 0.0
        %3362 = vmatpush1.msra.mxu0 %v1595
        %3363 = vmatprep.subr.mxu0 0.0
        %3364 = vmatpush1.msra.mxu0 %v1596
        %3365 = vmatprep.subr.mxu0 0.0
        %3366 = vmatpush1.msra.mxu0 %v1597
        %3367 = vmatprep.subr.mxu0 0.0
        %3368 = vmatpush1.msra.mxu0 %v1598
        %3369 = vmatprep.subr.mxu0 0.0
        %3370 = vmatpush1.msra.mxu0 %v1599
        %3371 = vmatprep.subr.mxu0 0.0
        %3372 = vmatpush1.msra.mxu0 %v1600
        %3373 = vmatprep.subr.mxu0 0.0
        %3374 = vmatpush1.msra.mxu0 %v1601
        %3375 = vmatprep.subr.mxu0 0.0
        %3376 = vmatpush1.msra.mxu0 %v1608
        %3377 = vmatprep.subr.mxu0 0.0
        %3378 = vmatpush1.msra.mxu0 0.0
        %3379 = vmatprep.subr.mxu0 0.0
        %3380 = vmatpush1.msra.mxu0 0.0
        %3381 = vmatprep.subr.mxu0 0.0
        %3382 = vmatpush1.msra.mxu0 0.0
        %3383 = vmatprep.subr.mxu0 0.0
        %3384 = vmatpush1.msra.mxu0 0.0
        %3385 = vmatprep.subr.mxu0 0.0
        %3386 = vmatpush1.msra.mxu0 0.0
        %3387 = vmatprep.subr.mxu0 0.0
        %3388 = vmatpush1.msra.mxu0 0.0
        %3389 = vmatprep.subr.mxu0 0.0
        %3390 = vmatpush1.msra.mxu0 0.0
        %3391 = vmatprep.subr.mxu0 0.0
        %3392 = vmatpush1.msra.mxu0 0.0
        %3393 = vmatprep.subr.mxu0 0.0
        %3394 = vmatpush1.msra.mxu0 0.0
        %3395 = vmatprep.subr.mxu0 0.0
        %3396 = vmatpush1.msra.mxu0 0.0
        %3397 = vmatprep.subr.mxu0 0.0
        %3398 = vmatpush1.msra.mxu0 0.0
        %3399 = vmatprep.subr.mxu0 0.0
        %3400 = vmatpush1.msra.mxu0 0.0
        %3401 = vmatprep.subr.mxu0 0.0
        %3402 = vmatpush1.msra.mxu0 0.0
        %3403 = vmatprep.subr.mxu0 0.0
        %3404 = vmatpush1.msra.mxu0 0.0
        %3405 = vmatprep.subr.mxu0 0.0
        %3406 = vmatpush1.msra.mxu0 0.0
        %3407 = vmatprep.subr.mxu0 0.0
        %3408 = vmatpush1.msra.mxu0 0.0
        %3409 = vmatprep.subr.mxu0 0.0
        %3410 = vmatpush1.msra.mxu0 0.0
        %3411 = vmatprep.subr.mxu0 0.0
        %3412 = vmatpush1.msra.mxu0 0.0
        %3413 = vmatprep.subr.mxu0 0.0
        %3414 = vmatpush1.msra.mxu0 0.0
        %3415 = vmatprep.mubr.f32.mxu0 0.0
        %3416 = vmatmul.mubr.f32.gmra.mrb[0].mxu0 %v3349
        %v3417 = vpop.f32.mrb[0].mxu0
        %v3418 = vadd.f32 0.0, %v3417
        %v3419 = vpop.f32.mrb[0].mxu0
        %3420 = vdwg.mxu0
        %v3421 = vld [vmem:[%s4] sm:$0xff]
        %v3422 = vld [vmem:[%s4 + $0x8] sm:$0xff]
        %3423 = vmatprep.subr.mxu0 0.0
        %3424 = vmatpush1.msra.mxu0 %v1720
        %3425 = vmatprep.subr.mxu0 0.0
        %3426 = vmatpush1.msra.mxu0 %v1721
        %3427 = vmatprep.subr.mxu0 0.0
        %3428 = vmatpush1.msra.mxu0 %v1722
        %3429 = vmatprep.subr.mxu0 0.0
        %3430 = vmatpush1.msra.mxu0 %v1723
        %3431 = vmatprep.subr.mxu0 0.0
        %3432 = vmatpush1.msra.mxu0 %v1724
        %3433 = vmatprep.subr.mxu0 0.0
        %3434 = vmatpush1.msra.mxu0 %v1725
        %3435 = vmatprep.subr.mxu0 0.0
        %3436 = vmatpush1.msra.mxu0 %v1726
        %3437 = vmatprep.subr.mxu0 0.0
        %3438 = vmatpush1.msra.mxu0 %v1727
        %3439 = vmatprep.subr.mxu0 0.0
        %3440 = vmatpush1.msra.mxu0 %v1728
        %3441 = vmatprep.subr.mxu0 0.0
        %3442 = vmatpush1.msra.mxu0 %v1729
        %3443 = vmatprep.subr.mxu0 0.0
        %3444 = vmatpush1.msra.mxu0 %v1730
        %3445 = vmatprep.subr.mxu0 0.0
        %3446 = vmatpush1.msra.mxu0 %v1731
        %3447 = vmatprep.subr.mxu0 0.0
        %3448 = vmatpush1.msra.mxu0 %v1734
        %3449 = vmatprep.subr.mxu0 0.0
        %3450 = vmatpush1.msra.mxu0 0.0
        %3451 = vmatprep.subr.mxu0 0.0
        %3452 = vmatpush1.msra.mxu0 0.0
        %3453 = vmatprep.subr.mxu0 0.0
        %3454 = vmatpush1.msra.mxu0 0.0
        %3455 = vmatprep.subr.mxu0 0.0
        %3456 = vmatpush1.msra.mxu0 0.0
        %3457 = vmatprep.subr.mxu0 0.0
        %3458 = vmatpush1.msra.mxu0 0.0
        %3459 = vmatprep.subr.mxu0 0.0
        %3460 = vmatpush1.msra.mxu0 0.0
        %3461 = vmatprep.subr.mxu0 0.0
        %3462 = vmatpush1.msra.mxu0 0.0
        %3463 = vmatprep.subr.mxu0 0.0
        %3464 = vmatpush1.msra.mxu0 0.0
        %3465 = vmatprep.subr.mxu0 0.0
        %3466 = vmatpush1.msra.mxu0 0.0
        %3467 = vmatprep.subr.mxu0 0.0
        %3468 = vmatpush1.msra.mxu0 0.0
        %3469 = vmatprep.subr.mxu0 0.0
        %3470 = vmatpush1.msra.mxu0 0.0
        %3471 = vmatprep.subr.mxu0 0.0
        %3472 = vmatpush1.msra.mxu0 0.0
        %3473 = vmatprep.subr.mxu0 0.0
        %3474 = vmatpush1.msra.mxu0 0.0
        %3475 = vmatprep.subr.mxu0 0.0
        %3476 = vmatpush1.msra.mxu0 0.0
        %3477 = vmatprep.subr.mxu0 0.0
        %3478 = vmatpush1.msra.mxu0 0.0
        %3479 = vmatprep.subr.mxu0 0.0
        %3480 = vmatpush1.msra.mxu0 0.0
        %3481 = vmatprep.subr.mxu0 0.0
        %3482 = vmatpush1.msra.mxu0 0.0
        %3483 = vmatprep.subr.mxu0 0.0
        %3484 = vmatpush1.msra.mxu0 0.0
        %3485 = vmatprep.subr.mxu0 0.0
        %3486 = vmatpush1.msra.mxu0 0.0
        %3487 = vmatprep.mubr.f32.mxu0 0.0
        %3488 = vmatmul.mubr.f32.gmra.mrb[0].mxu0 %v3349
        %v3489 = vpop.f32.mrb[0].mxu0
        %v3490 = vadd.f32 0.0, %v3489
        %v3491 = vpop.f32.mrb[0].mxu0
        %3492 = vdwg.mxu0
        %s3493 = scalar_lea.vmem %s4, 16
        %v3494 = vld [vmem:[%s3493] sm:$0xff]
        %v3495 = vld [vmem:[%s3493 + $0x8] sm:$0xff]
        %vm3496 = vcmask 64512
        %v3498 = vsel %vm3496, %v3494, 0
        %v3501 = vsel %vm3496, %v3495, 0
        %3503 = vmatprep.subr.mxu0 0.0
        %3504 = vmatpush1.msra.mxu0 %v3490
        %3505 = vmatprep.subr.mxu0 0.0
        %3506 = vmatpush1.msra.mxu0 0.0
        %3507 = vmatprep.subr.mxu0 0.0
        %3508 = vmatpush1.msra.mxu0 0.0
        %3509 = vmatprep.subr.mxu0 0.0
        %3510 = vmatpush1.msra.mxu0 0.0
        %3511 = vmatprep.subr.mxu0 0.0
        %3512 = vmatpush1.msra.mxu0 0.0
        %3513 = vmatprep.subr.mxu0 0.0
        %3514 = vmatpush1.msra.mxu0 0.0
        %3515 = vmatprep.subr.mxu0 0.0
        %3516 = vmatpush1.msra.mxu0 0.0
        %3517 = vmatprep.subr.mxu0 0.0
        %3518 = vmatpush1.msra.mxu0 0.0
        %3519 = vmatprep.subr.mxu0 0.0
        %3520 = vmatpush1.msra.mxu0 0.0
        %3521 = vmatprep.subr.mxu0 0.0
        %3522 = vmatpush1.msra.mxu0 0.0
        %3523 = vmatprep.subr.mxu0 0.0
        %3524 = vmatpush1.msra.mxu0 0.0
        %3525 = vmatprep.subr.mxu0 0.0
        %3526 = vmatpush1.msra.mxu0 0.0
        %3527 = vmatprep.subr.mxu0 0.0
        %3528 = vmatpush1.msra.mxu0 0.0
        %3529 = vmatprep.subr.mxu0 0.0
        %3530 = vmatpush1.msra.mxu0 0.0
        %3531 = vmatprep.subr.mxu0 0.0
        %3532 = vmatpush1.msra.mxu0 0.0
        %3533 = vmatprep.subr.mxu0 0.0
        %3534 = vmatpush1.msra.mxu0 0.0
        %3535 = vmatprep.subr.mxu0 0.0
        %3536 = vmatpush1.msra.mxu0 0.0
        %3537 = vmatprep.subr.mxu0 0.0
        %3538 = vmatpush1.msra.mxu0 0.0
        %3539 = vmatprep.subr.mxu0 0.0
        %3540 = vmatpush1.msra.mxu0 0.0
        %3541 = vmatprep.subr.mxu0 0.0
        %3542 = vmatpush1.msra.mxu0 0.0
        %3543 = vmatprep.subr.mxu0 0.0
        %3544 = vmatpush1.msra.mxu0 0.0
        %3545 = vmatprep.subr.mxu0 0.0
        %3546 = vmatpush1.msra.mxu0 0.0
        %3547 = vmatprep.subr.mxu0 0.0
        %3548 = vmatpush1.msra.mxu0 0.0
        %3549 = vmatprep.subr.mxu0 0.0
        %3550 = vmatpush1.msra.mxu0 0.0
        %3551 = vmatprep.subr.mxu0 0.0
        %3552 = vmatpush1.msra.mxu0 0.0
        %3553 = vmatprep.subr.mxu0 0.0
        %3554 = vmatpush1.msra.mxu0 0.0
        %3555 = vmatprep.subr.mxu0 0.0
        %3556 = vmatpush1.msra.mxu0 0.0
        %3557 = vmatprep.subr.mxu0 0.0
        %3558 = vmatpush1.msra.mxu0 0.0
        %3559 = vmatprep.subr.mxu0 0.0
        %3560 = vmatpush1.msra.mxu0 0.0
        %3561 = vmatprep.subr.mxu0 0.0
        %3562 = vmatpush1.msra.mxu0 0.0
        %3563 = vmatprep.subr.mxu0 0.0
        %3564 = vmatpush1.msra.mxu0 0.0
        %3565 = vmatprep.subr.mxu0 0.0
        %3566 = vmatpush1.msra.mxu0 0.0
        %3567 = vmatprep.mubr.f32.mxu0 0.0
        %3568 = vmatmul.mubr.f32.gmra.mrb[0].mxu0 %v3498
        %v3569 = vpop.f32.mrb[0].mxu0
        %v3570 = vadd.f32 0.0, %v3569
        %v3571 = vpop.f32.mrb[0].mxu0
        %3572 = vmatprep.mubr.f32.mxu0 0.0
        %3573 = vmatmul.mubr.f32.gmra.mrb[0].mxu0 %v3501
        %v3574 = vpop.f32.mrb[0].mxu0
        %v3575 = vadd.f32 0.0, %v3574
        %v3576 = vpop.f32.mrb[0].mxu0
        %3577 = vdwg.mxu0
        %v3579 = vsel %vm3496, %v3421, 0
        %v3582 = vsel %vm3496, %v3422, 0
        %3584 = vmatprep.subr.mxu0 0.0
        %3585 = vmatpush1.msra.mxu0 %v3418
        %3586 = vmatprep.subr.mxu0 0.0
        %3587 = vmatpush1.msra.mxu0 0.0
        %3588 = vmatprep.subr.mxu0 0.0
        %3589 = vmatpush1.msra.mxu0 0.0
        %3590 = vmatprep.subr.mxu0 0.0
        %3591 = vmatpush1.msra.mxu0 0.0
        %3592 = vmatprep.subr.mxu0 0.0
        %3593 = vmatpush1.msra.mxu0 0.0
        %3594 = vmatprep.subr.mxu0 0.0
        %3595 = vmatpush1.msra.mxu0 0.0
        %3596 = vmatprep.subr.mxu0 0.0
        %3597 = vmatpush1.msra.mxu0 0.0
        %3598 = vmatprep.subr.mxu0 0.0
        %3599 = vmatpush1.msra.mxu0 0.0
        %3600 = vmatprep.subr.mxu0 0.0
        %3601 = vmatpush1.msra.mxu0 0.0
        %3602 = vmatprep.subr.mxu0 0.0
        %3603 = vmatpush1.msra.mxu0 0.0
        %3604 = vmatprep.subr.mxu0 0.0
        %3605 = vmatpush1.msra.mxu0 0.0
        %3606 = vmatprep.subr.mxu0 0.0
        %3607 = vmatpush1.msra.mxu0 0.0
        %3608 = vmatprep.subr.mxu0 0.0
        %3609 = vmatpush1.msra.mxu0 0.0
        %3610 = vmatprep.subr.mxu0 0.0
        %3611 = vmatpush1.msra.mxu0 0.0
        %3612 = vmatprep.subr.mxu0 0.0
        %3613 = vmatpush1.msra.mxu0 0.0
        %3614 = vmatprep.subr.mxu0 0.0
        %3615 = vmatpush1.msra.mxu0 0.0
        %3616 = vmatprep.subr.mxu0 0.0
        %3617 = vmatpush1.msra.mxu0 0.0
        %3618 = vmatprep.subr.mxu0 0.0
        %3619 = vmatpush1.msra.mxu0 0.0
        %3620 = vmatprep.subr.mxu0 0.0
        %3621 = vmatpush1.msra.mxu0 0.0
        %3622 = vmatprep.subr.mxu0 0.0
        %3623 = vmatpush1.msra.mxu0 0.0
        %3624 = vmatprep.subr.mxu0 0.0
        %3625 = vmatpush1.msra.mxu0 0.0
        %3626 = vmatprep.subr.mxu0 0.0
        %3627 = vmatpush1.msra.mxu0 0.0
        %3628 = vmatprep.subr.mxu0 0.0
        %3629 = vmatpush1.msra.mxu0 0.0
        %3630 = vmatprep.subr.mxu0 0.0
        %3631 = vmatpush1.msra.mxu0 0.0
        %3632 = vmatprep.subr.mxu0 0.0
        %3633 = vmatpush1.msra.mxu0 0.0
        %3634 = vmatprep.subr.mxu0 0.0
        %3635 = vmatpush1.msra.mxu0 0.0
        %3636 = vmatprep.subr.mxu0 0.0
        %3637 = vmatpush1.msra.mxu0 0.0
        %3638 = vmatprep.subr.mxu0 0.0
        %3639 = vmatpush1.msra.mxu0 0.0
        %3640 = vmatprep.subr.mxu0 0.0
        %3641 = vmatpush1.msra.mxu0 0.0
        %3642 = vmatprep.subr.mxu0 0.0
        %3643 = vmatpush1.msra.mxu0 0.0
        %3644 = vmatprep.subr.mxu0 0.0
        %3645 = vmatpush1.msra.mxu0 0.0
        %3646 = vmatprep.subr.mxu0 0.0
        %3647 = vmatpush1.msra.mxu0 0.0
        %3648 = vmatprep.mubr.f32.mxu0 0.0
        %3649 = vmatmul.mubr.f32.gmra.mrb[0].mxu0 %v3579
        %v3650 = vpop.f32.mrb[0].mxu0
        %v3651 = vadd.f32 %v3570, %v3650
        %v3652 = vpop.f32.mrb[0].mxu0
        %3653 = vmatprep.mubr.f32.mxu0 0.0
        %3654 = vmatmul.mubr.f32.gmra.mrb[0].mxu0 %v3582
        %v3655 = vpop.f32.mrb[0].mxu0
        %v3656 = vadd.f32 %v3575, %v3655
        %v3657 = vpop.f32.mrb[0].mxu0
        %3658 = vdwg.mxu0
        %3659 = vmatprep.subr.mxu0 0.0
        %3660 = vmatpush1.msra.mxu0 %v2002
        %3661 = vmatprep.subr.mxu0 0.0
        %3662 = vmatpush1.msra.mxu0 %v2003
        %3663 = vmatprep.subr.mxu0 0.0
        %3664 = vmatpush1.msra.mxu0 %v2004
        %3665 = vmatprep.subr.mxu0 0.0
        %3666 = vmatpush1.msra.mxu0 %v2005
        %3667 = vmatprep.subr.mxu0 0.0
        %3668 = vmatpush1.msra.mxu0 %v2006
        %3669 = vmatprep.subr.mxu0 0.0
        %3670 = vmatpush1.msra.mxu0 %v2007
        %3671 = vmatprep.subr.mxu0 0.0
        %3672 = vmatpush1.msra.mxu0 %v2008
        %3673 = vmatprep.subr.mxu0 0.0
        %3674 = vmatpush1.msra.mxu0 %v2009
        %3675 = vmatprep.subr.mxu0 0.0
        %3676 = vmatpush1.msra.mxu0 %v2010
        %3677 = vmatprep.subr.mxu0 0.0
        %3678 = vmatpush1.msra.mxu0 %v2011
        %3679 = vmatprep.subr.mxu0 0.0
        %3680 = vmatpush1.msra.mxu0 %v2012
        %3681 = vmatprep.subr.mxu0 0.0
        %3682 = vmatpush1.msra.mxu0 %v2013
        %3683 = vmatprep.subr.mxu0 0.0
        %3684 = vmatpush1.msra.mxu0 %v2016
        %3685 = vmatprep.subr.mxu0 0.0
        %3686 = vmatpush1.msra.mxu0 0.0
        %3687 = vmatprep.subr.mxu0 0.0
        %3688 = vmatpush1.msra.mxu0 0.0
        %3689 = vmatprep.subr.mxu0 0.0
        %3690 = vmatpush1.msra.mxu0 0.0
        %3691 = vmatprep.subr.mxu0 0.0
        %3692 = vmatpush1.msra.mxu0 0.0
        %3693 = vmatprep.subr.mxu0 0.0
        %3694 = vmatpush1.msra.mxu0 0.0
        %3695 = vmatprep.subr.mxu0 0.0
        %3696 = vmatpush1.msra.mxu0 0.0
        %3697 = vmatprep.subr.mxu0 0.0
        %3698 = vmatpush1.msra.mxu0 0.0
        %3699 = vmatprep.subr.mxu0 0.0
        %3700 = vmatpush1.msra.mxu0 0.0
        %3701 = vmatprep.subr.mxu0 0.0
        %3702 = vmatpush1.msra.mxu0 0.0
        %3703 = vmatprep.subr.mxu0 0.0
        %3704 = vmatpush1.msra.mxu0 0.0
        %3705 = vmatprep.subr.mxu0 0.0
        %3706 = vmatpush1.msra.mxu0 0.0
        %3707 = vmatprep.subr.mxu0 0.0
        %3708 = vmatpush1.msra.mxu0 0.0
        %3709 = vmatprep.subr.mxu0 0.0
        %3710 = vmatpush1.msra.mxu0 0.0
        %3711 = vmatprep.subr.mxu0 0.0
        %3712 = vmatpush1.msra.mxu0 0.0
        %3713 = vmatprep.subr.mxu0 0.0
        %3714 = vmatpush1.msra.mxu0 0.0
        %3715 = vmatprep.subr.mxu0 0.0
        %3716 = vmatpush1.msra.mxu0 0.0
        %3717 = vmatprep.subr.mxu0 0.0
        %3718 = vmatpush1.msra.mxu0 0.0
        %3719 = vmatprep.subr.mxu0 0.0
        %3720 = vmatpush1.msra.mxu0 0.0
        %3721 = vmatprep.subr.mxu0 0.0
        %3722 = vmatpush1.msra.mxu0 0.0
        %3723 = vmatprep.mubr.f32.mxu0 0.0
        %3724 = vmatmul.mubr.f32.gmra.mrb[0].mxu0 %v3349
        %v3725 = vpop.f32.mrb[0].mxu0
        %v3726 = vadd.f32 0.0, %v3725
        %v3727 = vpop.f32.mrb[0].mxu0
        %3728 = vdwg.mxu0
        %s3729 = scalar_lea.vmem %s4, 32
        %v3730 = vld [vmem:[%s3729] sm:$0xff]
        %v3731 = vld [vmem:[%s3729 + $0x8] sm:$0xff]
        %v3733 = vsel %vm3496, %v3730, 0
        %v3736 = vsel %vm3496, %v3731, 0
        %3738 = vmatprep.subr.mxu0 0.0
        %3739 = vmatpush1.msra.mxu0 %v3726
        %3740 = vmatprep.subr.mxu0 0.0
        %3741 = vmatpush1.msra.mxu0 0.0
        %3742 = vmatprep.subr.mxu0 0.0
        %3743 = vmatpush1.msra.mxu0 0.0
        %3744 = vmatprep.subr.mxu0 0.0
        %3745 = vmatpush1.msra.mxu0 0.0
        %3746 = vmatprep.subr.mxu0 0.0
        %3747 = vmatpush1.msra.mxu0 0.0
        %3748 = vmatprep.subr.mxu0 0.0
        %3749 = vmatpush1.msra.mxu0 0.0
        %3750 = vmatprep.subr.mxu0 0.0
        %3751 = vmatpush1.msra.mxu0 0.0
        %3752 = vmatprep.subr.mxu0 0.0
        %3753 = vmatpush1.msra.mxu0 0.0
        %3754 = vmatprep.subr.mxu0 0.0
        %3755 = vmatpush1.msra.mxu0 0.0
        %3756 = vmatprep.subr.mxu0 0.0
        %3757 = vmatpush1.msra.mxu0 0.0
        %3758 = vmatprep.subr.mxu0 0.0
        %3759 = vmatpush1.msra.mxu0 0.0
        %3760 = vmatprep.subr.mxu0 0.0
        %3761 = vmatpush1.msra.mxu0 0.0
        %3762 = vmatprep.subr.mxu0 0.0
        %3763 = vmatpush1.msra.mxu0 0.0
        %3764 = vmatprep.subr.mxu0 0.0
        %3765 = vmatpush1.msra.mxu0 0.0
        %3766 = vmatprep.subr.mxu0 0.0
        %3767 = vmatpush1.msra.mxu0 0.0
        %3768 = vmatprep.subr.mxu0 0.0
        %3769 = vmatpush1.msra.mxu0 0.0
        %3770 = vmatprep.subr.mxu0 0.0
        %3771 = vmatpush1.msra.mxu0 0.0
        %3772 = vmatprep.subr.mxu0 0.0
        %3773 = vmatpush1.msra.mxu0 0.0
        %3774 = vmatprep.subr.mxu0 0.0
        %3775 = vmatpush1.msra.mxu0 0.0
        %3776 = vmatprep.subr.mxu0 0.0
        %3777 = vmatpush1.msra.mxu0 0.0
        %3778 = vmatprep.subr.mxu0 0.0
        %3779 = vmatpush1.msra.mxu0 0.0
        %3780 = vmatprep.subr.mxu0 0.0
        %3781 = vmatpush1.msra.mxu0 0.0
        %3782 = vmatprep.subr.mxu0 0.0
        %3783 = vmatpush1.msra.mxu0 0.0
        %3784 = vmatprep.subr.mxu0 0.0
        %3785 = vmatpush1.msra.mxu0 0.0
        %3786 = vmatprep.subr.mxu0 0.0
        %3787 = vmatpush1.msra.mxu0 0.0
        %3788 = vmatprep.subr.mxu0 0.0
        %3789 = vmatpush1.msra.mxu0 0.0
        %3790 = vmatprep.subr.mxu0 0.0
        %3791 = vmatpush1.msra.mxu0 0.0
        %3792 = vmatprep.subr.mxu0 0.0
        %3793 = vmatpush1.msra.mxu0 0.0
        %3794 = vmatprep.subr.mxu0 0.0
        %3795 = vmatpush1.msra.mxu0 0.0
        %3796 = vmatprep.subr.mxu0 0.0
        %3797 = vmatpush1.msra.mxu0 0.0
        %3798 = vmatprep.subr.mxu0 0.0
        %3799 = vmatpush1.msra.mxu0 0.0
        %3800 = vmatprep.subr.mxu0 0.0
        %3801 = vmatpush1.msra.mxu0 0.0
        %3802 = vmatprep.mubr.f32.mxu0 0.0
        %3803 = vmatmul.mubr.f32.gmra.mrb[0].mxu0 %v3733
        %v3804 = vpop.f32.mrb[0].mxu0
        %v3805 = vadd.f32 0.0, %v3804
        %v3806 = vpop.f32.mrb[0].mxu0
        %3807 = vmatprep.mubr.f32.mxu0 0.0
        %3808 = vmatmul.mubr.f32.gmra.mrb[0].mxu0 %v3736
        %v3809 = vpop.f32.mrb[0].mxu0
        %v3810 = vadd.f32 0.0, %v3809
        %v3811 = vpop.f32.mrb[0].mxu0
        %3812 = vdwg.mxu0
        %v3813 = vadd.f32 %v3651, %v3805
        %v3814 = vadd.f32 %v3656, %v3810
        %3815 = vmatprep.subr.mxu0 0.0
        %3816 = vmatpush1.msra.mxu0 %v2206
        %3817 = vmatprep.subr.mxu0 0.0
        %3818 = vmatpush1.msra.mxu0 %v2207
        %3819 = vmatprep.subr.mxu0 0.0
        %3820 = vmatpush1.msra.mxu0 %v2208
        %3821 = vmatprep.subr.mxu0 0.0
        %3822 = vmatpush1.msra.mxu0 %v2209
        %3823 = vmatprep.subr.mxu0 0.0
        %3824 = vmatpush1.msra.mxu0 %v2210
        %3825 = vmatprep.subr.mxu0 0.0
        %3826 = vmatpush1.msra.mxu0 %v2211
        %3827 = vmatprep.subr.mxu0 0.0
        %3828 = vmatpush1.msra.mxu0 %v2212
        %3829 = vmatprep.subr.mxu0 0.0
        %3830 = vmatpush1.msra.mxu0 %v2213
        %3831 = vmatprep.subr.mxu0 0.0
        %3832 = vmatpush1.msra.mxu0 %v2214
        %3833 = vmatprep.subr.mxu0 0.0
        %3834 = vmatpush1.msra.mxu0 %v2215
        %3835 = vmatprep.subr.mxu0 0.0
        %3836 = vmatpush1.msra.mxu0 %v2216
        %3837 = vmatprep.subr.mxu0 0.0
        %3838 = vmatpush1.msra.mxu0 %v2217
        %3839 = vmatprep.subr.mxu0 0.0
        %3840 = vmatpush1.msra.mxu0 %v2220
        %3841 = vmatprep.subr.mxu0 0.0
        %3842 = vmatpush1.msra.mxu0 0.0
        %3843 = vmatprep.subr.mxu0 0.0
        %3844 = vmatpush1.msra.mxu0 0.0
        %3845 = vmatprep.subr.mxu0 0.0
        %3846 = vmatpush1.msra.mxu0 0.0
        %3847 = vmatprep.subr.mxu0 0.0
        %3848 = vmatpush1.msra.mxu0 0.0
        %3849 = vmatprep.subr.mxu0 0.0
        %3850 = vmatpush1.msra.mxu0 0.0
        %3851 = vmatprep.subr.mxu0 0.0
        %3852 = vmatpush1.msra.mxu0 0.0
        %3853 = vmatprep.subr.mxu0 0.0
        %3854 = vmatpush1.msra.mxu0 0.0
        %3855 = vmatprep.subr.mxu0 0.0
        %3856 = vmatpush1.msra.mxu0 0.0
        %3857 = vmatprep.subr.mxu0 0.0
        %3858 = vmatpush1.msra.mxu0 0.0
        %3859 = vmatprep.subr.mxu0 0.0
        %3860 = vmatpush1.msra.mxu0 0.0
        %3861 = vmatprep.subr.mxu0 0.0
        %3862 = vmatpush1.msra.mxu0 0.0
        %3863 = vmatprep.subr.mxu0 0.0
        %3864 = vmatpush1.msra.mxu0 0.0
        %3865 = vmatprep.subr.mxu0 0.0
        %3866 = vmatpush1.msra.mxu0 0.0
        %3867 = vmatprep.subr.mxu0 0.0
        %3868 = vmatpush1.msra.mxu0 0.0
        %3869 = vmatprep.subr.mxu0 0.0
        %3870 = vmatpush1.msra.mxu0 0.0
        %3871 = vmatprep.subr.mxu0 0.0
        %3872 = vmatpush1.msra.mxu0 0.0
        %3873 = vmatprep.subr.mxu0 0.0
        %3874 = vmatpush1.msra.mxu0 0.0
        %3875 = vmatprep.subr.mxu0 0.0
        %3876 = vmatpush1.msra.mxu0 0.0
        %3877 = vmatprep.subr.mxu0 0.0
        %3878 = vmatpush1.msra.mxu0 0.0
        %3879 = vmatprep.mubr.f32.mxu0 0.0
        %3880 = vmatmul.mubr.f32.gmra.mrb[0].mxu0 %v3349
        %v3881 = vpop.f32.mrb[0].mxu0
        %v3882 = vadd.f32 0.0, %v3881
        %v3883 = vpop.f32.mrb[0].mxu0
        %3884 = vdwg.mxu0
        %s3885 = scalar_lea.vmem %s4, 48
        %v3886 = vld [vmem:[%s3885] sm:$0xff]
        %v3887 = vld [vmem:[%s3885 + $0x8] sm:$0xff]
        %v3889 = vsel %vm3496, %v3886, 0
        %v3892 = vsel %vm3496, %v3887, 0
        %3894 = vmatprep.subr.mxu0 0.0
        %3895 = vmatpush1.msra.mxu0 %v3882
        %3896 = vmatprep.subr.mxu0 0.0
        %3897 = vmatpush1.msra.mxu0 0.0
        %3898 = vmatprep.subr.mxu0 0.0
        %3899 = vmatpush1.msra.mxu0 0.0
        %3900 = vmatprep.subr.mxu0 0.0
        %3901 = vmatpush1.msra.mxu0 0.0
        %3902 = vmatprep.subr.mxu0 0.0
        %3903 = vmatpush1.msra.mxu0 0.0
        %3904 = vmatprep.subr.mxu0 0.0
        %3905 = vmatpush1.msra.mxu0 0.0
        %3906 = vmatprep.subr.mxu0 0.0
        %3907 = vmatpush1.msra.mxu0 0.0
        %3908 = vmatprep.subr.mxu0 0.0
        %3909 = vmatpush1.msra.mxu0 0.0
        %3910 = vmatprep.subr.mxu0 0.0
        %3911 = vmatpush1.msra.mxu0 0.0
        %3912 = vmatprep.subr.mxu0 0.0
        %3913 = vmatpush1.msra.mxu0 0.0
        %3914 = vmatprep.subr.mxu0 0.0
        %3915 = vmatpush1.msra.mxu0 0.0
        %3916 = vmatprep.subr.mxu0 0.0
        %3917 = vmatpush1.msra.mxu0 0.0
        %3918 = vmatprep.subr.mxu0 0.0
        %3919 = vmatpush1.msra.mxu0 0.0
        %3920 = vmatprep.subr.mxu0 0.0
        %3921 = vmatpush1.msra.mxu0 0.0
        %3922 = vmatprep.subr.mxu0 0.0
        %3923 = vmatpush1.msra.mxu0 0.0
        %3924 = vmatprep.subr.mxu0 0.0
        %3925 = vmatpush1.msra.mxu0 0.0
        %3926 = vmatprep.subr.mxu0 0.0
        %3927 = vmatpush1.msra.mxu0 0.0
        %3928 = vmatprep.subr.mxu0 0.0
        %3929 = vmatpush1.msra.mxu0 0.0
        %3930 = vmatprep.subr.mxu0 0.0
        %3931 = vmatpush1.msra.mxu0 0.0
        %3932 = vmatprep.subr.mxu0 0.0
        %3933 = vmatpush1.msra.mxu0 0.0
        %3934 = vmatprep.subr.mxu0 0.0
        %3935 = vmatpush1.msra.mxu0 0.0
        %3936 = vmatprep.subr.mxu0 0.0
        %3937 = vmatpush1.msra.mxu0 0.0
        %3938 = vmatprep.subr.mxu0 0.0
        %3939 = vmatpush1.msra.mxu0 0.0
        %3940 = vmatprep.subr.mxu0 0.0
        %3941 = vmatpush1.msra.mxu0 0.0
        %3942 = vmatprep.subr.mxu0 0.0
        %3943 = vmatpush1.msra.mxu0 0.0
        %3944 = vmatprep.subr.mxu0 0.0
        %3945 = vmatpush1.msra.mxu0 0.0
        %3946 = vmatprep.subr.mxu0 0.0
        %3947 = vmatpush1.msra.mxu0 0.0
        %3948 = vmatprep.subr.mxu0 0.0
        %3949 = vmatpush1.msra.mxu0 0.0
        %3950 = vmatprep.subr.mxu0 0.0
        %3951 = vmatpush1.msra.mxu0 0.0
        %3952 = vmatprep.subr.mxu0 0.0
        %3953 = vmatpush1.msra.mxu0 0.0
        %3954 = vmatprep.subr.mxu0 0.0
        %3955 = vmatpush1.msra.mxu0 0.0
        %3956 = vmatprep.subr.mxu0 0.0
        %3957 = vmatpush1.msra.mxu0 0.0
        %3958 = vmatprep.mubr.f32.mxu0 0.0
        %3959 = vmatmul.mubr.f32.gmra.mrb[0].mxu0 %v3889
        %v3960 = vpop.f32.mrb[0].mxu0
        %v3961 = vadd.f32 0.0, %v3960
        %v3962 = vpop.f32.mrb[0].mxu0
        %3963 = vmatprep.mubr.f32.mxu0 0.0
        %3964 = vmatmul.mubr.f32.gmra.mrb[0].mxu0 %v3892
        %v3965 = vpop.f32.mrb[0].mxu0
        %v3966 = vadd.f32 0.0, %v3965
        %v3967 = vpop.f32.mrb[0].mxu0
        %3968 = vdwg.mxu0
        %v3969 = vadd.f32 %v3813, %v3961
        %v3970 = vadd.f32 %v3814, %v3966
        %3971 = vmatprep.subr.mxu0 0.0
        %3972 = vmatpush1.msra.mxu0 %v2397
        %3973 = vmatprep.subr.mxu0 0.0
        %3974 = vmatpush1.msra.mxu0 %v2398
        %3975 = vmatprep.subr.mxu0 0.0
        %3976 = vmatpush1.msra.mxu0 %v2399
        %3977 = vmatprep.subr.mxu0 0.0
        %3978 = vmatpush1.msra.mxu0 %v2400
        %3979 = vmatprep.subr.mxu0 0.0
        %3980 = vmatpush1.msra.mxu0 %v2401
        %3981 = vmatprep.subr.mxu0 0.0
        %3982 = vmatpush1.msra.mxu0 %v2402
        %3983 = vmatprep.subr.mxu0 0.0
        %3984 = vmatpush1.msra.mxu0 %v2403
        %3985 = vmatprep.subr.mxu0 0.0
        %3986 = vmatpush1.msra.mxu0 %v2404
        %3987 = vmatprep.subr.mxu0 0.0
        %3988 = vmatpush1.msra.mxu0 %v2405
        %3989 = vmatprep.subr.mxu0 0.0
        %3990 = vmatpush1.msra.mxu0 %v2406
        %3991 = vmatprep.subr.mxu0 0.0
        %3992 = vmatpush1.msra.mxu0 %v2407
        %3993 = vmatprep.subr.mxu0 0.0
        %3994 = vmatpush1.msra.mxu0 %v2408
        %3995 = vmatprep.subr.mxu0 0.0
        %3996 = vmatpush1.msra.mxu0 %v2411
        %3997 = vmatprep.subr.mxu0 0.0
        %3998 = vmatpush1.msra.mxu0 0.0
        %3999 = vmatprep.subr.mxu0 0.0
        %4000 = vmatpush1.msra.mxu0 0.0
        %4001 = vmatprep.subr.mxu0 0.0
        %4002 = vmatpush1.msra.mxu0 0.0
        %4003 = vmatprep.subr.mxu0 0.0
        %4004 = vmatpush1.msra.mxu0 0.0
        %4005 = vmatprep.subr.mxu0 0.0
        %4006 = vmatpush1.msra.mxu0 0.0
        %4007 = vmatprep.subr.mxu0 0.0
        %4008 = vmatpush1.msra.mxu0 0.0
        %4009 = vmatprep.subr.mxu0 0.0
        %4010 = vmatpush1.msra.mxu0 0.0
        %4011 = vmatprep.subr.mxu0 0.0
        %4012 = vmatpush1.msra.mxu0 0.0
        %4013 = vmatprep.subr.mxu0 0.0
        %4014 = vmatpush1.msra.mxu0 0.0
        %4015 = vmatprep.subr.mxu0 0.0
        %4016 = vmatpush1.msra.mxu0 0.0
        %4017 = vmatprep.subr.mxu0 0.0
        %4018 = vmatpush1.msra.mxu0 0.0
        %4019 = vmatprep.subr.mxu0 0.0
        %4020 = vmatpush1.msra.mxu0 0.0
        %4021 = vmatprep.subr.mxu0 0.0
        %4022 = vmatpush1.msra.mxu0 0.0
        %4023 = vmatprep.subr.mxu0 0.0
        %4024 = vmatpush1.msra.mxu0 0.0
        %4025 = vmatprep.subr.mxu0 0.0
        %4026 = vmatpush1.msra.mxu0 0.0
        %4027 = vmatprep.subr.mxu0 0.0
        %4028 = vmatpush1.msra.mxu0 0.0
        %4029 = vmatprep.subr.mxu0 0.0
        %4030 = vmatpush1.msra.mxu0 0.0
        %4031 = vmatprep.subr.mxu0 0.0
        %4032 = vmatpush1.msra.mxu0 0.0
        %4033 = vmatprep.subr.mxu0 0.0
        %4034 = vmatpush1.msra.mxu0 0.0
        %4035 = vmatprep.mubr.f32.mxu0 0.0
        %4036 = vmatmul.mubr.f32.gmra.mrb[0].mxu0 %v3349
        %v4037 = vpop.f32.mrb[0].mxu0
        %v4038 = vadd.f32 0.0, %v4037
        %v4039 = vpop.f32.mrb[0].mxu0
        %4040 = vdwg.mxu0
        %s4041 = scalar_lea.vmem %s4, 64
        %v4042 = vld [vmem:[%s4041] sm:$0xff]
        %v4043 = vld [vmem:[%s4041 + $0x8] sm:$0xff]
        %v4045 = vsel %vm3496, %v4042, 0
        %v4048 = vsel %vm3496, %v4043, 0
        %4050 = vmatprep.subr.mxu0 0.0
        %4051 = vmatpush1.msra.mxu0 %v4038
        %4052 = vmatprep.subr.mxu0 0.0
        %4053 = vmatpush1.msra.mxu0 0.0
        %4054 = vmatprep.subr.mxu0 0.0
        %4055 = vmatpush1.msra.mxu0 0.0
        %4056 = vmatprep.subr.mxu0 0.0
        %4057 = vmatpush1.msra.mxu0 0.0
        %4058 = vmatprep.subr.mxu0 0.0
        %4059 = vmatpush1.msra.mxu0 0.0
        %4060 = vmatprep.subr.mxu0 0.0
        %4061 = vmatpush1.msra.mxu0 0.0
        %4062 = vmatprep.subr.mxu0 0.0
        %4063 = vmatpush1.msra.mxu0 0.0
        %4064 = vmatprep.subr.mxu0 0.0
        %4065 = vmatpush1.msra.mxu0 0.0
        %4066 = vmatprep.subr.mxu0 0.0
        %4067 = vmatpush1.msra.mxu0 0.0
        %4068 = vmatprep.subr.mxu0 0.0
        %4069 = vmatpush1.msra.mxu0 0.0
        %4070 = vmatprep.subr.mxu0 0.0
        %4071 = vmatpush1.msra.mxu0 0.0
        %4072 = vmatprep.subr.mxu0 0.0
        %4073 = vmatpush1.msra.mxu0 0.0
        %4074 = vmatprep.subr.mxu0 0.0
        %4075 = vmatpush1.msra.mxu0 0.0
        %4076 = vmatprep.subr.mxu0 0.0
        %4077 = vmatpush1.msra.mxu0 0.0
        %4078 = vmatprep.subr.mxu0 0.0
        %4079 = vmatpush1.msra.mxu0 0.0
        %4080 = vmatprep.subr.mxu0 0.0
        %4081 = vmatpush1.msra.mxu0 0.0
        %4082 = vmatprep.subr.mxu0 0.0
        %4083 = vmatpush1.msra.mxu0 0.0
        %4084 = vmatprep.subr.mxu0 0.0
        %4085 = vmatpush1.msra.mxu0 0.0
        %4086 = vmatprep.subr.mxu0 0.0
        %4087 = vmatpush1.msra.mxu0 0.0
        %4088 = vmatprep.subr.mxu0 0.0
        %4089 = vmatpush1.msra.mxu0 0.0
        %4090 = vmatprep.subr.mxu0 0.0
        %4091 = vmatpush1.msra.mxu0 0.0
        %4092 = vmatprep.subr.mxu0 0.0
        %4093 = vmatpush1.msra.mxu0 0.0
        %4094 = vmatprep.subr.mxu0 0.0
        %4095 = vmatpush1.msra.mxu0 0.0
        %4096 = vmatprep.subr.mxu0 0.0
        %4097 = vmatpush1.msra.mxu0 0.0
        %4098 = vmatprep.subr.mxu0 0.0
        %4099 = vmatpush1.msra.mxu0 0.0
        %4100 = vmatprep.subr.mxu0 0.0
        %4101 = vmatpush1.msra.mxu0 0.0
        %4102 = vmatprep.subr.mxu0 0.0
        %4103 = vmatpush1.msra.mxu0 0.0
        %4104 = vmatprep.subr.mxu0 0.0
        %4105 = vmatpush1.msra.mxu0 0.0
        %4106 = vmatprep.subr.mxu0 0.0
        %4107 = vmatpush1.msra.mxu0 0.0
        %4108 = vmatprep.subr.mxu0 0.0
        %4109 = vmatpush1.msra.mxu0 0.0
        %4110 = vmatprep.subr.mxu0 0.0
        %4111 = vmatpush1.msra.mxu0 0.0
        %4112 = vmatprep.subr.mxu0 0.0
        %4113 = vmatpush1.msra.mxu0 0.0
        %4114 = vmatprep.mubr.f32.mxu0 0.0
        %4115 = vmatmul.mubr.f32.gmra.mrb[0].mxu0 %v4045
        %v4116 = vpop.f32.mrb[0].mxu0
        %v4117 = vadd.f32 0.0, %v4116
        %v4118 = vpop.f32.mrb[0].mxu0
        %4119 = vmatprep.mubr.f32.mxu0 0.0
        %4120 = vmatmul.mubr.f32.gmra.mrb[0].mxu0 %v4048
        %v4121 = vpop.f32.mrb[0].mxu0
        %v4122 = vadd.f32 0.0, %v4121
        %v4123 = vpop.f32.mrb[0].mxu0
        %4124 = vdwg.mxu0
        %v4125 = vadd.f32 %v3969, %v4117
        %v4126 = vadd.f32 %v3970, %v4122
        %4127 = vmatprep.subr.mxu0 0.0
        %4128 = vmatpush1.msra.mxu0 %v2588
        %4129 = vmatprep.subr.mxu0 0.0
        %4130 = vmatpush1.msra.mxu0 %v2589
        %4131 = vmatprep.subr.mxu0 0.0
        %4132 = vmatpush1.msra.mxu0 %v2590
        %4133 = vmatprep.subr.mxu0 0.0
        %4134 = vmatpush1.msra.mxu0 %v2591
        %4135 = vmatprep.subr.mxu0 0.0
        %4136 = vmatpush1.msra.mxu0 %v2592
        %4137 = vmatprep.subr.mxu0 0.0
        %4138 = vmatpush1.msra.mxu0 %v2593
        %4139 = vmatprep.subr.mxu0 0.0
        %4140 = vmatpush1.msra.mxu0 %v2594
        %4141 = vmatprep.subr.mxu0 0.0
        %4142 = vmatpush1.msra.mxu0 %v2595
        %4143 = vmatprep.subr.mxu0 0.0
        %4144 = vmatpush1.msra.mxu0 %v2596
        %4145 = vmatprep.subr.mxu0 0.0
        %4146 = vmatpush1.msra.mxu0 %v2597
        %4147 = vmatprep.subr.mxu0 0.0
        %4148 = vmatpush1.msra.mxu0 %v2598
        %4149 = vmatprep.subr.mxu0 0.0
        %4150 = vmatpush1.msra.mxu0 %v2599
        %4151 = vmatprep.subr.mxu0 0.0
        %4152 = vmatpush1.msra.mxu0 %v2602
        %4153 = vmatprep.subr.mxu0 0.0
        %4154 = vmatpush1.msra.mxu0 0.0
        %4155 = vmatprep.subr.mxu0 0.0
        %4156 = vmatpush1.msra.mxu0 0.0
        %4157 = vmatprep.subr.mxu0 0.0
        %4158 = vmatpush1.msra.mxu0 0.0
        %4159 = vmatprep.subr.mxu0 0.0
        %4160 = vmatpush1.msra.mxu0 0.0
        %4161 = vmatprep.subr.mxu0 0.0
        %4162 = vmatpush1.msra.mxu0 0.0
        %4163 = vmatprep.subr.mxu0 0.0
        %4164 = vmatpush1.msra.mxu0 0.0
        %4165 = vmatprep.subr.mxu0 0.0
        %4166 = vmatpush1.msra.mxu0 0.0
        %4167 = vmatprep.subr.mxu0 0.0
        %4168 = vmatpush1.msra.mxu0 0.0
        %4169 = vmatprep.subr.mxu0 0.0
        %4170 = vmatpush1.msra.mxu0 0.0
        %4171 = vmatprep.subr.mxu0 0.0
        %4172 = vmatpush1.msra.mxu0 0.0
        %4173 = vmatprep.subr.mxu0 0.0
        %4174 = vmatpush1.msra.mxu0 0.0
        %4175 = vmatprep.subr.mxu0 0.0
        %4176 = vmatpush1.msra.mxu0 0.0
        %4177 = vmatprep.subr.mxu0 0.0
        %4178 = vmatpush1.msra.mxu0 0.0
        %4179 = vmatprep.subr.mxu0 0.0
        %4180 = vmatpush1.msra.mxu0 0.0
        %4181 = vmatprep.subr.mxu0 0.0
        %4182 = vmatpush1.msra.mxu0 0.0
        %4183 = vmatprep.subr.mxu0 0.0
        %4184 = vmatpush1.msra.mxu0 0.0
        %4185 = vmatprep.subr.mxu0 0.0
        %4186 = vmatpush1.msra.mxu0 0.0
        %4187 = vmatprep.subr.mxu0 0.0
        %4188 = vmatpush1.msra.mxu0 0.0
        %4189 = vmatprep.subr.mxu0 0.0
        %4190 = vmatpush1.msra.mxu0 0.0
        %4191 = vmatprep.mubr.f32.mxu0 0.0
        %4192 = vmatmul.mubr.f32.gmra.mrb[0].mxu0 %v3349
        %v4193 = vpop.f32.mrb[0].mxu0
        %v4194 = vadd.f32 0.0, %v4193
        %v4195 = vpop.f32.mrb[0].mxu0
        %4196 = vdwg.mxu0
        %s4197 = scalar_lea.vmem %s4, 80
        %v4198 = vld [vmem:[%s4197] sm:$0xff]
        %v4199 = vld [vmem:[%s4197 + $0x8] sm:$0xff]
        %v4201 = vsel %vm3496, %v4198, 0
        %v4204 = vsel %vm3496, %v4199, 0
        %4206 = vmatprep.subr.mxu0 0.0
        %4207 = vmatpush1.msra.mxu0 %v4194
        %4208 = vmatprep.subr.mxu0 0.0
        %4209 = vmatpush1.msra.mxu0 0.0
        %4210 = vmatprep.subr.mxu0 0.0
        %4211 = vmatpush1.msra.mxu0 0.0
        %4212 = vmatprep.subr.mxu0 0.0
        %4213 = vmatpush1.msra.mxu0 0.0
        %4214 = vmatprep.subr.mxu0 0.0
        %4215 = vmatpush1.msra.mxu0 0.0
        %4216 = vmatprep.subr.mxu0 0.0
        %4217 = vmatpush1.msra.mxu0 0.0
        %4218 = vmatprep.subr.mxu0 0.0
        %4219 = vmatpush1.msra.mxu0 0.0
        %4220 = vmatprep.subr.mxu0 0.0
        %4221 = vmatpush1.msra.mxu0 0.0
        %4222 = vmatprep.subr.mxu0 0.0
        %4223 = vmatpush1.msra.mxu0 0.0
        %4224 = vmatprep.subr.mxu0 0.0
        %4225 = vmatpush1.msra.mxu0 0.0
        %4226 = vmatprep.subr.mxu0 0.0
        %4227 = vmatpush1.msra.mxu0 0.0
        %4228 = vmatprep.subr.mxu0 0.0
        %4229 = vmatpush1.msra.mxu0 0.0
        %4230 = vmatprep.subr.mxu0 0.0
        %4231 = vmatpush1.msra.mxu0 0.0
        %4232 = vmatprep.subr.mxu0 0.0
        %4233 = vmatpush1.msra.mxu0 0.0
        %4234 = vmatprep.subr.mxu0 0.0
        %4235 = vmatpush1.msra.mxu0 0.0
        %4236 = vmatprep.subr.mxu0 0.0
        %4237 = vmatpush1.msra.mxu0 0.0
        %4238 = vmatprep.subr.mxu0 0.0
        %4239 = vmatpush1.msra.mxu0 0.0
        %4240 = vmatprep.subr.mxu0 0.0
        %4241 = vmatpush1.msra.mxu0 0.0
        %4242 = vmatprep.subr.mxu0 0.0
        %4243 = vmatpush1.msra.mxu0 0.0
        %4244 = vmatprep.subr.mxu0 0.0
        %4245 = vmatpush1.msra.mxu0 0.0
        %4246 = vmatprep.subr.mxu0 0.0
        %4247 = vmatpush1.msra.mxu0 0.0
        %4248 = vmatprep.subr.mxu0 0.0
        %4249 = vmatpush1.msra.mxu0 0.0
        %4250 = vmatprep.subr.mxu0 0.0
        %4251 = vmatpush1.msra.mxu0 0.0
        %4252 = vmatprep.subr.mxu0 0.0
        %4253 = vmatpush1.msra.mxu0 0.0
        %4254 = vmatprep.subr.mxu0 0.0
        %4255 = vmatpush1.msra.mxu0 0.0
        %4256 = vmatprep.subr.mxu0 0.0
        %4257 = vmatpush1.msra.mxu0 0.0
        %4258 = vmatprep.subr.mxu0 0.0
        %4259 = vmatpush1.msra.mxu0 0.0
        %4260 = vmatprep.subr.mxu0 0.0
        %4261 = vmatpush1.msra.mxu0 0.0
        %4262 = vmatprep.subr.mxu0 0.0
        %4263 = vmatpush1.msra.mxu0 0.0
        %4264 = vmatprep.subr.mxu0 0.0
        %4265 = vmatpush1.msra.mxu0 0.0
        %4266 = vmatprep.subr.mxu0 0.0
        %4267 = vmatpush1.msra.mxu0 0.0
        %4268 = vmatprep.subr.mxu0 0.0
        %4269 = vmatpush1.msra.mxu0 0.0
        %4270 = vmatprep.mubr.f32.mxu0 0.0
        %4271 = vmatmul.mubr.f32.gmra.mrb[0].mxu0 %v4201
        %v4272 = vpop.f32.mrb[0].mxu0
        %v4273 = vadd.f32 0.0, %v4272
        %v4274 = vpop.f32.mrb[0].mxu0
        %4275 = vmatprep.mubr.f32.mxu0 0.0
        %4276 = vmatmul.mubr.f32.gmra.mrb[0].mxu0 %v4204
        %v4277 = vpop.f32.mrb[0].mxu0
        %v4278 = vadd.f32 0.0, %v4277
        %v4279 = vpop.f32.mrb[0].mxu0
        %4280 = vdwg.mxu0
        %v4281 = vadd.f32 %v4125, %v4273
        %v4282 = vadd.f32 %v4126, %v4278
        %4283 = vmatprep.subr.mxu0 0.0
        %4284 = vmatpush1.msra.mxu0 %v2793
        %4285 = vmatprep.subr.mxu0 0.0
        %4286 = vmatpush1.msra.mxu0 %v2794
        %4287 = vmatprep.subr.mxu0 0.0
        %4288 = vmatpush1.msra.mxu0 %v2795
        %4289 = vmatprep.subr.mxu0 0.0
        %4290 = vmatpush1.msra.mxu0 %v2796
        %4291 = vmatprep.subr.mxu0 0.0
        %4292 = vmatpush1.msra.mxu0 %v2797
        %4293 = vmatprep.subr.mxu0 0.0
        %4294 = vmatpush1.msra.mxu0 %v2798
        %4295 = vmatprep.subr.mxu0 0.0
        %4296 = vmatpush1.msra.mxu0 %v2799
        %4297 = vmatprep.subr.mxu0 0.0
        %4298 = vmatpush1.msra.mxu0 %v2800
        %4299 = vmatprep.subr.mxu0 0.0
        %4300 = vmatpush1.msra.mxu0 %v2801
        %4301 = vmatprep.subr.mxu0 0.0
        %4302 = vmatpush1.msra.mxu0 %v2802
        %4303 = vmatprep.subr.mxu0 0.0
        %4304 = vmatpush1.msra.mxu0 %v2803
        %4305 = vmatprep.subr.mxu0 0.0
        %4306 = vmatpush1.msra.mxu0 %v2804
        %4307 = vmatprep.subr.mxu0 0.0
        %4308 = vmatpush1.msra.mxu0 %v2807
        %4309 = vmatprep.subr.mxu0 0.0
        %4310 = vmatpush1.msra.mxu0 0.0
        %4311 = vmatprep.subr.mxu0 0.0
        %4312 = vmatpush1.msra.mxu0 0.0
        %4313 = vmatprep.subr.mxu0 0.0
        %4314 = vmatpush1.msra.mxu0 0.0
        %4315 = vmatprep.subr.mxu0 0.0
        %4316 = vmatpush1.msra.mxu0 0.0
        %4317 = vmatprep.subr.mxu0 0.0
        %4318 = vmatpush1.msra.mxu0 0.0
        %4319 = vmatprep.subr.mxu0 0.0
        %4320 = vmatpush1.msra.mxu0 0.0
        %4321 = vmatprep.subr.mxu0 0.0
        %4322 = vmatpush1.msra.mxu0 0.0
        %4323 = vmatprep.subr.mxu0 0.0
        %4324 = vmatpush1.msra.mxu0 0.0
        %4325 = vmatprep.subr.mxu0 0.0
        %4326 = vmatpush1.msra.mxu0 0.0
        %4327 = vmatprep.subr.mxu0 0.0
        %4328 = vmatpush1.msra.mxu0 0.0
        %4329 = vmatprep.subr.mxu0 0.0
        %4330 = vmatpush1.msra.mxu0 0.0
        %4331 = vmatprep.subr.mxu0 0.0
        %4332 = vmatpush1.msra.mxu0 0.0
        %4333 = vmatprep.subr.mxu0 0.0
        %4334 = vmatpush1.msra.mxu0 0.0
        %4335 = vmatprep.subr.mxu0 0.0
        %4336 = vmatpush1.msra.mxu0 0.0
        %4337 = vmatprep.subr.mxu0 0.0
        %4338 = vmatpush1.msra.mxu0 0.0
        %4339 = vmatprep.subr.mxu0 0.0
        %4340 = vmatpush1.msra.mxu0 0.0
        %4341 = vmatprep.subr.mxu0 0.0
        %4342 = vmatpush1.msra.mxu0 0.0
        %4343 = vmatprep.subr.mxu0 0.0
        %4344 = vmatpush1.msra.mxu0 0.0
        %4345 = vmatprep.subr.mxu0 0.0
        %4346 = vmatpush1.msra.mxu0 0.0
        %4347 = vmatprep.mubr.f32.mxu0 0.0
        %4348 = vmatmul.mubr.f32.gmra.mrb[0].mxu0 %v3349
        %v4349 = vpop.f32.mrb[0].mxu0
        %v4350 = vadd.f32 0.0, %v4349
        %v4351 = vpop.f32.mrb[0].mxu0
        %4352 = vdwg.mxu0
        %s4353 = scalar_lea.vmem %s4, 96
        %v4354 = vld [vmem:[%s4353] sm:$0xff]
        %v4355 = vld [vmem:[%s4353 + $0x8] sm:$0xff]
        %v4357 = vsel %vm3496, %v4354, 0
        %v4360 = vsel %vm3496, %v4355, 0
        %4362 = vmatprep.subr.mxu0 0.0
        %4363 = vmatpush1.msra.mxu0 %v4350
        %4364 = vmatprep.subr.mxu0 0.0
        %4365 = vmatpush1.msra.mxu0 0.0
        %4366 = vmatprep.subr.mxu0 0.0
        %4367 = vmatpush1.msra.mxu0 0.0
        %4368 = vmatprep.subr.mxu0 0.0
        %4369 = vmatpush1.msra.mxu0 0.0
        %4370 = vmatprep.subr.mxu0 0.0
        %4371 = vmatpush1.msra.mxu0 0.0
        %4372 = vmatprep.subr.mxu0 0.0
        %4373 = vmatpush1.msra.mxu0 0.0
        %4374 = vmatprep.subr.mxu0 0.0
        %4375 = vmatpush1.msra.mxu0 0.0
        %4376 = vmatprep.subr.mxu0 0.0
        %4377 = vmatpush1.msra.mxu0 0.0
        %4378 = vmatprep.subr.mxu0 0.0
        %4379 = vmatpush1.msra.mxu0 0.0
        %4380 = vmatprep.subr.mxu0 0.0
        %4381 = vmatpush1.msra.mxu0 0.0
        %4382 = vmatprep.subr.mxu0 0.0
        %4383 = vmatpush1.msra.mxu0 0.0
        %4384 = vmatprep.subr.mxu0 0.0
        %4385 = vmatpush1.msra.mxu0 0.0
        %4386 = vmatprep.subr.mxu0 0.0
        %4387 = vmatpush1.msra.mxu0 0.0
        %4388 = vmatprep.subr.mxu0 0.0
        %4389 = vmatpush1.msra.mxu0 0.0
        %4390 = vmatprep.subr.mxu0 0.0
        %4391 = vmatpush1.msra.mxu0 0.0
        %4392 = vmatprep.subr.mxu0 0.0
        %4393 = vmatpush1.msra.mxu0 0.0
        %4394 = vmatprep.subr.mxu0 0.0
        %4395 = vmatpush1.msra.mxu0 0.0
        %4396 = vmatprep.subr.mxu0 0.0
        %4397 = vmatpush1.msra.mxu0 0.0
        %4398 = vmatprep.subr.mxu0 0.0
        %4399 = vmatpush1.msra.mxu0 0.0
        %4400 = vmatprep.subr.mxu0 0.0
        %4401 = vmatpush1.msra.mxu0 0.0
        %4402 = vmatprep.subr.mxu0 0.0
        %4403 = vmatpush1.msra.mxu0 0.0
        %4404 = vmatprep.subr.mxu0 0.0
        %4405 = vmatpush1.msra.mxu0 0.0
        %4406 = vmatprep.subr.mxu0 0.0
        %4407 = vmatpush1.msra.mxu0 0.0
        %4408 = vmatprep.subr.mxu0 0.0
        %4409 = vmatpush1.msra.mxu0 0.0
        %4410 = vmatprep.subr.mxu0 0.0
        %4411 = vmatpush1.msra.mxu0 0.0
        %4412 = vmatprep.subr.mxu0 0.0
        %4413 = vmatpush1.msra.mxu0 0.0
        %4414 = vmatprep.subr.mxu0 0.0
        %4415 = vmatpush1.msra.mxu0 0.0
        %4416 = vmatprep.subr.mxu0 0.0
        %4417 = vmatpush1.msra.mxu0 0.0
        %4418 = vmatprep.subr.mxu0 0.0
        %4419 = vmatpush1.msra.mxu0 0.0
        %4420 = vmatprep.subr.mxu0 0.0
        %4421 = vmatpush1.msra.mxu0 0.0
        %4422 = vmatprep.subr.mxu0 0.0
        %4423 = vmatpush1.msra.mxu0 0.0
        %4424 = vmatprep.subr.mxu0 0.0
        %4425 = vmatpush1.msra.mxu0 0.0
        %4426 = vmatprep.mubr.f32.mxu0 0.0
        %4427 = vmatmul.mubr.f32.gmra.mrb[0].mxu0 %v4357
        %v4428 = vpop.f32.mrb[0].mxu0
        %v4429 = vadd.f32 0.0, %v4428
        %v4430 = vpop.f32.mrb[0].mxu0
        %4431 = vmatprep.mubr.f32.mxu0 0.0
        %4432 = vmatmul.mubr.f32.gmra.mrb[0].mxu0 %v4360
        %v4433 = vpop.f32.mrb[0].mxu0
        %v4434 = vadd.f32 0.0, %v4433
        %v4435 = vpop.f32.mrb[0].mxu0
        %4436 = vdwg.mxu0
        %v4437 = vadd.f32 %v4281, %v4429
        %v4438 = vadd.f32 %v4282, %v4434
        %4439 = vmatprep.subr.mxu0 0.0
        %4440 = vmatpush1.msra.mxu0 %v2984
        %4441 = vmatprep.subr.mxu0 0.0
        %4442 = vmatpush1.msra.mxu0 %v2985
        %4443 = vmatprep.subr.mxu0 0.0
        %4444 = vmatpush1.msra.mxu0 %v2986
        %4445 = vmatprep.subr.mxu0 0.0
        %4446 = vmatpush1.msra.mxu0 %v2987
        %4447 = vmatprep.subr.mxu0 0.0
        %4448 = vmatpush1.msra.mxu0 %v2988
        %4449 = vmatprep.subr.mxu0 0.0
        %4450 = vmatpush1.msra.mxu0 %v2989
        %4451 = vmatprep.subr.mxu0 0.0
        %4452 = vmatpush1.msra.mxu0 %v2990
        %4453 = vmatprep.subr.mxu0 0.0
        %4454 = vmatpush1.msra.mxu0 %v2991
        %4455 = vmatprep.subr.mxu0 0.0
        %4456 = vmatpush1.msra.mxu0 %v2992
        %4457 = vmatprep.subr.mxu0 0.0
        %4458 = vmatpush1.msra.mxu0 %v2993
        %4459 = vmatprep.subr.mxu0 0.0
        %4460 = vmatpush1.msra.mxu0 %v2994
        %4461 = vmatprep.subr.mxu0 0.0
        %4462 = vmatpush1.msra.mxu0 %v2995
        %4463 = vmatprep.subr.mxu0 0.0
        %4464 = vmatpush1.msra.mxu0 %v2998
        %4465 = vmatprep.subr.mxu0 0.0
        %4466 = vmatpush1.msra.mxu0 0.0
        %4467 = vmatprep.subr.mxu0 0.0
        %4468 = vmatpush1.msra.mxu0 0.0
        %4469 = vmatprep.subr.mxu0 0.0
        %4470 = vmatpush1.msra.mxu0 0.0
        %4471 = vmatprep.subr.mxu0 0.0
        %4472 = vmatpush1.msra.mxu0 0.0
        %4473 = vmatprep.subr.mxu0 0.0
        %4474 = vmatpush1.msra.mxu0 0.0
        %4475 = vmatprep.subr.mxu0 0.0
        %4476 = vmatpush1.msra.mxu0 0.0
        %4477 = vmatprep.subr.mxu0 0.0
        %4478 = vmatpush1.msra.mxu0 0.0
        %4479 = vmatprep.subr.mxu0 0.0
        %4480 = vmatpush1.msra.mxu0 0.0
        %4481 = vmatprep.subr.mxu0 0.0
        %4482 = vmatpush1.msra.mxu0 0.0
        %4483 = vmatprep.subr.mxu0 0.0
        %4484 = vmatpush1.msra.mxu0 0.0
        %4485 = vmatprep.subr.mxu0 0.0
        %4486 = vmatpush1.msra.mxu0 0.0
        %4487 = vmatprep.subr.mxu0 0.0
        %4488 = vmatpush1.msra.mxu0 0.0
        %4489 = vmatprep.subr.mxu0 0.0
        %4490 = vmatpush1.msra.mxu0 0.0
        %4491 = vmatprep.subr.mxu0 0.0
        %4492 = vmatpush1.msra.mxu0 0.0
        %4493 = vmatprep.subr.mxu0 0.0
        %4494 = vmatpush1.msra.mxu0 0.0
        %4495 = vmatprep.subr.mxu0 0.0
        %4496 = vmatpush1.msra.mxu0 0.0
        %4497 = vmatprep.subr.mxu0 0.0
        %4498 = vmatpush1.msra.mxu0 0.0
        %4499 = vmatprep.subr.mxu0 0.0
        %4500 = vmatpush1.msra.mxu0 0.0
        %4501 = vmatprep.subr.mxu0 0.0
        %4502 = vmatpush1.msra.mxu0 0.0
        %4503 = vmatprep.mubr.f32.mxu0 0.0
        %4504 = vmatmul.mubr.f32.gmra.mrb[0].mxu0 %v3349
        %v4505 = vpop.f32.mrb[0].mxu0
        %v4506 = vadd.f32 0.0, %v4505
        %v4507 = vpop.f32.mrb[0].mxu0
        %4508 = vdwg.mxu0
        %s4509 = scalar_lea.vmem %s4, 112
        %v4510 = vld [vmem:[%s4509] sm:$0xff]
        %v4511 = vld [vmem:[%s4509 + $0x8] sm:$0xff]
        %v4513 = vsel %vm3496, %v4510, 0
        %v4516 = vsel %vm3496, %v4511, 0
        %4518 = vmatprep.subr.mxu0 0.0
        %4519 = vmatpush1.msra.mxu0 %v4506
        %4520 = vmatprep.subr.mxu0 0.0
        %4521 = vmatpush1.msra.mxu0 0.0
        %4522 = vmatprep.subr.mxu0 0.0
        %4523 = vmatpush1.msra.mxu0 0.0
        %4524 = vmatprep.subr.mxu0 0.0
        %4525 = vmatpush1.msra.mxu0 0.0
        %4526 = vmatprep.subr.mxu0 0.0
        %4527 = vmatpush1.msra.mxu0 0.0
        %4528 = vmatprep.subr.mxu0 0.0
        %4529 = vmatpush1.msra.mxu0 0.0
        %4530 = vmatprep.subr.mxu0 0.0
        %4531 = vmatpush1.msra.mxu0 0.0
        %4532 = vmatprep.subr.mxu0 0.0
        %4533 = vmatpush1.msra.mxu0 0.0
        %4534 = vmatprep.subr.mxu0 0.0
        %4535 = vmatpush1.msra.mxu0 0.0
        %4536 = vmatprep.subr.mxu0 0.0
        %4537 = vmatpush1.msra.mxu0 0.0
        %4538 = vmatprep.subr.mxu0 0.0
        %4539 = vmatpush1.msra.mxu0 0.0
        %4540 = vmatprep.subr.mxu0 0.0
        %4541 = vmatpush1.msra.mxu0 0.0
        %4542 = vmatprep.subr.mxu0 0.0
        %4543 = vmatpush1.msra.mxu0 0.0
        %4544 = vmatprep.subr.mxu0 0.0
        %4545 = vmatpush1.msra.mxu0 0.0
        %4546 = vmatprep.subr.mxu0 0.0
        %4547 = vmatpush1.msra.mxu0 0.0
        %4548 = vmatprep.subr.mxu0 0.0
        %4549 = vmatpush1.msra.mxu0 0.0
        %4550 = vmatprep.subr.mxu0 0.0
        %4551 = vmatpush1.msra.mxu0 0.0
        %4552 = vmatprep.subr.mxu0 0.0
        %4553 = vmatpush1.msra.mxu0 0.0
        %4554 = vmatprep.subr.mxu0 0.0
        %4555 = vmatpush1.msra.mxu0 0.0
        %4556 = vmatprep.subr.mxu0 0.0
        %4557 = vmatpush1.msra.mxu0 0.0
        %4558 = vmatprep.subr.mxu0 0.0
        %4559 = vmatpush1.msra.mxu0 0.0
        %4560 = vmatprep.subr.mxu0 0.0
        %4561 = vmatpush1.msra.mxu0 0.0
        %4562 = vmatprep.subr.mxu0 0.0
        %4563 = vmatpush1.msra.mxu0 0.0
        %4564 = vmatprep.subr.mxu0 0.0
        %4565 = vmatpush1.msra.mxu0 0.0
        %4566 = vmatprep.subr.mxu0 0.0
        %4567 = vmatpush1.msra.mxu0 0.0
        %4568 = vmatprep.subr.mxu0 0.0
        %4569 = vmatpush1.msra.mxu0 0.0
        %4570 = vmatprep.subr.mxu0 0.0
        %4571 = vmatpush1.msra.mxu0 0.0
        %4572 = vmatprep.subr.mxu0 0.0
        %4573 = vmatpush1.msra.mxu0 0.0
        %4574 = vmatprep.subr.mxu0 0.0
        %4575 = vmatpush1.msra.mxu0 0.0
        %4576 = vmatprep.subr.mxu0 0.0
        %4577 = vmatpush1.msra.mxu0 0.0
        %4578 = vmatprep.subr.mxu0 0.0
        %4579 = vmatpush1.msra.mxu0 0.0
        %4580 = vmatprep.subr.mxu0 0.0
        %4581 = vmatpush1.msra.mxu0 0.0
        %4582 = vmatprep.mubr.f32.mxu0 0.0
        %4583 = vmatmul.mubr.f32.gmra.mrb[0].mxu0 %v4513
        %v4584 = vpop.f32.mrb[0].mxu0
        %v4585 = vadd.f32 0.0, %v4584
        %v4586 = vpop.f32.mrb[0].mxu0
        %4587 = vmatprep.mubr.f32.mxu0 0.0
        %4588 = vmatmul.mubr.f32.gmra.mrb[0].mxu0 %v4516
        %v4589 = vpop.f32.mrb[0].mxu0
        %v4590 = vadd.f32 0.0, %v4589
        %v4591 = vpop.f32.mrb[0].mxu0
        %4592 = vdwg.mxu0
        %v4593 = vadd.f32 %v4437, %v4585
        %v4594 = vadd.f32 %v4438, %v4590
        %4595 = vmatprep.subr.mxu0 0.0
        %4596 = vmatpush1.msra.mxu0 %v3175
        %4597 = vmatprep.subr.mxu0 0.0
        %4598 = vmatpush1.msra.mxu0 %v3176
        %4599 = vmatprep.subr.mxu0 0.0
        %4600 = vmatpush1.msra.mxu0 %v3177
        %4601 = vmatprep.subr.mxu0 0.0
        %4602 = vmatpush1.msra.mxu0 %v3178
        %4603 = vmatprep.subr.mxu0 0.0
        %4604 = vmatpush1.msra.mxu0 %v3179
        %4605 = vmatprep.subr.mxu0 0.0
        %4606 = vmatpush1.msra.mxu0 %v3180
        %4607 = vmatprep.subr.mxu0 0.0
        %4608 = vmatpush1.msra.mxu0 %v3181
        %4609 = vmatprep.subr.mxu0 0.0
        %4610 = vmatpush1.msra.mxu0 %v3182
        %4611 = vmatprep.subr.mxu0 0.0
        %4612 = vmatpush1.msra.mxu0 %v3183
        %4613 = vmatprep.subr.mxu0 0.0
        %4614 = vmatpush1.msra.mxu0 %v3184
        %4615 = vmatprep.subr.mxu0 0.0
        %4616 = vmatpush1.msra.mxu0 %v3185
        %4617 = vmatprep.subr.mxu0 0.0
        %4618 = vmatpush1.msra.mxu0 %v3186
        %4619 = vmatprep.subr.mxu0 0.0
        %4620 = vmatpush1.msra.mxu0 %v3189
        %4621 = vmatprep.subr.mxu0 0.0
        %4622 = vmatpush1.msra.mxu0 0.0
        %4623 = vmatprep.subr.mxu0 0.0
        %4624 = vmatpush1.msra.mxu0 0.0
        %4625 = vmatprep.subr.mxu0 0.0
        %4626 = vmatpush1.msra.mxu0 0.0
        %4627 = vmatprep.subr.mxu0 0.0
        %4628 = vmatpush1.msra.mxu0 0.0
        %4629 = vmatprep.subr.mxu0 0.0
        %4630 = vmatpush1.msra.mxu0 0.0
        %4631 = vmatprep.subr.mxu0 0.0
        %4632 = vmatpush1.msra.mxu0 0.0
        %4633 = vmatprep.subr.mxu0 0.0
        %4634 = vmatpush1.msra.mxu0 0.0
        %4635 = vmatprep.subr.mxu0 0.0
        %4636 = vmatpush1.msra.mxu0 0.0
        %4637 = vmatprep.subr.mxu0 0.0
        %4638 = vmatpush1.msra.mxu0 0.0
        %4639 = vmatprep.subr.mxu0 0.0
        %4640 = vmatpush1.msra.mxu0 0.0
        %4641 = vmatprep.subr.mxu0 0.0
        %4642 = vmatpush1.msra.mxu0 0.0
        %4643 = vmatprep.subr.mxu0 0.0
        %4644 = vmatpush1.msra.mxu0 0.0
        %4645 = vmatprep.subr.mxu0 0.0
        %4646 = vmatpush1.msra.mxu0 0.0
        %4647 = vmatprep.subr.mxu0 0.0
        %4648 = vmatpush1.msra.mxu0 0.0
        %4649 = vmatprep.subr.mxu0 0.0
        %4650 = vmatpush1.msra.mxu0 0.0
        %4651 = vmatprep.subr.mxu0 0.0
        %4652 = vmatpush1.msra.mxu0 0.0
        %4653 = vmatprep.subr.mxu0 0.0
        %4654 = vmatpush1.msra.mxu0 0.0
        %4655 = vmatprep.subr.mxu0 0.0
        %4656 = vmatpush1.msra.mxu0 0.0
        %4657 = vmatprep.subr.mxu0 0.0
        %4658 = vmatpush1.msra.mxu0 0.0
        %4659 = vmatprep.mubr.f32.mxu0 0.0
        %4660 = vmatmul.mubr.f32.gmra.mrb[0].mxu0 %v3349
        %v4661 = vpop.f32.mrb[0].mxu0
        %v4662 = vadd.f32 0.0, %v4661
        %v4663 = vpop.f32.mrb[0].mxu0
        %4664 = vdwg.mxu0
        %s4665 = scalar_lea.vmem %s4, 128
        %v4666 = vld [vmem:[%s4665] sm:$0xff]
        %v4667 = vld [vmem:[%s4665 + $0x8] sm:$0xff]
        %v4669 = vsel %vm3496, %v4666, 0
        %v4672 = vsel %vm3496, %v4667, 0
        %4674 = vmatprep.subr.mxu0 0.0
        %4675 = vmatpush1.msra.mxu0 %v4662
        %4676 = vmatprep.subr.mxu0 0.0
        %4677 = vmatpush1.msra.mxu0 0.0
        %4678 = vmatprep.subr.mxu0 0.0
        %4679 = vmatpush1.msra.mxu0 0.0
        %4680 = vmatprep.subr.mxu0 0.0
        %4681 = vmatpush1.msra.mxu0 0.0
        %4682 = vmatprep.subr.mxu0 0.0
        %4683 = vmatpush1.msra.mxu0 0.0
        %4684 = vmatprep.subr.mxu0 0.0
        %4685 = vmatpush1.msra.mxu0 0.0
        %4686 = vmatprep.subr.mxu0 0.0
        %4687 = vmatpush1.msra.mxu0 0.0
        %4688 = vmatprep.subr.mxu0 0.0
        %4689 = vmatpush1.msra.mxu0 0.0
        %4690 = vmatprep.subr.mxu0 0.0
        %4691 = vmatpush1.msra.mxu0 0.0
        %4692 = vmatprep.subr.mxu0 0.0
        %4693 = vmatpush1.msra.mxu0 0.0
        %4694 = vmatprep.subr.mxu0 0.0
        %4695 = vmatpush1.msra.mxu0 0.0
        %4696 = vmatprep.subr.mxu0 0.0
        %4697 = vmatpush1.msra.mxu0 0.0
        %4698 = vmatprep.subr.mxu0 0.0
        %4699 = vmatpush1.msra.mxu0 0.0
        %4700 = vmatprep.subr.mxu0 0.0
        %4701 = vmatpush1.msra.mxu0 0.0
        %4702 = vmatprep.subr.mxu0 0.0
        %4703 = vmatpush1.msra.mxu0 0.0
        %4704 = vmatprep.subr.mxu0 0.0
        %4705 = vmatpush1.msra.mxu0 0.0
        %4706 = vmatprep.subr.mxu0 0.0
        %4707 = vmatpush1.msra.mxu0 0.0
        %4708 = vmatprep.subr.mxu0 0.0
        %4709 = vmatpush1.msra.mxu0 0.0
        %4710 = vmatprep.subr.mxu0 0.0
        %4711 = vmatpush1.msra.mxu0 0.0
        %4712 = vmatprep.subr.mxu0 0.0
        %4713 = vmatpush1.msra.mxu0 0.0
        %4714 = vmatprep.subr.mxu0 0.0
        %4715 = vmatpush1.msra.mxu0 0.0
        %4716 = vmatprep.subr.mxu0 0.0
        %4717 = vmatpush1.msra.mxu0 0.0
        %4718 = vmatprep.subr.mxu0 0.0
        %4719 = vmatpush1.msra.mxu0 0.0
        %4720 = vmatprep.subr.mxu0 0.0
        %4721 = vmatpush1.msra.mxu0 0.0
        %4722 = vmatprep.subr.mxu0 0.0
        %4723 = vmatpush1.msra.mxu0 0.0
        %4724 = vmatprep.subr.mxu0 0.0
        %4725 = vmatpush1.msra.mxu0 0.0
        %4726 = vmatprep.subr.mxu0 0.0
        %4727 = vmatpush1.msra.mxu0 0.0
        %4728 = vmatprep.subr.mxu0 0.0
        %4729 = vmatpush1.msra.mxu0 0.0
        %4730 = vmatprep.subr.mxu0 0.0
        %4731 = vmatpush1.msra.mxu0 0.0
        %4732 = vmatprep.subr.mxu0 0.0
        %4733 = vmatpush1.msra.mxu0 0.0
        %4734 = vmatprep.subr.mxu0 0.0
        %4735 = vmatpush1.msra.mxu0 0.0
        %4736 = vmatprep.subr.mxu0 0.0
        %4737 = vmatpush1.msra.mxu0 0.0
        %4738 = vmatprep.mubr.f32.mxu0 0.0
        %4739 = vmatmul.mubr.f32.gmra.mrb[0].mxu0 %v4669
        %v4740 = vpop.f32.mrb[0].mxu0
        %v4741 = vadd.f32 0.0, %v4740
        %v4742 = vpop.f32.mrb[0].mxu0
        %4743 = vmatprep.mubr.f32.mxu0 0.0
        %4744 = vmatmul.mubr.f32.gmra.mrb[0].mxu0 %v4672
        %v4745 = vpop.f32.mrb[0].mxu0
        %v4746 = vadd.f32 0.0, %v4745
        %v4747 = vpop.f32.mrb[0].mxu0
        %4748 = vdwg.mxu0
        %v4749 = vadd.f32 %v4593, %v4741
        %v4750 = vadd.f32 %v4594, %v4746
        %v4751 = vld [vmem:[%s5] sm:$0xff]
        %v4752 = vld [vmem:[%s5 + $0x8] sm:$0xff]
        %4754 = vset.pattern.permute.xlu0 0
        %4755 = vperm.xlu0 %4754, %v4751
        %v4756 = vpop.permute.xlu0 %4755
        %4759 = vset.pattern.permute.xlu0 0
        %4760 = vperm.xlu0 %4759, %v4752
        %v4761 = vpop.permute.xlu0 %4760
        %v4763 = vadd.f32 %v4749, %v4756
        %v4764 = vadd.f32 %v4750, %v4761
        %v4765 = vmax.f32 %v4763, 0.0
        %v4766 = vmax.f32 %v4764, 0.0
        %vm4767 = vcmp.ge.s32.totalorder %v797, 4
        %v4768 = vsel %vm4767, 1, 0
        %vm4769 = vcmp.ge.s32.totalorder %v797, 8
        %v4770 = vsel %vm4769, 1, 0
        %v4771 = vadd.s32 %v4768, %v4770
        %vm4772 = vcmp.ge.s32.totalorder %v797, 12
        %v4773 = vsel %vm4772, 1, 0
        %v4774 = vadd.s32 %v4771, %v4773
        %vm4775 = vcmp.ge.s32.totalorder %v797, 16
        %v4776 = vsel %vm4775, 1, 0
        %v4777 = vadd.s32 %v4774, %v4776
        %v4778 = vadd.s32 %v4777, %v1066
        %vm4779 = vcmp.ge.s32.totalorder %v797, 24
        %v4780 = vsel %vm4779, 1, 0
        %v4781 = vadd.s32 %v4778, %v4780
        %vm4782 = vcmp.ge.s32.totalorder %v797, 28
        %v4783 = vsel %vm4782, 1, 0
        %v4784 = vadd.s32 %v4781, %v4783
        %vm4785 = vcmp.ge.s32.totalorder %v797, 32
        %v4786 = vsel %vm4785, 1, 0
        %v4787 = vadd.s32 %v4784, %v4786
        %vm4788 = vcmp.ge.s32.totalorder %v797, 36
        %v4789 = vsel %vm4788, 1, 0
        %v4790 = vadd.s32 %v4787, %v4789
        %v4791 = vadd.s32 %v4790, %v1072
        %vm4792 = vcmp.ge.s32.totalorder %v797, 44
        %v4793 = vsel %vm4792, 1, 0
        %v4794 = vadd.s32 %v4791, %v4793
        %vm4795 = vcmp.ge.s32.totalorder %v797, 48
        %v4796 = vsel %vm4795, 1, 0
        %v4797 = vadd.s32 %v4794, %v4796
        %vm4798 = vcmp.ge.s32.totalorder %v797, 52
        %v4799 = vsel %vm4798, 1, 0
        %v4800 = vadd.s32 %v4797, %v4799
        %vm4801 = vcmp.ge.s32.totalorder %v797, 56
        %v4802 = vsel %vm4801, 1, 0
        %v4803 = vadd.s32 %v4800, %v4802
        %v4804 = vadd.s32 %v4803, %v1078
        %v4805 = vmul.u32 %v4804, 4
        %v4806 = vsub.s32 %v797, %v4805
        %vm4807 = vcmp.ge.s32.totalorder %v1416, 5
        %vm4808 = vcmp.ge.s32.totalorder %v1417, 5
        %vm4809 = vcmp.ge.s32.totalorder %v1418, 5
        %vm4810 = vcmp.ge.s32.totalorder %v1419, 5
        %vm4811 = vcmp.ge.s32.totalorder %v1420, 5
        %vm4812 = vcmp.ge.s32.totalorder %v1421, 5
        %vm4813 = vcmp.ge.s32.totalorder %v1422, 5
        %vm4814 = vcmp.ge.s32.totalorder %v1423, 5
        %vm4815 = vcmp.ge.s32.totalorder %v1424, 5
        %vm4816 = vcmp.ge.s32.totalorder %v1425, 5
        %vm4817 = vcmp.ge.s32.totalorder %v1426, 5
        %vm4818 = vcmp.ge.s32.totalorder %v1427, 5
        %vm4819 = vcmp.ge.s32.totalorder %v1428, 5
        %v4820 = vsel %vm4807, 1, 0
        %v4821 = vsel %vm4808, 1, 0
        %v4822 = vsel %vm4809, 1, 0
        %v4823 = vsel %vm4810, 1, 0
        %v4824 = vsel %vm4811, 1, 0
        %v4825 = vsel %vm4812, 1, 0
        %v4826 = vsel %vm4813, 1, 0
        %v4827 = vsel %vm4814, 1, 0
        %v4828 = vsel %vm4815, 1, 0
        %v4829 = vsel %vm4816, 1, 0
        %v4830 = vsel %vm4817, 1, 0
        %v4831 = vsel %vm4818, 1, 0
        %v4832 = vsel %vm4819, 1, 0
        %v4833 = vmul.u32 %v4820, 2
        %v4834 = vmul.u32 %v4821, 2
        %v4835 = vmul.u32 %v4822, 2
        %v4836 = vmul.u32 %v4823, 2
        %v4837 = vmul.u32 %v4824, 2
        %v4838 = vmul.u32 %v4825, 2
        %v4839 = vmul.u32 %v4826, 2
        %v4840 = vmul.u32 %v4827, 2
        %v4841 = vmul.u32 %v4828, 2
        %v4842 = vmul.u32 %v4829, 2
        %v4843 = vmul.u32 %v4830, 2
        %v4844 = vmul.u32 %v4831, 2
        %v4845 = vmul.u32 %v4832, 2
        %vm4846 = vcmp.ge.s32.totalorder %v1442, 5
        %vm4847 = vcmp.ge.s32.totalorder %v1443, 5
        %vm4848 = vcmp.ge.s32.totalorder %v1444, 5
        %vm4849 = vcmp.ge.s32.totalorder %v1445, 5
        %vm4850 = vcmp.ge.s32.totalorder %v1446, 5
        %vm4851 = vcmp.ge.s32.totalorder %v1447, 5
        %vm4852 = vcmp.ge.s32.totalorder %v1448, 5
        %vm4853 = vcmp.ge.s32.totalorder %v1449, 5
        %vm4854 = vcmp.ge.s32.totalorder %v1450, 5
        %vm4855 = vcmp.ge.s32.totalorder %v1451, 5
        %vm4856 = vcmp.ge.s32.totalorder %v1452, 5
        %vm4857 = vcmp.ge.s32.totalorder %v1453, 5
        %vm4858 = vcmp.ge.s32.totalorder %v1454, 5
        %v4859 = vsel %vm4846, 1, 0
        %v4860 = vsel %vm4847, 1, 0
        %v4861 = vsel %vm4848, 1, 0
        %v4862 = vsel %vm4849, 1, 0
        %v4863 = vsel %vm4850, 1, 0
        %v4864 = vsel %vm4851, 1, 0
        %v4865 = vsel %vm4852, 1, 0
        %v4866 = vsel %vm4853, 1, 0
        %v4867 = vsel %vm4854, 1, 0
        %v4868 = vsel %vm4855, 1, 0
        %v4869 = vsel %vm4856, 1, 0
        %v4870 = vsel %vm4857, 1, 0
        %v4871 = vsel %vm4858, 1, 0
        %v4872 = vadd.s32 %v4833, %v4859
        %v4873 = vadd.s32 %v4834, %v4860
        %v4874 = vadd.s32 %v4835, %v4861
        %v4875 = vadd.s32 %v4836, %v4862
        %v4876 = vadd.s32 %v4837, %v4863
        %v4877 = vadd.s32 %v4838, %v4864
        %v4878 = vadd.s32 %v4839, %v4865
        %v4879 = vadd.s32 %v4840, %v4866
        %v4880 = vadd.s32 %v4841, %v4867
        %v4881 = vadd.s32 %v4842, %v4868
        %v4882 = vadd.s32 %v4843, %v4869
        %v4883 = vadd.s32 %v4844, %v4870
        %v4884 = vadd.s32 %v4845, %v4871
        %vm4885 = vcmp.eq.s32.totalorder %v4872, %v4806
        %vm4886 = vcmp.eq.s32.totalorder %v4873, %v4806
        %vm4887 = vcmp.eq.s32.totalorder %v4874, %v4806
        %vm4888 = vcmp.eq.s32.totalorder %v4875, %v4806
        %vm4889 = vcmp.eq.s32.totalorder %v4876, %v4806
        %vm4890 = vcmp.eq.s32.totalorder %v4877, %v4806
        %vm4891 = vcmp.eq.s32.totalorder %v4878, %v4806
        %vm4892 = vcmp.eq.s32.totalorder %v4879, %v4806
        %vm4893 = vcmp.eq.s32.totalorder %v4880, %v4806
        %vm4894 = vcmp.eq.s32.totalorder %v4881, %v4806
        %vm4895 = vcmp.eq.s32.totalorder %v4882, %v4806
        %vm4896 = vcmp.eq.s32.totalorder %v4883, %v4806
        %vm4897 = vcmp.eq.s32.totalorder %v4884, %v4806
        %v4898 = vsel %vm4885, 1, 0
        %v4899 = vsel %vm4886, 1, 0
        %v4900 = vsel %vm4887, 1, 0
        %v4901 = vsel %vm4888, 1, 0
        %v4902 = vsel %vm4889, 1, 0
        %v4903 = vsel %vm4890, 1, 0
        %v4904 = vsel %vm4891, 1, 0
        %v4905 = vsel %vm4892, 1, 0
        %v4906 = vsel %vm4893, 1, 0
        %v4907 = vsel %vm4894, 1, 0
        %v4908 = vsel %vm4895, 1, 0
        %v4909 = vsel %vm4896, 1, 0
        %v4910 = vsel %vm4897, 1, 0
        %v4911 = vcvt.s32.f32 %v4898
        %v4912 = vcvt.s32.f32 %v4899
        %v4913 = vcvt.s32.f32 %v4900
        %v4914 = vcvt.s32.f32 %v4901
        %v4915 = vcvt.s32.f32 %v4902
        %v4916 = vcvt.s32.f32 %v4903
        %v4917 = vcvt.s32.f32 %v4904
        %v4918 = vcvt.s32.f32 %v4905
        %v4919 = vcvt.s32.f32 %v4906
        %v4920 = vcvt.s32.f32 %v4907
        %v4921 = vcvt.s32.f32 %v4908
        %v4922 = vcvt.s32.f32 %v4909
        %v4923 = vcvt.s32.f32 %v4910
        %v4924 = vrcp.pop 25.0
        %v4925 = vmul.f32 %v4911, %v4924
        %v4926 = vmul.f32 %v4912, %v4924
        %v4927 = vmul.f32 %v4913, %v4924
        %v4928 = vmul.f32 %v4914, %v4924
        %v4929 = vmul.f32 %v4915, %v4924
        %v4930 = vmul.f32 %v4916, %v4924
        %v4931 = vmul.f32 %v4917, %v4924
        %v4932 = vmul.f32 %v4918, %v4924
        %v4933 = vmul.f32 %v4919, %v4924
        %v4934 = vmul.f32 %v4920, %v4924
        %v4935 = vmul.f32 %v4921, %v4924
        %v4936 = vmul.f32 %v4922, %v4924
        %v4937 = vmul.f32 %v4923, %v4924
        %vm4938 = vcmp.eq.s32.totalorder %v794, %v4804
        %vm4939 = vcmp.eq.s32.totalorder %v795, %v4804
        %v4940 = vsel %vm4938, 1, 0
        %v4941 = vsel %vm4939, 1, 0
        %v4942 = vcvt.s32.f32 %v4940
        %v4943 = vcvt.s32.f32 %v4941
        %v4945 = vsel %vm1485, %v4765, 0
        %v4948 = vsel %vm1485, %v4766, 0
        %v4951 = vsel %vm1606, %v4937, 0
        %4953 = vmatprep.subr.mxu0 0.0
        %4954 = vmatpush1.msra.mxu0 %v4925
        %4955 = vmatprep.subr.mxu0 0.0
        %4956 = vmatpush1.msra.mxu0 %v4926
        %4957 = vmatprep.subr.mxu0 0.0
        %4958 = vmatpush1.msra.mxu0 %v4927
        %4959 = vmatprep.subr.mxu0 0.0
        %4960 = vmatpush1.msra.mxu0 %v4928
        %4961 = vmatprep.subr.mxu0 0.0
        %4962 = vmatpush1.msra.mxu0 %v4929
        %4963 = vmatprep.subr.mxu0 0.0
        %4964 = vmatpush1.msra.mxu0 %v4930
        %4965 = vmatprep.subr.mxu0 0.0
        %4966 = vmatpush1.msra.mxu0 %v4931
        %4967 = vmatprep.subr.mxu0 0.0
        %4968 = vmatpush1.msra.mxu0 %v4932
        %4969 = vmatprep.subr.mxu0 0.0
        %4970 = vmatpush1.msra.mxu0 %v4933
        %4971 = vmatprep.subr.mxu0 0.0
        %4972 = vmatpush1.msra.mxu0 %v4934
        %4973 = vmatprep.subr.mxu0 0.0
        %4974 = vmatpush1.msra.mxu0 %v4935
        %4975 = vmatprep.subr.mxu0 0.0
        %4976 = vmatpush1.msra.mxu0 %v4936
        %4977 = vmatprep.subr.mxu0 0.0
        %4978 = vmatpush1.msra.mxu0 %v4951
        %4979 = vmatprep.subr.mxu0 0.0
        %4980 = vmatpush1.msra.mxu0 0.0
        %4981 = vmatprep.subr.mxu0 0.0
        %4982 = vmatpush1.msra.mxu0 0.0
        %4983 = vmatprep.subr.mxu0 0.0
        %4984 = vmatpush1.msra.mxu0 0.0
        %4985 = vmatprep.subr.mxu0 0.0
        %4986 = vmatpush1.msra.mxu0 0.0
        %4987 = vmatprep.subr.mxu0 0.0
        %4988 = vmatpush1.msra.mxu0 0.0
        %4989 = vmatprep.subr.mxu0 0.0
        %4990 = vmatpush1.msra.mxu0 0.0
        %4991 = vmatprep.subr.mxu0 0.0
        %4992 = vmatpush1.msra.mxu0 0.0
        %4993 = vmatprep.subr.mxu0 0.0
        %4994 = vmatpush1.msra.mxu0 0.0
        %4995 = vmatprep.subr.mxu0 0.0
        %4996 = vmatpush1.msra.mxu0 0.0
        %4997 = vmatprep.subr.mxu0 0.0
        %4998 = vmatpush1.msra.mxu0 0.0
        %4999 = vmatprep.subr.mxu0 0.0
        %5000 = vmatpush1.msra.mxu0 0.0
        %5001 = vmatprep.subr.mxu0 0.0
        %5002 = vmatpush1.msra.mxu0 0.0
        %5003 = vmatprep.subr.mxu0 0.0
        %5004 = vmatpush1.msra.mxu0 0.0
        %5005 = vmatprep.subr.mxu0 0.0
        %5006 = vmatpush1.msra.mxu0 0.0
        %5007 = vmatprep.subr.mxu0 0.0
        %5008 = vmatpush1.msra.mxu0 0.0
        %5009 = vmatprep.subr.mxu0 0.0
        %5010 = vmatpush1.msra.mxu0 0.0
        %5011 = vmatprep.subr.mxu0 0.0
        %5012 = vmatpush1.msra.mxu0 0.0
        %5013 = vmatprep.subr.mxu0 0.0
        %5014 = vmatpush1.msra.mxu0 0.0
        %5015 = vmatprep.subr.mxu0 0.0
        %5016 = vmatpush1.msra.mxu0 0.0
        %5017 = vmatprep.mubr.f32.mxu0 0.0
        %5018 = vmatmul.mubr.f32.gmra.mrb[0].mxu0 %v4945
        %v5019 = vpop.f32.mrb[0].mxu0
        %v5020 = vadd.f32 0.0, %v5019
        %v5021 = vpop.f32.mrb[0].mxu0
        %5022 = vmatprep.mubr.f32.mxu0 0.0
        %5023 = vmatmul.mubr.f32.gmra.mrb[0].mxu0 %v4948
        %v5024 = vpop.f32.mrb[0].mxu0
        %v5025 = vadd.f32 0.0, %v5024
        %v5026 = vpop.f32.mrb[0].mxu0
        %5027 = vdwg.mxu0
        %v5028 = vmul.f32 %v5020, %v4942
        %v5029 = vmul.f32 %v5025, %v4943
        %vm5030 = vcmask 523264
        %v5031 = vsel %vm5030, %v5028, 0.0
        %v5032 = vsel %vm5030, %v5029, 0.0
        %v5033 = vadd.f32 %v5031, %v5032
        %v5034 = vrot.slane %v5033, 4
        %v5035 = vadd.f32 %v5033, %v5034
        %v5036 = vrot.slane %v5035, 2
        %v5037 = vadd.f32 %v5035, %v5036
        %v5038 = vrot.slane %v5037, 1
        %v5039 = vadd.f32 %v5037, %v5038
        %v5040 = vld [vmem:[%s10] sm:$0xff]
        %v5041 = vld [vmem:[%s10 + $0x8] sm:$0xff]
        %v5042 = vld [vmem:[%s10 + $0x10] sm:$0xff]
        %v5043 = vld [vmem:[%s10 + $0x18] sm:$0xff]
        %v5044 = vld [vmem:[%s10 + $0x20] sm:$0xff]
        %v5045 = vld [vmem:[%s10 + $0x28] sm:$0xff]
        %v5046 = vld [vmem:[%s10 + $0x30] sm:$0xff]
        %v5047 = vld [vmem:[%s10 + $0x38] sm:$0xff]
        %v5048 = vld [vmem:[%s11] sm:$0x1]
        %v5050 = vsel %vm5030, %v5039, 0
        %5052 = vmatprep.subr.mxu0 0.0
        %5053 = vmatpush1.msra.mxu0 %v5040
        %5054 = vmatprep.subr.mxu0 0.0
        %5055 = vmatpush1.msra.mxu0 %v5041
        %5056 = vmatprep.subr.mxu0 0.0
        %5057 = vmatpush1.msra.mxu0 %v5042
        %5058 = vmatprep.subr.mxu0 0.0
        %5059 = vmatpush1.msra.mxu0 %v5043
        %5060 = vmatprep.subr.mxu0 0.0
        %5061 = vmatpush1.msra.mxu0 %v5044
        %5062 = vmatprep.subr.mxu0 0.0
        %5063 = vmatpush1.msra.mxu0 %v5045
        %5064 = vmatprep.subr.mxu0 0.0
        %5065 = vmatpush1.msra.mxu0 %v5046
        %5066 = vmatprep.subr.mxu0 0.0
        %5067 = vmatpush1.msra.mxu0 %v5047
        %5068 = vmatprep.subr.mxu0 0.0
        %5069 = vmatpush1.msra.mxu0 0.0
        %5070 = vmatprep.subr.mxu0 0.0
        %5071 = vmatpush1.msra.mxu0 0.0
        %5072 = vmatprep.subr.mxu0 0.0
        %5073 = vmatpush1.msra.mxu0 0.0
        %5074 = vmatprep.subr.mxu0 0.0
        %5075 = vmatpush1.msra.mxu0 0.0
        %5076 = vmatprep.subr.mxu0 0.0
        %5077 = vmatpush1.msra.mxu0 0.0
        %5078 = vmatprep.subr.mxu0 0.0
        %5079 = vmatpush1.msra.mxu0 0.0
        %5080 = vmatprep.subr.mxu0 0.0
        %5081 = vmatpush1.msra.mxu0 0.0
        %5082 = vmatprep.subr.mxu0 0.0
        %5083 = vmatpush1.msra.mxu0 0.0
        %5084 = vmatprep.subr.mxu0 0.0
        %5085 = vmatpush1.msra.mxu0 0.0
        %5086 = vmatprep.subr.mxu0 0.0
        %5087 = vmatpush1.msra.mxu0 0.0
        %5088 = vmatprep.subr.mxu0 0.0
        %5089 = vmatpush1.msra.mxu0 0.0
        %5090 = vmatprep.subr.mxu0 0.0
        %5091 = vmatpush1.msra.mxu0 0.0
        %5092 = vmatprep.subr.mxu0 0.0
        %5093 = vmatpush1.msra.mxu0 0.0
        %5094 = vmatprep.subr.mxu0 0.0
        %5095 = vmatpush1.msra.mxu0 0.0
        %5096 = vmatprep.subr.mxu0 0.0
        %5097 = vmatpush1.msra.mxu0 0.0
        %5098 = vmatprep.subr.mxu0 0.0
        %5099 = vmatpush1.msra.mxu0 0.0
        %5100 = vmatprep.subr.mxu0 0.0
        %5101 = vmatpush1.msra.mxu0 0.0
        %5102 = vmatprep.subr.mxu0 0.0
        %5103 = vmatpush1.msra.mxu0 0.0
        %5104 = vmatprep.subr.mxu0 0.0
        %5105 = vmatpush1.msra.mxu0 0.0
        %5106 = vmatprep.subr.mxu0 0.0
        %5107 = vmatpush1.msra.mxu0 0.0
        %5108 = vmatprep.subr.mxu0 0.0
        %5109 = vmatpush1.msra.mxu0 0.0
        %5110 = vmatprep.subr.mxu0 0.0
        %5111 = vmatpush1.msra.mxu0 0.0
        %5112 = vmatprep.subr.mxu0 0.0
        %5113 = vmatpush1.msra.mxu0 0.0
        %5114 = vmatprep.subr.mxu0 0.0
        %5115 = vmatpush1.msra.mxu0 0.0
        %5116 = vmatprep.mubr.f32.mxu0 0.0
        %5117 = vmatmul.mubr.f32.gmra.mrb[0].mxu0 %v5050
        %v5118 = vpop.f32.mrb[0].mxu0
        %v5119 = vadd.f32 %v5048, %v5118
        %v5120 = vpop.f32.mrb[0].mxu0
        %5121 = vdwg.mxu0
        %v5122 = vmax.f32 %v5119, 0.0
        %v5123 = vld [vmem:[%s12] sm:$0xff]
        %v5124 = vld [vmem:[%s12 + $0x8] sm:$0xff]
        %v5125 = vld [vmem:[%s12 + $0x10] sm:$0xff]
        %v5126 = vld [vmem:[%s12 + $0x18] sm:$0xff]
        %v5127 = vld [vmem:[%s13] sm:$0x1]
        %v5129 = vsel %vm711, %v5122, 0
        %5131 = vmatprep.subr.mxu0 0.0
        %5132 = vmatpush1.msra.mxu0 %v5123
        %5133 = vmatprep.subr.mxu0 0.0
        %5134 = vmatpush1.msra.mxu0 %v5124
        %5135 = vmatprep.subr.mxu0 0.0
        %5136 = vmatpush1.msra.mxu0 %v5125
        %5137 = vmatprep.subr.mxu0 0.0
        %5138 = vmatpush1.msra.mxu0 %v5126
        %5139 = vmatprep.subr.mxu0 0.0
        %5140 = vmatpush1.msra.mxu0 0.0
        %5141 = vmatprep.subr.mxu0 0.0
        %5142 = vmatpush1.msra.mxu0 0.0
        %5143 = vmatprep.subr.mxu0 0.0
        %5144 = vmatpush1.msra.mxu0 0.0
        %5145 = vmatprep.subr.mxu0 0.0
        %5146 = vmatpush1.msra.mxu0 0.0
        %5147 = vmatprep.subr.mxu0 0.0
        %5148 = vmatpush1.msra.mxu0 0.0
        %5149 = vmatprep.subr.mxu0 0.0
        %5150 = vmatpush1.msra.mxu0 0.0
        %5151 = vmatprep.subr.mxu0 0.0
        %5152 = vmatpush1.msra.mxu0 0.0
        %5153 = vmatprep.subr.mxu0 0.0
        %5154 = vmatpush1.msra.mxu0 0.0
        %5155 = vmatprep.subr.mxu0 0.0
        %5156 = vmatpush1.msra.mxu0 0.0
        %5157 = vmatprep.subr.mxu0 0.0
        %5158 = vmatpush1.msra.mxu0 0.0
        %5159 = vmatprep.subr.mxu0 0.0
        %5160 = vmatpush1.msra.mxu0 0.0
        %5161 = vmatprep.subr.mxu0 0.0
        %5162 = vmatpush1.msra.mxu0 0.0
        %5163 = vmatprep.subr.mxu0 0.0
        %5164 = vmatpush1.msra.mxu0 0.0
        %5165 = vmatprep.subr.mxu0 0.0
        %5166 = vmatpush1.msra.mxu0 0.0
        %5167 = vmatprep.subr.mxu0 0.0
        %5168 = vmatpush1.msra.mxu0 0.0
        %5169 = vmatprep.subr.mxu0 0.0
        %5170 = vmatpush1.msra.mxu0 0.0
        %5171 = vmatprep.subr.mxu0 0.0
        %5172 = vmatpush1.msra.mxu0 0.0
        %5173 = vmatprep.subr.mxu0 0.0
        %5174 = vmatpush1.msra.mxu0 0.0
        %5175 = vmatprep.subr.mxu0 0.0
        %5176 = vmatpush1.msra.mxu0 0.0
        %5177 = vmatprep.subr.mxu0 0.0
        %5178 = vmatpush1.msra.mxu0 0.0
        %5179 = vmatprep.subr.mxu0 0.0
        %5180 = vmatpush1.msra.mxu0 0.0
        %5181 = vmatprep.subr.mxu0 0.0
        %5182 = vmatpush1.msra.mxu0 0.0
        %5183 = vmatprep.subr.mxu0 0.0
        %5184 = vmatpush1.msra.mxu0 0.0
        %5185 = vmatprep.subr.mxu0 0.0
        %5186 = vmatpush1.msra.mxu0 0.0
        %5187 = vmatprep.subr.mxu0 0.0
        %5188 = vmatpush1.msra.mxu0 0.0
        %5189 = vmatprep.subr.mxu0 0.0
        %5190 = vmatpush1.msra.mxu0 0.0
        %5191 = vmatprep.subr.mxu0 0.0
        %5192 = vmatpush1.msra.mxu0 0.0
        %5193 = vmatprep.subr.mxu0 0.0
        %5194 = vmatpush1.msra.mxu0 0.0
        %5195 = vmatprep.mubr.f32.mxu0 0.0
        %5196 = vmatmul.mubr.f32.gmra.mrb[0].mxu0 %v5129
        %v5197 = vpop.f32.mrb[0].mxu0
        %v5198 = vadd.f32 %v5127, %v5197
        %v5199 = vpop.f32.mrb[0].mxu0
        %5200 = vdwg.mxu0
        %v5201 = vld [vmem:[%s6] sm:$0xff]
        %v5202 = vld [vmem:[%s6 + $0x8] sm:$0xff]
        %v5203 = vld [vmem:[%s6 + $0x10] sm:$0xf]
        %v5204 = vld [vmem:[%s7] sm:$0x1]
        %v5206 = vsel %vm895, %v905, 0
        %v5209 = vsel %vm1606, %v5203, 0
        %5211 = vmatprep.subr.mxu0 0.0
        %5212 = vmatpush1.msra.mxu0 %v5201
        %5213 = vmatprep.subr.mxu0 0.0
        %5214 = vmatpush1.msra.mxu0 %v5202
        %5215 = vmatprep.subr.mxu0 0.0
        %5216 = vmatpush1.msra.mxu0 %v5209
        %5217 = vmatprep.subr.mxu0 0.0
        %5218 = vmatpush1.msra.mxu0 0.0
        %5219 = vmatprep.subr.mxu0 0.0
        %5220 = vmatpush1.msra.mxu0 0.0
        %5221 = vmatprep.subr.mxu0 0.0
        %5222 = vmatpush1.msra.mxu0 0.0
        %5223 = vmatprep.subr.mxu0 0.0
        %5224 = vmatpush1.msra.mxu0 0.0
        %5225 = vmatprep.subr.mxu0 0.0
        %5226 = vmatpush1.msra.mxu0 0.0
        %5227 = vmatprep.subr.mxu0 0.0
        %5228 = vmatpush1.msra.mxu0 0.0
        %5229 = vmatprep.subr.mxu0 0.0
        %5230 = vmatpush1.msra.mxu0 0.0
        %5231 = vmatprep.subr.mxu0 0.0
        %5232 = vmatpush1.msra.mxu0 0.0
        %5233 = vmatprep.subr.mxu0 0.0
        %5234 = vmatpush1.msra.mxu0 0.0
        %5235 = vmatprep.subr.mxu0 0.0
        %5236 = vmatpush1.msra.mxu0 0.0
        %5237 = vmatprep.subr.mxu0 0.0
        %5238 = vmatpush1.msra.mxu0 0.0
        %5239 = vmatprep.subr.mxu0 0.0
        %5240 = vmatpush1.msra.mxu0 0.0
        %5241 = vmatprep.subr.mxu0 0.0
        %5242 = vmatpush1.msra.mxu0 0.0
        %5243 = vmatprep.subr.mxu0 0.0
        %5244 = vmatpush1.msra.mxu0 0.0
        %5245 = vmatprep.subr.mxu0 0.0
        %5246 = vmatpush1.msra.mxu0 0.0
        %5247 = vmatprep.subr.mxu0 0.0
        %5248 = vmatpush1.msra.mxu0 0.0
        %5249 = vmatprep.subr.mxu0 0.0
        %5250 = vmatpush1.msra.mxu0 0.0
        %5251 = vmatprep.subr.mxu0 0.0
        %5252 = vmatpush1.msra.mxu0 0.0
        %5253 = vmatprep.subr.mxu0 0.0
        %5254 = vmatpush1.msra.mxu0 0.0
        %5255 = vmatprep.subr.mxu0 0.0
        %5256 = vmatpush1.msra.mxu0 0.0
        %5257 = vmatprep.subr.mxu0 0.0
        %5258 = vmatpush1.msra.mxu0 0.0
        %5259 = vmatprep.subr.mxu0 0.0
        %5260 = vmatpush1.msra.mxu0 0.0
        %5261 = vmatprep.subr.mxu0 0.0
        %5262 = vmatpush1.msra.mxu0 0.0
        %5263 = vmatprep.subr.mxu0 0.0
        %5264 = vmatpush1.msra.mxu0 0.0
        %5265 = vmatprep.subr.mxu0 0.0
        %5266 = vmatpush1.msra.mxu0 0.0
        %5267 = vmatprep.subr.mxu0 0.0
        %5268 = vmatpush1.msra.mxu0 0.0
        %5269 = vmatprep.subr.mxu0 0.0
        %5270 = vmatpush1.msra.mxu0 0.0
        %5271 = vmatprep.subr.mxu0 0.0
        %5272 = vmatpush1.msra.mxu0 0.0
        %5273 = vmatprep.subr.mxu0 0.0
        %5274 = vmatpush1.msra.mxu0 0.0
        %5275 = vmatprep.mubr.f32.mxu0 0.0
        %5276 = vmatmul.mubr.f32.gmra.mrb[0].mxu0 %v5206
        %v5277 = vpop.f32.mrb[0].mxu0
        %v5278 = vadd.f32 %v5204, %v5277
        %v5279 = vpop.f32.mrb[0].mxu0
        %5280 = vdwg.mxu0
        %v5281 = vmax.f32 %v5278, 0.0
        %v5282 = vld [vmem:[%s8] sm:$0xff]
        %v5283 = vld [vmem:[%s8 + $0x8] sm:$0xff]
        %v5284 = vld [vmem:[%s8 + $0x10] sm:$0xff]
        %v5285 = vld [vmem:[%s8 + $0x18] sm:$0xff]
        %v5286 = vld [vmem:[%s9] sm:$0x1]
        %v5288 = vsel %vm711, %v5281, 0
        %5290 = vmatprep.subr.mxu0 0.0
        %5291 = vmatpush1.msra.mxu0 %v5282
        %5292 = vmatprep.subr.mxu0 0.0
        %5293 = vmatpush1.msra.mxu0 %v5283
        %5294 = vmatprep.subr.mxu0 0.0
        %5295 = vmatpush1.msra.mxu0 %v5284
        %5296 = vmatprep.subr.mxu0 0.0
        %5297 = vmatpush1.msra.mxu0 %v5285
        %5298 = vmatprep.subr.mxu0 0.0
        %5299 = vmatpush1.msra.mxu0 0.0
        %5300 = vmatprep.subr.mxu0 0.0
        %5301 = vmatpush1.msra.mxu0 0.0
        %5302 = vmatprep.subr.mxu0 0.0
        %5303 = vmatpush1.msra.mxu0 0.0
        %5304 = vmatprep.subr.mxu0 0.0
        %5305 = vmatpush1.msra.mxu0 0.0
        %5306 = vmatprep.subr.mxu0 0.0
        %5307 = vmatpush1.msra.mxu0 0.0
        %5308 = vmatprep.subr.mxu0 0.0
        %5309 = vmatpush1.msra.mxu0 0.0
        %5310 = vmatprep.subr.mxu0 0.0
        %5311 = vmatpush1.msra.mxu0 0.0
        %5312 = vmatprep.subr.mxu0 0.0
        %5313 = vmatpush1.msra.mxu0 0.0
        %5314 = vmatprep.subr.mxu0 0.0
        %5315 = vmatpush1.msra.mxu0 0.0
        %5316 = vmatprep.subr.mxu0 0.0
        %5317 = vmatpush1.msra.mxu0 0.0
        %5318 = vmatprep.subr.mxu0 0.0
        %5319 = vmatpush1.msra.mxu0 0.0
        %5320 = vmatprep.subr.mxu0 0.0
        %5321 = vmatpush1.msra.mxu0 0.0
        %5322 = vmatprep.subr.mxu0 0.0
        %5323 = vmatpush1.msra.mxu0 0.0
        %5324 = vmatprep.subr.mxu0 0.0
        %5325 = vmatpush1.msra.mxu0 0.0
        %5326 = vmatprep.subr.mxu0 0.0
        %5327 = vmatpush1.msra.mxu0 0.0
        %5328 = vmatprep.subr.mxu0 0.0
        %5329 = vmatpush1.msra.mxu0 0.0
        %5330 = vmatprep.subr.mxu0 0.0
        %5331 = vmatpush1.msra.mxu0 0.0
        %5332 = vmatprep.subr.mxu0 0.0
        %5333 = vmatpush1.msra.mxu0 0.0
        %5334 = vmatprep.subr.mxu0 0.0
        %5335 = vmatpush1.msra.mxu0 0.0
        %5336 = vmatprep.subr.mxu0 0.0
        %5337 = vmatpush1.msra.mxu0 0.0
        %5338 = vmatprep.subr.mxu0 0.0
        %5339 = vmatpush1.msra.mxu0 0.0
        %5340 = vmatprep.subr.mxu0 0.0
        %5341 = vmatpush1.msra.mxu0 0.0
        %5342 = vmatprep.subr.mxu0 0.0
        %5343 = vmatpush1.msra.mxu0 0.0
        %5344 = vmatprep.subr.mxu0 0.0
        %5345 = vmatpush1.msra.mxu0 0.0
        %5346 = vmatprep.subr.mxu0 0.0
        %5347 = vmatpush1.msra.mxu0 0.0
        %5348 = vmatprep.subr.mxu0 0.0
        %5349 = vmatpush1.msra.mxu0 0.0
        %5350 = vmatprep.subr.mxu0 0.0
        %5351 = vmatpush1.msra.mxu0 0.0
        %5352 = vmatprep.subr.mxu0 0.0
        %5353 = vmatpush1.msra.mxu0 0.0
        %5354 = vmatprep.mubr.f32.mxu0 0.0
        %5355 = vmatmul.mubr.f32.gmra.mrb[0].mxu0 %v5288
        %v5356 = vpop.f32.mrb[0].mxu0
        %v5357 = vadd.f32 %v5286, %v5356
        %v5358 = vpop.f32.mrb[0].mxu0
        %5359 = vdwg.mxu0
        %v5360 = vld [vmem:[%s14] sm:$0xff]
        %v5361 = vld [vmem:[%s14 + $0x8] sm:$0xff]
        %v5362 = vld [vmem:[%s14 + $0x10] sm:$0xff]
        %v5363 = vld [vmem:[%s14 + $0x18] sm:$0xff]
        %v5364 = vld [vmem:[%s15] sm:$0xff]
        %v5365 = vld [vmem:[%s15 + $0x8] sm:$0xff]
        %v5366 = vld [vmem:[%s15 + $0x10] sm:$0xff]
        %v5367 = vld [vmem:[%s15 + $0x18] sm:$0xff]
        %v5369 = vsel %vm711, %v5198, 0
        %5371 = vmatprep.subr.mxu0 0.0
        %5372 = vmatpush1.msra.mxu0 %v5364
        %5373 = vmatprep.subr.mxu0 0.0
        %5374 = vmatpush1.msra.mxu0 %v5365
        %5375 = vmatprep.subr.mxu0 0.0
        %5376 = vmatpush1.msra.mxu0 %v5366
        %5377 = vmatprep.subr.mxu0 0.0
        %5378 = vmatpush1.msra.mxu0 %v5367
        %5379 = vmatprep.subr.mxu0 0.0
        %5380 = vmatpush1.msra.mxu0 0.0
        %5381 = vmatprep.subr.mxu0 0.0
        %5382 = vmatpush1.msra.mxu0 0.0
        %5383 = vmatprep.subr.mxu0 0.0
        %5384 = vmatpush1.msra.mxu0 0.0
        %5385 = vmatprep.subr.mxu0 0.0
        %5386 = vmatpush1.msra.mxu0 0.0
        %5387 = vmatprep.subr.mxu0 0.0
        %5388 = vmatpush1.msra.mxu0 0.0
        %5389 = vmatprep.subr.mxu0 0.0
        %5390 = vmatpush1.msra.mxu0 0.0
        %5391 = vmatprep.subr.mxu0 0.0
        %5392 = vmatpush1.msra.mxu0 0.0
        %5393 = vmatprep.subr.mxu0 0.0
        %5394 = vmatpush1.msra.mxu0 0.0
        %5395 = vmatprep.subr.mxu0 0.0
        %5396 = vmatpush1.msra.mxu0 0.0
        %5397 = vmatprep.subr.mxu0 0.0
        %5398 = vmatpush1.msra.mxu0 0.0
        %5399 = vmatprep.subr.mxu0 0.0
        %5400 = vmatpush1.msra.mxu0 0.0
        %5401 = vmatprep.subr.mxu0 0.0
        %5402 = vmatpush1.msra.mxu0 0.0
        %5403 = vmatprep.subr.mxu0 0.0
        %5404 = vmatpush1.msra.mxu0 0.0
        %5405 = vmatprep.subr.mxu0 0.0
        %5406 = vmatpush1.msra.mxu0 0.0
        %5407 = vmatprep.subr.mxu0 0.0
        %5408 = vmatpush1.msra.mxu0 0.0
        %5409 = vmatprep.subr.mxu0 0.0
        %5410 = vmatpush1.msra.mxu0 0.0
        %5411 = vmatprep.subr.mxu0 0.0
        %5412 = vmatpush1.msra.mxu0 0.0
        %5413 = vmatprep.subr.mxu0 0.0
        %5414 = vmatpush1.msra.mxu0 0.0
        %5415 = vmatprep.subr.mxu0 0.0
        %5416 = vmatpush1.msra.mxu0 0.0
        %5417 = vmatprep.subr.mxu0 0.0
        %5418 = vmatpush1.msra.mxu0 0.0
        %5419 = vmatprep.subr.mxu0 0.0
        %5420 = vmatpush1.msra.mxu0 0.0
        %5421 = vmatprep.subr.mxu0 0.0
        %5422 = vmatpush1.msra.mxu0 0.0
        %5423 = vmatprep.subr.mxu0 0.0
        %5424 = vmatpush1.msra.mxu0 0.0
        %5425 = vmatprep.subr.mxu0 0.0
        %5426 = vmatpush1.msra.mxu0 0.0
        %5427 = vmatprep.subr.mxu0 0.0
        %5428 = vmatpush1.msra.mxu0 0.0
        %5429 = vmatprep.subr.mxu0 0.0
        %5430 = vmatpush1.msra.mxu0 0.0
        %5431 = vmatprep.subr.mxu0 0.0
        %5432 = vmatpush1.msra.mxu0 0.0
        %5433 = vmatprep.subr.mxu0 0.0
        %5434 = vmatpush1.msra.mxu0 0.0
        %5435 = vmatprep.mubr.f32.mxu0 0.0
        %5436 = vmatmul.mubr.f32.gmra.mrb[0].mxu0 %v5369
        %v5437 = vpop.f32.mrb[0].mxu0
        %v5438 = vadd.f32 0.0, %v5437
        %v5439 = vpop.f32.mrb[0].mxu0
        %5440 = vdwg.mxu0
        %v5442 = vsel %vm711, %v5357, 0
        %5444 = vmatprep.subr.mxu0 0.0
        %5445 = vmatpush1.msra.mxu0 %v5360
        %5446 = vmatprep.subr.mxu0 0.0
        %5447 = vmatpush1.msra.mxu0 %v5361
        %5448 = vmatprep.subr.mxu0 0.0
        %5449 = vmatpush1.msra.mxu0 %v5362
        %5450 = vmatprep.subr.mxu0 0.0
        %5451 = vmatpush1.msra.mxu0 %v5363
        %5452 = vmatprep.subr.mxu0 0.0
        %5453 = vmatpush1.msra.mxu0 0.0
        %5454 = vmatprep.subr.mxu0 0.0
        %5455 = vmatpush1.msra.mxu0 0.0
        %5456 = vmatprep.subr.mxu0 0.0
        %5457 = vmatpush1.msra.mxu0 0.0
        %5458 = vmatprep.subr.mxu0 0.0
        %5459 = vmatpush1.msra.mxu0 0.0
        %5460 = vmatprep.subr.mxu0 0.0
        %5461 = vmatpush1.msra.mxu0 0.0
        %5462 = vmatprep.subr.mxu0 0.0
        %5463 = vmatpush1.msra.mxu0 0.0
        %5464 = vmatprep.subr.mxu0 0.0
        %5465 = vmatpush1.msra.mxu0 0.0
        %5466 = vmatprep.subr.mxu0 0.0
        %5467 = vmatpush1.msra.mxu0 0.0
        %5468 = vmatprep.subr.mxu0 0.0
        %5469 = vmatpush1.msra.mxu0 0.0
        %5470 = vmatprep.subr.mxu0 0.0
        %5471 = vmatpush1.msra.mxu0 0.0
        %5472 = vmatprep.subr.mxu0 0.0
        %5473 = vmatpush1.msra.mxu0 0.0
        %5474 = vmatprep.subr.mxu0 0.0
        %5475 = vmatpush1.msra.mxu0 0.0
        %5476 = vmatprep.subr.mxu0 0.0
        %5477 = vmatpush1.msra.mxu0 0.0
        %5478 = vmatprep.subr.mxu0 0.0
        %5479 = vmatpush1.msra.mxu0 0.0
        %5480 = vmatprep.subr.mxu0 0.0
        %5481 = vmatpush1.msra.mxu0 0.0
        %5482 = vmatprep.subr.mxu0 0.0
        %5483 = vmatpush1.msra.mxu0 0.0
        %5484 = vmatprep.subr.mxu0 0.0
        %5485 = vmatpush1.msra.mxu0 0.0
        %5486 = vmatprep.subr.mxu0 0.0
        %5487 = vmatpush1.msra.mxu0 0.0
        %5488 = vmatprep.subr.mxu0 0.0
        %5489 = vmatpush1.msra.mxu0 0.0
        %5490 = vmatprep.subr.mxu0 0.0
        %5491 = vmatpush1.msra.mxu0 0.0
        %5492 = vmatprep.subr.mxu0 0.0
        %5493 = vmatpush1.msra.mxu0 0.0
        %5494 = vmatprep.subr.mxu0 0.0
        %5495 = vmatpush1.msra.mxu0 0.0
        %5496 = vmatprep.subr.mxu0 0.0
        %5497 = vmatpush1.msra.mxu0 0.0
        %5498 = vmatprep.subr.mxu0 0.0
        %5499 = vmatpush1.msra.mxu0 0.0
        %5500 = vmatprep.subr.mxu0 0.0
        %5501 = vmatpush1.msra.mxu0 0.0
        %5502 = vmatprep.subr.mxu0 0.0
        %5503 = vmatpush1.msra.mxu0 0.0
        %5504 = vmatprep.subr.mxu0 0.0
        %5505 = vmatpush1.msra.mxu0 0.0
        %5506 = vmatprep.subr.mxu0 0.0
        %5507 = vmatpush1.msra.mxu0 0.0
        %5508 = vmatprep.mubr.f32.mxu0 0.0
        %5509 = vmatmul.mubr.f32.gmra.mrb[0].mxu0 %v5442
        %v5510 = vpop.f32.mrb[0].mxu0
        %v5511 = vadd.f32 %v5438, %v5510
        %v5512 = vpop.f32.mrb[0].mxu0
        %5513 = vdwg.mxu0
        %v5514 = vld [vmem:[%s16] sm:$0x1]
        %v5515 = vadd.f32 %v5511, %v5514
        %vm5516 = vcmask 253952
        %v5517 = vsel %vm5516, %v5515, 0.0
        %5518 = vadd.xlane.f32.xlu0 %v5517
        %v5519 = vpop.xlane.xlu0 %5518
        %v5520 = vrcp.pop 32.0
        %v5521 = vmul.f32 %v5519, %v5520
        %v5522 = vsub.f32 %v5515, %v5521
        %v5523 = vmul.f32 %v5522, %v5522
        %v5524 = vsel %vm5516, %v5523, 0.0
        %5525 = vadd.xlane.f32.xlu0 %v5524
        %v5526 = vpop.xlane.xlu0 %5525
        %v5527 = vmul.f32 %v5526, %v5520
        %v5528 = vadd.f32 %v5527, 1e-05
        %v5529 = vrsqrt.pop %v5528
        %v5530 = vmul.f32 %v5522, %v5529
        %v5531 = vld [vmem:[%s17] sm:$0x1]
        %v5532 = vmul.f32 %v5530, %v5531
        %v5533 = vld [vmem:[%s18] sm:$0x1]
        %v5534 = vadd.f32 %v5532, %v5533
        %5535 = vst.msk [vmem:[%s679] sm:$0x1] %vm5516, %v5534
        %s5536 = sand.u32 %s452, 1
        %s5537 = scalar_lea.sflag [#allocation3], %s5536
        %s5538 = sand.u32 %s452, 1
        %s5539 = scalar_lea.vmem [#allocation2], %s5538
        %s5540 = sand.u32 %s40, 1
        %s5541 = scalar_lea.sflag [#allocation5], %s5540
        %s5542 = sand.u32 %s478, 1
        %s5543 = smul.addr %s5542, 4
        %s5544 = scalar_lea.vmem [#allocation4], %s5543
        %s5545 = sand.u32 %s40, 1
        %s5546 = scalar_lea.sflag [#allocation5], %s5545
        %s5547 = sand.u32 %s504, 1
        %s5548 = smul.addr %s5547, 2
        %s5549 = scalar_lea.vmem [#allocation6], %s5548
        %p5550 = scmp.lt.s32.totalorder %s40, 1
        %s5551 = scalar_select %p5550, %s40, 1
        %s5552 = smul.addr %s5551, 2
        %s5553 = scalar_lea.vmem %s22, %s5552
        // Predicated region
        $region97: #{topological_feature_extraction.1} parent=95 // pred_check
          %p5554 = pneg %p462
        $region98: #{topological_feature_extraction.1} parent=95 // pred_check_branch
          %5556 = sbr.rel (%p5554) target = $region100
        $region99: #{topological_feature_extraction.1} parent=95 // pred_region
          %s5558 = ssub.s32 16, 16
          %5559 = vsyncadd %s5537, %s5558
          %s5560 = smul.addr %s40, 16
          %s5561 = scalar_lea.hbm %s19, %s5560
          %s5563 = sshll.u32 %s5539, 4
          %s5564 = int_to_ptr.vmem [resolvable:$true] %s5563
          %5566 = dma.vmem_to_hbm [thread:$0]  %s5564, 16, %s5561, %s5537
        $region100: #{topological_feature_extraction.1} parent=95 // pred_fallthru
          _
        // Predicated region
        $region101: #{topological_feature_extraction.1} parent=95 // pred_check
          %p5567 = pneg %p488
        $region102: #{topological_feature_extraction.1} parent=95 // pred_check_branch
          %5569 = sbr.rel (%p5567) target = $region104
        $region103: #{topological_feature_extraction.1} parent=95 // pred_region
          %s5571 = ssub.s32 64, 64
          %5572 = vsyncadd %s5541, %s5571
          %s5573 = smul.addr %s40, 2
          %s5574 = smul.addr %s5573, 32
          %s5575 = scalar_lea.hbm %s20, %s5574
          %s5576 = sshll.u32 %s5544, 4
          %s5577 = int_to_ptr.vmem [resolvable:$true] %s5576
          %5582 = dma.vmem_to_hbm [thread:$0]  %s5577, 64, %s5575, %s5541, 32, 32, 2
        $region104: #{topological_feature_extraction.1} parent=95 // pred_fallthru
          _
        // Predicated region
        $region105: #{topological_feature_extraction.1} parent=95 // pred_check
          %p5583 = pneg %p514
        $region106: #{topological_feature_extraction.1} parent=95 // pred_check_branch
          %5585 = sbr.rel (%p5583) target = $region108
        $region107: #{topological_feature_extraction.1} parent=95 // pred_region
          %s5587 = ssub.s32 32, 32
          %5588 = vsyncadd %s5546, %s5587
          %s5589 = smul.addr %s40, 32
          %s5590 = scalar_lea.hbm %s21, %s5589
          %s5592 = sshll.u32 %s5549, 4
          %s5593 = int_to_ptr.vmem [resolvable:$true] %s5592
          %5595 = dma.vmem_to_hbm [thread:$0]  %s5593, 32, %s5590, %s5546
        $region108: #{topological_feature_extraction.1} parent=95 // pred_fallthru
          _
        // Predicated region
        $region109: #{topological_feature_extraction.1} parent=95 // pred_check
          %p5596 = pneg %p540
        $region110: #{topological_feature_extraction.1} parent=95 // pred_check_branch
          %5598 = sbr.rel (%p5596) target = $region112
        $region111: #{topological_feature_extraction.1} parent=95 // pred_region
          _
        $region112: #{topological_feature_extraction.1} parent=95 // pred_fallthru
          _
      $region96: #{topological_feature_extraction.1} parent=5 // pred_fallthru
        _
      %p5599 = scmp.le.s32.totalorder 2, %s35
      // Predicated region
      $region113: #{topological_feature_extraction.1} parent=5 // pred_check
        %p5600 = pneg %p5599
      $region114: #{topological_feature_extraction.1} parent=5 // pred_check_branch
        %5602 = sbr.rel (%p5600) target = $region116
      $region115: #{topological_feature_extraction.1} parent=5 // pred_region
        %s5603 = ssub.s32 %s35, 2
        // Predicated region
        $region117: #{topological_feature_extraction.1} parent=115 // pred_check
          %p5604 = pneg %p468
        $region118: #{topological_feature_extraction.1} parent=115 // pred_check_branch
          %5606 = sbr.rel (%p5604) target = $region120
        $region119: #{topological_feature_extraction.1} parent=115 // pred_region
          %s5607 = sand.u32 %s453, 1
          %s5608 = scalar_lea.sflag [#allocation3], %s5607
          %s5609 = sand.u32 %s453, 1
          %s5610 = scalar_lea.vmem [#allocation2], %s5609
          %5611 = dma.done %s5608, 16
        $region120: #{topological_feature_extraction.1} parent=115 // pred_fallthru
          _
        // Predicated region
        $region121: #{topological_feature_extraction.1} parent=115 // pred_check
          %p5612 = pneg %p494
        $region122: #{topological_feature_extraction.1} parent=115 // pred_check_branch
          %5614 = sbr.rel (%p5612) target = $region124
        $region123: #{topological_feature_extraction.1} parent=115 // pred_region
          %s5615 = sand.u32 %s41, 1
          %s5616 = scalar_lea.sflag [#allocation5], %s5615
          %s5617 = sand.u32 %s479, 1
          %s5618 = smul.addr %s5617, 4
          %s5619 = scalar_lea.vmem [#allocation4], %s5618
          %5620 = dma.done %s5616, 64
        $region124: #{topological_feature_extraction.1} parent=115 // pred_fallthru
          _
        // Predicated region
        $region125: #{topological_feature_extraction.1} parent=115 // pred_check
          %p5621 = pneg %p520
        $region126: #{topological_feature_extraction.1} parent=115 // pred_check_branch
          %5623 = sbr.rel (%p5621) target = $region128
        $region127: #{topological_feature_extraction.1} parent=115 // pred_region
          %s5624 = sand.u32 %s41, 1
          %s5625 = scalar_lea.sflag [#allocation5], %s5624
          %s5626 = sand.u32 %s505, 1
          %s5627 = smul.addr %s5626, 2
          %s5628 = scalar_lea.vmem [#allocation6], %s5627
          %5629 = dma.done %s5625, 32
        $region128: #{topological_feature_extraction.1} parent=115 // pred_fallthru
          _
        // Predicated region
        $region129: #{topological_feature_extraction.1} parent=115 // pred_check
          %p5630 = pneg %p546
        $region130: #{topological_feature_extraction.1} parent=115 // pred_check_branch
          %5632 = sbr.rel (%p5630) target = $region132
        $region131: #{topological_feature_extraction.1} parent=115 // pred_region
          %p5633 = scmp.lt.s32.totalorder %s41, 1
          %s5634 = scalar_select %p5633, %s41, 1
          %s5635 = smul.addr %s5634, 2
          %s5636 = scalar_lea.vmem %s22, %s5635
        $region132: #{topological_feature_extraction.1} parent=115 // pred_fallthru
          _
      $region116: #{topological_feature_extraction.1} parent=5 // pred_fallthru
        _
    $region6: #{topological_feature_extraction.1} parent=1 // loop_footer
      %s39 = sadd.s32 1, %s35
    $region7: #{topological_feature_extraction.1} parent=1 // loop_footer_branch
      %34 = sbr.rel target = $region3
    $region8: #{topological_feature_extraction.1} parent=1 // loop_exit
      _
    %5637 = vsyncpa [#allocation3], 1
    %s5638 = scalar_lea.sflag [#allocation3], 1
    %5639 = vsyncpa %s5638, 1
    %5640 = vsyncpa [#allocation5], 1
    %s5641 = scalar_lea.sflag [#allocation5], 1
    %5642 = vsyncpa %s5641, 1

</llo_original>
